<compile_context>
chip_gen: v7x
topology: tpu7x:2x2x1
jax: 0.10.0
libtpu: 0.0.40
codegen_flags: <defaults>
</compile_context>

<pallas_src>
import math

import jax
import jax.numpy as jnp
from jax.experimental import pallas as pl
from jax.experimental.pallas import tpu as pltpu

PRIMITIVES = [
    "none",
    "max_pool_3x3",
    "avg_pool_3x3",
    "skip_connect",
    "sep_conv_3x3",
    "sep_conv_5x5",
    "dil_conv_3x3",
    "dil_conv_5x5",
]

BN_EPS = 1e-5
P_POOL = 2  # halo of the small shared scratch (pools need 1, sep5 stage-2 needs 2)
P_CONV = 4  # halo of the ReLU(x) scratch (dil_conv_5x5: dil=2, k=5 -> 'same' pad 4)


# ----------------------------------------------------------------------------
# Pallas kernel (built as a closure over the static shapes)
# ----------------------------------------------------------------------------
def _build_mixedop_kernel(N, H, W, C):
    NH, WC = N * H, W * C
    f32 = jnp.float32

    def kernel(x_ref, w_ref, invcnt_ref, mavg_ref,
               s3dw1_ref, s3pw1_ref, s3dw2_ref, s3pw2_ref,
               s5dw1_ref, s5pw1_ref, s5dw2_ref, s5pw2_ref,
               d3dw_ref, d3pw_ref, d5dw_ref, d5pw_ref,
               o_ref, padA_ref, padB_ref):

        x3 = x_ref[...]                      # (N, H, W*C), lane-dense
        mavg = mavg_ref[...]                 # (W*C, W*C) same-channel fold (x 1/(N*H*W))

        # ------------------------- helpers (static shapes) -------------------------
        def write_interior(ref, P, v3):
            ref[:, P:P + H, P * C:P * C + WC] = v3

        def write_halo(ref, P, ph, fill):
            # Border-only fill at the depth actually consumed; the interior and any
            # deeper halo are NOT touched (replaces the old full-scratch jnp.full).
            lo, hi = (P - ph) * C, (P + ph) * C + WC
            ref[:, P - ph:P, lo:hi] = jnp.full((N, ph, hi - lo), fill, f32)
            ref[:, P + H:P + H + ph, lo:hi] = jnp.full((N, ph, hi - lo), fill, f32)
            ref[:, P:P + H, lo:P * C] = jnp.full((N, H, ph * C), fill, f32)
            ref[:, P:P + H, P * C + WC:hi] = jnp.full((N, H, ph * C), fill, f32)

        def fold_channels(v2):
            # Per-channel mean over N*H*W, broadcast back to every lane of that
            # channel.  The axis-0 reduction is commuted BEFORE the mavg matmul
            # (sum_axis0(v @ mavg) == sum_axis0(v) @ mavg), so the MXU only sees an
            # (8, WC) x (WC, WC) matvec instead of an (N*H, WC) x (WC, WC) matmul.
            if NH % 8 == 0:
                p = jnp.sum(v2.reshape(NH // 8, 8, WC), axis=0)      # (8, WC)
            else:
                p = jnp.sum(v2, axis=0, keepdims=True)               # (1, WC)
            return jnp.sum(jnp.dot(p, mavg, preferred_element_type=f32),
                           axis=0, keepdims=True)                    # (1, WC)

        def bn(v2):
            # training-mode BatchNorm2d(affine=False), two-pass centered form.
            mean = fold_channels(v2)
            cen = v2 - mean
            var = fold_channels(cen * cen)
            return cen * jax.lax.rsqrt(var + BN_EPS)

        def pointwise(v3, bd_ref):
            # 1x1 conv as ONE block-diagonal matmul on the lane-dense (N*H, W*C)
            # view.  Kept only because WC <= 128 here (one MXU lane tile) — review
            # option (c).
            # TODO(synk): for WC > 128 switch to a (., C)x(C, C) dense matmul on a
            #             C-padded relayout, or VPU scaled-adds for tiny C.
            return jnp.dot(v3.reshape(NH, WC), bd_ref[...],
                           preferred_element_type=f32)

        def depthwise(src_ref, P, dw_ref, ksz, dil):
            # One lane-wide slab load per kernel row; the dx taps are static lane
            # slices of the already-loaded value (vld traffic ~k x lower than
            # per-tap ref reads; the lane shifts land on the XLU slot).
            p = dil * (ksz - 1) // 2
            taps_w = dw_ref[...]                              # (k*k, W*C), hoisted
            acc = None
            for i in range(ksz):
                dy = i * dil - p
                r0 = P + dy
                slab = src_ref[:, r0:r0 + H, (P - p) * C:(P + p) * C + WC]
                for j in range(ksz):
                    dx = j * dil - p
                    l0 = (p + dx) * C
                    tw = taps_w[i * ksz + j:i * ksz + j + 1, :]      # (1, W*C)
                    t = slab[:, :, l0:l0 + WC] * tw[None, :, :]
                    acc = t if acc is None else acc + t
            return acc                                        # (N, H, W*C)

        # ------------- max_pool_3x3 + BN (separable, -inf depth-1 halo) -------------
        write_interior(padA_ref, P_POOL, x3)          # interior shared with avg-pool
        write_halo(padA_ref, P_POOL, 1, -jnp.inf)
        hm = None
        for dx in (-1, 0, 1):
            l0 = (P_POOL + dx) * C
            s = padA_ref[:, P_POOL - 1:P_POOL + H + 1, l0:l0 + WC]   # (N, H+2, W*C)
            hm = s if hm is None else jnp.maximum(hm, s)
        mp = jnp.maximum(jnp.maximum(hm[:, 0:H, :], hm[:, 1:H + 1, :]),
                         hm[:, 2:H + 2, :])
        # PRIMITIVES[0] == 'none' contributes weights[0] * 0, so it is skipped.
        acc = w_ref[1] * bn(mp.reshape(NH, WC))

        # ------ avg_pool_3x3 + BN (separable, count_include_pad=False divisor) ------
        # Depth-2 zero halo: overwrites the -inf strips AND pre-zeroes the halo for
        # both sep_conv stage-2 fills below (only their interiors get rewritten).
        write_halo(padA_ref, P_POOL, 2, 0.0)
        hs = None
        for dx in (-1, 0, 1):
            l0 = (P_POOL + dx) * C
            s = padA_ref[:, P_POOL - 1:P_POOL + H + 1, l0:l0 + WC]
            hs = s if hs is None else hs + s
        sm = (hs[:, 0:H, :] + hs[:, 1:H + 1, :] + hs[:, 2:H + 2, :]) \
            * invcnt_ref[...][None, :, :]
        acc = acc + w_ref[2] * bn(sm.reshape(NH, WC))

        # ---------------- skip_connect (stride 1 -> identity) ----------------
        acc = acc + w_ref[3] * x3.reshape(NH, WC)

        # ---- shared ReLU(x), padded once with depth-4 zeros, feeds 4 conv branches ----
        write_interior(padB_ref, P_CONV, jnp.maximum(x3, 0.0))
        write_halo(padB_ref, P_CONV, P_CONV, 0.0)

        # dil_conv_3x3 / dil_conv_5x5
        y = bn(pointwise(depthwise(padB_ref, P_CONV, d3dw_ref, 3, 2), d3pw_ref))
        acc = acc + w_ref[6] * y
        y = bn(pointwise(depthwise(padB_ref, P_CONV, d5dw_ref, 5, 2), d5pw_ref))
        acc = acc + w_ref[7] * y

        # sep_conv_3x3: stage 1 + stage 2 fully, before sep_conv_5x5 starts, so only
        # one stage-1 intermediate is live at a time.
        s3a = bn(pointwise(depthwise(padB_ref, P_CONV, s3dw1_ref, 3, 1), s3pw1_ref))
        write_interior(padA_ref, P_POOL, jnp.maximum(s3a, 0.0).reshape(N, H, WC))
        y = bn(pointwise(depthwise(padA_ref, P_POOL, s3dw2_ref, 3, 1), s3pw2_ref))
        acc = acc + w_ref[4] * y

        # sep_conv_5x5
        s5a = bn(pointwise(depthwise(padB_ref, P_CONV, s5dw1_ref, 5, 1), s5pw1_ref))
        write_interior(padA_ref, P_POOL, jnp.maximum(s5a, 0.0).reshape(N, H, WC))
        y = bn(pointwise(depthwise(padA_ref, P_POOL, s5dw2_ref, 5, 1), s5pw2_ref))
        acc = acc + w_ref[5] * y

        # Output kept in the (N*H, W*C) compute layout.
        # TODO(synk): at production widths make the output lane width a multiple of
        #             128 (pad C or fold H into the lane dim) to avoid masked stores.
        o_ref[...] = acc

    return kernel


# ----------------------------------------------------------------------------
# Host-side wrapper (layout transform + parameter packing)
# ----------------------------------------------------------------------------
def mixed_op_pallas(x_nchw, weights, params, *, check_weights=False):
    if check_weights:
        # Mirrors the PyTorch host-side NaN guard. jax.device_get forces a host
        # sync, so this is opt-in and off the hot path by default.
        w_host = jax.device_get(weights)
        for idx in range(w_host.shape[0]):
            wi = float(w_host[idx])
            if wi != 0.0 and math.isnan(wi):
                raise OverflowError(f"weight: {weights}")

    N, C, H, W = x_nchw.shape
    NH, WC = N * H, W * C
    f32 = jnp.float32

    # Block-diagonal 1x1 path is only valid/efficient while WC fits one MXU lane tile.
    assert WC <= 128, "TODO(synk): restructure pointwise() for WC > 128 (see kernel)"

    # NCHW -> (N, H, W*C): channels ride the lane dim together with W.
    x_l = jnp.transpose(x_nchw, (0, 2, 3, 1)).astype(f32).reshape(N, H, WC)

    def dw_tiled(wd):    # torch (C,1,k,k) -> (k*k, W*C): tap weights tiled over W
        Cc, _, k, _ = wd.shape
        flat = jnp.transpose(wd.reshape(Cc, k * k), (1, 0)).astype(f32)   # (k*k, C)
        return jnp.tile(flat, (1, W))

    def pw_blockdiag(wp):  # torch (C_out, C_in) -> block-diagonal (W*C, W*C)
        pw = jnp.transpose(wp, (1, 0)).astype(f32)                        # (C_in, C_out)
        return jnp.kron(jnp.eye(W, dtype=f32), pw)

    # Same-channel fold matrix for BN stats: 1/(N*H*W) where lanes share a channel.
    mavg = jnp.kron(jnp.ones((W, W), f32), jnp.eye(C, dtype=f32)) / float(N * H * W)

    # 3x3 / stride-1 / pad-1 avg-pool divisor (count_include_pad=False) as a
    # reciprocal map, broadcast over channels: (H, W*C).
    ri = jnp.arange(H)
    rc = jnp.minimum(ri, 1) + 1 + jnp.minimum(H - 1 - ri, 1)
    ci = jnp.arange(W)
    cc = jnp.minimum(ci, 1) + 1 + jnp.minimum(W - 1 - ci, 1)
    invcnt = jnp.repeat(1.0 / (rc[:, None] * cc[None, :]).astype(f32), C, axis=1)

    args = [
        x_l,
        weights.astype(f32).reshape(-1),          # (8,) architecture weights -> SMEM
        invcnt, mavg,
        dw_tiled(params["sep3"]["dw1"]), pw_blockdiag(params["sep3"]["pw1"]),
        dw_tiled(params["sep3"]["dw2"]), pw_blockdiag(params["sep3"]["pw2"]),
        dw_tiled(params["sep5"]["dw1"]), pw_blockdiag(params["sep5"]["pw1"]),
        dw_tiled(params["sep5"]["dw2"]), pw_blockdiag(params["sep5"]["pw2"]),
        dw_tiled(params["dil3"]["dw"]), pw_blockdiag(params["dil3"]["pw"]),
        dw_tiled(params["dil5"]["dw"]), pw_blockdiag(params["dil5"]["pw"]),
    ]

    vmem_spec = pl.BlockSpec(memory_space=pltpu.MemorySpace.VMEM)
    smem_spec = pl.BlockSpec(memory_space=pltpu.MemorySpace.SMEM)
    in_specs = [vmem_spec, smem_spec] + [vmem_spec] * (len(args) - 2)

    padA_shape = (N, H + 2 * P_POOL, (W + 2 * P_POOL) * C)
    padB_shape = (N, H + 2 * P_CONV, (W + 2 * P_CONV) * C)

    # Re-derived VMEM budget: resident operands + scratches + a handful of full-size
    # temporaries, x2 headroom; clamped well under v7x's 64 MiB physical VMEM.
    def _sz(shape):
        n = 1
        for d in shape:
            n *= int(d)
        return 4 * n
    resident = (sum(_sz(a.shape) for a in args) + _sz((NH, WC))
                + _sz(padA_shape) + _sz(padB_shape) + 6 * _sz((NH, WC)))
    vmem_limit = min(max(2 * resident, 8 * 1024 * 1024), 48 * 1024 * 1024)

    out2 = pl.pallas_call(
        _build_mixedop_kernel(N, H, W, C),
        out_shape=jax.ShapeDtypeStruct((NH, WC), f32),
        in_specs=in_specs,
        out_specs=vmem_spec,
        scratch_shapes=[pltpu.VMEM(padA_shape, f32),     # pools + sep stage-2 scratch
                        pltpu.VMEM(padB_shape, f32)],    # shared padded ReLU(x)
        compiler_params=pltpu.CompilerParams(vmem_limit_bytes=vmem_limit),
    )(*args)

    return jnp.transpose(out2.reshape(N, H, W, C), (0, 3, 1, 2))


# ----------------------------------------------------------------------------
# Deterministic parameter init (torch-shaped weights)
# ----------------------------------------------------------------------------
def init_params(C, key):
    ks = jax.random.split(key, 12)

    def dw(k_, ksz):
        return 0.3 * jax.random.normal(k_, (C, 1, ksz, ksz), jnp.float32)

    def pw(k_):
        return 0.3 * jax.random.normal(k_, (C, C), jnp.float32)

    return {
        "sep3": dict(dw1=dw(ks[0], 3), pw1=pw(ks[1]), dw2=dw(ks[2], 3), pw2=pw(ks[3])),
        "sep5": dict(dw1=dw(ks[4], 5), pw1=pw(ks[5]), dw2=dw(ks[6], 5), pw2=pw(ks[7])),
        "dil3": dict(dw=dw(ks[8], 3), pw=pw(ks[9])),
        "dil5": dict(dw=dw(ks[10], 5), pw=pw(ks[11])),
    }


# ----------------------------------------------------------------------------
# Pure-JAX reference (NCHW, lax conv / reduce_window) for validation
# ----------------------------------------------------------------------------
def mixed_op_reference(x, weights, params):
    C = x.shape[1]
    hp = jax.lax.Precision.HIGHEST

    def bn(v):
        mean = jnp.mean(v, axis=(0, 2, 3), keepdims=True)
        var = jnp.mean((v - mean) ** 2, axis=(0, 2, 3), keepdims=True)
        return (v - mean) / jnp.sqrt(var + BN_EPS)

    def dwconv(v, wd, dil):
        k = wd.shape[-1]
        p = dil * (k - 1) // 2
        return jax.lax.conv_general_dilated(
            v, wd, (1, 1), [(p, p), (p, p)], rhs_dilation=(dil, dil),
            dimension_numbers=("NCHW", "OIHW", "NCHW"),
            feature_group_count=C, precision=hp)

    def pwconv(v, wp):
        return jax.lax.conv_general_dilated(
            v, wp[:, :, None, None], (1, 1), [(0, 0), (0, 0)],
            dimension_numbers=("NCHW", "OIHW", "NCHW"), precision=hp)

    def sep(v, p_):
        y = jax.nn.relu(v)
        y = bn(pwconv(dwconv(y, p_["dw1"], 1), p_["pw1"]))
        y = jax.nn.relu(y)
        return bn(pwconv(dwconv(y, p_["dw2"], 1), p_["pw2"]))

    def dil(v, p_):
        y = jax.nn.relu(v)
        return bn(pwconv(dwconv(y, p_["dw"], 2), p_["pw"]))

    def maxpool(v):
        return jax.lax.reduce_window(
            v, -jnp.inf, jax.lax.max, (1, 1, 3, 3), (1, 1, 1, 1),
            [(0, 0), (0, 0), (1, 1), (1, 1)])

    def avgpool(v):
        s = jax.lax.reduce_window(
            v, 0.0, jax.lax.add, (1, 1, 3, 3), (1, 1, 1, 1),
            [(0, 0), (0, 0), (1, 1), (1, 1)])
        cnt = jax.lax.reduce_window(
            jnp.ones_like(v), 0.0, jax.lax.add, (1, 1, 3, 3), (1, 1, 1, 1),
            [(0, 0), (0, 0), (1, 1), (1, 1)])
        return s / cnt

    ops = [jnp.zeros_like(x), bn(maxpool(x)), bn(avgpool(x)), x,
           sep(x, params["sep3"]), sep(x, params["sep5"]),
           dil(x, params["dil3"]), dil(x, params["dil5"])]
    out = jnp.zeros_like(x)
    for k, o in enumerate(ops):
        out = out + weights[k] * o
    return out


if __name__ == "__main__":
    key = jax.random.PRNGKey(0)
    kx, kw, kp = jax.random.split(key, 3)

    N, C, H, W = 2, 4, 16, 16
    x = jax.random.normal(kx, (N, C, H, W), jnp.float32)
    alphas = jax.nn.softmax(jax.random.normal(kw, (len(PRIMITIVES),), jnp.float32))
    params = init_params(C, kp)

    out = mixed_op_pallas(x, alphas, params)
    out = jax.block_until_ready(out)

    ref = mixed_op_reference(x, alphas, params)
    err = float(jnp.max(jnp.abs(out - ref)))
    if not (err < 1e-2):
        raise AssertionError(f"Pallas MixedOp mismatch vs reference: max abs err={err}")
    print("KERNEL_OK")
</pallas_src>

<mosaic_0001>
module attributes {stable_mosaic.version = 11 : i64} {
  func.func @kernel(%arg0: memref<2x16x64xf32, #tpu.memory_space<vmem>>, %arg1: memref<8xf32, #tpu.memory_space<smem>>, %arg2: memref<16x64xf32, #tpu.memory_space<vmem>>, %arg3: memref<64x64xf32, #tpu.memory_space<vmem>>, %arg4: memref<9x64xf32, #tpu.memory_space<vmem>>, %arg5: memref<64x64xf32, #tpu.memory_space<vmem>>, %arg6: memref<9x64xf32, #tpu.memory_space<vmem>>, %arg7: memref<64x64xf32, #tpu.memory_space<vmem>>, %arg8: memref<25x64xf32, #tpu.memory_space<vmem>>, %arg9: memref<64x64xf32, #tpu.memory_space<vmem>>, %arg10: memref<25x64xf32, #tpu.memory_space<vmem>>, %arg11: memref<64x64xf32, #tpu.memory_space<vmem>>, %arg12: memref<9x64xf32, #tpu.memory_space<vmem>>, %arg13: memref<64x64xf32, #tpu.memory_space<vmem>>, %arg14: memref<25x64xf32, #tpu.memory_space<vmem>>, %arg15: memref<64x64xf32, #tpu.memory_space<vmem>>, %arg16: memref<32x64xf32, #tpu.memory_space<vmem>>, %arg17: memref<2x20x80xf32, #tpu.memory_space<vmem>>, %arg18: memref<2x24x96xf32, #tpu.memory_space<vmem>>) attributes {dimension_semantics = [], scalar_prefetch = 0 : i64, scratch_operands = 2 : i64, tpu.core_type = #tpu.core_type<tc>} {
    %c0 = arith.constant 0 : index
    %c0_0 = arith.constant 0 : index
    %c0_1 = arith.constant 0 : index
    %0 = vector.load %arg0[%c0, %c0_0, %c0_1] : memref<2x16x64xf32, #tpu.memory_space<vmem>>, vector<2x16x64xf32>
    %c0_2 = arith.constant 0 : index
    %c0_3 = arith.constant 0 : index
    %1 = vector.load %arg3[%c0_2, %c0_3] : memref<64x64xf32, #tpu.memory_space<vmem>>, vector<64x64xf32>
    %c0_4 = arith.constant 0 : index
    %c2 = arith.constant 2 : index
    %c8 = arith.constant 8 : index
    %2 = vector.load %arg17[%c0_4, %c2, %c8] : memref<2x20x80xf32, #tpu.memory_space<vmem>>, vector<2x16x64xf32>
    tpu.vector_store %arg17[%c0_4, %c2, %c8], %0 {strides = array<i32>} : memref<2x20x80xf32, #tpu.memory_space<vmem>>, vector<2x16x64xf32>,
    %cst = arith.constant 0xFF800000 : f32
    %3 = vector.broadcast %cst : f32 to vector<2x1x72xf32>
    %c0_5 = arith.constant 0 : index
    %c1 = arith.constant 1 : index
    %c4 = arith.constant 4 : index
    %4 = vector.load %arg17[%c0_5, %c1, %c4] : memref<2x20x80xf32, #tpu.memory_space<vmem>>, vector<2x1x72xf32>
    tpu.vector_store %arg17[%c0_5, %c1, %c4], %3 {strides = array<i32>} : memref<2x20x80xf32, #tpu.memory_space<vmem>>, vector<2x1x72xf32>,
    %cst_6 = arith.constant 0xFF800000 : f32
    %5 = vector.broadcast %cst_6 : f32 to vector<2x1x72xf32>
    %c0_7 = arith.constant 0 : index
    %c18 = arith.constant 18 : index
    %c4_8 = arith.constant 4 : index
    %6 = vector.load %arg17[%c0_7, %c18, %c4_8] : memref<2x20x80xf32, #tpu.memory_space<vmem>>, vector<2x1x72xf32>
    tpu.vector_store %arg17[%c0_7, %c18, %c4_8], %5 {strides = array<i32>} : memref<2x20x80xf32, #tpu.memory_space<vmem>>, vector<2x1x72xf32>,
    %cst_9 = arith.constant 0xFF800000 : f32
    %7 = vector.broadcast %cst_9 : f32 to vector<2x16x4xf32>
    %c0_10 = arith.constant 0 : index
    %c2_11 = arith.constant 2 : index
    %c4_12 = arith.constant 4 : index
    %8 = vector.load %arg17[%c0_10, %c2_11, %c4_12] : memref<2x20x80xf32, #tpu.memory_space<vmem>>, vector<2x16x4xf32>
    tpu.vector_store %arg17[%c0_10, %c2_11, %c4_12], %7 {strides = array<i32>} : memref<2x20x80xf32, #tpu.memory_space<vmem>>, vector<2x16x4xf32>,
    %cst_13 = arith.constant 0xFF800000 : f32
    %9 = vector.broadcast %cst_13 : f32 to vector<2x16x4xf32>
    %c0_14 = arith.constant 0 : index
    %c2_15 = arith.constant 2 : index
    %c72 = arith.constant 72 : index
    %10 = vector.load %arg17[%c0_14, %c2_15, %c72] : memref<2x20x80xf32, #tpu.memory_space<vmem>>, vector<2x16x4xf32>
    tpu.vector_store %arg17[%c0_14, %c2_15, %c72], %9 {strides = array<i32>} : memref<2x20x80xf32, #tpu.memory_space<vmem>>, vector<2x16x4xf32>,
    %c0_16 = arith.constant 0 : index
    %c1_17 = arith.constant 1 : index
    %c4_18 = arith.constant 4 : index
    %11 = vector.load %arg17[%c0_16, %c1_17, %c4_18] : memref<2x20x80xf32, #tpu.memory_space<vmem>>, vector<2x18x64xf32>
    %c0_19 = arith.constant 0 : index
    %c1_20 = arith.constant 1 : index
    %c8_21 = arith.constant 8 : index
    %12 = vector.load %arg17[%c0_19, %c1_20, %c8_21] : memref<2x20x80xf32, #tpu.memory_space<vmem>>, vector<2x18x64xf32>
    %13 = arith.maximumf %11, %12 : vector<2x18x64xf32>
    %c0_22 = arith.constant 0 : index
    %c1_23 = arith.constant 1 : index
    %c12 = arith.constant 12 : index
    %14 = vector.load %arg17[%c0_22, %c1_23, %c12] : memref<2x20x80xf32, #tpu.memory_space<vmem>>, vector<2x18x64xf32>
    %15 = arith.maximumf %13, %14 : vector<2x18x64xf32>
    %16 = vector.extract_strided_slice %15 {offsets = [0, 0, 0], sizes = [2, 16, 64], strides = [1, 1, 1]} : vector<2x18x64xf32> to vector<2x16x64xf32>
    %17 = vector.extract_strided_slice %15 {offsets = [0, 1, 0], sizes = [2, 16, 64], strides = [1, 1, 1]} : vector<2x18x64xf32> to vector<2x16x64xf32>
    %18 = arith.maximumf %16, %17 : vector<2x16x64xf32>
    %19 = vector.extract_strided_slice %15 {offsets = [0, 2, 0], sizes = [2, 16, 64], strides = [1, 1, 1]} : vector<2x18x64xf32> to vector<2x16x64xf32>
    %20 = arith.maximumf %18, %19 : vector<2x16x64xf32>
    %c1_24 = arith.constant 1 : index
    %21 = memref.load %arg1[%c1_24] : memref<8xf32, #tpu.memory_space<smem>>
    %22 = vector.shape_cast %20 : vector<2x16x64xf32> to vector<32x64xf32>
    %23 = vector.shape_cast %22 : vector<32x64xf32> to vector<4x8x64xf32>
    %cst_25 = arith.constant dense<0.000000e+00> : vector<8x64xf32>
    %24 = vector.multi_reduction <add>, %23, %cst_25 [0] : vector<4x8x64xf32> to vector<8x64xf32>
    %cst_26 = arith.constant dense<0.000000e+00> : vector<8x64xf32>
    %25 = tpu.matmul %24, %1, %cst_26 {dimension_numbers = #tpu.dot_dimension_numbers<[1], [0], [0], [1], [0, 0, 1, 1], [], []>} : vector<8x64xf32>, vector<64x64xf32>, vector<8x64xf32> -> vector<8x64xf32>
    %cst_27 = arith.constant dense<0.000000e+00> : vector<64xf32>
    %26 = vector.multi_reduction <add>, %25, %cst_27 [0] : vector<8x64xf32> to vector<64xf32>
    %27 = vector.shape_cast %26 : vector<64xf32> to vector<1x64xf32>
    %28 = vector.broadcast %27 : vector<1x64xf32> to vector<32x64xf32>
    %29 = arith.subf %22, %28 : vector<32x64xf32>
    %30 = arith.mulf %29, %29 : vector<32x64xf32>
    %31 = vector.shape_cast %30 : vector<32x64xf32> to vector<4x8x64xf32>
    %cst_28 = arith.constant dense<0.000000e+00> : vector<8x64xf32>
    %32 = vector.multi_reduction <add>, %31, %cst_28 [0] : vector<4x8x64xf32> to vector<8x64xf32>
    %cst_29 = arith.constant dense<0.000000e+00> : vector<8x64xf32>
    %33 = tpu.matmul %32, %1, %cst_29 {dimension_numbers = #tpu.dot_dimension_numbers<[1], [0], [0], [1], [0, 0, 1, 1], [], []>} : vector<8x64xf32>, vector<64x64xf32>, vector<8x64xf32> -> vector<8x64xf32>
    %cst_30 = arith.constant dense<0.000000e+00> : vector<64xf32>
    %34 = vector.multi_reduction <add>, %33, %cst_30 [0] : vector<8x64xf32> to vector<64xf32>
    %35 = vector.shape_cast %34 : vector<64xf32> to vector<1x64xf32>
    %cst_31 = arith.constant 9.99999974E-6 : f32
    %36 = vector.broadcast %cst_31 : f32 to vector<1x64xf32>
    %37 = arith.addf %35, %36 : vector<1x64xf32>
    %38 = math.rsqrt %37 : vector<1x64xf32>
    %39 = vector.broadcast %38 : vector<1x64xf32> to vector<32x64xf32>
    %40 = arith.mulf %29, %39 : vector<32x64xf32>
    %41 = vector.broadcast %21 : f32 to vector<32x64xf32>
    %42 = arith.mulf %41, %40 : vector<32x64xf32>
    %cst_32 = arith.constant 0.000000e+00 : f32
    %43 = vector.broadcast %cst_32 : f32 to vector<2x2x80xf32>
    %c0_33 = arith.constant 0 : index
    %c0_34 = arith.constant 0 : index
    %c0_35 = arith.constant 0 : index
    %44 = vector.load %arg17[%c0_33, %c0_34, %c0_35] : memref<2x20x80xf32, #tpu.memory_space<vmem>>, vector<2x2x80xf32>
    tpu.vector_store %arg17[%c0_33, %c0_34, %c0_35], %43 {strides = array<i32>} : memref<2x20x80xf32, #tpu.memory_space<vmem>>, vector<2x2x80xf32>,
    %cst_36 = arith.constant 0.000000e+00 : f32
    %45 = vector.broadcast %cst_36 : f32 to vector<2x2x80xf32>
    %c0_37 = arith.constant 0 : index
    %c18_38 = arith.constant 18 : index
    %c0_39 = arith.constant 0 : index
    %46 = vector.load %arg17[%c0_37, %c18_38, %c0_39] : memref<2x20x80xf32, #tpu.memory_space<vmem>>, vector<2x2x80xf32>
    tpu.vector_store %arg17[%c0_37, %c18_38, %c0_39], %45 {strides = array<i32>} : memref<2x20x80xf32, #tpu.memory_space<vmem>>, vector<2x2x80xf32>,
    %cst_40 = arith.constant 0.000000e+00 : f32
    %47 = vector.broadcast %cst_40 : f32 to vector<2x16x8xf32>
    %c0_41 = arith.constant 0 : index
    %c2_42 = arith.constant 2 : index
    %c0_43 = arith.constant 0 : index
    %48 = vector.load %arg17[%c0_41, %c2_42, %c0_43] : memref<2x20x80xf32, #tpu.memory_space<vmem>>, vector<2x16x8xf32>
    tpu.vector_store %arg17[%c0_41, %c2_42, %c0_43], %47 {strides = array<i32>} : memref<2x20x80xf32, #tpu.memory_space<vmem>>, vector<2x16x8xf32>,
    %cst_44 = arith.constant 0.000000e+00 : f32
    %49 = vector.broadcast %cst_44 : f32 to vector<2x16x8xf32>
    %c0_45 = arith.constant 0 : index
    %c2_46 = arith.constant 2 : index
    %c72_47 = arith.constant 72 : index
    %50 = vector.load %arg17[%c0_45, %c2_46, %c72_47] : memref<2x20x80xf32, #tpu.memory_space<vmem>>, vector<2x16x8xf32>
    tpu.vector_store %arg17[%c0_45, %c2_46, %c72_47], %49 {strides = array<i32>} : memref<2x20x80xf32, #tpu.memory_space<vmem>>, vector<2x16x8xf32>,
    %c0_48 = arith.constant 0 : index
    %c1_49 = arith.constant 1 : index
    %c4_50 = arith.constant 4 : index
    %51 = vector.load %arg17[%c0_48, %c1_49, %c4_50] : memref<2x20x80xf32, #tpu.memory_space<vmem>>, vector<2x18x64xf32>
    %c0_51 = arith.constant 0 : index
    %c1_52 = arith.constant 1 : index
    %c8_53 = arith.constant 8 : index
    %52 = vector.load %arg17[%c0_51, %c1_52, %c8_53] : memref<2x20x80xf32, #tpu.memory_space<vmem>>, vector<2x18x64xf32>
    %53 = arith.addf %51, %52 : vector<2x18x64xf32>
    %c0_54 = arith.constant 0 : index
    %c1_55 = arith.constant 1 : index
    %c12_56 = arith.constant 12 : index
    %54 = vector.load %arg17[%c0_54, %c1_55, %c12_56] : memref<2x20x80xf32, #tpu.memory_space<vmem>>, vector<2x18x64xf32>
    %55 = arith.addf %53, %54 : vector<2x18x64xf32>
    %56 = vector.extract_strided_slice %55 {offsets = [0, 0, 0], sizes = [2, 16, 64], strides = [1, 1, 1]} : vector<2x18x64xf32> to vector<2x16x64xf32>
    %57 = vector.extract_strided_slice %55 {offsets = [0, 1, 0], sizes = [2, 16, 64], strides = [1, 1, 1]} : vector<2x18x64xf32> to vector<2x16x64xf32>
    %58 = arith.addf %56, %57 : vector<2x16x64xf32>
    %59 = vector.extract_strided_slice %55 {offsets = [0, 2, 0], sizes = [2, 16, 64], strides = [1, 1, 1]} : vector<2x18x64xf32> to vector<2x16x64xf32>
    %60 = arith.addf %58, %59 : vector<2x16x64xf32>
    %c0_57 = arith.constant 0 : index
    %c0_58 = arith.constant 0 : index
    %61 = vector.load %arg2[%c0_57, %c0_58] : memref<16x64xf32, #tpu.memory_space<vmem>>, vector<16x64xf32>
    %62 = vector.shape_cast %61 : vector<16x64xf32> to vector<1x16x64xf32>
    %63 = vector.broadcast %62 : vector<1x16x64xf32> to vector<2x16x64xf32>
    %64 = arith.mulf %60, %63 : vector<2x16x64xf32>
    %c2_59 = arith.constant 2 : index
    %65 = memref.load %arg1[%c2_59] : memref<8xf32, #tpu.memory_space<smem>>
    %66 = vector.shape_cast %64 : vector<2x16x64xf32> to vector<32x64xf32>
    %67 = vector.shape_cast %66 : vector<32x64xf32> to vector<4x8x64xf32>
    %cst_60 = arith.constant dense<0.000000e+00> : vector<8x64xf32>
    %68 = vector.multi_reduction <add>, %67, %cst_60 [0] : vector<4x8x64xf32> to vector<8x64xf32>
    %cst_61 = arith.constant dense<0.000000e+00> : vector<8x64xf32>
    %69 = tpu.matmul %68, %1, %cst_61 {dimension_numbers = #tpu.dot_dimension_numbers<[1], [0], [0], [1], [0, 0, 1, 1], [], []>} : vector<8x64xf32>, vector<64x64xf32>, vector<8x64xf32> -> vector<8x64xf32>
    %cst_62 = arith.constant dense<0.000000e+00> : vector<64xf32>
    %70 = vector.multi_reduction <add>, %69, %cst_62 [0] : vector<8x64xf32> to vector<64xf32>
    %71 = vector.shape_cast %70 : vector<64xf32> to vector<1x64xf32>
    %72 = vector.broadcast %71 : vector<1x64xf32> to vector<32x64xf32>
    %73 = arith.subf %66, %72 : vector<32x64xf32>
    %74 = arith.mulf %73, %73 : vector<32x64xf32>
    %75 = vector.shape_cast %74 : vector<32x64xf32> to vector<4x8x64xf32>
    %cst_63 = arith.constant dense<0.000000e+00> : vector<8x64xf32>
    %76 = vector.multi_reduction <add>, %75, %cst_63 [0] : vector<4x8x64xf32> to vector<8x64xf32>
    %cst_64 = arith.constant dense<0.000000e+00> : vector<8x64xf32>
    %77 = tpu.matmul %76, %1, %cst_64 {dimension_numbers = #tpu.dot_dimension_numbers<[1], [0], [0], [1], [0, 0, 1, 1], [], []>} : vector<8x64xf32>, vector<64x64xf32>, vector<8x64xf32> -> vector<8x64xf32>
    %cst_65 = arith.constant dense<0.000000e+00> : vector<64xf32>
    %78 = vector.multi_reduction <add>, %77, %cst_65 [0] : vector<8x64xf32> to vector<64xf32>
    %79 = vector.shape_cast %78 : vector<64xf32> to vector<1x64xf32>
    %cst_66 = arith.constant 9.99999974E-6 : f32
    %80 = vector.broadcast %cst_66 : f32 to vector<1x64xf32>
    %81 = arith.addf %79, %80 : vector<1x64xf32>
    %82 = math.rsqrt %81 : vector<1x64xf32>
    %83 = vector.broadcast %82 : vector<1x64xf32> to vector<32x64xf32>
    %84 = arith.mulf %73, %83 : vector<32x64xf32>
    %85 = vector.broadcast %65 : f32 to vector<32x64xf32>
    %86 = arith.mulf %85, %84 : vector<32x64xf32>
    %87 = arith.addf %42, %86 : vector<32x64xf32>
    %c3 = arith.constant 3 : index
    %88 = memref.load %arg1[%c3] : memref<8xf32, #tpu.memory_space<smem>>
    %89 = vector.shape_cast %0 : vector<2x16x64xf32> to vector<32x64xf32>
    %90 = vector.broadcast %88 : f32 to vector<32x64xf32>
    %91 = arith.mulf %90, %89 : vector<32x64xf32>
    %92 = arith.addf %87, %91 : vector<32x64xf32>
    %cst_67 = arith.constant 0.000000e+00 : f32
    %93 = vector.broadcast %cst_67 : f32 to vector<2x16x64xf32>
    %94 = arith.maximumf %0, %93 : vector<2x16x64xf32>
    %c0_68 = arith.constant 0 : index
    %c4_69 = arith.constant 4 : index
    %c16 = arith.constant 16 : index
    %95 = vector.load %arg18[%c0_68, %c4_69, %c16] : memref<2x24x96xf32, #tpu.memory_space<vmem>>, vector<2x16x64xf32>
    tpu.vector_store %arg18[%c0_68, %c4_69, %c16], %94 {strides = array<i32>} : memref<2x24x96xf32, #tpu.memory_space<vmem>>, vector<2x16x64xf32>,
    %cst_70 = arith.constant 0.000000e+00 : f32
    %96 = vector.broadcast %cst_70 : f32 to vector<2x4x96xf32>
    %c0_71 = arith.constant 0 : index
    %c0_72 = arith.constant 0 : index
    %c0_73 = arith.constant 0 : index
    %97 = vector.load %arg18[%c0_71, %c0_72, %c0_73] : memref<2x24x96xf32, #tpu.memory_space<vmem>>, vector<2x4x96xf32>
    tpu.vector_store %arg18[%c0_71, %c0_72, %c0_73], %96 {strides = array<i32>} : memref<2x24x96xf32, #tpu.memory_space<vmem>>, vector<2x4x96xf32>,
    %cst_74 = arith.constant 0.000000e+00 : f32
    %98 = vector.broadcast %cst_74 : f32 to vector<2x4x96xf32>
    %c0_75 = arith.constant 0 : index
    %c20 = arith.constant 20 : index
    %c0_76 = arith.constant 0 : index
    %99 = vector.load %arg18[%c0_75, %c20, %c0_76] : memref<2x24x96xf32, #tpu.memory_space<vmem>>, vector<2x4x96xf32>
    tpu.vector_store %arg18[%c0_75, %c20, %c0_76], %98 {strides = array<i32>} : memref<2x24x96xf32, #tpu.memory_space<vmem>>, vector<2x4x96xf32>,
    %cst_77 = arith.constant 0.000000e+00 : f32
    %100 = vector.broadcast %cst_77 : f32 to vector<2x16x16xf32>
    %c0_78 = arith.constant 0 : index
    %c4_79 = arith.constant 4 : index
    %c0_80 = arith.constant 0 : index
    %101 = vector.load %arg18[%c0_78, %c4_79, %c0_80] : memref<2x24x96xf32, #tpu.memory_space<vmem>>, vector<2x16x16xf32>
    tpu.vector_store %arg18[%c0_78, %c4_79, %c0_80], %100 {strides = array<i32>} : memref<2x24x96xf32, #tpu.memory_space<vmem>>, vector<2x16x16xf32>,
    %cst_81 = arith.constant 0.000000e+00 : f32
    %102 = vector.broadcast %cst_81 : f32 to vector<2x16x16xf32>
    %c0_82 = arith.constant 0 : index
    %c4_83 = arith.constant 4 : index
    %c80 = arith.constant 80 : index
    %103 = vector.load %arg18[%c0_82, %c4_83, %c80] : memref<2x24x96xf32, #tpu.memory_space<vmem>>, vector<2x16x16xf32>
    tpu.vector_store %arg18[%c0_82, %c4_83, %c80], %102 {strides = array<i32>} : memref<2x24x96xf32, #tpu.memory_space<vmem>>, vector<2x16x16xf32>,
    %c0_84 = arith.constant 0 : index
    %c0_85 = arith.constant 0 : index
    %104 = vector.load %arg12[%c0_84, %c0_85] : memref<9x64xf32, #tpu.memory_space<vmem>>, vector<9x64xf32>
    %c0_86 = arith.constant 0 : index
    %c2_87 = arith.constant 2 : index
    %c8_88 = arith.constant 8 : index
    %105 = vector.load %arg18[%c0_86, %c2_87, %c8_88] : memref<2x24x96xf32, #tpu.memory_space<vmem>>, vector<2x16x80xf32>
    %106 = vector.extract_strided_slice %104 {offsets = [0, 0], sizes = [1, 64], strides = [1, 1]} : vector<9x64xf32> to vector<1x64xf32>
    %107 = vector.extract_strided_slice %105 {offsets = [0, 0, 0], sizes = [2, 16, 64], strides = [1, 1, 1]} : vector<2x16x80xf32> to vector<2x16x64xf32>
    %108 = vector.shape_cast %106 : vector<1x64xf32> to vector<1x1x64xf32>
    %109 = vector.broadcast %108 : vector<1x1x64xf32> to vector<2x16x64xf32>
    %110 = arith.mulf %107, %109 : vector<2x16x64xf32>
    %111 = vector.extract_strided_slice %104 {offsets = [1, 0], sizes = [1, 64], strides = [1, 1]} : vector<9x64xf32> to vector<1x64xf32>
    %112 = vector.extract_strided_slice %105 {offsets = [0, 0, 8], sizes = [2, 16, 64], strides = [1, 1, 1]} : vector<2x16x80xf32> to vector<2x16x64xf32>
    %113 = vector.shape_cast %111 : vector<1x64xf32> to vector<1x1x64xf32>
    %114 = vector.broadcast %113 : vector<1x1x64xf32> to vector<2x16x64xf32>
    %115 = arith.mulf %112, %114 : vector<2x16x64xf32>
    %116 = arith.addf %110, %115 : vector<2x16x64xf32>
    %117 = vector.extract_strided_slice %104 {offsets = [2, 0], sizes = [1, 64], strides = [1, 1]} : vector<9x64xf32> to vector<1x64xf32>
    %118 = vector.extract_strided_slice %105 {offsets = [0, 0, 16], sizes = [2, 16, 64], strides = [1, 1, 1]} : vector<2x16x80xf32> to vector<2x16x64xf32>
    %119 = vector.shape_cast %117 : vector<1x64xf32> to vector<1x1x64xf32>
    %120 = vector.broadcast %119 : vector<1x1x64xf32> to vector<2x16x64xf32>
    %121 = arith.mulf %118, %120 : vector<2x16x64xf32>
    %122 = arith.addf %116, %121 : vector<2x16x64xf32>
    %c0_89 = arith.constant 0 : index
    %c4_90 = arith.constant 4 : index
    %c8_91 = arith.constant 8 : index
    %123 = vector.load %arg18[%c0_89, %c4_90, %c8_91] : memref<2x24x96xf32, #tpu.memory_space<vmem>>, vector<2x16x80xf32>
    %124 = vector.extract_strided_slice %104 {offsets = [3, 0], sizes = [1, 64], strides = [1, 1]} : vector<9x64xf32> to vector<1x64xf32>
    %125 = vector.extract_strided_slice %123 {offsets = [0, 0, 0], sizes = [2, 16, 64], strides = [1, 1, 1]} : vector<2x16x80xf32> to vector<2x16x64xf32>
    %126 = vector.shape_cast %124 : vector<1x64xf32> to vector<1x1x64xf32>
    %127 = vector.broadcast %126 : vector<1x1x64xf32> to vector<2x16x64xf32>
    %128 = arith.mulf %125, %127 : vector<2x16x64xf32>
    %129 = arith.addf %122, %128 : vector<2x16x64xf32>
    %130 = vector.extract_strided_slice %104 {offsets = [4, 0], sizes = [1, 64], strides = [1, 1]} : vector<9x64xf32> to vector<1x64xf32>
    %131 = vector.extract_strided_slice %123 {offsets = [0, 0, 8], sizes = [2, 16, 64], strides = [1, 1, 1]} : vector<2x16x80xf32> to vector<2x16x64xf32>
    %132 = vector.shape_cast %130 : vector<1x64xf32> to vector<1x1x64xf32>
    %133 = vector.broadcast %132 : vector<1x1x64xf32> to vector<2x16x64xf32>
    %134 = arith.mulf %131, %133 : vector<2x16x64xf32>
    %135 = arith.addf %129, %134 : vector<2x16x64xf32>
    %136 = vector.extract_strided_slice %104 {offsets = [5, 0], sizes = [1, 64], strides = [1, 1]} : vector<9x64xf32> to vector<1x64xf32>
    %137 = vector.extract_strided_slice %123 {offsets = [0, 0, 16], sizes = [2, 16, 64], strides = [1, 1, 1]} : vector<2x16x80xf32> to vector<2x16x64xf32>
    %138 = vector.shape_cast %136 : vector<1x64xf32> to vector<1x1x64xf32>
    %139 = vector.broadcast %138 : vector<1x1x64xf32> to vector<2x16x64xf32>
    %140 = arith.mulf %137, %139 : vector<2x16x64xf32>
    %141 = arith.addf %135, %140 : vector<2x16x64xf32>
    %c0_92 = arith.constant 0 : index
    %c6 = arith.constant 6 : index
    %c8_93 = arith.constant 8 : index
    %142 = vector.load %arg18[%c0_92, %c6, %c8_93] : memref<2x24x96xf32, #tpu.memory_space<vmem>>, vector<2x16x80xf32>
    %143 = vector.extract_strided_slice %104 {offsets = [6, 0], sizes = [1, 64], strides = [1, 1]} : vector<9x64xf32> to vector<1x64xf32>
    %144 = vector.extract_strided_slice %142 {offsets = [0, 0, 0], sizes = [2, 16, 64], strides = [1, 1, 1]} : vector<2x16x80xf32> to vector<2x16x64xf32>
    %145 = vector.shape_cast %143 : vector<1x64xf32> to vector<1x1x64xf32>
    %146 = vector.broadcast %145 : vector<1x1x64xf32> to vector<2x16x64xf32>
    %147 = arith.mulf %144, %146 : vector<2x16x64xf32>
    %148 = arith.addf %141, %147 : vector<2x16x64xf32>
    %149 = vector.extract_strided_slice %104 {offsets = [7, 0], sizes = [1, 64], strides = [1, 1]} : vector<9x64xf32> to vector<1x64xf32>
    %150 = vector.extract_strided_slice %142 {offsets = [0, 0, 8], sizes = [2, 16, 64], strides = [1, 1, 1]} : vector<2x16x80xf32> to vector<2x16x64xf32>
    %151 = vector.shape_cast %149 : vector<1x64xf32> to vector<1x1x64xf32>
    %152 = vector.broadcast %151 : vector<1x1x64xf32> to vector<2x16x64xf32>
    %153 = arith.mulf %150, %152 : vector<2x16x64xf32>
    %154 = arith.addf %148, %153 : vector<2x16x64xf32>
    %155 = vector.extract_strided_slice %104 {offsets = [8, 0], sizes = [1, 64], strides = [1, 1]} : vector<9x64xf32> to vector<1x64xf32>
    %156 = vector.extract_strided_slice %142 {offsets = [0, 0, 16], sizes = [2, 16, 64], strides = [1, 1, 1]} : vector<2x16x80xf32> to vector<2x16x64xf32>
    %157 = vector.shape_cast %155 : vector<1x64xf32> to vector<1x1x64xf32>
    %158 = vector.broadcast %157 : vector<1x1x64xf32> to vector<2x16x64xf32>
    %159 = arith.mulf %156, %158 : vector<2x16x64xf32>
    %160 = arith.addf %154, %159 : vector<2x16x64xf32>
    %161 = vector.shape_cast %160 : vector<2x16x64xf32> to vector<32x64xf32>
    %c0_94 = arith.constant 0 : index
    %c0_95 = arith.constant 0 : index
    %162 = vector.load %arg13[%c0_94, %c0_95] : memref<64x64xf32, #tpu.memory_space<vmem>>, vector<64x64xf32>
    %cst_96 = arith.constant dense<0.000000e+00> : vector<32x64xf32>
    %163 = tpu.matmul %161, %162, %cst_96 {dimension_numbers = #tpu.dot_dimension_numbers<[1], [0], [0], [1], [0, 0, 1, 1], [], []>} : vector<32x64xf32>, vector<64x64xf32>, vector<32x64xf32> -> vector<32x64xf32>
    %164 = vector.shape_cast %163 : vector<32x64xf32> to vector<4x8x64xf32>
    %cst_97 = arith.constant dense<0.000000e+00> : vector<8x64xf32>
    %165 = vector.multi_reduction <add>, %164, %cst_97 [0] : vector<4x8x64xf32> to vector<8x64xf32>
    %cst_98 = arith.constant dense<0.000000e+00> : vector<8x64xf32>
    %166 = tpu.matmul %165, %1, %cst_98 {dimension_numbers = #tpu.dot_dimension_numbers<[1], [0], [0], [1], [0, 0, 1, 1], [], []>} : vector<8x64xf32>, vector<64x64xf32>, vector<8x64xf32> -> vector<8x64xf32>
    %cst_99 = arith.constant dense<0.000000e+00> : vector<64xf32>
    %167 = vector.multi_reduction <add>, %166, %cst_99 [0] : vector<8x64xf32> to vector<64xf32>
    %168 = vector.shape_cast %167 : vector<64xf32> to vector<1x64xf32>
    %169 = vector.broadcast %168 : vector<1x64xf32> to vector<32x64xf32>
    %170 = arith.subf %163, %169 : vector<32x64xf32>
    %171 = arith.mulf %170, %170 : vector<32x64xf32>
    %172 = vector.shape_cast %171 : vector<32x64xf32> to vector<4x8x64xf32>
    %cst_100 = arith.constant dense<0.000000e+00> : vector<8x64xf32>
    %173 = vector.multi_reduction <add>, %172, %cst_100 [0] : vector<4x8x64xf32> to vector<8x64xf32>
    %cst_101 = arith.constant dense<0.000000e+00> : vector<8x64xf32>
    %174 = tpu.matmul %173, %1, %cst_101 {dimension_numbers = #tpu.dot_dimension_numbers<[1], [0], [0], [1], [0, 0, 1, 1], [], []>} : vector<8x64xf32>, vector<64x64xf32>, vector<8x64xf32> -> vector<8x64xf32>
    %cst_102 = arith.constant dense<0.000000e+00> : vector<64xf32>
    %175 = vector.multi_reduction <add>, %174, %cst_102 [0] : vector<8x64xf32> to vector<64xf32>
    %176 = vector.shape_cast %175 : vector<64xf32> to vector<1x64xf32>
    %cst_103 = arith.constant 9.99999974E-6 : f32
    %177 = vector.broadcast %cst_103 : f32 to vector<1x64xf32>
    %178 = arith.addf %176, %177 : vector<1x64xf32>
    %179 = math.rsqrt %178 : vector<1x64xf32>
    %180 = vector.broadcast %179 : vector<1x64xf32> to vector<32x64xf32>
    %181 = arith.mulf %170, %180 : vector<32x64xf32>
    %c6_104 = arith.constant 6 : index
    %182 = memref.load %arg1[%c6_104] : memref<8xf32, #tpu.memory_space<smem>>
    %183 = vector.broadcast %182 : f32 to vector<32x64xf32>
    %184 = arith.mulf %183, %181 : vector<32x64xf32>
    %185 = arith.addf %92, %184 : vector<32x64xf32>
    %c0_105 = arith.constant 0 : index
    %c0_106 = arith.constant 0 : index
    %186 = vector.load %arg14[%c0_105, %c0_106] : memref<25x64xf32, #tpu.memory_space<vmem>>, vector<25x64xf32>
    %c0_107 = arith.constant 0 : index
    %c0_108 = arith.constant 0 : index
    %c0_109 = arith.constant 0 : index
    %187 = vector.load %arg18[%c0_107, %c0_108, %c0_109] : memref<2x24x96xf32, #tpu.memory_space<vmem>>, vector<2x16x96xf32>
    %188 = vector.extract_strided_slice %186 {offsets = [0, 0], sizes = [1, 64], strides = [1, 1]} : vector<25x64xf32> to vector<1x64xf32>
    %189 = vector.extract_strided_slice %187 {offsets = [0, 0, 0], sizes = [2, 16, 64], strides = [1, 1, 1]} : vector<2x16x96xf32> to vector<2x16x64xf32>
    %190 = vector.shape_cast %188 : vector<1x64xf32> to vector<1x1x64xf32>
    %191 = vector.broadcast %190 : vector<1x1x64xf32> to vector<2x16x64xf32>
    %192 = arith.mulf %189, %191 : vector<2x16x64xf32>
    %193 = vector.extract_strided_slice %186 {offsets = [1, 0], sizes = [1, 64], strides = [1, 1]} : vector<25x64xf32> to vector<1x64xf32>
    %194 = vector.extract_strided_slice %187 {offsets = [0, 0, 8], sizes = [2, 16, 64], strides = [1, 1, 1]} : vector<2x16x96xf32> to vector<2x16x64xf32>
    %195 = vector.shape_cast %193 : vector<1x64xf32> to vector<1x1x64xf32>
    %196 = vector.broadcast %195 : vector<1x1x64xf32> to vector<2x16x64xf32>
    %197 = arith.mulf %194, %196 : vector<2x16x64xf32>
    %198 = arith.addf %192, %197 : vector<2x16x64xf32>
    %199 = vector.extract_strided_slice %186 {offsets = [2, 0], sizes = [1, 64], strides = [1, 1]} : vector<25x64xf32> to vector<1x64xf32>
    %200 = vector.extract_strided_slice %187 {offsets = [0, 0, 16], sizes = [2, 16, 64], strides = [1, 1, 1]} : vector<2x16x96xf32> to vector<2x16x64xf32>
    %201 = vector.shape_cast %199 : vector<1x64xf32> to vector<1x1x64xf32>
    %202 = vector.broadcast %201 : vector<1x1x64xf32> to vector<2x16x64xf32>
    %203 = arith.mulf %200, %202 : vector<2x16x64xf32>
    %204 = arith.addf %198, %203 : vector<2x16x64xf32>
    %205 = vector.extract_strided_slice %186 {offsets = [3, 0], sizes = [1, 64], strides = [1, 1]} : vector<25x64xf32> to vector<1x64xf32>
    %206 = vector.extract_strided_slice %187 {offsets = [0, 0, 24], sizes = [2, 16, 64], strides = [1, 1, 1]} : vector<2x16x96xf32> to vector<2x16x64xf32>
    %207 = vector.shape_cast %205 : vector<1x64xf32> to vector<1x1x64xf32>
    %208 = vector.broadcast %207 : vector<1x1x64xf32> to vector<2x16x64xf32>
    %209 = arith.mulf %206, %208 : vector<2x16x64xf32>
    %210 = arith.addf %204, %209 : vector<2x16x64xf32>
    %211 = vector.extract_strided_slice %186 {offsets = [4, 0], sizes = [1, 64], strides = [1, 1]} : vector<25x64xf32> to vector<1x64xf32>
    %212 = vector.extract_strided_slice %187 {offsets = [0, 0, 32], sizes = [2, 16, 64], strides = [1, 1, 1]} : vector<2x16x96xf32> to vector<2x16x64xf32>
    %213 = vector.shape_cast %211 : vector<1x64xf32> to vector<1x1x64xf32>
    %214 = vector.broadcast %213 : vector<1x1x64xf32> to vector<2x16x64xf32>
    %215 = arith.mulf %212, %214 : vector<2x16x64xf32>
    %216 = arith.addf %210, %215 : vector<2x16x64xf32>
    %c0_110 = arith.constant 0 : index
    %c2_111 = arith.constant 2 : index
    %c0_112 = arith.constant 0 : index
    %217 = vector.load %arg18[%c0_110, %c2_111, %c0_112] : memref<2x24x96xf32, #tpu.memory_space<vmem>>, vector<2x16x96xf32>
    %218 = vector.extract_strided_slice %186 {offsets = [5, 0], sizes = [1, 64], strides = [1, 1]} : vector<25x64xf32> to vector<1x64xf32>
    %219 = vector.extract_strided_slice %217 {offsets = [0, 0, 0], sizes = [2, 16, 64], strides = [1, 1, 1]} : vector<2x16x96xf32> to vector<2x16x64xf32>
    %220 = vector.shape_cast %218 : vector<1x64xf32> to vector<1x1x64xf32>
    %221 = vector.broadcast %220 : vector<1x1x64xf32> to vector<2x16x64xf32>
    %222 = arith.mulf %219, %221 : vector<2x16x64xf32>
    %223 = arith.addf %216, %222 : vector<2x16x64xf32>
    %224 = vector.extract_strided_slice %186 {offsets = [6, 0], sizes = [1, 64], strides = [1, 1]} : vector<25x64xf32> to vector<1x64xf32>
    %225 = vector.extract_strided_slice %217 {offsets = [0, 0, 8], sizes = [2, 16, 64], strides = [1, 1, 1]} : vector<2x16x96xf32> to vector<2x16x64xf32>
    %226 = vector.shape_cast %224 : vector<1x64xf32> to vector<1x1x64xf32>
    %227 = vector.broadcast %226 : vector<1x1x64xf32> to vector<2x16x64xf32>
    %228 = arith.mulf %225, %227 : vector<2x16x64xf32>
    %229 = arith.addf %223, %228 : vector<2x16x64xf32>
    %230 = vector.extract_strided_slice %186 {offsets = [7, 0], sizes = [1, 64], strides = [1, 1]} : vector<25x64xf32> to vector<1x64xf32>
    %231 = vector.extract_strided_slice %217 {offsets = [0, 0, 16], sizes = [2, 16, 64], strides = [1, 1, 1]} : vector<2x16x96xf32> to vector<2x16x64xf32>
    %232 = vector.shape_cast %230 : vector<1x64xf32> to vector<1x1x64xf32>
    %233 = vector.broadcast %232 : vector<1x1x64xf32> to vector<2x16x64xf32>
    %234 = arith.mulf %231, %233 : vector<2x16x64xf32>
    %235 = arith.addf %229, %234 : vector<2x16x64xf32>
    %236 = vector.extract_strided_slice %186 {offsets = [8, 0], sizes = [1, 64], strides = [1, 1]} : vector<25x64xf32> to vector<1x64xf32>
    %237 = vector.extract_strided_slice %217 {offsets = [0, 0, 24], sizes = [2, 16, 64], strides = [1, 1, 1]} : vector<2x16x96xf32> to vector<2x16x64xf32>
    %238 = vector.shape_cast %236 : vector<1x64xf32> to vector<1x1x64xf32>
    %239 = vector.broadcast %238 : vector<1x1x64xf32> to vector<2x16x64xf32>
    %240 = arith.mulf %237, %239 : vector<2x16x64xf32>
    %241 = arith.addf %235, %240 : vector<2x16x64xf32>
    %242 = vector.extract_strided_slice %186 {offsets = [9, 0], sizes = [1, 64], strides = [1, 1]} : vector<25x64xf32> to vector<1x64xf32>
    %243 = vector.extract_strided_slice %217 {offsets = [0, 0, 32], sizes = [2, 16, 64], strides = [1, 1, 1]} : vector<2x16x96xf32> to vector<2x16x64xf32>
    %244 = vector.shape_cast %242 : vector<1x64xf32> to vector<1x1x64xf32>
    %245 = vector.broadcast %244 : vector<1x1x64xf32> to vector<2x16x64xf32>
    %246 = arith.mulf %243, %245 : vector<2x16x64xf32>
    %247 = arith.addf %241, %246 : vector<2x16x64xf32>
    %c0_113 = arith.constant 0 : index
    %c4_114 = arith.constant 4 : index
    %c0_115 = arith.constant 0 : index
    %248 = vector.load %arg18[%c0_113, %c4_114, %c0_115] : memref<2x24x96xf32, #tpu.memory_space<vmem>>, vector<2x16x96xf32>
    %249 = vector.extract_strided_slice %186 {offsets = [10, 0], sizes = [1, 64], strides = [1, 1]} : vector<25x64xf32> to vector<1x64xf32>
    %250 = vector.extract_strided_slice %248 {offsets = [0, 0, 0], sizes = [2, 16, 64], strides = [1, 1, 1]} : vector<2x16x96xf32> to vector<2x16x64xf32>
    %251 = vector.shape_cast %249 : vector<1x64xf32> to vector<1x1x64xf32>
    %252 = vector.broadcast %251 : vector<1x1x64xf32> to vector<2x16x64xf32>
    %253 = arith.mulf %250, %252 : vector<2x16x64xf32>
    %254 = arith.addf %247, %253 : vector<2x16x64xf32>
    %255 = vector.extract_strided_slice %186 {offsets = [11, 0], sizes = [1, 64], strides = [1, 1]} : vector<25x64xf32> to vector<1x64xf32>
    %256 = vector.extract_strided_slice %248 {offsets = [0, 0, 8], sizes = [2, 16, 64], strides = [1, 1, 1]} : vector<2x16x96xf32> to vector<2x16x64xf32>
    %257 = vector.shape_cast %255 : vector<1x64xf32> to vector<1x1x64xf32>
    %258 = vector.broadcast %257 : vector<1x1x64xf32> to vector<2x16x64xf32>
    %259 = arith.mulf %256, %258 : vector<2x16x64xf32>
    %260 = arith.addf %254, %259 : vector<2x16x64xf32>
    %261 = vector.extract_strided_slice %186 {offsets = [12, 0], sizes = [1, 64], strides = [1, 1]} : vector<25x64xf32> to vector<1x64xf32>
    %262 = vector.extract_strided_slice %248 {offsets = [0, 0, 16], sizes = [2, 16, 64], strides = [1, 1, 1]} : vector<2x16x96xf32> to vector<2x16x64xf32>
    %263 = vector.shape_cast %261 : vector<1x64xf32> to vector<1x1x64xf32>
    %264 = vector.broadcast %263 : vector<1x1x64xf32> to vector<2x16x64xf32>
    %265 = arith.mulf %262, %264 : vector<2x16x64xf32>
    %266 = arith.addf %260, %265 : vector<2x16x64xf32>
    %267 = vector.extract_strided_slice %186 {offsets = [13, 0], sizes = [1, 64], strides = [1, 1]} : vector<25x64xf32> to vector<1x64xf32>
    %268 = vector.extract_strided_slice %248 {offsets = [0, 0, 24], sizes = [2, 16, 64], strides = [1, 1, 1]} : vector<2x16x96xf32> to vector<2x16x64xf32>
    %269 = vector.shape_cast %267 : vector<1x64xf32> to vector<1x1x64xf32>
    %270 = vector.broadcast %269 : vector<1x1x64xf32> to vector<2x16x64xf32>
    %271 = arith.mulf %268, %270 : vector<2x16x64xf32>
    %272 = arith.addf %266, %271 : vector<2x16x64xf32>
    %273 = vector.extract_strided_slice %186 {offsets = [14, 0], sizes = [1, 64], strides = [1, 1]} : vector<25x64xf32> to vector<1x64xf32>
    %274 = vector.extract_strided_slice %248 {offsets = [0, 0, 32], sizes = [2, 16, 64], strides = [1, 1, 1]} : vector<2x16x96xf32> to vector<2x16x64xf32>
    %275 = vector.shape_cast %273 : vector<1x64xf32> to vector<1x1x64xf32>
    %276 = vector.broadcast %275 : vector<1x1x64xf32> to vector<2x16x64xf32>
    %277 = arith.mulf %274, %276 : vector<2x16x64xf32>
    %278 = arith.addf %272, %277 : vector<2x16x64xf32>
    %c0_116 = arith.constant 0 : index
    %c6_117 = arith.constant 6 : index
    %c0_118 = arith.constant 0 : index
    %279 = vector.load %arg18[%c0_116, %c6_117, %c0_118] : memref<2x24x96xf32, #tpu.memory_space<vmem>>, vector<2x16x96xf32>
    %280 = vector.extract_strided_slice %186 {offsets = [15, 0], sizes = [1, 64], strides = [1, 1]} : vector<25x64xf32> to vector<1x64xf32>
    %281 = vector.extract_strided_slice %279 {offsets = [0, 0, 0], sizes = [2, 16, 64], strides = [1, 1, 1]} : vector<2x16x96xf32> to vector<2x16x64xf32>
    %282 = vector.shape_cast %280 : vector<1x64xf32> to vector<1x1x64xf32>
    %283 = vector.broadcast %282 : vector<1x1x64xf32> to vector<2x16x64xf32>
    %284 = arith.mulf %281, %283 : vector<2x16x64xf32>
    %285 = arith.addf %278, %284 : vector<2x16x64xf32>
    %286 = vector.extract_strided_slice %186 {offsets = [16, 0], sizes = [1, 64], strides = [1, 1]} : vector<25x64xf32> to vector<1x64xf32>
    %287 = vector.extract_strided_slice %279 {offsets = [0, 0, 8], sizes = [2, 16, 64], strides = [1, 1, 1]} : vector<2x16x96xf32> to vector<2x16x64xf32>
    %288 = vector.shape_cast %286 : vector<1x64xf32> to vector<1x1x64xf32>
    %289 = vector.broadcast %288 : vector<1x1x64xf32> to vector<2x16x64xf32>
    %290 = arith.mulf %287, %289 : vector<2x16x64xf32>
    %291 = arith.addf %285, %290 : vector<2x16x64xf32>
    %292 = vector.extract_strided_slice %186 {offsets = [17, 0], sizes = [1, 64], strides = [1, 1]} : vector<25x64xf32> to vector<1x64xf32>
    %293 = vector.extract_strided_slice %279 {offsets = [0, 0, 16], sizes = [2, 16, 64], strides = [1, 1, 1]} : vector<2x16x96xf32> to vector<2x16x64xf32>
    %294 = vector.shape_cast %292 : vector<1x64xf32> to vector<1x1x64xf32>
    %295 = vector.broadcast %294 : vector<1x1x64xf32> to vector<2x16x64xf32>
    %296 = arith.mulf %293, %295 : vector<2x16x64xf32>
    %297 = arith.addf %291, %296 : vector<2x16x64xf32>
    %298 = vector.extract_strided_slice %186 {offsets = [18, 0], sizes = [1, 64], strides = [1, 1]} : vector<25x64xf32> to vector<1x64xf32>
    %299 = vector.extract_strided_slice %279 {offsets = [0, 0, 24], sizes = [2, 16, 64], strides = [1, 1, 1]} : vector<2x16x96xf32> to vector<2x16x64xf32>
    %300 = vector.shape_cast %298 : vector<1x64xf32> to vector<1x1x64xf32>
    %301 = vector.broadcast %300 : vector<1x1x64xf32> to vector<2x16x64xf32>
    %302 = arith.mulf %299, %301 : vector<2x16x64xf32>
    %303 = arith.addf %297, %302 : vector<2x16x64xf32>
    %304 = vector.extract_strided_slice %186 {offsets = [19, 0], sizes = [1, 64], strides = [1, 1]} : vector<25x64xf32> to vector<1x64xf32>
    %305 = vector.extract_strided_slice %279 {offsets = [0, 0, 32], sizes = [2, 16, 64], strides = [1, 1, 1]} : vector<2x16x96xf32> to vector<2x16x64xf32>
    %306 = vector.shape_cast %304 : vector<1x64xf32> to vector<1x1x64xf32>
    %307 = vector.broadcast %306 : vector<1x1x64xf32> to vector<2x16x64xf32>
    %308 = arith.mulf %305, %307 : vector<2x16x64xf32>
    %309 = arith.addf %303, %308 : vector<2x16x64xf32>
    %c0_119 = arith.constant 0 : index
    %c8_120 = arith.constant 8 : index
    %c0_121 = arith.constant 0 : index
    %310 = vector.load %arg18[%c0_119, %c8_120, %c0_121] : memref<2x24x96xf32, #tpu.memory_space<vmem>>, vector<2x16x96xf32>
    %311 = vector.extract_strided_slice %186 {offsets = [20, 0], sizes = [1, 64], strides = [1, 1]} : vector<25x64xf32> to vector<1x64xf32>
    %312 = vector.extract_strided_slice %310 {offsets = [0, 0, 0], sizes = [2, 16, 64], strides = [1, 1, 1]} : vector<2x16x96xf32> to vector<2x16x64xf32>
    %313 = vector.shape_cast %311 : vector<1x64xf32> to vector<1x1x64xf32>
    %314 = vector.broadcast %313 : vector<1x1x64xf32> to vector<2x16x64xf32>
    %315 = arith.mulf %312, %314 : vector<2x16x64xf32>
    %316 = arith.addf %309, %315 : vector<2x16x64xf32>
    %317 = vector.extract_strided_slice %186 {offsets = [21, 0], sizes = [1, 64], strides = [1, 1]} : vector<25x64xf32> to vector<1x64xf32>
    %318 = vector.extract_strided_slice %310 {offsets = [0, 0, 8], sizes = [2, 16, 64], strides = [1, 1, 1]} : vector<2x16x96xf32> to vector<2x16x64xf32>
    %319 = vector.shape_cast %317 : vector<1x64xf32> to vector<1x1x64xf32>
    %320 = vector.broadcast %319 : vector<1x1x64xf32> to vector<2x16x64xf32>
    %321 = arith.mulf %318, %320 : vector<2x16x64xf32>
    %322 = arith.addf %316, %321 : vector<2x16x64xf32>
    %323 = vector.extract_strided_slice %186 {offsets = [22, 0], sizes = [1, 64], strides = [1, 1]} : vector<25x64xf32> to vector<1x64xf32>
    %324 = vector.extract_strided_slice %310 {offsets = [0, 0, 16], sizes = [2, 16, 64], strides = [1, 1, 1]} : vector<2x16x96xf32> to vector<2x16x64xf32>
    %325 = vector.shape_cast %323 : vector<1x64xf32> to vector<1x1x64xf32>
    %326 = vector.broadcast %325 : vector<1x1x64xf32> to vector<2x16x64xf32>
    %327 = arith.mulf %324, %326 : vector<2x16x64xf32>
    %328 = arith.addf %322, %327 : vector<2x16x64xf32>
    %329 = vector.extract_strided_slice %186 {offsets = [23, 0], sizes = [1, 64], strides = [1, 1]} : vector<25x64xf32> to vector<1x64xf32>
    %330 = vector.extract_strided_slice %310 {offsets = [0, 0, 24], sizes = [2, 16, 64], strides = [1, 1, 1]} : vector<2x16x96xf32> to vector<2x16x64xf32>
    %331 = vector.shape_cast %329 : vector<1x64xf32> to vector<1x1x64xf32>
    %332 = vector.broadcast %331 : vector<1x1x64xf32> to vector<2x16x64xf32>
    %333 = arith.mulf %330, %332 : vector<2x16x64xf32>
    %334 = arith.addf %328, %333 : vector<2x16x64xf32>
    %335 = vector.extract_strided_slice %186 {offsets = [24, 0], sizes = [1, 64], strides = [1, 1]} : vector<25x64xf32> to vector<1x64xf32>
    %336 = vector.extract_strided_slice %310 {offsets = [0, 0, 32], sizes = [2, 16, 64], strides = [1, 1, 1]} : vector<2x16x96xf32> to vector<2x16x64xf32>
    %337 = vector.shape_cast %335 : vector<1x64xf32> to vector<1x1x64xf32>
    %338 = vector.broadcast %337 : vector<1x1x64xf32> to vector<2x16x64xf32>
    %339 = arith.mulf %336, %338 : vector<2x16x64xf32>
    %340 = arith.addf %334, %339 : vector<2x16x64xf32>
    %341 = vector.shape_cast %340 : vector<2x16x64xf32> to vector<32x64xf32>
    %c0_122 = arith.constant 0 : index
    %c0_123 = arith.constant 0 : index
    %342 = vector.load %arg15[%c0_122, %c0_123] : memref<64x64xf32, #tpu.memory_space<vmem>>, vector<64x64xf32>
    %cst_124 = arith.constant dense<0.000000e+00> : vector<32x64xf32>
    %343 = tpu.matmul %341, %342, %cst_124 {dimension_numbers = #tpu.dot_dimension_numbers<[1], [0], [0], [1], [0, 0, 1, 1], [], []>} : vector<32x64xf32>, vector<64x64xf32>, vector<32x64xf32> -> vector<32x64xf32>
    %344 = vector.shape_cast %343 : vector<32x64xf32> to vector<4x8x64xf32>
    %cst_125 = arith.constant dense<0.000000e+00> : vector<8x64xf32>
    %345 = vector.multi_reduction <add>, %344, %cst_125 [0] : vector<4x8x64xf32> to vector<8x64xf32>
    %cst_126 = arith.constant dense<0.000000e+00> : vector<8x64xf32>
    %346 = tpu.matmul %345, %1, %cst_126 {dimension_numbers = #tpu.dot_dimension_numbers<[1], [0], [0], [1], [0, 0, 1, 1], [], []>} : vector<8x64xf32>, vector<64x64xf32>, vector<8x64xf32> -> vector<8x64xf32>
    %cst_127 = arith.constant dense<0.000000e+00> : vector<64xf32>
    %347 = vector.multi_reduction <add>, %346, %cst_127 [0] : vector<8x64xf32> to vector<64xf32>
    %348 = vector.shape_cast %347 : vector<64xf32> to vector<1x64xf32>
    %349 = vector.broadcast %348 : vector<1x64xf32> to vector<32x64xf32>
    %350 = arith.subf %343, %349 : vector<32x64xf32>
    %351 = arith.mulf %350, %350 : vector<32x64xf32>
    %352 = vector.shape_cast %351 : vector<32x64xf32> to vector<4x8x64xf32>
    %cst_128 = arith.constant dense<0.000000e+00> : vector<8x64xf32>
    %353 = vector.multi_reduction <add>, %352, %cst_128 [0] : vector<4x8x64xf32> to vector<8x64xf32>
    %cst_129 = arith.constant dense<0.000000e+00> : vector<8x64xf32>
    %354 = tpu.matmul %353, %1, %cst_129 {dimension_numbers = #tpu.dot_dimension_numbers<[1], [0], [0], [1], [0, 0, 1, 1], [], []>} : vector<8x64xf32>, vector<64x64xf32>, vector<8x64xf32> -> vector<8x64xf32>
    %cst_130 = arith.constant dense<0.000000e+00> : vector<64xf32>
    %355 = vector.multi_reduction <add>, %354, %cst_130 [0] : vector<8x64xf32> to vector<64xf32>
    %356 = vector.shape_cast %355 : vector<64xf32> to vector<1x64xf32>
    %cst_131 = arith.constant 9.99999974E-6 : f32
    %357 = vector.broadcast %cst_131 : f32 to vector<1x64xf32>
    %358 = arith.addf %356, %357 : vector<1x64xf32>
    %359 = math.rsqrt %358 : vector<1x64xf32>
    %360 = vector.broadcast %359 : vector<1x64xf32> to vector<32x64xf32>
    %361 = arith.mulf %350, %360 : vector<32x64xf32>
    %c7 = arith.constant 7 : index
    %362 = memref.load %arg1[%c7] : memref<8xf32, #tpu.memory_space<smem>>
    %363 = vector.broadcast %362 : f32 to vector<32x64xf32>
    %364 = arith.mulf %363, %361 : vector<32x64xf32>
    %365 = arith.addf %185, %364 : vector<32x64xf32>
    %c0_132 = arith.constant 0 : index
    %c0_133 = arith.constant 0 : index
    %366 = vector.load %arg4[%c0_132, %c0_133] : memref<9x64xf32, #tpu.memory_space<vmem>>, vector<9x64xf32>
    %c0_134 = arith.constant 0 : index
    %c3_135 = arith.constant 3 : index
    %c12_136 = arith.constant 12 : index
    %367 = vector.load %arg18[%c0_134, %c3_135, %c12_136] : memref<2x24x96xf32, #tpu.memory_space<vmem>>, vector<2x16x72xf32>
    %368 = vector.extract_strided_slice %366 {offsets = [0, 0], sizes = [1, 64], strides = [1, 1]} : vector<9x64xf32> to vector<1x64xf32>
    %369 = vector.extract_strided_slice %367 {offsets = [0, 0, 0], sizes = [2, 16, 64], strides = [1, 1, 1]} : vector<2x16x72xf32> to vector<2x16x64xf32>
    %370 = vector.shape_cast %368 : vector<1x64xf32> to vector<1x1x64xf32>
    %371 = vector.broadcast %370 : vector<1x1x64xf32> to vector<2x16x64xf32>
    %372 = arith.mulf %369, %371 : vector<2x16x64xf32>
    %373 = vector.extract_strided_slice %366 {offsets = [1, 0], sizes = [1, 64], strides = [1, 1]} : vector<9x64xf32> to vector<1x64xf32>
    %374 = vector.extract_strided_slice %367 {offsets = [0, 0, 4], sizes = [2, 16, 64], strides = [1, 1, 1]} : vector<2x16x72xf32> to vector<2x16x64xf32>
    %375 = vector.shape_cast %373 : vector<1x64xf32> to vector<1x1x64xf32>
    %376 = vector.broadcast %375 : vector<1x1x64xf32> to vector<2x16x64xf32>
    %377 = arith.mulf %374, %376 : vector<2x16x64xf32>
    %378 = arith.addf %372, %377 : vector<2x16x64xf32>
    %379 = vector.extract_strided_slice %366 {offsets = [2, 0], sizes = [1, 64], strides = [1, 1]} : vector<9x64xf32> to vector<1x64xf32>
    %380 = vector.extract_strided_slice %367 {offsets = [0, 0, 8], sizes = [2, 16, 64], strides = [1, 1, 1]} : vector<2x16x72xf32> to vector<2x16x64xf32>
    %381 = vector.shape_cast %379 : vector<1x64xf32> to vector<1x1x64xf32>
    %382 = vector.broadcast %381 : vector<1x1x64xf32> to vector<2x16x64xf32>
    %383 = arith.mulf %380, %382 : vector<2x16x64xf32>
    %384 = arith.addf %378, %383 : vector<2x16x64xf32>
    %c0_137 = arith.constant 0 : index
    %c4_138 = arith.constant 4 : index
    %c12_139 = arith.constant 12 : index
    %385 = vector.load %arg18[%c0_137, %c4_138, %c12_139] : memref<2x24x96xf32, #tpu.memory_space<vmem>>, vector<2x16x72xf32>
    %386 = vector.extract_strided_slice %366 {offsets = [3, 0], sizes = [1, 64], strides = [1, 1]} : vector<9x64xf32> to vector<1x64xf32>
    %387 = vector.extract_strided_slice %385 {offsets = [0, 0, 0], sizes = [2, 16, 64], strides = [1, 1, 1]} : vector<2x16x72xf32> to vector<2x16x64xf32>
    %388 = vector.shape_cast %386 : vector<1x64xf32> to vector<1x1x64xf32>
    %389 = vector.broadcast %388 : vector<1x1x64xf32> to vector<2x16x64xf32>
    %390 = arith.mulf %387, %389 : vector<2x16x64xf32>
    %391 = arith.addf %384, %390 : vector<2x16x64xf32>
    %392 = vector.extract_strided_slice %366 {offsets = [4, 0], sizes = [1, 64], strides = [1, 1]} : vector<9x64xf32> to vector<1x64xf32>
    %393 = vector.extract_strided_slice %385 {offsets = [0, 0, 4], sizes = [2, 16, 64], strides = [1, 1, 1]} : vector<2x16x72xf32> to vector<2x16x64xf32>
    %394 = vector.shape_cast %392 : vector<1x64xf32> to vector<1x1x64xf32>
    %395 = vector.broadcast %394 : vector<1x1x64xf32> to vector<2x16x64xf32>
    %396 = arith.mulf %393, %395 : vector<2x16x64xf32>
    %397 = arith.addf %391, %396 : vector<2x16x64xf32>
    %398 = vector.extract_strided_slice %366 {offsets = [5, 0], sizes = [1, 64], strides = [1, 1]} : vector<9x64xf32> to vector<1x64xf32>
    %399 = vector.extract_strided_slice %385 {offsets = [0, 0, 8], sizes = [2, 16, 64], strides = [1, 1, 1]} : vector<2x16x72xf32> to vector<2x16x64xf32>
    %400 = vector.shape_cast %398 : vector<1x64xf32> to vector<1x1x64xf32>
    %401 = vector.broadcast %400 : vector<1x1x64xf32> to vector<2x16x64xf32>
    %402 = arith.mulf %399, %401 : vector<2x16x64xf32>
    %403 = arith.addf %397, %402 : vector<2x16x64xf32>
    %c0_140 = arith.constant 0 : index
    %c5 = arith.constant 5 : index
    %c12_141 = arith.constant 12 : index
    %404 = vector.load %arg18[%c0_140, %c5, %c12_141] : memref<2x24x96xf32, #tpu.memory_space<vmem>>, vector<2x16x72xf32>
    %405 = vector.extract_strided_slice %366 {offsets = [6, 0], sizes = [1, 64], strides = [1, 1]} : vector<9x64xf32> to vector<1x64xf32>
    %406 = vector.extract_strided_slice %404 {offsets = [0, 0, 0], sizes = [2, 16, 64], strides = [1, 1, 1]} : vector<2x16x72xf32> to vector<2x16x64xf32>
    %407 = vector.shape_cast %405 : vector<1x64xf32> to vector<1x1x64xf32>
    %408 = vector.broadcast %407 : vector<1x1x64xf32> to vector<2x16x64xf32>
    %409 = arith.mulf %406, %408 : vector<2x16x64xf32>
    %410 = arith.addf %403, %409 : vector<2x16x64xf32>
    %411 = vector.extract_strided_slice %366 {offsets = [7, 0], sizes = [1, 64], strides = [1, 1]} : vector<9x64xf32> to vector<1x64xf32>
    %412 = vector.extract_strided_slice %404 {offsets = [0, 0, 4], sizes = [2, 16, 64], strides = [1, 1, 1]} : vector<2x16x72xf32> to vector<2x16x64xf32>
    %413 = vector.shape_cast %411 : vector<1x64xf32> to vector<1x1x64xf32>
    %414 = vector.broadcast %413 : vector<1x1x64xf32> to vector<2x16x64xf32>
    %415 = arith.mulf %412, %414 : vector<2x16x64xf32>
    %416 = arith.addf %410, %415 : vector<2x16x64xf32>
    %417 = vector.extract_strided_slice %366 {offsets = [8, 0], sizes = [1, 64], strides = [1, 1]} : vector<9x64xf32> to vector<1x64xf32>
    %418 = vector.extract_strided_slice %404 {offsets = [0, 0, 8], sizes = [2, 16, 64], strides = [1, 1, 1]} : vector<2x16x72xf32> to vector<2x16x64xf32>
    %419 = vector.shape_cast %417 : vector<1x64xf32> to vector<1x1x64xf32>
    %420 = vector.broadcast %419 : vector<1x1x64xf32> to vector<2x16x64xf32>
    %421 = arith.mulf %418, %420 : vector<2x16x64xf32>
    %422 = arith.addf %416, %421 : vector<2x16x64xf32>
    %423 = vector.shape_cast %422 : vector<2x16x64xf32> to vector<32x64xf32>
    %c0_142 = arith.constant 0 : index
    %c0_143 = arith.constant 0 : index
    %424 = vector.load %arg5[%c0_142, %c0_143] : memref<64x64xf32, #tpu.memory_space<vmem>>, vector<64x64xf32>
    %cst_144 = arith.constant dense<0.000000e+00> : vector<32x64xf32>
    %425 = tpu.matmul %423, %424, %cst_144 {dimension_numbers = #tpu.dot_dimension_numbers<[1], [0], [0], [1], [0, 0, 1, 1], [], []>} : vector<32x64xf32>, vector<64x64xf32>, vector<32x64xf32> -> vector<32x64xf32>
    %426 = vector.shape_cast %425 : vector<32x64xf32> to vector<4x8x64xf32>
    %cst_145 = arith.constant dense<0.000000e+00> : vector<8x64xf32>
    %427 = vector.multi_reduction <add>, %426, %cst_145 [0] : vector<4x8x64xf32> to vector<8x64xf32>
    %cst_146 = arith.constant dense<0.000000e+00> : vector<8x64xf32>
    %428 = tpu.matmul %427, %1, %cst_146 {dimension_numbers = #tpu.dot_dimension_numbers<[1], [0], [0], [1], [0, 0, 1, 1], [], []>} : vector<8x64xf32>, vector<64x64xf32>, vector<8x64xf32> -> vector<8x64xf32>
    %cst_147 = arith.constant dense<0.000000e+00> : vector<64xf32>
    %429 = vector.multi_reduction <add>, %428, %cst_147 [0] : vector<8x64xf32> to vector<64xf32>
    %430 = vector.shape_cast %429 : vector<64xf32> to vector<1x64xf32>
    %431 = vector.broadcast %430 : vector<1x64xf32> to vector<32x64xf32>
    %432 = arith.subf %425, %431 : vector<32x64xf32>
    %433 = arith.mulf %432, %432 : vector<32x64xf32>
    %434 = vector.shape_cast %433 : vector<32x64xf32> to vector<4x8x64xf32>
    %cst_148 = arith.constant dense<0.000000e+00> : vector<8x64xf32>
    %435 = vector.multi_reduction <add>, %434, %cst_148 [0] : vector<4x8x64xf32> to vector<8x64xf32>
    %cst_149 = arith.constant dense<0.000000e+00> : vector<8x64xf32>
    %436 = tpu.matmul %435, %1, %cst_149 {dimension_numbers = #tpu.dot_dimension_numbers<[1], [0], [0], [1], [0, 0, 1, 1], [], []>} : vector<8x64xf32>, vector<64x64xf32>, vector<8x64xf32> -> vector<8x64xf32>
    %cst_150 = arith.constant dense<0.000000e+00> : vector<64xf32>
    %437 = vector.multi_reduction <add>, %436, %cst_150 [0] : vector<8x64xf32> to vector<64xf32>
    %438 = vector.shape_cast %437 : vector<64xf32> to vector<1x64xf32>
    %cst_151 = arith.constant 9.99999974E-6 : f32
    %439 = vector.broadcast %cst_151 : f32 to vector<1x64xf32>
    %440 = arith.addf %438, %439 : vector<1x64xf32>
    %441 = math.rsqrt %440 : vector<1x64xf32>
    %442 = vector.broadcast %441 : vector<1x64xf32> to vector<32x64xf32>
    %443 = arith.mulf %432, %442 : vector<32x64xf32>
    %cst_152 = arith.constant 0.000000e+00 : f32
    %444 = vector.broadcast %cst_152 : f32 to vector<32x64xf32>
    %445 = arith.maximumf %443, %444 : vector<32x64xf32>
    %446 = vector.shape_cast %445 : vector<32x64xf32> to vector<2x16x64xf32>
    %c0_153 = arith.constant 0 : index
    %c2_154 = arith.constant 2 : index
    %c8_155 = arith.constant 8 : index
    %447 = vector.load %arg17[%c0_153, %c2_154, %c8_155] : memref<2x20x80xf32, #tpu.memory_space<vmem>>, vector<2x16x64xf32>
    tpu.vector_store %arg17[%c0_153, %c2_154, %c8_155], %446 {strides = array<i32>} : memref<2x20x80xf32, #tpu.memory_space<vmem>>, vector<2x16x64xf32>,
    %c0_156 = arith.constant 0 : index
    %c0_157 = arith.constant 0 : index
    %448 = vector.load %arg6[%c0_156, %c0_157] : memref<9x64xf32, #tpu.memory_space<vmem>>, vector<9x64xf32>
    %c0_158 = arith.constant 0 : index
    %c1_159 = arith.constant 1 : index
    %c4_160 = arith.constant 4 : index
    %449 = vector.load %arg17[%c0_158, %c1_159, %c4_160] : memref<2x20x80xf32, #tpu.memory_space<vmem>>, vector<2x16x72xf32>
    %450 = vector.extract_strided_slice %448 {offsets = [0, 0], sizes = [1, 64], strides = [1, 1]} : vector<9x64xf32> to vector<1x64xf32>
    %451 = vector.extract_strided_slice %449 {offsets = [0, 0, 0], sizes = [2, 16, 64], strides = [1, 1, 1]} : vector<2x16x72xf32> to vector<2x16x64xf32>
    %452 = vector.shape_cast %450 : vector<1x64xf32> to vector<1x1x64xf32>
    %453 = vector.broadcast %452 : vector<1x1x64xf32> to vector<2x16x64xf32>
    %454 = arith.mulf %451, %453 : vector<2x16x64xf32>
    %455 = vector.extract_strided_slice %448 {offsets = [1, 0], sizes = [1, 64], strides = [1, 1]} : vector<9x64xf32> to vector<1x64xf32>
    %456 = vector.extract_strided_slice %449 {offsets = [0, 0, 4], sizes = [2, 16, 64], strides = [1, 1, 1]} : vector<2x16x72xf32> to vector<2x16x64xf32>
    %457 = vector.shape_cast %455 : vector<1x64xf32> to vector<1x1x64xf32>
    %458 = vector.broadcast %457 : vector<1x1x64xf32> to vector<2x16x64xf32>
    %459 = arith.mulf %456, %458 : vector<2x16x64xf32>
    %460 = arith.addf %454, %459 : vector<2x16x64xf32>
    %461 = vector.extract_strided_slice %448 {offsets = [2, 0], sizes = [1, 64], strides = [1, 1]} : vector<9x64xf32> to vector<1x64xf32>
    %462 = vector.extract_strided_slice %449 {offsets = [0, 0, 8], sizes = [2, 16, 64], strides = [1, 1, 1]} : vector<2x16x72xf32> to vector<2x16x64xf32>
    %463 = vector.shape_cast %461 : vector<1x64xf32> to vector<1x1x64xf32>
    %464 = vector.broadcast %463 : vector<1x1x64xf32> to vector<2x16x64xf32>
    %465 = arith.mulf %462, %464 : vector<2x16x64xf32>
    %466 = arith.addf %460, %465 : vector<2x16x64xf32>
    %c0_161 = arith.constant 0 : index
    %c2_162 = arith.constant 2 : index
    %c4_163 = arith.constant 4 : index
    %467 = vector.load %arg17[%c0_161, %c2_162, %c4_163] : memref<2x20x80xf32, #tpu.memory_space<vmem>>, vector<2x16x72xf32>
    %468 = vector.extract_strided_slice %448 {offsets = [3, 0], sizes = [1, 64], strides = [1, 1]} : vector<9x64xf32> to vector<1x64xf32>
    %469 = vector.extract_strided_slice %467 {offsets = [0, 0, 0], sizes = [2, 16, 64], strides = [1, 1, 1]} : vector<2x16x72xf32> to vector<2x16x64xf32>
    %470 = vector.shape_cast %468 : vector<1x64xf32> to vector<1x1x64xf32>
    %471 = vector.broadcast %470 : vector<1x1x64xf32> to vector<2x16x64xf32>
    %472 = arith.mulf %469, %471 : vector<2x16x64xf32>
    %473 = arith.addf %466, %472 : vector<2x16x64xf32>
    %474 = vector.extract_strided_slice %448 {offsets = [4, 0], sizes = [1, 64], strides = [1, 1]} : vector<9x64xf32> to vector<1x64xf32>
    %475 = vector.extract_strided_slice %467 {offsets = [0, 0, 4], sizes = [2, 16, 64], strides = [1, 1, 1]} : vector<2x16x72xf32> to vector<2x16x64xf32>
    %476 = vector.shape_cast %474 : vector<1x64xf32> to vector<1x1x64xf32>
    %477 = vector.broadcast %476 : vector<1x1x64xf32> to vector<2x16x64xf32>
    %478 = arith.mulf %475, %477 : vector<2x16x64xf32>
    %479 = arith.addf %473, %478 : vector<2x16x64xf32>
    %480 = vector.extract_strided_slice %448 {offsets = [5, 0], sizes = [1, 64], strides = [1, 1]} : vector<9x64xf32> to vector<1x64xf32>
    %481 = vector.extract_strided_slice %467 {offsets = [0, 0, 8], sizes = [2, 16, 64], strides = [1, 1, 1]} : vector<2x16x72xf32> to vector<2x16x64xf32>
    %482 = vector.shape_cast %480 : vector<1x64xf32> to vector<1x1x64xf32>
    %483 = vector.broadcast %482 : vector<1x1x64xf32> to vector<2x16x64xf32>
    %484 = arith.mulf %481, %483 : vector<2x16x64xf32>
    %485 = arith.addf %479, %484 : vector<2x16x64xf32>
    %c0_164 = arith.constant 0 : index
    %c3_165 = arith.constant 3 : index
    %c4_166 = arith.constant 4 : index
    %486 = vector.load %arg17[%c0_164, %c3_165, %c4_166] : memref<2x20x80xf32, #tpu.memory_space<vmem>>, vector<2x16x72xf32>
    %487 = vector.extract_strided_slice %448 {offsets = [6, 0], sizes = [1, 64], strides = [1, 1]} : vector<9x64xf32> to vector<1x64xf32>
    %488 = vector.extract_strided_slice %486 {offsets = [0, 0, 0], sizes = [2, 16, 64], strides = [1, 1, 1]} : vector<2x16x72xf32> to vector<2x16x64xf32>
    %489 = vector.shape_cast %487 : vector<1x64xf32> to vector<1x1x64xf32>
    %490 = vector.broadcast %489 : vector<1x1x64xf32> to vector<2x16x64xf32>
    %491 = arith.mulf %488, %490 : vector<2x16x64xf32>
    %492 = arith.addf %485, %491 : vector<2x16x64xf32>
    %493 = vector.extract_strided_slice %448 {offsets = [7, 0], sizes = [1, 64], strides = [1, 1]} : vector<9x64xf32> to vector<1x64xf32>
    %494 = vector.extract_strided_slice %486 {offsets = [0, 0, 4], sizes = [2, 16, 64], strides = [1, 1, 1]} : vector<2x16x72xf32> to vector<2x16x64xf32>
    %495 = vector.shape_cast %493 : vector<1x64xf32> to vector<1x1x64xf32>
    %496 = vector.broadcast %495 : vector<1x1x64xf32> to vector<2x16x64xf32>
    %497 = arith.mulf %494, %496 : vector<2x16x64xf32>
    %498 = arith.addf %492, %497 : vector<2x16x64xf32>
    %499 = vector.extract_strided_slice %448 {offsets = [8, 0], sizes = [1, 64], strides = [1, 1]} : vector<9x64xf32> to vector<1x64xf32>
    %500 = vector.extract_strided_slice %486 {offsets = [0, 0, 8], sizes = [2, 16, 64], strides = [1, 1, 1]} : vector<2x16x72xf32> to vector<2x16x64xf32>
    %501 = vector.shape_cast %499 : vector<1x64xf32> to vector<1x1x64xf32>
    %502 = vector.broadcast %501 : vector<1x1x64xf32> to vector<2x16x64xf32>
    %503 = arith.mulf %500, %502 : vector<2x16x64xf32>
    %504 = arith.addf %498, %503 : vector<2x16x64xf32>
    %505 = vector.shape_cast %504 : vector<2x16x64xf32> to vector<32x64xf32>
    %c0_167 = arith.constant 0 : index
    %c0_168 = arith.constant 0 : index
    %506 = vector.load %arg7[%c0_167, %c0_168] : memref<64x64xf32, #tpu.memory_space<vmem>>, vector<64x64xf32>
    %cst_169 = arith.constant dense<0.000000e+00> : vector<32x64xf32>
    %507 = tpu.matmul %505, %506, %cst_169 {dimension_numbers = #tpu.dot_dimension_numbers<[1], [0], [0], [1], [0, 0, 1, 1], [], []>} : vector<32x64xf32>, vector<64x64xf32>, vector<32x64xf32> -> vector<32x64xf32>
    %508 = vector.shape_cast %507 : vector<32x64xf32> to vector<4x8x64xf32>
    %cst_170 = arith.constant dense<0.000000e+00> : vector<8x64xf32>
    %509 = vector.multi_reduction <add>, %508, %cst_170 [0] : vector<4x8x64xf32> to vector<8x64xf32>
    %cst_171 = arith.constant dense<0.000000e+00> : vector<8x64xf32>
    %510 = tpu.matmul %509, %1, %cst_171 {dimension_numbers = #tpu.dot_dimension_numbers<[1], [0], [0], [1], [0, 0, 1, 1], [], []>} : vector<8x64xf32>, vector<64x64xf32>, vector<8x64xf32> -> vector<8x64xf32>
    %cst_172 = arith.constant dense<0.000000e+00> : vector<64xf32>
    %511 = vector.multi_reduction <add>, %510, %cst_172 [0] : vector<8x64xf32> to vector<64xf32>
    %512 = vector.shape_cast %511 : vector<64xf32> to vector<1x64xf32>
    %513 = vector.broadcast %512 : vector<1x64xf32> to vector<32x64xf32>
    %514 = arith.subf %507, %513 : vector<32x64xf32>
    %515 = arith.mulf %514, %514 : vector<32x64xf32>
    %516 = vector.shape_cast %515 : vector<32x64xf32> to vector<4x8x64xf32>
    %cst_173 = arith.constant dense<0.000000e+00> : vector<8x64xf32>
    %517 = vector.multi_reduction <add>, %516, %cst_173 [0] : vector<4x8x64xf32> to vector<8x64xf32>
    %cst_174 = arith.constant dense<0.000000e+00> : vector<8x64xf32>
    %518 = tpu.matmul %517, %1, %cst_174 {dimension_numbers = #tpu.dot_dimension_numbers<[1], [0], [0], [1], [0, 0, 1, 1], [], []>} : vector<8x64xf32>, vector<64x64xf32>, vector<8x64xf32> -> vector<8x64xf32>
    %cst_175 = arith.constant dense<0.000000e+00> : vector<64xf32>
    %519 = vector.multi_reduction <add>, %518, %cst_175 [0] : vector<8x64xf32> to vector<64xf32>
    %520 = vector.shape_cast %519 : vector<64xf32> to vector<1x64xf32>
    %cst_176 = arith.constant 9.99999974E-6 : f32
    %521 = vector.broadcast %cst_176 : f32 to vector<1x64xf32>
    %522 = arith.addf %520, %521 : vector<1x64xf32>
    %523 = math.rsqrt %522 : vector<1x64xf32>
    %524 = vector.broadcast %523 : vector<1x64xf32> to vector<32x64xf32>
    %525 = arith.mulf %514, %524 : vector<32x64xf32>
    %c4_177 = arith.constant 4 : index
    %526 = memref.load %arg1[%c4_177] : memref<8xf32, #tpu.memory_space<smem>>
    %527 = vector.broadcast %526 : f32 to vector<32x64xf32>
    %528 = arith.mulf %527, %525 : vector<32x64xf32>
    %529 = arith.addf %365, %528 : vector<32x64xf32>
    %c0_178 = arith.constant 0 : index
    %c0_179 = arith.constant 0 : index
    %530 = vector.load %arg8[%c0_178, %c0_179] : memref<25x64xf32, #tpu.memory_space<vmem>>, vector<25x64xf32>
    %c0_180 = arith.constant 0 : index
    %c2_181 = arith.constant 2 : index
    %c8_182 = arith.constant 8 : index
    %531 = vector.load %arg18[%c0_180, %c2_181, %c8_182] : memref<2x24x96xf32, #tpu.memory_space<vmem>>, vector<2x16x80xf32>
    %532 = vector.extract_strided_slice %530 {offsets = [0, 0], sizes = [1, 64], strides = [1, 1]} : vector<25x64xf32> to vector<1x64xf32>
    %533 = vector.extract_strided_slice %531 {offsets = [0, 0, 0], sizes = [2, 16, 64], strides = [1, 1, 1]} : vector<2x16x80xf32> to vector<2x16x64xf32>
    %534 = vector.shape_cast %532 : vector<1x64xf32> to vector<1x1x64xf32>
    %535 = vector.broadcast %534 : vector<1x1x64xf32> to vector<2x16x64xf32>
    %536 = arith.mulf %533, %535 : vector<2x16x64xf32>
    %537 = vector.extract_strided_slice %530 {offsets = [1, 0], sizes = [1, 64], strides = [1, 1]} : vector<25x64xf32> to vector<1x64xf32>
    %538 = vector.extract_strided_slice %531 {offsets = [0, 0, 4], sizes = [2, 16, 64], strides = [1, 1, 1]} : vector<2x16x80xf32> to vector<2x16x64xf32>
    %539 = vector.shape_cast %537 : vector<1x64xf32> to vector<1x1x64xf32>
    %540 = vector.broadcast %539 : vector<1x1x64xf32> to vector<2x16x64xf32>
    %541 = arith.mulf %538, %540 : vector<2x16x64xf32>
    %542 = arith.addf %536, %541 : vector<2x16x64xf32>
    %543 = vector.extract_strided_slice %530 {offsets = [2, 0], sizes = [1, 64], strides = [1, 1]} : vector<25x64xf32> to vector<1x64xf32>
    %544 = vector.extract_strided_slice %531 {offsets = [0, 0, 8], sizes = [2, 16, 64], strides = [1, 1, 1]} : vector<2x16x80xf32> to vector<2x16x64xf32>
    %545 = vector.shape_cast %543 : vector<1x64xf32> to vector<1x1x64xf32>
    %546 = vector.broadcast %545 : vector<1x1x64xf32> to vector<2x16x64xf32>
    %547 = arith.mulf %544, %546 : vector<2x16x64xf32>
    %548 = arith.addf %542, %547 : vector<2x16x64xf32>
    %549 = vector.extract_strided_slice %530 {offsets = [3, 0], sizes = [1, 64], strides = [1, 1]} : vector<25x64xf32> to vector<1x64xf32>
    %550 = vector.extract_strided_slice %531 {offsets = [0, 0, 12], sizes = [2, 16, 64], strides = [1, 1, 1]} : vector<2x16x80xf32> to vector<2x16x64xf32>
    %551 = vector.shape_cast %549 : vector<1x64xf32> to vector<1x1x64xf32>
    %552 = vector.broadcast %551 : vector<1x1x64xf32> to vector<2x16x64xf32>
    %553 = arith.mulf %550, %552 : vector<2x16x64xf32>
    %554 = arith.addf %548, %553 : vector<2x16x64xf32>
    %555 = vector.extract_strided_slice %530 {offsets = [4, 0], sizes = [1, 64], strides = [1, 1]} : vector<25x64xf32> to vector<1x64xf32>
    %556 = vector.extract_strided_slice %531 {offsets = [0, 0, 16], sizes = [2, 16, 64], strides = [1, 1, 1]} : vector<2x16x80xf32> to vector<2x16x64xf32>
    %557 = vector.shape_cast %555 : vector<1x64xf32> to vector<1x1x64xf32>
    %558 = vector.broadcast %557 : vector<1x1x64xf32> to vector<2x16x64xf32>
    %559 = arith.mulf %556, %558 : vector<2x16x64xf32>
    %560 = arith.addf %554, %559 : vector<2x16x64xf32>
    %c0_183 = arith.constant 0 : index
    %c3_184 = arith.constant 3 : index
    %c8_185 = arith.constant 8 : index
    %561 = vector.load %arg18[%c0_183, %c3_184, %c8_185] : memref<2x24x96xf32, #tpu.memory_space<vmem>>, vector<2x16x80xf32>
    %562 = vector.extract_strided_slice %530 {offsets = [5, 0], sizes = [1, 64], strides = [1, 1]} : vector<25x64xf32> to vector<1x64xf32>
    %563 = vector.extract_strided_slice %561 {offsets = [0, 0, 0], sizes = [2, 16, 64], strides = [1, 1, 1]} : vector<2x16x80xf32> to vector<2x16x64xf32>
    %564 = vector.shape_cast %562 : vector<1x64xf32> to vector<1x1x64xf32>
    %565 = vector.broadcast %564 : vector<1x1x64xf32> to vector<2x16x64xf32>
    %566 = arith.mulf %563, %565 : vector<2x16x64xf32>
    %567 = arith.addf %560, %566 : vector<2x16x64xf32>
    %568 = vector.extract_strided_slice %530 {offsets = [6, 0], sizes = [1, 64], strides = [1, 1]} : vector<25x64xf32> to vector<1x64xf32>
    %569 = vector.extract_strided_slice %561 {offsets = [0, 0, 4], sizes = [2, 16, 64], strides = [1, 1, 1]} : vector<2x16x80xf32> to vector<2x16x64xf32>
    %570 = vector.shape_cast %568 : vector<1x64xf32> to vector<1x1x64xf32>
    %571 = vector.broadcast %570 : vector<1x1x64xf32> to vector<2x16x64xf32>
    %572 = arith.mulf %569, %571 : vector<2x16x64xf32>
    %573 = arith.addf %567, %572 : vector<2x16x64xf32>
    %574 = vector.extract_strided_slice %530 {offsets = [7, 0], sizes = [1, 64], strides = [1, 1]} : vector<25x64xf32> to vector<1x64xf32>
    %575 = vector.extract_strided_slice %561 {offsets = [0, 0, 8], sizes = [2, 16, 64], strides = [1, 1, 1]} : vector<2x16x80xf32> to vector<2x16x64xf32>
    %576 = vector.shape_cast %574 : vector<1x64xf32> to vector<1x1x64xf32>
    %577 = vector.broadcast %576 : vector<1x1x64xf32> to vector<2x16x64xf32>
    %578 = arith.mulf %575, %577 : vector<2x16x64xf32>
    %579 = arith.addf %573, %578 : vector<2x16x64xf32>
    %580 = vector.extract_strided_slice %530 {offsets = [8, 0], sizes = [1, 64], strides = [1, 1]} : vector<25x64xf32> to vector<1x64xf32>
    %581 = vector.extract_strided_slice %561 {offsets = [0, 0, 12], sizes = [2, 16, 64], strides = [1, 1, 1]} : vector<2x16x80xf32> to vector<2x16x64xf32>
    %582 = vector.shape_cast %580 : vector<1x64xf32> to vector<1x1x64xf32>
    %583 = vector.broadcast %582 : vector<1x1x64xf32> to vector<2x16x64xf32>
    %584 = arith.mulf %581, %583 : vector<2x16x64xf32>
    %585 = arith.addf %579, %584 : vector<2x16x64xf32>
    %586 = vector.extract_strided_slice %530 {offsets = [9, 0], sizes = [1, 64], strides = [1, 1]} : vector<25x64xf32> to vector<1x64xf32>
    %587 = vector.extract_strided_slice %561 {offsets = [0, 0, 16], sizes = [2, 16, 64], strides = [1, 1, 1]} : vector<2x16x80xf32> to vector<2x16x64xf32>
    %588 = vector.shape_cast %586 : vector<1x64xf32> to vector<1x1x64xf32>
    %589 = vector.broadcast %588 : vector<1x1x64xf32> to vector<2x16x64xf32>
    %590 = arith.mulf %587, %589 : vector<2x16x64xf32>
    %591 = arith.addf %585, %590 : vector<2x16x64xf32>
    %c0_186 = arith.constant 0 : index
    %c4_187 = arith.constant 4 : index
    %c8_188 = arith.constant 8 : index
    %592 = vector.load %arg18[%c0_186, %c4_187, %c8_188] : memref<2x24x96xf32, #tpu.memory_space<vmem>>, vector<2x16x80xf32>
    %593 = vector.extract_strided_slice %530 {offsets = [10, 0], sizes = [1, 64], strides = [1, 1]} : vector<25x64xf32> to vector<1x64xf32>
    %594 = vector.extract_strided_slice %592 {offsets = [0, 0, 0], sizes = [2, 16, 64], strides = [1, 1, 1]} : vector<2x16x80xf32> to vector<2x16x64xf32>
    %595 = vector.shape_cast %593 : vector<1x64xf32> to vector<1x1x64xf32>
    %596 = vector.broadcast %595 : vector<1x1x64xf32> to vector<2x16x64xf32>
    %597 = arith.mulf %594, %596 : vector<2x16x64xf32>
    %598 = arith.addf %591, %597 : vector<2x16x64xf32>
    %599 = vector.extract_strided_slice %530 {offsets = [11, 0], sizes = [1, 64], strides = [1, 1]} : vector<25x64xf32> to vector<1x64xf32>
    %600 = vector.extract_strided_slice %592 {offsets = [0, 0, 4], sizes = [2, 16, 64], strides = [1, 1, 1]} : vector<2x16x80xf32> to vector<2x16x64xf32>
    %601 = vector.shape_cast %599 : vector<1x64xf32> to vector<1x1x64xf32>
    %602 = vector.broadcast %601 : vector<1x1x64xf32> to vector<2x16x64xf32>
    %603 = arith.mulf %600, %602 : vector<2x16x64xf32>
    %604 = arith.addf %598, %603 : vector<2x16x64xf32>
    %605 = vector.extract_strided_slice %530 {offsets = [12, 0], sizes = [1, 64], strides = [1, 1]} : vector<25x64xf32> to vector<1x64xf32>
    %606 = vector.extract_strided_slice %592 {offsets = [0, 0, 8], sizes = [2, 16, 64], strides = [1, 1, 1]} : vector<2x16x80xf32> to vector<2x16x64xf32>
    %607 = vector.shape_cast %605 : vector<1x64xf32> to vector<1x1x64xf32>
    %608 = vector.broadcast %607 : vector<1x1x64xf32> to vector<2x16x64xf32>
    %609 = arith.mulf %606, %608 : vector<2x16x64xf32>
    %610 = arith.addf %604, %609 : vector<2x16x64xf32>
    %611 = vector.extract_strided_slice %530 {offsets = [13, 0], sizes = [1, 64], strides = [1, 1]} : vector<25x64xf32> to vector<1x64xf32>
    %612 = vector.extract_strided_slice %592 {offsets = [0, 0, 12], sizes = [2, 16, 64], strides = [1, 1, 1]} : vector<2x16x80xf32> to vector<2x16x64xf32>
    %613 = vector.shape_cast %611 : vector<1x64xf32> to vector<1x1x64xf32>
    %614 = vector.broadcast %613 : vector<1x1x64xf32> to vector<2x16x64xf32>
    %615 = arith.mulf %612, %614 : vector<2x16x64xf32>
    %616 = arith.addf %610, %615 : vector<2x16x64xf32>
    %617 = vector.extract_strided_slice %530 {offsets = [14, 0], sizes = [1, 64], strides = [1, 1]} : vector<25x64xf32> to vector<1x64xf32>
    %618 = vector.extract_strided_slice %592 {offsets = [0, 0, 16], sizes = [2, 16, 64], strides = [1, 1, 1]} : vector<2x16x80xf32> to vector<2x16x64xf32>
    %619 = vector.shape_cast %617 : vector<1x64xf32> to vector<1x1x64xf32>
    %620 = vector.broadcast %619 : vector<1x1x64xf32> to vector<2x16x64xf32>
    %621 = arith.mulf %618, %620 : vector<2x16x64xf32>
    %622 = arith.addf %616, %621 : vector<2x16x64xf32>
    %c0_189 = arith.constant 0 : index
    %c5_190 = arith.constant 5 : index
    %c8_191 = arith.constant 8 : index
    %623 = vector.load %arg18[%c0_189, %c5_190, %c8_191] : memref<2x24x96xf32, #tpu.memory_space<vmem>>, vector<2x16x80xf32>
    %624 = vector.extract_strided_slice %530 {offsets = [15, 0], sizes = [1, 64], strides = [1, 1]} : vector<25x64xf32> to vector<1x64xf32>
    %625 = vector.extract_strided_slice %623 {offsets = [0, 0, 0], sizes = [2, 16, 64], strides = [1, 1, 1]} : vector<2x16x80xf32> to vector<2x16x64xf32>
    %626 = vector.shape_cast %624 : vector<1x64xf32> to vector<1x1x64xf32>
    %627 = vector.broadcast %626 : vector<1x1x64xf32> to vector<2x16x64xf32>
    %628 = arith.mulf %625, %627 : vector<2x16x64xf32>
    %629 = arith.addf %622, %628 : vector<2x16x64xf32>
    %630 = vector.extract_strided_slice %530 {offsets = [16, 0], sizes = [1, 64], strides = [1, 1]} : vector<25x64xf32> to vector<1x64xf32>
    %631 = vector.extract_strided_slice %623 {offsets = [0, 0, 4], sizes = [2, 16, 64], strides = [1, 1, 1]} : vector<2x16x80xf32> to vector<2x16x64xf32>
    %632 = vector.shape_cast %630 : vector<1x64xf32> to vector<1x1x64xf32>
    %633 = vector.broadcast %632 : vector<1x1x64xf32> to vector<2x16x64xf32>
    %634 = arith.mulf %631, %633 : vector<2x16x64xf32>
    %635 = arith.addf %629, %634 : vector<2x16x64xf32>
    %636 = vector.extract_strided_slice %530 {offsets = [17, 0], sizes = [1, 64], strides = [1, 1]} : vector<25x64xf32> to vector<1x64xf32>
    %637 = vector.extract_strided_slice %623 {offsets = [0, 0, 8], sizes = [2, 16, 64], strides = [1, 1, 1]} : vector<2x16x80xf32> to vector<2x16x64xf32>
    %638 = vector.shape_cast %636 : vector<1x64xf32> to vector<1x1x64xf32>
    %639 = vector.broadcast %638 : vector<1x1x64xf32> to vector<2x16x64xf32>
    %640 = arith.mulf %637, %639 : vector<2x16x64xf32>
    %641 = arith.addf %635, %640 : vector<2x16x64xf32>
    %642 = vector.extract_strided_slice %530 {offsets = [18, 0], sizes = [1, 64], strides = [1, 1]} : vector<25x64xf32> to vector<1x64xf32>
    %643 = vector.extract_strided_slice %623 {offsets = [0, 0, 12], sizes = [2, 16, 64], strides = [1, 1, 1]} : vector<2x16x80xf32> to vector<2x16x64xf32>
    %644 = vector.shape_cast %642 : vector<1x64xf32> to vector<1x1x64xf32>
    %645 = vector.broadcast %644 : vector<1x1x64xf32> to vector<2x16x64xf32>
    %646 = arith.mulf %643, %645 : vector<2x16x64xf32>
    %647 = arith.addf %641, %646 : vector<2x16x64xf32>
    %648 = vector.extract_strided_slice %530 {offsets = [19, 0], sizes = [1, 64], strides = [1, 1]} : vector<25x64xf32> to vector<1x64xf32>
    %649 = vector.extract_strided_slice %623 {offsets = [0, 0, 16], sizes = [2, 16, 64], strides = [1, 1, 1]} : vector<2x16x80xf32> to vector<2x16x64xf32>
    %650 = vector.shape_cast %648 : vector<1x64xf32> to vector<1x1x64xf32>
    %651 = vector.broadcast %650 : vector<1x1x64xf32> to vector<2x16x64xf32>
    %652 = arith.mulf %649, %651 : vector<2x16x64xf32>
    %653 = arith.addf %647, %652 : vector<2x16x64xf32>
    %c0_192 = arith.constant 0 : index
    %c6_193 = arith.constant 6 : index
    %c8_194 = arith.constant 8 : index
    %654 = vector.load %arg18[%c0_192, %c6_193, %c8_194] : memref<2x24x96xf32, #tpu.memory_space<vmem>>, vector<2x16x80xf32>
    %655 = vector.extract_strided_slice %530 {offsets = [20, 0], sizes = [1, 64], strides = [1, 1]} : vector<25x64xf32> to vector<1x64xf32>
    %656 = vector.extract_strided_slice %654 {offsets = [0, 0, 0], sizes = [2, 16, 64], strides = [1, 1, 1]} : vector<2x16x80xf32> to vector<2x16x64xf32>
    %657 = vector.shape_cast %655 : vector<1x64xf32> to vector<1x1x64xf32>
    %658 = vector.broadcast %657 : vector<1x1x64xf32> to vector<2x16x64xf32>
    %659 = arith.mulf %656, %658 : vector<2x16x64xf32>
    %660 = arith.addf %653, %659 : vector<2x16x64xf32>
    %661 = vector.extract_strided_slice %530 {offsets = [21, 0], sizes = [1, 64], strides = [1, 1]} : vector<25x64xf32> to vector<1x64xf32>
    %662 = vector.extract_strided_slice %654 {offsets = [0, 0, 4], sizes = [2, 16, 64], strides = [1, 1, 1]} : vector<2x16x80xf32> to vector<2x16x64xf32>
    %663 = vector.shape_cast %661 : vector<1x64xf32> to vector<1x1x64xf32>
    %664 = vector.broadcast %663 : vector<1x1x64xf32> to vector<2x16x64xf32>
    %665 = arith.mulf %662, %664 : vector<2x16x64xf32>
    %666 = arith.addf %660, %665 : vector<2x16x64xf32>
    %667 = vector.extract_strided_slice %530 {offsets = [22, 0], sizes = [1, 64], strides = [1, 1]} : vector<25x64xf32> to vector<1x64xf32>
    %668 = vector.extract_strided_slice %654 {offsets = [0, 0, 8], sizes = [2, 16, 64], strides = [1, 1, 1]} : vector<2x16x80xf32> to vector<2x16x64xf32>
    %669 = vector.shape_cast %667 : vector<1x64xf32> to vector<1x1x64xf32>
    %670 = vector.broadcast %669 : vector<1x1x64xf32> to vector<2x16x64xf32>
    %671 = arith.mulf %668, %670 : vector<2x16x64xf32>
    %672 = arith.addf %666, %671 : vector<2x16x64xf32>
    %673 = vector.extract_strided_slice %530 {offsets = [23, 0], sizes = [1, 64], strides = [1, 1]} : vector<25x64xf32> to vector<1x64xf32>
    %674 = vector.extract_strided_slice %654 {offsets = [0, 0, 12], sizes = [2, 16, 64], strides = [1, 1, 1]} : vector<2x16x80xf32> to vector<2x16x64xf32>
    %675 = vector.shape_cast %673 : vector<1x64xf32> to vector<1x1x64xf32>
    %676 = vector.broadcast %675 : vector<1x1x64xf32> to vector<2x16x64xf32>
    %677 = arith.mulf %674, %676 : vector<2x16x64xf32>
    %678 = arith.addf %672, %677 : vector<2x16x64xf32>
    %679 = vector.extract_strided_slice %530 {offsets = [24, 0], sizes = [1, 64], strides = [1, 1]} : vector<25x64xf32> to vector<1x64xf32>
    %680 = vector.extract_strided_slice %654 {offsets = [0, 0, 16], sizes = [2, 16, 64], strides = [1, 1, 1]} : vector<2x16x80xf32> to vector<2x16x64xf32>
    %681 = vector.shape_cast %679 : vector<1x64xf32> to vector<1x1x64xf32>
    %682 = vector.broadcast %681 : vector<1x1x64xf32> to vector<2x16x64xf32>
    %683 = arith.mulf %680, %682 : vector<2x16x64xf32>
    %684 = arith.addf %678, %683 : vector<2x16x64xf32>
    %685 = vector.shape_cast %684 : vector<2x16x64xf32> to vector<32x64xf32>
    %c0_195 = arith.constant 0 : index
    %c0_196 = arith.constant 0 : index
    %686 = vector.load %arg9[%c0_195, %c0_196] : memref<64x64xf32, #tpu.memory_space<vmem>>, vector<64x64xf32>
    %cst_197 = arith.constant dense<0.000000e+00> : vector<32x64xf32>
    %687 = tpu.matmul %685, %686, %cst_197 {dimension_numbers = #tpu.dot_dimension_numbers<[1], [0], [0], [1], [0, 0, 1, 1], [], []>} : vector<32x64xf32>, vector<64x64xf32>, vector<32x64xf32> -> vector<32x64xf32>
    %688 = vector.shape_cast %687 : vector<32x64xf32> to vector<4x8x64xf32>
    %cst_198 = arith.constant dense<0.000000e+00> : vector<8x64xf32>
    %689 = vector.multi_reduction <add>, %688, %cst_198 [0] : vector<4x8x64xf32> to vector<8x64xf32>
    %cst_199 = arith.constant dense<0.000000e+00> : vector<8x64xf32>
    %690 = tpu.matmul %689, %1, %cst_199 {dimension_numbers = #tpu.dot_dimension_numbers<[1], [0], [0], [1], [0, 0, 1, 1], [], []>} : vector<8x64xf32>, vector<64x64xf32>, vector<8x64xf32> -> vector<8x64xf32>
    %cst_200 = arith.constant dense<0.000000e+00> : vector<64xf32>
    %691 = vector.multi_reduction <add>, %690, %cst_200 [0] : vector<8x64xf32> to vector<64xf32>
    %692 = vector.shape_cast %691 : vector<64xf32> to vector<1x64xf32>
    %693 = vector.broadcast %692 : vector<1x64xf32> to vector<32x64xf32>
    %694 = arith.subf %687, %693 : vector<32x64xf32>
    %695 = arith.mulf %694, %694 : vector<32x64xf32>
    %696 = vector.shape_cast %695 : vector<32x64xf32> to vector<4x8x64xf32>
    %cst_201 = arith.constant dense<0.000000e+00> : vector<8x64xf32>
    %697 = vector.multi_reduction <add>, %696, %cst_201 [0] : vector<4x8x64xf32> to vector<8x64xf32>
    %cst_202 = arith.constant dense<0.000000e+00> : vector<8x64xf32>
    %698 = tpu.matmul %697, %1, %cst_202 {dimension_numbers = #tpu.dot_dimension_numbers<[1], [0], [0], [1], [0, 0, 1, 1], [], []>} : vector<8x64xf32>, vector<64x64xf32>, vector<8x64xf32> -> vector<8x64xf32>
    %cst_203 = arith.constant dense<0.000000e+00> : vector<64xf32>
    %699 = vector.multi_reduction <add>, %698, %cst_203 [0] : vector<8x64xf32> to vector<64xf32>
    %700 = vector.shape_cast %699 : vector<64xf32> to vector<1x64xf32>
    %cst_204 = arith.constant 9.99999974E-6 : f32
    %701 = vector.broadcast %cst_204 : f32 to vector<1x64xf32>
    %702 = arith.addf %700, %701 : vector<1x64xf32>
    %703 = math.rsqrt %702 : vector<1x64xf32>
    %704 = vector.broadcast %703 : vector<1x64xf32> to vector<32x64xf32>
    %705 = arith.mulf %694, %704 : vector<32x64xf32>
    %cst_205 = arith.constant 0.000000e+00 : f32
    %706 = vector.broadcast %cst_205 : f32 to vector<32x64xf32>
    %707 = arith.maximumf %705, %706 : vector<32x64xf32>
    %708 = vector.shape_cast %707 : vector<32x64xf32> to vector<2x16x64xf32>
    %c0_206 = arith.constant 0 : index
    %c2_207 = arith.constant 2 : index
    %c8_208 = arith.constant 8 : index
    %709 = vector.load %arg17[%c0_206, %c2_207, %c8_208] : memref<2x20x80xf32, #tpu.memory_space<vmem>>, vector<2x16x64xf32>
    tpu.vector_store %arg17[%c0_206, %c2_207, %c8_208], %708 {strides = array<i32>} : memref<2x20x80xf32, #tpu.memory_space<vmem>>, vector<2x16x64xf32>,
    %c0_209 = arith.constant 0 : index
    %c0_210 = arith.constant 0 : index
    %710 = vector.load %arg10[%c0_209, %c0_210] : memref<25x64xf32, #tpu.memory_space<vmem>>, vector<25x64xf32>
    %c0_211 = arith.constant 0 : index
    %c0_212 = arith.constant 0 : index
    %c0_213 = arith.constant 0 : index
    %711 = vector.load %arg17[%c0_211, %c0_212, %c0_213] : memref<2x20x80xf32, #tpu.memory_space<vmem>>, vector<2x16x80xf32>
    %712 = vector.extract_strided_slice %710 {offsets = [0, 0], sizes = [1, 64], strides = [1, 1]} : vector<25x64xf32> to vector<1x64xf32>
    %713 = vector.extract_strided_slice %711 {offsets = [0, 0, 0], sizes = [2, 16, 64], strides = [1, 1, 1]} : vector<2x16x80xf32> to vector<2x16x64xf32>
    %714 = vector.shape_cast %712 : vector<1x64xf32> to vector<1x1x64xf32>
    %715 = vector.broadcast %714 : vector<1x1x64xf32> to vector<2x16x64xf32>
    %716 = arith.mulf %713, %715 : vector<2x16x64xf32>
    %717 = vector.extract_strided_slice %710 {offsets = [1, 0], sizes = [1, 64], strides = [1, 1]} : vector<25x64xf32> to vector<1x64xf32>
    %718 = vector.extract_strided_slice %711 {offsets = [0, 0, 4], sizes = [2, 16, 64], strides = [1, 1, 1]} : vector<2x16x80xf32> to vector<2x16x64xf32>
    %719 = vector.shape_cast %717 : vector<1x64xf32> to vector<1x1x64xf32>
    %720 = vector.broadcast %719 : vector<1x1x64xf32> to vector<2x16x64xf32>
    %721 = arith.mulf %718, %720 : vector<2x16x64xf32>
    %722 = arith.addf %716, %721 : vector<2x16x64xf32>
    %723 = vector.extract_strided_slice %710 {offsets = [2, 0], sizes = [1, 64], strides = [1, 1]} : vector<25x64xf32> to vector<1x64xf32>
    %724 = vector.extract_strided_slice %711 {offsets = [0, 0, 8], sizes = [2, 16, 64], strides = [1, 1, 1]} : vector<2x16x80xf32> to vector<2x16x64xf32>
    %725 = vector.shape_cast %723 : vector<1x64xf32> to vector<1x1x64xf32>
    %726 = vector.broadcast %725 : vector<1x1x64xf32> to vector<2x16x64xf32>
    %727 = arith.mulf %724, %726 : vector<2x16x64xf32>
    %728 = arith.addf %722, %727 : vector<2x16x64xf32>
    %729 = vector.extract_strided_slice %710 {offsets = [3, 0], sizes = [1, 64], strides = [1, 1]} : vector<25x64xf32> to vector<1x64xf32>
    %730 = vector.extract_strided_slice %711 {offsets = [0, 0, 12], sizes = [2, 16, 64], strides = [1, 1, 1]} : vector<2x16x80xf32> to vector<2x16x64xf32>
    %731 = vector.shape_cast %729 : vector<1x64xf32> to vector<1x1x64xf32>
    %732 = vector.broadcast %731 : vector<1x1x64xf32> to vector<2x16x64xf32>
    %733 = arith.mulf %730, %732 : vector<2x16x64xf32>
    %734 = arith.addf %728, %733 : vector<2x16x64xf32>
    %735 = vector.extract_strided_slice %710 {offsets = [4, 0], sizes = [1, 64], strides = [1, 1]} : vector<25x64xf32> to vector<1x64xf32>
    %736 = vector.extract_strided_slice %711 {offsets = [0, 0, 16], sizes = [2, 16, 64], strides = [1, 1, 1]} : vector<2x16x80xf32> to vector<2x16x64xf32>
    %737 = vector.shape_cast %735 : vector<1x64xf32> to vector<1x1x64xf32>
    %738 = vector.broadcast %737 : vector<1x1x64xf32> to vector<2x16x64xf32>
    %739 = arith.mulf %736, %738 : vector<2x16x64xf32>
    %740 = arith.addf %734, %739 : vector<2x16x64xf32>
    %c0_214 = arith.constant 0 : index
    %c1_215 = arith.constant 1 : index
    %c0_216 = arith.constant 0 : index
    %741 = vector.load %arg17[%c0_214, %c1_215, %c0_216] : memref<2x20x80xf32, #tpu.memory_space<vmem>>, vector<2x16x80xf32>
    %742 = vector.extract_strided_slice %710 {offsets = [5, 0], sizes = [1, 64], strides = [1, 1]} : vector<25x64xf32> to vector<1x64xf32>
    %743 = vector.extract_strided_slice %741 {offsets = [0, 0, 0], sizes = [2, 16, 64], strides = [1, 1, 1]} : vector<2x16x80xf32> to vector<2x16x64xf32>
    %744 = vector.shape_cast %742 : vector<1x64xf32> to vector<1x1x64xf32>
    %745 = vector.broadcast %744 : vector<1x1x64xf32> to vector<2x16x64xf32>
    %746 = arith.mulf %743, %745 : vector<2x16x64xf32>
    %747 = arith.addf %740, %746 : vector<2x16x64xf32>
    %748 = vector.extract_strided_slice %710 {offsets = [6, 0], sizes = [1, 64], strides = [1, 1]} : vector<25x64xf32> to vector<1x64xf32>
    %749 = vector.extract_strided_slice %741 {offsets = [0, 0, 4], sizes = [2, 16, 64], strides = [1, 1, 1]} : vector<2x16x80xf32> to vector<2x16x64xf32>
    %750 = vector.shape_cast %748 : vector<1x64xf32> to vector<1x1x64xf32>
    %751 = vector.broadcast %750 : vector<1x1x64xf32> to vector<2x16x64xf32>
    %752 = arith.mulf %749, %751 : vector<2x16x64xf32>
    %753 = arith.addf %747, %752 : vector<2x16x64xf32>
    %754 = vector.extract_strided_slice %710 {offsets = [7, 0], sizes = [1, 64], strides = [1, 1]} : vector<25x64xf32> to vector<1x64xf32>
    %755 = vector.extract_strided_slice %741 {offsets = [0, 0, 8], sizes = [2, 16, 64], strides = [1, 1, 1]} : vector<2x16x80xf32> to vector<2x16x64xf32>
    %756 = vector.shape_cast %754 : vector<1x64xf32> to vector<1x1x64xf32>
    %757 = vector.broadcast %756 : vector<1x1x64xf32> to vector<2x16x64xf32>
    %758 = arith.mulf %755, %757 : vector<2x16x64xf32>
    %759 = arith.addf %753, %758 : vector<2x16x64xf32>
    %760 = vector.extract_strided_slice %710 {offsets = [8, 0], sizes = [1, 64], strides = [1, 1]} : vector<25x64xf32> to vector<1x64xf32>
    %761 = vector.extract_strided_slice %741 {offsets = [0, 0, 12], sizes = [2, 16, 64], strides = [1, 1, 1]} : vector<2x16x80xf32> to vector<2x16x64xf32>
    %762 = vector.shape_cast %760 : vector<1x64xf32> to vector<1x1x64xf32>
    %763 = vector.broadcast %762 : vector<1x1x64xf32> to vector<2x16x64xf32>
    %764 = arith.mulf %761, %763 : vector<2x16x64xf32>
    %765 = arith.addf %759, %764 : vector<2x16x64xf32>
    %766 = vector.extract_strided_slice %710 {offsets = [9, 0], sizes = [1, 64], strides = [1, 1]} : vector<25x64xf32> to vector<1x64xf32>
    %767 = vector.extract_strided_slice %741 {offsets = [0, 0, 16], sizes = [2, 16, 64], strides = [1, 1, 1]} : vector<2x16x80xf32> to vector<2x16x64xf32>
    %768 = vector.shape_cast %766 : vector<1x64xf32> to vector<1x1x64xf32>
    %769 = vector.broadcast %768 : vector<1x1x64xf32> to vector<2x16x64xf32>
    %770 = arith.mulf %767, %769 : vector<2x16x64xf32>
    %771 = arith.addf %765, %770 : vector<2x16x64xf32>
    %c0_217 = arith.constant 0 : index
    %c2_218 = arith.constant 2 : index
    %c0_219 = arith.constant 0 : index
    %772 = vector.load %arg17[%c0_217, %c2_218, %c0_219] : memref<2x20x80xf32, #tpu.memory_space<vmem>>, vector<2x16x80xf32>
    %773 = vector.extract_strided_slice %710 {offsets = [10, 0], sizes = [1, 64], strides = [1, 1]} : vector<25x64xf32> to vector<1x64xf32>
    %774 = vector.extract_strided_slice %772 {offsets = [0, 0, 0], sizes = [2, 16, 64], strides = [1, 1, 1]} : vector<2x16x80xf32> to vector<2x16x64xf32>
    %775 = vector.shape_cast %773 : vector<1x64xf32> to vector<1x1x64xf32>
    %776 = vector.broadcast %775 : vector<1x1x64xf32> to vector<2x16x64xf32>
    %777 = arith.mulf %774, %776 : vector<2x16x64xf32>
    %778 = arith.addf %771, %777 : vector<2x16x64xf32>
    %779 = vector.extract_strided_slice %710 {offsets = [11, 0], sizes = [1, 64], strides = [1, 1]} : vector<25x64xf32> to vector<1x64xf32>
    %780 = vector.extract_strided_slice %772 {offsets = [0, 0, 4], sizes = [2, 16, 64], strides = [1, 1, 1]} : vector<2x16x80xf32> to vector<2x16x64xf32>
    %781 = vector.shape_cast %779 : vector<1x64xf32> to vector<1x1x64xf32>
    %782 = vector.broadcast %781 : vector<1x1x64xf32> to vector<2x16x64xf32>
    %783 = arith.mulf %780, %782 : vector<2x16x64xf32>
    %784 = arith.addf %778, %783 : vector<2x16x64xf32>
    %785 = vector.extract_strided_slice %710 {offsets = [12, 0], sizes = [1, 64], strides = [1, 1]} : vector<25x64xf32> to vector<1x64xf32>
    %786 = vector.extract_strided_slice %772 {offsets = [0, 0, 8], sizes = [2, 16, 64], strides = [1, 1, 1]} : vector<2x16x80xf32> to vector<2x16x64xf32>
    %787 = vector.shape_cast %785 : vector<1x64xf32> to vector<1x1x64xf32>
    %788 = vector.broadcast %787 : vector<1x1x64xf32> to vector<2x16x64xf32>
    %789 = arith.mulf %786, %788 : vector<2x16x64xf32>
    %790 = arith.addf %784, %789 : vector<2x16x64xf32>
    %791 = vector.extract_strided_slice %710 {offsets = [13, 0], sizes = [1, 64], strides = [1, 1]} : vector<25x64xf32> to vector<1x64xf32>
    %792 = vector.extract_strided_slice %772 {offsets = [0, 0, 12], sizes = [2, 16, 64], strides = [1, 1, 1]} : vector<2x16x80xf32> to vector<2x16x64xf32>
    %793 = vector.shape_cast %791 : vector<1x64xf32> to vector<1x1x64xf32>
    %794 = vector.broadcast %793 : vector<1x1x64xf32> to vector<2x16x64xf32>
    %795 = arith.mulf %792, %794 : vector<2x16x64xf32>
    %796 = arith.addf %790, %795 : vector<2x16x64xf32>
    %797 = vector.extract_strided_slice %710 {offsets = [14, 0], sizes = [1, 64], strides = [1, 1]} : vector<25x64xf32> to vector<1x64xf32>
    %798 = vector.extract_strided_slice %772 {offsets = [0, 0, 16], sizes = [2, 16, 64], strides = [1, 1, 1]} : vector<2x16x80xf32> to vector<2x16x64xf32>
    %799 = vector.shape_cast %797 : vector<1x64xf32> to vector<1x1x64xf32>
    %800 = vector.broadcast %799 : vector<1x1x64xf32> to vector<2x16x64xf32>
    %801 = arith.mulf %798, %800 : vector<2x16x64xf32>
    %802 = arith.addf %796, %801 : vector<2x16x64xf32>
    %c0_220 = arith.constant 0 : index
    %c3_221 = arith.constant 3 : index
    %c0_222 = arith.constant 0 : index
    %803 = vector.load %arg17[%c0_220, %c3_221, %c0_222] : memref<2x20x80xf32, #tpu.memory_space<vmem>>, vector<2x16x80xf32>
    %804 = vector.extract_strided_slice %710 {offsets = [15, 0], sizes = [1, 64], strides = [1, 1]} : vector<25x64xf32> to vector<1x64xf32>
    %805 = vector.extract_strided_slice %803 {offsets = [0, 0, 0], sizes = [2, 16, 64], strides = [1, 1, 1]} : vector<2x16x80xf32> to vector<2x16x64xf32>
    %806 = vector.shape_cast %804 : vector<1x64xf32> to vector<1x1x64xf32>
    %807 = vector.broadcast %806 : vector<1x1x64xf32> to vector<2x16x64xf32>
    %808 = arith.mulf %805, %807 : vector<2x16x64xf32>
    %809 = arith.addf %802, %808 : vector<2x16x64xf32>
    %810 = vector.extract_strided_slice %710 {offsets = [16, 0], sizes = [1, 64], strides = [1, 1]} : vector<25x64xf32> to vector<1x64xf32>
    %811 = vector.extract_strided_slice %803 {offsets = [0, 0, 4], sizes = [2, 16, 64], strides = [1, 1, 1]} : vector<2x16x80xf32> to vector<2x16x64xf32>
    %812 = vector.shape_cast %810 : vector<1x64xf32> to vector<1x1x64xf32>
    %813 = vector.broadcast %812 : vector<1x1x64xf32> to vector<2x16x64xf32>
    %814 = arith.mulf %811, %813 : vector<2x16x64xf32>
    %815 = arith.addf %809, %814 : vector<2x16x64xf32>
    %816 = vector.extract_strided_slice %710 {offsets = [17, 0], sizes = [1, 64], strides = [1, 1]} : vector<25x64xf32> to vector<1x64xf32>
    %817 = vector.extract_strided_slice %803 {offsets = [0, 0, 8], sizes = [2, 16, 64], strides = [1, 1, 1]} : vector<2x16x80xf32> to vector<2x16x64xf32>
    %818 = vector.shape_cast %816 : vector<1x64xf32> to vector<1x1x64xf32>
    %819 = vector.broadcast %818 : vector<1x1x64xf32> to vector<2x16x64xf32>
    %820 = arith.mulf %817, %819 : vector<2x16x64xf32>
    %821 = arith.addf %815, %820 : vector<2x16x64xf32>
    %822 = vector.extract_strided_slice %710 {offsets = [18, 0], sizes = [1, 64], strides = [1, 1]} : vector<25x64xf32> to vector<1x64xf32>
    %823 = vector.extract_strided_slice %803 {offsets = [0, 0, 12], sizes = [2, 16, 64], strides = [1, 1, 1]} : vector<2x16x80xf32> to vector<2x16x64xf32>
    %824 = vector.shape_cast %822 : vector<1x64xf32> to vector<1x1x64xf32>
    %825 = vector.broadcast %824 : vector<1x1x64xf32> to vector<2x16x64xf32>
    %826 = arith.mulf %823, %825 : vector<2x16x64xf32>
    %827 = arith.addf %821, %826 : vector<2x16x64xf32>
    %828 = vector.extract_strided_slice %710 {offsets = [19, 0], sizes = [1, 64], strides = [1, 1]} : vector<25x64xf32> to vector<1x64xf32>
    %829 = vector.extract_strided_slice %803 {offsets = [0, 0, 16], sizes = [2, 16, 64], strides = [1, 1, 1]} : vector<2x16x80xf32> to vector<2x16x64xf32>
    %830 = vector.shape_cast %828 : vector<1x64xf32> to vector<1x1x64xf32>
    %831 = vector.broadcast %830 : vector<1x1x64xf32> to vector<2x16x64xf32>
    %832 = arith.mulf %829, %831 : vector<2x16x64xf32>
    %833 = arith.addf %827, %832 : vector<2x16x64xf32>
    %c0_223 = arith.constant 0 : index
    %c4_224 = arith.constant 4 : index
    %c0_225 = arith.constant 0 : index
    %834 = vector.load %arg17[%c0_223, %c4_224, %c0_225] : memref<2x20x80xf32, #tpu.memory_space<vmem>>, vector<2x16x80xf32>
    %835 = vector.extract_strided_slice %710 {offsets = [20, 0], sizes = [1, 64], strides = [1, 1]} : vector<25x64xf32> to vector<1x64xf32>
    %836 = vector.extract_strided_slice %834 {offsets = [0, 0, 0], sizes = [2, 16, 64], strides = [1, 1, 1]} : vector<2x16x80xf32> to vector<2x16x64xf32>
    %837 = vector.shape_cast %835 : vector<1x64xf32> to vector<1x1x64xf32>
    %838 = vector.broadcast %837 : vector<1x1x64xf32> to vector<2x16x64xf32>
    %839 = arith.mulf %836, %838 : vector<2x16x64xf32>
    %840 = arith.addf %833, %839 : vector<2x16x64xf32>
    %841 = vector.extract_strided_slice %710 {offsets = [21, 0], sizes = [1, 64], strides = [1, 1]} : vector<25x64xf32> to vector<1x64xf32>
    %842 = vector.extract_strided_slice %834 {offsets = [0, 0, 4], sizes = [2, 16, 64], strides = [1, 1, 1]} : vector<2x16x80xf32> to vector<2x16x64xf32>
    %843 = vector.shape_cast %841 : vector<1x64xf32> to vector<1x1x64xf32>
    %844 = vector.broadcast %843 : vector<1x1x64xf32> to vector<2x16x64xf32>
    %845 = arith.mulf %842, %844 : vector<2x16x64xf32>
    %846 = arith.addf %840, %845 : vector<2x16x64xf32>
    %847 = vector.extract_strided_slice %710 {offsets = [22, 0], sizes = [1, 64], strides = [1, 1]} : vector<25x64xf32> to vector<1x64xf32>
    %848 = vector.extract_strided_slice %834 {offsets = [0, 0, 8], sizes = [2, 16, 64], strides = [1, 1, 1]} : vector<2x16x80xf32> to vector<2x16x64xf32>
    %849 = vector.shape_cast %847 : vector<1x64xf32> to vector<1x1x64xf32>
    %850 = vector.broadcast %849 : vector<1x1x64xf32> to vector<2x16x64xf32>
    %851 = arith.mulf %848, %850 : vector<2x16x64xf32>
    %852 = arith.addf %846, %851 : vector<2x16x64xf32>
    %853 = vector.extract_strided_slice %710 {offsets = [23, 0], sizes = [1, 64], strides = [1, 1]} : vector<25x64xf32> to vector<1x64xf32>
    %854 = vector.extract_strided_slice %834 {offsets = [0, 0, 12], sizes = [2, 16, 64], strides = [1, 1, 1]} : vector<2x16x80xf32> to vector<2x16x64xf32>
    %855 = vector.shape_cast %853 : vector<1x64xf32> to vector<1x1x64xf32>
    %856 = vector.broadcast %855 : vector<1x1x64xf32> to vector<2x16x64xf32>
    %857 = arith.mulf %854, %856 : vector<2x16x64xf32>
    %858 = arith.addf %852, %857 : vector<2x16x64xf32>
    %859 = vector.extract_strided_slice %710 {offsets = [24, 0], sizes = [1, 64], strides = [1, 1]} : vector<25x64xf32> to vector<1x64xf32>
    %860 = vector.extract_strided_slice %834 {offsets = [0, 0, 16], sizes = [2, 16, 64], strides = [1, 1, 1]} : vector<2x16x80xf32> to vector<2x16x64xf32>
    %861 = vector.shape_cast %859 : vector<1x64xf32> to vector<1x1x64xf32>
    %862 = vector.broadcast %861 : vector<1x1x64xf32> to vector<2x16x64xf32>
    %863 = arith.mulf %860, %862 : vector<2x16x64xf32>
    %864 = arith.addf %858, %863 : vector<2x16x64xf32>
    %865 = vector.shape_cast %864 : vector<2x16x64xf32> to vector<32x64xf32>
    %c0_226 = arith.constant 0 : index
    %c0_227 = arith.constant 0 : index
    %866 = vector.load %arg11[%c0_226, %c0_227] : memref<64x64xf32, #tpu.memory_space<vmem>>, vector<64x64xf32>
    %cst_228 = arith.constant dense<0.000000e+00> : vector<32x64xf32>
    %867 = tpu.matmul %865, %866, %cst_228 {dimension_numbers = #tpu.dot_dimension_numbers<[1], [0], [0], [1], [0, 0, 1, 1], [], []>} : vector<32x64xf32>, vector<64x64xf32>, vector<32x64xf32> -> vector<32x64xf32>
    %868 = vector.shape_cast %867 : vector<32x64xf32> to vector<4x8x64xf32>
    %cst_229 = arith.constant dense<0.000000e+00> : vector<8x64xf32>
    %869 = vector.multi_reduction <add>, %868, %cst_229 [0] : vector<4x8x64xf32> to vector<8x64xf32>
    %cst_230 = arith.constant dense<0.000000e+00> : vector<8x64xf32>
    %870 = tpu.matmul %869, %1, %cst_230 {dimension_numbers = #tpu.dot_dimension_numbers<[1], [0], [0], [1], [0, 0, 1, 1], [], []>} : vector<8x64xf32>, vector<64x64xf32>, vector<8x64xf32> -> vector<8x64xf32>
    %cst_231 = arith.constant dense<0.000000e+00> : vector<64xf32>
    %871 = vector.multi_reduction <add>, %870, %cst_231 [0] : vector<8x64xf32> to vector<64xf32>
    %872 = vector.shape_cast %871 : vector<64xf32> to vector<1x64xf32>
    %873 = vector.broadcast %872 : vector<1x64xf32> to vector<32x64xf32>
    %874 = arith.subf %867, %873 : vector<32x64xf32>
    %875 = arith.mulf %874, %874 : vector<32x64xf32>
    %876 = vector.shape_cast %875 : vector<32x64xf32> to vector<4x8x64xf32>
    %cst_232 = arith.constant dense<0.000000e+00> : vector<8x64xf32>
    %877 = vector.multi_reduction <add>, %876, %cst_232 [0] : vector<4x8x64xf32> to vector<8x64xf32>
    %cst_233 = arith.constant dense<0.000000e+00> : vector<8x64xf32>
    %878 = tpu.matmul %877, %1, %cst_233 {dimension_numbers = #tpu.dot_dimension_numbers<[1], [0], [0], [1], [0, 0, 1, 1], [], []>} : vector<8x64xf32>, vector<64x64xf32>, vector<8x64xf32> -> vector<8x64xf32>
    %cst_234 = arith.constant dense<0.000000e+00> : vector<64xf32>
    %879 = vector.multi_reduction <add>, %878, %cst_234 [0] : vector<8x64xf32> to vector<64xf32>
    %880 = vector.shape_cast %879 : vector<64xf32> to vector<1x64xf32>
    %cst_235 = arith.constant 9.99999974E-6 : f32
    %881 = vector.broadcast %cst_235 : f32 to vector<1x64xf32>
    %882 = arith.addf %880, %881 : vector<1x64xf32>
    %883 = math.rsqrt %882 : vector<1x64xf32>
    %884 = vector.broadcast %883 : vector<1x64xf32> to vector<32x64xf32>
    %885 = arith.mulf %874, %884 : vector<32x64xf32>
    %c5_236 = arith.constant 5 : index
    %886 = memref.load %arg1[%c5_236] : memref<8xf32, #tpu.memory_space<smem>>
    %887 = vector.broadcast %886 : f32 to vector<32x64xf32>
    %888 = arith.mulf %887, %885 : vector<32x64xf32>
    %889 = arith.addf %529, %888 : vector<32x64xf32>
    %c0_237 = arith.constant 0 : index
    %c0_238 = arith.constant 0 : index
    %890 = vector.load %arg16[%c0_237, %c0_238] : memref<32x64xf32, #tpu.memory_space<vmem>>, vector<32x64xf32>
    tpu.vector_store %arg16[%c0_237, %c0_238], %889 {strides = array<i32>} : memref<32x64xf32, #tpu.memory_space<vmem>>, vector<32x64xf32>,
    return
  }
}

</mosaic_0001>

<llo_original>
// kernel: tpu_custom_call.1
$region0: #{tpu_custom_call.1}
  #allocation0 [shape = 'u32[]', space=smem, size = 0x4, offset = 0x4, fixed_abs, tag = 'smem constant byte address 0x4 - core index']
  #allocation1 [shape = 'u32[144,128]{1,0:T(1,128)}', space=vmem, size = 0x12000, scoped, tag = 'internal scratch']
  #allocation2 [shape = 'f32[2,20,80]{2,1,0:T(8,128)}', space=vmem, size = 0x6000, scoped, tag = 'scratch operand']
  #allocation3 [shape = 'f32[2,24,96]{2,1,0:T(8,128)}', space=vmem, size = 0x6000, scoped, tag = 'scratch operand']
  %s0 = inlined_call_operand.hbm [shape: f32[2,16,64], index: 0, kind: input, shape index: {}]
  %s1 = inlined_call_operand.vmem [shape: f32[8], index: 1, kind: input, shape index: {}]
  %s2 = inlined_call_operand.hbm [shape: f32[16,64], index: 2, kind: input, shape index: {}]
  %s3 = inlined_call_operand.hbm [shape: f32[64,64], index: 3, kind: input, shape index: {}]
  %s4 = inlined_call_operand.hbm [shape: f32[9,64], index: 4, kind: input, shape index: {}]
  %s5 = inlined_call_operand.hbm [shape: f32[64,64], index: 5, kind: input, shape index: {}]
  %s6 = inlined_call_operand.hbm [shape: f32[9,64], index: 6, kind: input, shape index: {}]
  %s7 = inlined_call_operand.hbm [shape: f32[64,64], index: 7, kind: input, shape index: {}]
  %s8 = inlined_call_operand.hbm [shape: f32[25,64], index: 8, kind: input, shape index: {}]
  %s9 = inlined_call_operand.hbm [shape: f32[64,64], index: 9, kind: input, shape index: {}]
  %s10 = inlined_call_operand.vmem [shape: f32[25,64], index: 10, kind: input, shape index: {}]
  %s11 = inlined_call_operand.hbm [shape: f32[64,64], index: 11, kind: input, shape index: {}]
  %s12 = inlined_call_operand.hbm [shape: f32[9,64], index: 12, kind: input, shape index: {}]
  %s13 = inlined_call_operand.hbm [shape: f32[64,64], index: 13, kind: input, shape index: {}]
  %s14 = inlined_call_operand.hbm [shape: f32[25,64], index: 14, kind: input, shape index: {}]
  %s15 = inlined_call_operand.hbm [shape: f32[64,64], index: 15, kind: input, shape index: {}]
  %s16 = inlined_call_operand.hbm [shape: f32[32,64], index: 16, kind: output, shape index: {}]
  %s17 = sld [smem:[#allocation0]]
  $region134: #{tpu_custom_call.1} parent=0
    _
  %s19 = ssub.s32 1, %s17
  %s20 = scalar_select 0, %s19, %s17
  $region1: #{tpu_custom_call.1} parent=0
    #allocation4 [shape = 'u8[16384]{0}', space=vmem, size = 0x4000, scoped, tag = 'input window, operand 0, single buffered']
    #allocation5 [shape = 's32[1]{0}', space=sflag, size = 0x4, scoped, tag = 'scoped memory for tpu_custom_call.1']
    #allocation6 [shape = 's32[1]{0}', space=sflag, size = 0x4, scoped, tag = 'scoped memory for tpu_custom_call.1']
    #allocation7 [shape = 's32[1]{0}', space=sflag, size = 0x4, scoped, tag = 'scoped memory for tpu_custom_call.1']
    #allocation8 [shape = 'u8[512]{0}', space=smem, size = 0x200, scoped, tag = 'input window, operand 1, single buffered']
    #allocation9 [shape = 'u8[8192]{0}', space=vmem, size = 0x2000, scoped, tag = 'input window, operand 2, single buffered']
    #allocation10 [shape = 's32[1]{0}', space=sflag, size = 0x4, scoped, tag = 'scoped memory for tpu_custom_call.1']
    #allocation11 [shape = 'u8[32768]{0}', space=vmem, size = 0x8000, scoped, tag = 'input window, operand 3, single buffered']
    #allocation12 [shape = 'u8[8192]{0}', space=vmem, size = 0x2000, scoped, tag = 'input window, operand 4, single buffered']
    #allocation13 [shape = 's32[1]{0}', space=sflag, size = 0x4, scoped, tag = 'scoped memory for tpu_custom_call.1']
    #allocation14 [shape = 'u8[32768]{0}', space=vmem, size = 0x8000, scoped, tag = 'input window, operand 5, single buffered']
    #allocation15 [shape = 'u8[8192]{0}', space=vmem, size = 0x2000, scoped, tag = 'input window, operand 6, single buffered']
    #allocation16 [shape = 's32[1]{0}', space=sflag, size = 0x4, scoped, tag = 'scoped memory for tpu_custom_call.1']
    #allocation17 [shape = 'u8[32768]{0}', space=vmem, size = 0x8000, scoped, tag = 'input window, operand 7, single buffered']
    #allocation18 [shape = 'u8[16384]{0}', space=vmem, size = 0x4000, scoped, tag = 'input window, operand 8, single buffered']
    #allocation19 [shape = 's32[1]{0}', space=sflag, size = 0x4, scoped, tag = 'scoped memory for tpu_custom_call.1']
    #allocation20 [shape = 'u8[32768]{0}', space=vmem, size = 0x8000, scoped, tag = 'input window, operand 9, single buffered']
    #allocation21 [shape = 'u8[32768]{0}', space=vmem, size = 0x8000, scoped, tag = 'input window, operand 11, single buffered']
    #allocation22 [shape = 's32[1]{0}', space=sflag, size = 0x4, scoped, tag = 'scoped memory for tpu_custom_call.1']
    #allocation23 [shape = 'u8[8192]{0}', space=vmem, size = 0x2000, scoped, tag = 'input window, operand 12, single buffered']
    #allocation24 [shape = 'u8[32768]{0}', space=vmem, size = 0x8000, scoped, tag = 'input window, operand 13, single buffered']
    #allocation25 [shape = 's32[1]{0}', space=sflag, size = 0x4, scoped, tag = 'scoped memory for tpu_custom_call.1']
    #allocation26 [shape = 'u8[16384]{0}', space=vmem, size = 0x4000, scoped, tag = 'input window, operand 14, single buffered']
    #allocation27 [shape = 'u8[32768]{0}', space=vmem, size = 0x8000, scoped, tag = 'input window, operand 15, single buffered']
    #allocation28 [shape = 's32[1]{0}', space=sflag, size = 0x4, scoped, tag = 'scoped memory for tpu_custom_call.1']
    #allocation29 [shape = 'u8[16384]{0}', space=vmem, size = 0x4000, scoped, tag = 'output window, operand 0, single buffered']
    %21 = vsyncpa [#allocation5], 0
    %22 = vsyncpa [#allocation7], 0
    %23 = vsyncpa [#allocation10], 0
    %24 = vsyncpa [#allocation13], 0
    %25 = vsyncpa [#allocation16], 0
    %26 = vsyncpa [#allocation19], 0
    %27 = vsyncpa [#allocation22], 0
    %28 = vsyncpa [#allocation25], 0
    %29 = vsyncpa [#allocation28], 0
    %30 = vsyncpa [#allocation6], 0
    // Predicated region
    $region2: #{tpu_custom_call.1} parent=1 // pred_check
      _
    $region3: #{tpu_custom_call.1} parent=1 // pred_check_branch
      %32 = sbr.rel (0) target = $region5
    $region4: #{tpu_custom_call.1} parent=1 // pred_region
      %s34 = ssub.s32 512, 512
      %35 = vsyncadd [#allocation5], %s34
      %s36 = sshll.u32 [#allocation4], 4
      %s37 = int_to_ptr.vmem [resolvable:$true] %s36
      %42 = dma.hbm_to_vmem [thread:$0]  %s0, 512, %s37, [#allocation5], 128, 128, 8
    $region5: #{tpu_custom_call.1} parent=1 // pred_fallthru
      _
    // Predicated region
    $region6: #{tpu_custom_call.1} parent=1 // pred_check
      _
    $region7: #{tpu_custom_call.1} parent=1 // pred_check_branch
      %44 = sbr.rel (0) target = $region9
    $region8: #{tpu_custom_call.1} parent=1 // pred_region
      %s46 = ssub.s32 16, 16
      %47 = vsyncadd [#allocation7], %s46
      %s49 = sshll.u32 %s1, 4
      %s50 = int_to_ptr.vmem [resolvable:$true] %s49
      %52 = dma.vmem_to_smem %s50, 16, [#allocation8], [#allocation7]
    $region9: #{tpu_custom_call.1} parent=1 // pred_fallthru
      _
    // Predicated region
    $region10: #{tpu_custom_call.1} parent=1 // pred_check
      _
    $region11: #{tpu_custom_call.1} parent=1 // pred_check_branch
      %54 = sbr.rel (0) target = $region13
    $region12: #{tpu_custom_call.1} parent=1 // pred_region
      %s56 = ssub.s32 256, 256
      %57 = vsyncadd [#allocation10], %s56
      %s58 = sshll.u32 [#allocation9], 4
      %s59 = int_to_ptr.vmem [resolvable:$true] %s58
      %64 = dma.hbm_to_vmem [thread:$0]  %s2, 256, %s59, [#allocation10], 128, 128, 8
    $region13: #{tpu_custom_call.1} parent=1 // pred_fallthru
      _
    // Predicated region
    $region14: #{tpu_custom_call.1} parent=1 // pred_check
      _
    $region15: #{tpu_custom_call.1} parent=1 // pred_check_branch
      %66 = sbr.rel (0) target = $region17
    $region16: #{tpu_custom_call.1} parent=1 // pred_region
      %s68 = ssub.s32 1024, 1024
      %69 = vsyncadd [#allocation10], %s68
      %s70 = sshll.u32 [#allocation11], 4
      %s71 = int_to_ptr.vmem [resolvable:$true] %s70
      %76 = dma.hbm_to_vmem [thread:$0]  %s3, 1024, %s71, [#allocation10], 128, 128, 8
    $region17: #{tpu_custom_call.1} parent=1 // pred_fallthru
      _
    // Predicated region
    $region18: #{tpu_custom_call.1} parent=1 // pred_check
      _
    $region19: #{tpu_custom_call.1} parent=1 // pred_check_branch
      %78 = sbr.rel (0) target = $region21
    $region20: #{tpu_custom_call.1} parent=1 // pred_region
      %s80 = ssub.s32 256, 256
      %81 = vsyncadd [#allocation13], %s80
      %s82 = sshll.u32 [#allocation12], 4
      %s83 = int_to_ptr.vmem [resolvable:$true] %s82
      %88 = dma.hbm_to_vmem [thread:$0]  %s4, 256, %s83, [#allocation13], 128, 128, 8
    $region21: #{tpu_custom_call.1} parent=1 // pred_fallthru
      _
    // Predicated region
    $region22: #{tpu_custom_call.1} parent=1 // pred_check
      _
    $region23: #{tpu_custom_call.1} parent=1 // pred_check_branch
      %90 = sbr.rel (0) target = $region25
    $region24: #{tpu_custom_call.1} parent=1 // pred_region
      %s92 = ssub.s32 1024, 1024
      %93 = vsyncadd [#allocation13], %s92
      %s94 = sshll.u32 [#allocation14], 4
      %s95 = int_to_ptr.vmem [resolvable:$true] %s94
      %100 = dma.hbm_to_vmem [thread:$0]  %s5, 1024, %s95, [#allocation13], 128, 128, 8
    $region25: #{tpu_custom_call.1} parent=1 // pred_fallthru
      _
    // Predicated region
    $region26: #{tpu_custom_call.1} parent=1 // pred_check
      _
    $region27: #{tpu_custom_call.1} parent=1 // pred_check_branch
      %102 = sbr.rel (0) target = $region29
    $region28: #{tpu_custom_call.1} parent=1 // pred_region
      %s104 = ssub.s32 256, 256
      %105 = vsyncadd [#allocation16], %s104
      %s106 = sshll.u32 [#allocation15], 4
      %s107 = int_to_ptr.vmem [resolvable:$true] %s106
      %112 = dma.hbm_to_vmem [thread:$0]  %s6, 256, %s107, [#allocation16], 128, 128, 8
    $region29: #{tpu_custom_call.1} parent=1 // pred_fallthru
      _
    // Predicated region
    $region30: #{tpu_custom_call.1} parent=1 // pred_check
      _
    $region31: #{tpu_custom_call.1} parent=1 // pred_check_branch
      %114 = sbr.rel (0) target = $region33
    $region32: #{tpu_custom_call.1} parent=1 // pred_region
      %s116 = ssub.s32 1024, 1024
      %117 = vsyncadd [#allocation16], %s116
      %s118 = sshll.u32 [#allocation17], 4
      %s119 = int_to_ptr.vmem [resolvable:$true] %s118
      %124 = dma.hbm_to_vmem [thread:$0]  %s7, 1024, %s119, [#allocation16], 128, 128, 8
    $region33: #{tpu_custom_call.1} parent=1 // pred_fallthru
      _
    // Predicated region
    $region34: #{tpu_custom_call.1} parent=1 // pred_check
      _
    $region35: #{tpu_custom_call.1} parent=1 // pred_check_branch
      %126 = sbr.rel (0) target = $region37
    $region36: #{tpu_custom_call.1} parent=1 // pred_region
      %s128 = ssub.s32 512, 512
      %129 = vsyncadd [#allocation19], %s128
      %s130 = sshll.u32 [#allocation18], 4
      %s131 = int_to_ptr.vmem [resolvable:$true] %s130
      %136 = dma.hbm_to_vmem [thread:$0]  %s8, 512, %s131, [#allocation19], 128, 128, 8
    $region37: #{tpu_custom_call.1} parent=1 // pred_fallthru
      _
    // Predicated region
    $region38: #{tpu_custom_call.1} parent=1 // pred_check
      _
    $region39: #{tpu_custom_call.1} parent=1 // pred_check_branch
      %138 = sbr.rel (0) target = $region41
    $region40: #{tpu_custom_call.1} parent=1 // pred_region
      %s140 = ssub.s32 1024, 1024
      %141 = vsyncadd [#allocation19], %s140
      %s142 = sshll.u32 [#allocation20], 4
      %s143 = int_to_ptr.vmem [resolvable:$true] %s142
      %148 = dma.hbm_to_vmem [thread:$0]  %s9, 1024, %s143, [#allocation19], 128, 128, 8
    $region41: #{tpu_custom_call.1} parent=1 // pred_fallthru
      _
    // Predicated region
    $region42: #{tpu_custom_call.1} parent=1 // pred_check
      _
    $region43: #{tpu_custom_call.1} parent=1 // pred_check_branch
      %150 = sbr.rel (0) target = $region45
    $region44: #{tpu_custom_call.1} parent=1 // pred_region
      _
    $region45: #{tpu_custom_call.1} parent=1 // pred_fallthru
      _
    // Predicated region
    $region46: #{tpu_custom_call.1} parent=1 // pred_check
      _
    $region47: #{tpu_custom_call.1} parent=1 // pred_check_branch
      %152 = sbr.rel (0) target = $region49
    $region48: #{tpu_custom_call.1} parent=1 // pred_region
      %s154 = ssub.s32 1024, 1024
      %155 = vsyncadd [#allocation22], %s154
      %s156 = sshll.u32 [#allocation21], 4
      %s157 = int_to_ptr.vmem [resolvable:$true] %s156
      %162 = dma.hbm_to_vmem [thread:$0]  %s11, 1024, %s157, [#allocation22], 128, 128, 8
    $region49: #{tpu_custom_call.1} parent=1 // pred_fallthru
      _
    // Predicated region
    $region50: #{tpu_custom_call.1} parent=1 // pred_check
      _
    $region51: #{tpu_custom_call.1} parent=1 // pred_check_branch
      %164 = sbr.rel (0) target = $region53
    $region52: #{tpu_custom_call.1} parent=1 // pred_region
      %s166 = ssub.s32 256, 256
      %167 = vsyncadd [#allocation22], %s166
      %s168 = sshll.u32 [#allocation23], 4
      %s169 = int_to_ptr.vmem [resolvable:$true] %s168
      %174 = dma.hbm_to_vmem [thread:$0]  %s12, 256, %s169, [#allocation22], 128, 128, 8
    $region53: #{tpu_custom_call.1} parent=1 // pred_fallthru
      _
    // Predicated region
    $region54: #{tpu_custom_call.1} parent=1 // pred_check
      _
    $region55: #{tpu_custom_call.1} parent=1 // pred_check_branch
      %176 = sbr.rel (0) target = $region57
    $region56: #{tpu_custom_call.1} parent=1 // pred_region
      %s178 = ssub.s32 1024, 1024
      %179 = vsyncadd [#allocation25], %s178
      %s180 = sshll.u32 [#allocation24], 4
      %s181 = int_to_ptr.vmem [resolvable:$true] %s180
      %186 = dma.hbm_to_vmem [thread:$0]  %s13, 1024, %s181, [#allocation25], 128, 128, 8
    $region57: #{tpu_custom_call.1} parent=1 // pred_fallthru
      _
    // Predicated region
    $region58: #{tpu_custom_call.1} parent=1 // pred_check
      _
    $region59: #{tpu_custom_call.1} parent=1 // pred_check_branch
      %188 = sbr.rel (0) target = $region61
    $region60: #{tpu_custom_call.1} parent=1 // pred_region
      %s190 = ssub.s32 512, 512
      %191 = vsyncadd [#allocation25], %s190
      %s192 = sshll.u32 [#allocation26], 4
      %s193 = int_to_ptr.vmem [resolvable:$true] %s192
      %198 = dma.hbm_to_vmem [thread:$0]  %s14, 512, %s193, [#allocation25], 128, 128, 8
    $region61: #{tpu_custom_call.1} parent=1 // pred_fallthru
      _
    // Predicated region
    $region62: #{tpu_custom_call.1} parent=1 // pred_check
      _
    $region63: #{tpu_custom_call.1} parent=1 // pred_check_branch
      %200 = sbr.rel (0) target = $region65
    $region64: #{tpu_custom_call.1} parent=1 // pred_region
      %s202 = ssub.s32 1024, 1024
      %203 = vsyncadd [#allocation28], %s202
      %s204 = sshll.u32 [#allocation27], 4
      %s205 = int_to_ptr.vmem [resolvable:$true] %s204
      %210 = dma.hbm_to_vmem [thread:$0]  %s15, 1024, %s205, [#allocation28], 128, 128, 8
    $region65: #{tpu_custom_call.1} parent=1 // pred_fallthru
      _
    // Predicated region
    $region66: #{tpu_custom_call.1} parent=1 // pred_check
      _
    $region67: #{tpu_custom_call.1} parent=1 // pred_check_branch
      %212 = sbr.rel (0) target = $region69
    $region68: #{tpu_custom_call.1} parent=1 // pred_region
      %213 = dma.done [#allocation5], 512
    $region69: #{tpu_custom_call.1} parent=1 // pred_fallthru
      _
    // Predicated region
    $region70: #{tpu_custom_call.1} parent=1 // pred_check
      _
    $region71: #{tpu_custom_call.1} parent=1 // pred_check_branch
      %215 = sbr.rel (0) target = $region73
    $region72: #{tpu_custom_call.1} parent=1 // pred_region
      %216 = dma.done [#allocation7], 16
    $region73: #{tpu_custom_call.1} parent=1 // pred_fallthru
      _
    // Predicated region
    $region74: #{tpu_custom_call.1} parent=1 // pred_check
      _
    $region75: #{tpu_custom_call.1} parent=1 // pred_check_branch
      %218 = sbr.rel (0) target = $region77
    $region76: #{tpu_custom_call.1} parent=1 // pred_region
      %219 = dma.done [#allocation10], 256
    $region77: #{tpu_custom_call.1} parent=1 // pred_fallthru
      _
    // Predicated region
    $region78: #{tpu_custom_call.1} parent=1 // pred_check
      _
    $region79: #{tpu_custom_call.1} parent=1 // pred_check_branch
      %221 = sbr.rel (0) target = $region81
    $region80: #{tpu_custom_call.1} parent=1 // pred_region
      %222 = dma.done [#allocation10], 1024
    $region81: #{tpu_custom_call.1} parent=1 // pred_fallthru
      _
    // Predicated region
    $region82: #{tpu_custom_call.1} parent=1 // pred_check
      _
    $region83: #{tpu_custom_call.1} parent=1 // pred_check_branch
      %224 = sbr.rel (0) target = $region85
    $region84: #{tpu_custom_call.1} parent=1 // pred_region
      %225 = dma.done [#allocation13], 256
    $region85: #{tpu_custom_call.1} parent=1 // pred_fallthru
      _
    // Predicated region
    $region86: #{tpu_custom_call.1} parent=1 // pred_check
      _
    $region87: #{tpu_custom_call.1} parent=1 // pred_check_branch
      %227 = sbr.rel (0) target = $region89
    $region88: #{tpu_custom_call.1} parent=1 // pred_region
      %228 = dma.done [#allocation13], 1024
    $region89: #{tpu_custom_call.1} parent=1 // pred_fallthru
      _
    // Predicated region
    $region90: #{tpu_custom_call.1} parent=1 // pred_check
      _
    $region91: #{tpu_custom_call.1} parent=1 // pred_check_branch
      %230 = sbr.rel (0) target = $region93
    $region92: #{tpu_custom_call.1} parent=1 // pred_region
      %231 = dma.done [#allocation16], 256
    $region93: #{tpu_custom_call.1} parent=1 // pred_fallthru
      _
    // Predicated region
    $region94: #{tpu_custom_call.1} parent=1 // pred_check
      _
    $region95: #{tpu_custom_call.1} parent=1 // pred_check_branch
      %233 = sbr.rel (0) target = $region97
    $region96: #{tpu_custom_call.1} parent=1 // pred_region
      %234 = dma.done [#allocation16], 1024
    $region97: #{tpu_custom_call.1} parent=1 // pred_fallthru
      _
    // Predicated region
    $region98: #{tpu_custom_call.1} parent=1 // pred_check
      _
    $region99: #{tpu_custom_call.1} parent=1 // pred_check_branch
      %236 = sbr.rel (0) target = $region101
    $region100: #{tpu_custom_call.1} parent=1 // pred_region
      %237 = dma.done [#allocation19], 512
    $region101: #{tpu_custom_call.1} parent=1 // pred_fallthru
      _
    // Predicated region
    $region102: #{tpu_custom_call.1} parent=1 // pred_check
      _
    $region103: #{tpu_custom_call.1} parent=1 // pred_check_branch
      %239 = sbr.rel (0) target = $region105
    $region104: #{tpu_custom_call.1} parent=1 // pred_region
      %240 = dma.done [#allocation19], 1024
    $region105: #{tpu_custom_call.1} parent=1 // pred_fallthru
      _
    // Predicated region
    $region106: #{tpu_custom_call.1} parent=1 // pred_check
      _
    $region107: #{tpu_custom_call.1} parent=1 // pred_check_branch
      %242 = sbr.rel (0) target = $region109
    $region108: #{tpu_custom_call.1} parent=1 // pred_region
      %243 = dma.done [#allocation22], 1024
    $region109: #{tpu_custom_call.1} parent=1 // pred_fallthru
      _
    // Predicated region
    $region110: #{tpu_custom_call.1} parent=1 // pred_check
      _
    $region111: #{tpu_custom_call.1} parent=1 // pred_check_branch
      %245 = sbr.rel (0) target = $region113
    $region112: #{tpu_custom_call.1} parent=1 // pred_region
      %246 = dma.done [#allocation22], 256
    $region113: #{tpu_custom_call.1} parent=1 // pred_fallthru
      _
    // Predicated region
    $region114: #{tpu_custom_call.1} parent=1 // pred_check
      _
    $region115: #{tpu_custom_call.1} parent=1 // pred_check_branch
      %248 = sbr.rel (0) target = $region117
    $region116: #{tpu_custom_call.1} parent=1 // pred_region
      %249 = dma.done [#allocation25], 1024
    $region117: #{tpu_custom_call.1} parent=1 // pred_fallthru
      _
    // Predicated region
    $region118: #{tpu_custom_call.1} parent=1 // pred_check
      _
    $region119: #{tpu_custom_call.1} parent=1 // pred_check_branch
      %251 = sbr.rel (0) target = $region121
    $region120: #{tpu_custom_call.1} parent=1 // pred_region
      %252 = dma.done [#allocation25], 512
    $region121: #{tpu_custom_call.1} parent=1 // pred_fallthru
      _
    // Predicated region
    $region122: #{tpu_custom_call.1} parent=1 // pred_check
      _
    $region123: #{tpu_custom_call.1} parent=1 // pred_check_branch
      %254 = sbr.rel (0) target = $region125
    $region124: #{tpu_custom_call.1} parent=1 // pred_region
      %255 = dma.done [#allocation28], 1024
    $region125: #{tpu_custom_call.1} parent=1 // pred_fallthru
      _
    %256 = sfence
    %v257 = vld [vmem:[#allocation4] sm:$0xff]
    %v258 = vld [vmem:[#allocation4 + $0x8] sm:$0xff]
    %v259 = vld [vmem:[#allocation4 + $0x10] sm:$0xff]
    %v260 = vld [vmem:[#allocation4 + $0x18] sm:$0xff]
    %v261 = vld [vmem:[#allocation11] sm:$0xff]
    %v262 = vld [vmem:[#allocation11 + $0x8] sm:$0xff]
    %v263 = vld [vmem:[#allocation11 + $0x10] sm:$0xff]
    %v264 = vld [vmem:[#allocation11 + $0x18] sm:$0xff]
    %v265 = vld [vmem:[#allocation11 + $0x20] sm:$0xff]
    %v266 = vld [vmem:[#allocation11 + $0x28] sm:$0xff]
    %v267 = vld [vmem:[#allocation11 + $0x30] sm:$0xff]
    %v268 = vld [vmem:[#allocation11 + $0x38] sm:$0xff]
    %273 = vrot.lane.b32.xlu0 %v257, 8
    %v274 = vpop.permute.xlu0 %273
    %275 = vrot.lane.b32.xlu0 %v258, 8
    %v276 = vpop.permute.xlu0 %275
    %277 = vrot.lane.b32.xlu0 %v259, 8
    %v278 = vpop.permute.xlu0 %277
    %279 = vrot.lane.b32.xlu0 %v260, 8
    %v280 = vpop.permute.xlu0 %279
    %vm285 = vcmask 588864
    %286 = vst.msk [vmem:[#allocation2 + $0x2] sm:$0xff] %vm285, %v274
    %287 = vst.msk [vmem:[#allocation2 + $0xa] sm:$0xff] %vm285, %v276
    %288 = vst.msk [vmem:[#allocation2 + $0x1a] sm:$0xff] %vm285, %v278
    %289 = vst.msk [vmem:[#allocation2 + $0x22] sm:$0xff] %vm285, %v280
    %vm290 = vcmask 614432
    %291 = vst.msk [vmem:[#allocation2 + $0x1] sm:$0x1] %vm290, -inf
    %292 = vst.msk [vmem:[#allocation2 + $0x19] sm:$0x1] %vm290, -inf
    %293 = vst.msk [vmem:[#allocation2 + $0x12] sm:$0x1] %vm290, -inf
    %294 = vst.msk [vmem:[#allocation2 + $0x2a] sm:$0x1] %vm290, -inf
    %vm295 = vcmask 64544
    %296 = vst.msk [vmem:[#allocation2 + $0x2] sm:$0xff] %vm295, -inf
    %297 = vst.msk [vmem:[#allocation2 + $0xa] sm:$0xff] %vm295, -inf
    %298 = vst.msk [vmem:[#allocation2 + $0x1a] sm:$0xff] %vm295, -inf
    %299 = vst.msk [vmem:[#allocation2 + $0x22] sm:$0xff] %vm295, -inf
    %vm300 = vcmask 622144
    %301 = vst.msk [vmem:[#allocation2 + $0x2] sm:$0xff] %vm300, -inf
    %302 = vst.msk [vmem:[#allocation2 + $0xa] sm:$0xff] %vm300, -inf
    %303 = vst.msk [vmem:[#allocation2 + $0x1a] sm:$0xff] %vm300, -inf
    %304 = vst.msk [vmem:[#allocation2 + $0x22] sm:$0xff] %vm300, -inf
    %v305 = vld [vmem:[#allocation2 + $0x1] sm:$0xff]
    %v306 = vld [vmem:[#allocation2 + $0x9] sm:$0xff]
    %v307 = vld [vmem:[#allocation2 + $0x11] sm:$0x3]
    %v308 = vld [vmem:[#allocation2 + $0x19] sm:$0xff]
    %v309 = vld [vmem:[#allocation2 + $0x21] sm:$0xff]
    %v310 = vld [vmem:[#allocation2 + $0x29] sm:$0x3]
    %317 = vrot.lane.b32.xlu0 %v305, 124
    %v318 = vpop.permute.xlu0 %317
    %319 = vrot.lane.b32.xlu0 %v306, 124
    %v320 = vpop.permute.xlu0 %319
    %321 = vrot.lane.b32.xlu0 %v307, 124
    %v322 = vpop.permute.xlu0 %321
    %323 = vrot.lane.b32.xlu0 %v308, 124
    %v324 = vpop.permute.xlu0 %323
    %325 = vrot.lane.b32.xlu0 %v309, 124
    %v326 = vpop.permute.xlu0 %325
    %327 = vrot.lane.b32.xlu0 %v310, 124
    %v328 = vpop.permute.xlu0 %327
    %v335 = vmax.f32 %v305, %v318
    %v336 = vmax.f32 %v306, %v320
    %v337 = vmax.f32 %v307, %v322
    %v338 = vmax.f32 %v308, %v324
    %v339 = vmax.f32 %v309, %v326
    %v340 = vmax.f32 %v310, %v328
    %341 = vrot.lane.b32.xlu0 %v305, 120
    %v342 = vpop.permute.xlu0 %341
    %343 = vrot.lane.b32.xlu0 %v306, 120
    %v344 = vpop.permute.xlu0 %343
    %345 = vrot.lane.b32.xlu0 %v307, 120
    %v346 = vpop.permute.xlu0 %345
    %347 = vrot.lane.b32.xlu0 %v308, 120
    %v348 = vpop.permute.xlu0 %347
    %349 = vrot.lane.b32.xlu0 %v309, 120
    %v350 = vpop.permute.xlu0 %349
    %351 = vrot.lane.b32.xlu0 %v310, 120
    %v352 = vpop.permute.xlu0 %351
    %v359 = vmax.f32 %v335, %v342
    %v360 = vmax.f32 %v336, %v344
    %v361 = vmax.f32 %v337, %v346
    %v362 = vmax.f32 %v338, %v348
    %v363 = vmax.f32 %v339, %v350
    %v364 = vmax.f32 %v340, %v352
    %vm371 = vcmask 1046528
    %v372 = vrot.slane %v359, 1
    %v373 = vrot.slane %v360, 1
    %v374 = vsel %vm371, %v372, %v373
    %v375 = vrot.slane %v361, 1
    %v376 = vsel %vm371, %v373, %v375
    %v377 = vrot.slane %v362, 1
    %v378 = vrot.slane %v363, 1
    %v379 = vsel %vm371, %v377, %v378
    %v380 = vrot.slane %v364, 1
    %v381 = vsel %vm371, %v378, %v380
    %v386 = vmax.f32 %v359, %v374
    %v387 = vmax.f32 %v360, %v376
    %v388 = vmax.f32 %v362, %v379
    %v389 = vmax.f32 %v363, %v381
    %vm390 = vcmask 1045504
    %v391 = vrot.slane %v359, 2
    %v392 = vrot.slane %v360, 2
    %v393 = vsel %vm390, %v391, %v392
    %v394 = vrot.slane %v361, 2
    %v395 = vsel %vm390, %v392, %v394
    %v396 = vrot.slane %v362, 2
    %v397 = vrot.slane %v363, 2
    %v398 = vsel %vm390, %v396, %v397
    %v399 = vrot.slane %v364, 2
    %v400 = vsel %vm390, %v397, %v399
    %v405 = vmax.f32 %v386, %v393
    %v406 = vmax.f32 %v387, %v395
    %v407 = vmax.f32 %v388, %v398
    %v408 = vmax.f32 %v389, %v400
    %s409 = sld [smem:[#allocation8 + $0x1]]
    %vm410 = vcmask 556064
    %v411 = vsel %vm410, %v405, 0.0
    %v412 = vsel %vm410, %v406, 0.0
    %v413 = vadd.f32 %v411, %v412
    %v414 = vsel %vm410, %v407, 0.0
    %v415 = vadd.f32 %v413, %v414
    %v416 = vsel %vm410, %v408, 0.0
    %v417 = vadd.f32 %v415, %v416
    %419 = vrot.lane.b32.xlu0 %v417, 124
    %v420 = vpop.permute.xlu0 %419
    %vm421 = vcmask 523264
    %v422 = vsel %vm421, %v420, 0
    %424 = vmatprep.subr.mxu0 0.0
    %425 = vmatpush1.msra.mxu0 %v261
    %426 = vmatprep.subr.mxu0 0.0
    %427 = vmatpush1.msra.mxu0 %v262
    %428 = vmatprep.subr.mxu0 0.0
    %429 = vmatpush1.msra.mxu0 %v263
    %430 = vmatprep.subr.mxu0 0.0
    %431 = vmatpush1.msra.mxu0 %v264
    %432 = vmatprep.subr.mxu0 0.0
    %433 = vmatpush1.msra.mxu0 %v265
    %434 = vmatprep.subr.mxu0 0.0
    %435 = vmatpush1.msra.mxu0 %v266
    %436 = vmatprep.subr.mxu0 0.0
    %437 = vmatpush1.msra.mxu0 %v267
    %438 = vmatprep.subr.mxu0 0.0
    %439 = vmatpush1.msra.mxu0 %v268
    %440 = vmatprep.subr.mxu0 0.0
    %441 = vmatpush1.msra.mxu0 0.0
    %442 = vmatprep.subr.mxu0 0.0
    %443 = vmatpush1.msra.mxu0 0.0
    %444 = vmatprep.subr.mxu0 0.0
    %445 = vmatpush1.msra.mxu0 0.0
    %446 = vmatprep.subr.mxu0 0.0
    %447 = vmatpush1.msra.mxu0 0.0
    %448 = vmatprep.subr.mxu0 0.0
    %449 = vmatpush1.msra.mxu0 0.0
    %450 = vmatprep.subr.mxu0 0.0
    %451 = vmatpush1.msra.mxu0 0.0
    %452 = vmatprep.subr.mxu0 0.0
    %453 = vmatpush1.msra.mxu0 0.0
    %454 = vmatprep.subr.mxu0 0.0
    %455 = vmatpush1.msra.mxu0 0.0
    %456 = vmatprep.subr.mxu0 0.0
    %457 = vmatpush1.msra.mxu0 0.0
    %458 = vmatprep.subr.mxu0 0.0
    %459 = vmatpush1.msra.mxu0 0.0
    %460 = vmatprep.subr.mxu0 0.0
    %461 = vmatpush1.msra.mxu0 0.0
    %462 = vmatprep.subr.mxu0 0.0
    %463 = vmatpush1.msra.mxu0 0.0
    %464 = vmatprep.subr.mxu0 0.0
    %465 = vmatpush1.msra.mxu0 0.0
    %466 = vmatprep.subr.mxu0 0.0
    %467 = vmatpush1.msra.mxu0 0.0
    %468 = vmatprep.subr.mxu0 0.0
    %469 = vmatpush1.msra.mxu0 0.0
    %470 = vmatprep.subr.mxu0 0.0
    %471 = vmatpush1.msra.mxu0 0.0
    %472 = vmatprep.subr.mxu0 0.0
    %473 = vmatpush1.msra.mxu0 0.0
    %474 = vmatprep.subr.mxu0 0.0
    %475 = vmatpush1.msra.mxu0 0.0
    %476 = vmatprep.subr.mxu0 0.0
    %477 = vmatpush1.msra.mxu0 0.0
    %478 = vmatprep.subr.mxu0 0.0
    %479 = vmatpush1.msra.mxu0 0.0
    %480 = vmatprep.subr.mxu0 0.0
    %481 = vmatpush1.msra.mxu0 0.0
    %482 = vmatprep.subr.mxu0 0.0
    %483 = vmatpush1.msra.mxu0 0.0
    %484 = vmatprep.subr.mxu0 0.0
    %485 = vmatpush1.msra.mxu0 0.0
    %486 = vmatprep.subr.mxu0 0.0
    %487 = vmatpush1.msra.mxu0 0.0
    %488 = vmatprep.mubr.f32.mxu0 0.0
    %489 = vmatmul.mubr.f32.gmra.mrb[0].mxu0 %v422
    %v490 = vpop.f32.mrb[0].mxu0
    %v491 = vadd.f32 0.0, %v490
    %v492 = vpop.f32.mrb[0].mxu0
    %493 = vdwg.mxu0
    %v494 = vsel %vm421, %v491, 0.0
    %v495 = vrot.slane %v494, 4
    %v496 = vadd.f32 %v494, %v495
    %v497 = vrot.slane %v496, 2
    %v498 = vadd.f32 %v496, %v497
    %v499 = vrot.slane %v498, 1
    %v500 = vadd.f32 %v498, %v499
    %502 = vrot.lane.b32.xlu0 %v500, 4
    %v503 = vpop.permute.xlu0 %502
    %v505 = vsub.f32 %v405, %v503
    %v506 = vsub.f32 %v406, %v503
    %v507 = vsub.f32 %v407, %v503
    %v508 = vsub.f32 %v408, %v503
    %v509 = vmul.f32 %v505, %v505
    %v510 = vmul.f32 %v506, %v506
    %v511 = vmul.f32 %v507, %v507
    %v512 = vmul.f32 %v508, %v508
    %v513 = vsel %vm410, %v509, 0.0
    %v514 = vsel %vm410, %v510, 0.0
    %v515 = vadd.f32 %v513, %v514
    %v516 = vsel %vm410, %v511, 0.0
    %v517 = vadd.f32 %v515, %v516
    %v518 = vsel %vm410, %v512, 0.0
    %v519 = vadd.f32 %v517, %v518
    %521 = vrot.lane.b32.xlu0 %v519, 124
    %v522 = vpop.permute.xlu0 %521
    %v523 = vsel %vm421, %v522, 0
    %525 = vmatprep.subr.mxu0 0.0
    %526 = vmatpush1.msra.mxu0 %v261
    %527 = vmatprep.subr.mxu0 0.0
    %528 = vmatpush1.msra.mxu0 %v262
    %529 = vmatprep.subr.mxu0 0.0
    %530 = vmatpush1.msra.mxu0 %v263
    %531 = vmatprep.subr.mxu0 0.0
    %532 = vmatpush1.msra.mxu0 %v264
    %533 = vmatprep.subr.mxu0 0.0
    %534 = vmatpush1.msra.mxu0 %v265
    %535 = vmatprep.subr.mxu0 0.0
    %536 = vmatpush1.msra.mxu0 %v266
    %537 = vmatprep.subr.mxu0 0.0
    %538 = vmatpush1.msra.mxu0 %v267
    %539 = vmatprep.subr.mxu0 0.0
    %540 = vmatpush1.msra.mxu0 %v268
    %541 = vmatprep.subr.mxu0 0.0
    %542 = vmatpush1.msra.mxu0 0.0
    %543 = vmatprep.subr.mxu0 0.0
    %544 = vmatpush1.msra.mxu0 0.0
    %545 = vmatprep.subr.mxu0 0.0
    %546 = vmatpush1.msra.mxu0 0.0
    %547 = vmatprep.subr.mxu0 0.0
    %548 = vmatpush1.msra.mxu0 0.0
    %549 = vmatprep.subr.mxu0 0.0
    %550 = vmatpush1.msra.mxu0 0.0
    %551 = vmatprep.subr.mxu0 0.0
    %552 = vmatpush1.msra.mxu0 0.0
    %553 = vmatprep.subr.mxu0 0.0
    %554 = vmatpush1.msra.mxu0 0.0
    %555 = vmatprep.subr.mxu0 0.0
    %556 = vmatpush1.msra.mxu0 0.0
    %557 = vmatprep.subr.mxu0 0.0
    %558 = vmatpush1.msra.mxu0 0.0
    %559 = vmatprep.subr.mxu0 0.0
    %560 = vmatpush1.msra.mxu0 0.0
    %561 = vmatprep.subr.mxu0 0.0
    %562 = vmatpush1.msra.mxu0 0.0
    %563 = vmatprep.subr.mxu0 0.0
    %564 = vmatpush1.msra.mxu0 0.0
    %565 = vmatprep.subr.mxu0 0.0
    %566 = vmatpush1.msra.mxu0 0.0
    %567 = vmatprep.subr.mxu0 0.0
    %568 = vmatpush1.msra.mxu0 0.0
    %569 = vmatprep.subr.mxu0 0.0
    %570 = vmatpush1.msra.mxu0 0.0
    %571 = vmatprep.subr.mxu0 0.0
    %572 = vmatpush1.msra.mxu0 0.0
    %573 = vmatprep.subr.mxu0 0.0
    %574 = vmatpush1.msra.mxu0 0.0
    %575 = vmatprep.subr.mxu0 0.0
    %576 = vmatpush1.msra.mxu0 0.0
    %577 = vmatprep.subr.mxu0 0.0
    %578 = vmatpush1.msra.mxu0 0.0
    %579 = vmatprep.subr.mxu0 0.0
    %580 = vmatpush1.msra.mxu0 0.0
    %581 = vmatprep.subr.mxu0 0.0
    %582 = vmatpush1.msra.mxu0 0.0
    %583 = vmatprep.subr.mxu0 0.0
    %584 = vmatpush1.msra.mxu0 0.0
    %585 = vmatprep.subr.mxu0 0.0
    %586 = vmatpush1.msra.mxu0 0.0
    %587 = vmatprep.subr.mxu0 0.0
    %588 = vmatpush1.msra.mxu0 0.0
    %589 = vmatprep.mubr.f32.mxu0 0.0
    %590 = vmatmul.mubr.f32.gmra.mrb[0].mxu0 %v523
    %v591 = vpop.f32.mrb[0].mxu0
    %v592 = vadd.f32 0.0, %v591
    %v593 = vpop.f32.mrb[0].mxu0
    %594 = vdwg.mxu0
    %v595 = vsel %vm421, %v592, 0.0
    %v596 = vrot.slane %v595, 4
    %v597 = vadd.f32 %v595, %v596
    %v598 = vrot.slane %v597, 2
    %v599 = vadd.f32 %v597, %v598
    %v600 = vrot.slane %v599, 1
    %v601 = vadd.f32 %v599, %v600
    %v602 = vadd.f32 %v601, 1e-05
    %v603 = vrsqrt.pop %v602
    %605 = vrot.lane.b32.xlu0 %v603, 4
    %v606 = vpop.permute.xlu0 %605
    %v608 = vmul.f32 %v505, %v606
    %v609 = vmul.f32 %v506, %v606
    %v610 = vmul.f32 %v507, %v606
    %v611 = vmul.f32 %v508, %v606
    %v612 = vstv %s409
    %v613 = vmul.f32 %v612, %v608
    %v614 = vmul.f32 %v612, %v609
    %v615 = vmul.f32 %v612, %v610
    %v616 = vmul.f32 %v612, %v611
    %vm617 = vcmask 648192
    %618 = vst.msk [vmem:[#allocation2] sm:$0x3] %vm617, 0.0
    %619 = vst.msk [vmem:[#allocation2 + $0x18] sm:$0x3] %vm617, 0.0
    %620 = vst.msk [vmem:[#allocation2 + $0x12] sm:$0x3] %vm617, 0.0
    %621 = vst.msk [vmem:[#allocation2 + $0x2a] sm:$0x3] %vm617, 0.0
    %vm622 = vcmask 64512
    %623 = vst.msk [vmem:[#allocation2 + $0x2] sm:$0xff] %vm622, 0.0
    %624 = vst.msk [vmem:[#allocation2 + $0xa] sm:$0xff] %vm622, 0.0
    %625 = vst.msk [vmem:[#allocation2 + $0x1a] sm:$0xff] %vm622, 0.0
    %626 = vst.msk [vmem:[#allocation2 + $0x22] sm:$0xff] %vm622, 0.0
    %vm627 = vcmask 654912
    %628 = vst.msk [vmem:[#allocation2 + $0x2] sm:$0xff] %vm627, 0.0
    %629 = vst.msk [vmem:[#allocation2 + $0xa] sm:$0xff] %vm627, 0.0
    %630 = vst.msk [vmem:[#allocation2 + $0x1a] sm:$0xff] %vm627, 0.0
    %631 = vst.msk [vmem:[#allocation2 + $0x22] sm:$0xff] %vm627, 0.0
    %v632 = vld [vmem:[#allocation2 + $0x1] sm:$0xff]
    %v633 = vld [vmem:[#allocation2 + $0x9] sm:$0xff]
    %v634 = vld [vmem:[#allocation2 + $0x11] sm:$0x3]
    %v635 = vld [vmem:[#allocation2 + $0x19] sm:$0xff]
    %v636 = vld [vmem:[#allocation2 + $0x21] sm:$0xff]
    %v637 = vld [vmem:[#allocation2 + $0x29] sm:$0x3]
    %644 = vrot.lane.b32.xlu0 %v632, 124
    %v645 = vpop.permute.xlu0 %644
    %646 = vrot.lane.b32.xlu0 %v633, 124
    %v647 = vpop.permute.xlu0 %646
    %648 = vrot.lane.b32.xlu0 %v634, 124
    %v649 = vpop.permute.xlu0 %648
    %650 = vrot.lane.b32.xlu0 %v635, 124
    %v651 = vpop.permute.xlu0 %650
    %652 = vrot.lane.b32.xlu0 %v636, 124
    %v653 = vpop.permute.xlu0 %652
    %654 = vrot.lane.b32.xlu0 %v637, 124
    %v655 = vpop.permute.xlu0 %654
    %v662 = vadd.f32 %v632, %v645
    %v663 = vadd.f32 %v633, %v647
    %v664 = vadd.f32 %v634, %v649
    %v665 = vadd.f32 %v635, %v651
    %v666 = vadd.f32 %v636, %v653
    %v667 = vadd.f32 %v637, %v655
    %668 = vrot.lane.b32.xlu0 %v632, 120
    %v669 = vpop.permute.xlu0 %668
    %670 = vrot.lane.b32.xlu0 %v633, 120
    %v671 = vpop.permute.xlu0 %670
    %672 = vrot.lane.b32.xlu0 %v634, 120
    %v673 = vpop.permute.xlu0 %672
    %674 = vrot.lane.b32.xlu0 %v635, 120
    %v675 = vpop.permute.xlu0 %674
    %676 = vrot.lane.b32.xlu0 %v636, 120
    %v677 = vpop.permute.xlu0 %676
    %678 = vrot.lane.b32.xlu0 %v637, 120
    %v679 = vpop.permute.xlu0 %678
    %v686 = vadd.f32 %v662, %v669
    %v687 = vadd.f32 %v663, %v671
    %v688 = vadd.f32 %v664, %v673
    %v689 = vadd.f32 %v665, %v675
    %v690 = vadd.f32 %v666, %v677
    %v691 = vadd.f32 %v667, %v679
    %v698 = vrot.slane %v686, 1
    %v699 = vrot.slane %v687, 1
    %v700 = vsel %vm371, %v698, %v699
    %v701 = vrot.slane %v688, 1
    %v702 = vsel %vm371, %v699, %v701
    %v703 = vrot.slane %v689, 1
    %v704 = vrot.slane %v690, 1
    %v705 = vsel %vm371, %v703, %v704
    %v706 = vrot.slane %v691, 1
    %v707 = vsel %vm371, %v704, %v706
    %v712 = vadd.f32 %v686, %v700
    %v713 = vadd.f32 %v687, %v702
    %v714 = vadd.f32 %v689, %v705
    %v715 = vadd.f32 %v690, %v707
    %v716 = vrot.slane %v686, 2
    %v717 = vrot.slane %v687, 2
    %v718 = vsel %vm390, %v716, %v717
    %v719 = vrot.slane %v688, 2
    %v720 = vsel %vm390, %v717, %v719
    %v721 = vrot.slane %v689, 2
    %v722 = vrot.slane %v690, 2
    %v723 = vsel %vm390, %v721, %v722
    %v724 = vrot.slane %v691, 2
    %v725 = vsel %vm390, %v722, %v724
    %v730 = vadd.f32 %v712, %v718
    %v731 = vadd.f32 %v713, %v720
    %v732 = vadd.f32 %v714, %v723
    %v733 = vadd.f32 %v715, %v725
    %v734 = vld [vmem:[#allocation9] sm:$0xff]
    %v735 = vld [vmem:[#allocation9 + $0x8] sm:$0xff]
    %738 = vrot.lane.b32.xlu0 %v734, 4
    %v739 = vpop.permute.xlu0 %738
    %740 = vrot.lane.b32.xlu0 %v735, 4
    %v741 = vpop.permute.xlu0 %740
    %v744 = vmul.f32 %v730, %v739
    %v745 = vmul.f32 %v731, %v741
    %v746 = vmul.f32 %v732, %v739
    %v747 = vmul.f32 %v733, %v741
    %s748 = sld [smem:[#allocation8 + $0x2]]
    %v749 = vsel %vm410, %v744, 0.0
    %v750 = vsel %vm410, %v745, 0.0
    %v751 = vadd.f32 %v749, %v750
    %v752 = vsel %vm410, %v746, 0.0
    %v753 = vadd.f32 %v751, %v752
    %v754 = vsel %vm410, %v747, 0.0
    %v755 = vadd.f32 %v753, %v754
    %757 = vrot.lane.b32.xlu0 %v755, 124
    %v758 = vpop.permute.xlu0 %757
    %v759 = vsel %vm421, %v758, 0
    %761 = vmatprep.subr.mxu0 0.0
    %762 = vmatpush1.msra.mxu0 %v261
    %763 = vmatprep.subr.mxu0 0.0
    %764 = vmatpush1.msra.mxu0 %v262
    %765 = vmatprep.subr.mxu0 0.0
    %766 = vmatpush1.msra.mxu0 %v263
    %767 = vmatprep.subr.mxu0 0.0
    %768 = vmatpush1.msra.mxu0 %v264
    %769 = vmatprep.subr.mxu0 0.0
    %770 = vmatpush1.msra.mxu0 %v265
    %771 = vmatprep.subr.mxu0 0.0
    %772 = vmatpush1.msra.mxu0 %v266
    %773 = vmatprep.subr.mxu0 0.0
    %774 = vmatpush1.msra.mxu0 %v267
    %775 = vmatprep.subr.mxu0 0.0
    %776 = vmatpush1.msra.mxu0 %v268
    %777 = vmatprep.subr.mxu0 0.0
    %778 = vmatpush1.msra.mxu0 0.0
    %779 = vmatprep.subr.mxu0 0.0
    %780 = vmatpush1.msra.mxu0 0.0
    %781 = vmatprep.subr.mxu0 0.0
    %782 = vmatpush1.msra.mxu0 0.0
    %783 = vmatprep.subr.mxu0 0.0
    %784 = vmatpush1.msra.mxu0 0.0
    %785 = vmatprep.subr.mxu0 0.0
    %786 = vmatpush1.msra.mxu0 0.0
    %787 = vmatprep.subr.mxu0 0.0
    %788 = vmatpush1.msra.mxu0 0.0
    %789 = vmatprep.subr.mxu0 0.0
    %790 = vmatpush1.msra.mxu0 0.0
    %791 = vmatprep.subr.mxu0 0.0
    %792 = vmatpush1.msra.mxu0 0.0
    %793 = vmatprep.subr.mxu0 0.0
    %794 = vmatpush1.msra.mxu0 0.0
    %795 = vmatprep.subr.mxu0 0.0
    %796 = vmatpush1.msra.mxu0 0.0
    %797 = vmatprep.subr.mxu0 0.0
    %798 = vmatpush1.msra.mxu0 0.0
    %799 = vmatprep.subr.mxu0 0.0
    %800 = vmatpush1.msra.mxu0 0.0
    %801 = vmatprep.subr.mxu0 0.0
    %802 = vmatpush1.msra.mxu0 0.0
    %803 = vmatprep.subr.mxu0 0.0
    %804 = vmatpush1.msra.mxu0 0.0
    %805 = vmatprep.subr.mxu0 0.0
    %806 = vmatpush1.msra.mxu0 0.0
    %807 = vmatprep.subr.mxu0 0.0
    %808 = vmatpush1.msra.mxu0 0.0
    %809 = vmatprep.subr.mxu0 0.0
    %810 = vmatpush1.msra.mxu0 0.0
    %811 = vmatprep.subr.mxu0 0.0
    %812 = vmatpush1.msra.mxu0 0.0
    %813 = vmatprep.subr.mxu0 0.0
    %814 = vmatpush1.msra.mxu0 0.0
    %815 = vmatprep.subr.mxu0 0.0
    %816 = vmatpush1.msra.mxu0 0.0
    %817 = vmatprep.subr.mxu0 0.0
    %818 = vmatpush1.msra.mxu0 0.0
    %819 = vmatprep.subr.mxu0 0.0
    %820 = vmatpush1.msra.mxu0 0.0
    %821 = vmatprep.subr.mxu0 0.0
    %822 = vmatpush1.msra.mxu0 0.0
    %823 = vmatprep.subr.mxu0 0.0
    %824 = vmatpush1.msra.mxu0 0.0
    %825 = vmatprep.mubr.f32.mxu0 0.0
    %826 = vmatmul.mubr.f32.gmra.mrb[0].mxu0 %v759
    %v827 = vpop.f32.mrb[0].mxu0
    %v828 = vadd.f32 0.0, %v827
    %v829 = vpop.f32.mrb[0].mxu0
    %830 = vdwg.mxu0
    %v831 = vsel %vm421, %v828, 0.0
    %v832 = vrot.slane %v831, 4
    %v833 = vadd.f32 %v831, %v832
    %v834 = vrot.slane %v833, 2
    %v835 = vadd.f32 %v833, %v834
    %v836 = vrot.slane %v835, 1
    %v837 = vadd.f32 %v835, %v836
    %839 = vrot.lane.b32.xlu0 %v837, 4
    %v840 = vpop.permute.xlu0 %839
    %v842 = vsub.f32 %v744, %v840
    %v843 = vsub.f32 %v745, %v840
    %v844 = vsub.f32 %v746, %v840
    %v845 = vsub.f32 %v747, %v840
    %v846 = vmul.f32 %v842, %v842
    %v847 = vmul.f32 %v843, %v843
    %v848 = vmul.f32 %v844, %v844
    %v849 = vmul.f32 %v845, %v845
    %v850 = vsel %vm410, %v846, 0.0
    %v851 = vsel %vm410, %v847, 0.0
    %v852 = vadd.f32 %v850, %v851
    %v853 = vsel %vm410, %v848, 0.0
    %v854 = vadd.f32 %v852, %v853
    %v855 = vsel %vm410, %v849, 0.0
    %v856 = vadd.f32 %v854, %v855
    %858 = vrot.lane.b32.xlu0 %v856, 124
    %v859 = vpop.permute.xlu0 %858
    %v860 = vsel %vm421, %v859, 0
    %862 = vmatprep.subr.mxu0 0.0
    %863 = vmatpush1.msra.mxu0 %v261
    %864 = vmatprep.subr.mxu0 0.0
    %865 = vmatpush1.msra.mxu0 %v262
    %866 = vmatprep.subr.mxu0 0.0
    %867 = vmatpush1.msra.mxu0 %v263
    %868 = vmatprep.subr.mxu0 0.0
    %869 = vmatpush1.msra.mxu0 %v264
    %870 = vmatprep.subr.mxu0 0.0
    %871 = vmatpush1.msra.mxu0 %v265
    %872 = vmatprep.subr.mxu0 0.0
    %873 = vmatpush1.msra.mxu0 %v266
    %874 = vmatprep.subr.mxu0 0.0
    %875 = vmatpush1.msra.mxu0 %v267
    %876 = vmatprep.subr.mxu0 0.0
    %877 = vmatpush1.msra.mxu0 %v268
    %878 = vmatprep.subr.mxu0 0.0
    %879 = vmatpush1.msra.mxu0 0.0
    %880 = vmatprep.subr.mxu0 0.0
    %881 = vmatpush1.msra.mxu0 0.0
    %882 = vmatprep.subr.mxu0 0.0
    %883 = vmatpush1.msra.mxu0 0.0
    %884 = vmatprep.subr.mxu0 0.0
    %885 = vmatpush1.msra.mxu0 0.0
    %886 = vmatprep.subr.mxu0 0.0
    %887 = vmatpush1.msra.mxu0 0.0
    %888 = vmatprep.subr.mxu0 0.0
    %889 = vmatpush1.msra.mxu0 0.0
    %890 = vmatprep.subr.mxu0 0.0
    %891 = vmatpush1.msra.mxu0 0.0
    %892 = vmatprep.subr.mxu0 0.0
    %893 = vmatpush1.msra.mxu0 0.0
    %894 = vmatprep.subr.mxu0 0.0
    %895 = vmatpush1.msra.mxu0 0.0
    %896 = vmatprep.subr.mxu0 0.0
    %897 = vmatpush1.msra.mxu0 0.0
    %898 = vmatprep.subr.mxu0 0.0
    %899 = vmatpush1.msra.mxu0 0.0
    %900 = vmatprep.subr.mxu0 0.0
    %901 = vmatpush1.msra.mxu0 0.0
    %902 = vmatprep.subr.mxu0 0.0
    %903 = vmatpush1.msra.mxu0 0.0
    %904 = vmatprep.subr.mxu0 0.0
    %905 = vmatpush1.msra.mxu0 0.0
    %906 = vmatprep.subr.mxu0 0.0
    %907 = vmatpush1.msra.mxu0 0.0
    %908 = vmatprep.subr.mxu0 0.0
    %909 = vmatpush1.msra.mxu0 0.0
    %910 = vmatprep.subr.mxu0 0.0
    %911 = vmatpush1.msra.mxu0 0.0
    %912 = vmatprep.subr.mxu0 0.0
    %913 = vmatpush1.msra.mxu0 0.0
    %914 = vmatprep.subr.mxu0 0.0
    %915 = vmatpush1.msra.mxu0 0.0
    %916 = vmatprep.subr.mxu0 0.0
    %917 = vmatpush1.msra.mxu0 0.0
    %918 = vmatprep.subr.mxu0 0.0
    %919 = vmatpush1.msra.mxu0 0.0
    %920 = vmatprep.subr.mxu0 0.0
    %921 = vmatpush1.msra.mxu0 0.0
    %922 = vmatprep.subr.mxu0 0.0
    %923 = vmatpush1.msra.mxu0 0.0
    %924 = vmatprep.subr.mxu0 0.0
    %925 = vmatpush1.msra.mxu0 0.0
    %926 = vmatprep.mubr.f32.mxu0 0.0
    %927 = vmatmul.mubr.f32.gmra.mrb[0].mxu0 %v860
    %v928 = vpop.f32.mrb[0].mxu0
    %v929 = vadd.f32 0.0, %v928
    %v930 = vpop.f32.mrb[0].mxu0
    %931 = vdwg.mxu0
    %v932 = vsel %vm421, %v929, 0.0
    %v933 = vrot.slane %v932, 4
    %v934 = vadd.f32 %v932, %v933
    %v935 = vrot.slane %v934, 2
    %v936 = vadd.f32 %v934, %v935
    %v937 = vrot.slane %v936, 1
    %v938 = vadd.f32 %v936, %v937
    %v939 = vadd.f32 %v938, 1e-05
    %v940 = vrsqrt.pop %v939
    %942 = vrot.lane.b32.xlu0 %v940, 4
    %v943 = vpop.permute.xlu0 %942
    %v945 = vmul.f32 %v842, %v943
    %v946 = vmul.f32 %v843, %v943
    %v947 = vmul.f32 %v844, %v943
    %v948 = vmul.f32 %v845, %v943
    %v949 = vstv %s748
    %v950 = vmul.f32 %v949, %v945
    %v951 = vmul.f32 %v949, %v946
    %v952 = vmul.f32 %v949, %v947
    %v953 = vmul.f32 %v949, %v948
    %v954 = vadd.f32 %v613, %v950
    %v955 = vadd.f32 %v614, %v951
    %v956 = vadd.f32 %v615, %v952
    %v957 = vadd.f32 %v616, %v953
    %s958 = sld [smem:[#allocation8 + $0x3]]
    %v959 = vstv %s958
    %v960 = vmul.f32 %v959, %v257
    %v961 = vmul.f32 %v959, %v258
    %v962 = vmul.f32 %v959, %v259
    %v963 = vmul.f32 %v959, %v260
    %968 = vrot.lane.b32.xlu0 %v960, 4
    %v969 = vpop.permute.xlu0 %968
    %970 = vrot.lane.b32.xlu0 %v961, 4
    %v971 = vpop.permute.xlu0 %970
    %972 = vrot.lane.b32.xlu0 %v962, 4
    %v973 = vpop.permute.xlu0 %972
    %974 = vrot.lane.b32.xlu0 %v963, 4
    %v975 = vpop.permute.xlu0 %974
    %v980 = vadd.f32 %v954, %v969
    %v981 = vadd.f32 %v955, %v971
    %v982 = vadd.f32 %v956, %v973
    %v983 = vadd.f32 %v957, %v975
    %v984 = vmax.f32 %v257, 0.0
    %v985 = vmax.f32 %v258, 0.0
    %v986 = vmax.f32 %v259, 0.0
    %v987 = vmax.f32 %v260, 0.0
    %992 = vrot.lane.b32.xlu0 %v984, 16
    %v993 = vpop.permute.xlu0 %992
    %994 = vrot.lane.b32.xlu0 %v985, 16
    %v995 = vpop.permute.xlu0 %994
    %996 = vrot.lane.b32.xlu0 %v986, 16
    %v997 = vpop.permute.xlu0 %996
    %998 = vrot.lane.b32.xlu0 %v987, 16
    %v999 = vpop.permute.xlu0 %998
    %vm1004 = vcmask 654464
    %1005 = vst.msk [vmem:[#allocation3 + $0x4] sm:$0xff] %vm1004, %v993
    %1006 = vst.msk [vmem:[#allocation3 + $0xc] sm:$0xff] %vm1004, %v995
    %1007 = vst.msk [vmem:[#allocation3 + $0x1c] sm:$0xff] %vm1004, %v997
    %1008 = vst.msk [vmem:[#allocation3 + $0x24] sm:$0xff] %vm1004, %v999
    %vm1009 = vcmask 781312
    %1010 = vst.msk [vmem:[#allocation3] sm:$0xf] %vm1009, 0.0
    %1011 = vst.msk [vmem:[#allocation3 + $0x18] sm:$0xf] %vm1009, 0.0
    %1012 = vst.msk [vmem:[#allocation3 + $0x14] sm:$0xf] %vm1009, 0.0
    %1013 = vst.msk [vmem:[#allocation3 + $0x2c] sm:$0xf] %vm1009, 0.0
    %vm1014 = vcmask 130048
    %1015 = vst.msk [vmem:[#allocation3 + $0x4] sm:$0xff] %vm1014, 0.0
    %1016 = vst.msk [vmem:[#allocation3 + $0xc] sm:$0xff] %vm1014, 0.0
    %1017 = vst.msk [vmem:[#allocation3 + $0x1c] sm:$0xff] %vm1014, 0.0
    %1018 = vst.msk [vmem:[#allocation3 + $0x24] sm:$0xff] %vm1014, 0.0
    %vm1019 = vcmask 786048
    %1020 = vst.msk [vmem:[#allocation3 + $0x4] sm:$0xff] %vm1019, 0.0
    %1021 = vst.msk [vmem:[#allocation3 + $0xc] sm:$0xff] %vm1019, 0.0
    %1022 = vst.msk [vmem:[#allocation3 + $0x1c] sm:$0xff] %vm1019, 0.0
    %1023 = vst.msk [vmem:[#allocation3 + $0x24] sm:$0xff] %vm1019, 0.0
    %v1024 = vld [vmem:[#allocation23] sm:$0xff]
    %v1025 = vld [vmem:[#allocation23 + $0x8] sm:$0x1]
    %v1026 = vld [vmem:[#allocation3 + $0x2] sm:$0xff]
    %v1027 = vld [vmem:[#allocation3 + $0xa] sm:$0xff]
    %v1028 = vld [vmem:[#allocation3 + $0x1a] sm:$0xff]
    %v1029 = vld [vmem:[#allocation3 + $0x22] sm:$0xff]
    %v1030 = vlaneseq
    %v1031 = vshrl.u32 %v1030, 7
    %v1032 = vsub.s32 0, %v1031
    %v1033 = vrot.slane %v1024, %v1032
    %1035 = vrot.lane.b32.xlu0 %v1033, 8
    %v1036 = vpop.permute.xlu0 %1035
    %v1038 = vmul.f32 %v1026, %v1036
    %v1039 = vmul.f32 %v1027, %v1036
    %v1040 = vmul.f32 %v1028, %v1036
    %v1041 = vmul.f32 %v1029, %v1036
    %v1042 = vlaneseq
    %v1043 = vshrl.u32 %v1042, 7
    %v1044 = vsub.s32 1, %v1043
    %v1045 = vrot.slane %v1024, %v1044
    %1047 = vrot.lane.b32.xlu0 %v1045, 16
    %v1048 = vpop.permute.xlu0 %1047
    %v1050 = vmul.f32 %v1026, %v1048
    %v1051 = vmul.f32 %v1027, %v1048
    %v1052 = vmul.f32 %v1028, %v1048
    %v1053 = vmul.f32 %v1029, %v1048
    %1058 = vrot.lane.b32.xlu0 %v1050, 120
    %v1059 = vpop.permute.xlu0 %1058
    %1060 = vrot.lane.b32.xlu0 %v1051, 120
    %v1061 = vpop.permute.xlu0 %1060
    %1062 = vrot.lane.b32.xlu0 %v1052, 120
    %v1063 = vpop.permute.xlu0 %1062
    %1064 = vrot.lane.b32.xlu0 %v1053, 120
    %v1065 = vpop.permute.xlu0 %1064
    %v1070 = vadd.f32 %v1038, %v1059
    %v1071 = vadd.f32 %v1039, %v1061
    %v1072 = vadd.f32 %v1040, %v1063
    %v1073 = vadd.f32 %v1041, %v1065
    %v1074 = vlaneseq
    %v1075 = vshrl.u32 %v1074, 7
    %v1076 = vsub.s32 2, %v1075
    %v1077 = vrot.slane %v1024, %v1076
    %1079 = vrot.lane.b32.xlu0 %v1077, 24
    %v1080 = vpop.permute.xlu0 %1079
    %v1082 = vmul.f32 %v1026, %v1080
    %v1083 = vmul.f32 %v1027, %v1080
    %v1084 = vmul.f32 %v1028, %v1080
    %v1085 = vmul.f32 %v1029, %v1080
    %1090 = vrot.lane.b32.xlu0 %v1082, 112
    %v1091 = vpop.permute.xlu0 %1090
    %1092 = vrot.lane.b32.xlu0 %v1083, 112
    %v1093 = vpop.permute.xlu0 %1092
    %1094 = vrot.lane.b32.xlu0 %v1084, 112
    %v1095 = vpop.permute.xlu0 %1094
    %1096 = vrot.lane.b32.xlu0 %v1085, 112
    %v1097 = vpop.permute.xlu0 %1096
    %v1102 = vadd.f32 %v1070, %v1091
    %v1103 = vadd.f32 %v1071, %v1093
    %v1104 = vadd.f32 %v1072, %v1095
    %v1105 = vadd.f32 %v1073, %v1097
    %v1106 = vld [vmem:[#allocation3 + $0x4] sm:$0xff]
    %v1107 = vld [vmem:[#allocation3 + $0xc] sm:$0xff]
    %v1108 = vld [vmem:[#allocation3 + $0x1c] sm:$0xff]
    %v1109 = vld [vmem:[#allocation3 + $0x24] sm:$0xff]
    %v1110 = vlaneseq
    %v1111 = vshrl.u32 %v1110, 7
    %v1112 = vsub.s32 3, %v1111
    %v1113 = vrot.slane %v1024, %v1112
    %1115 = vrot.lane.b32.xlu0 %v1113, 8
    %v1116 = vpop.permute.xlu0 %1115
    %v1118 = vmul.f32 %v1106, %v1116
    %v1119 = vmul.f32 %v1107, %v1116
    %v1120 = vmul.f32 %v1108, %v1116
    %v1121 = vmul.f32 %v1109, %v1116
    %v1122 = vadd.f32 %v1102, %v1118
    %v1123 = vadd.f32 %v1103, %v1119
    %v1124 = vadd.f32 %v1104, %v1120
    %v1125 = vadd.f32 %v1105, %v1121
    %v1126 = vlaneseq
    %v1127 = vshrl.u32 %v1126, 7
    %v1128 = vsub.s32 4, %v1127
    %v1129 = vrot.slane %v1024, %v1128
    %1131 = vrot.lane.b32.xlu0 %v1129, 16
    %v1132 = vpop.permute.xlu0 %1131
    %v1134 = vmul.f32 %v1106, %v1132
    %v1135 = vmul.f32 %v1107, %v1132
    %v1136 = vmul.f32 %v1108, %v1132
    %v1137 = vmul.f32 %v1109, %v1132
    %1142 = vrot.lane.b32.xlu0 %v1134, 120
    %v1143 = vpop.permute.xlu0 %1142
    %1144 = vrot.lane.b32.xlu0 %v1135, 120
    %v1145 = vpop.permute.xlu0 %1144
    %1146 = vrot.lane.b32.xlu0 %v1136, 120
    %v1147 = vpop.permute.xlu0 %1146
    %1148 = vrot.lane.b32.xlu0 %v1137, 120
    %v1149 = vpop.permute.xlu0 %1148
    %v1154 = vadd.f32 %v1122, %v1143
    %v1155 = vadd.f32 %v1123, %v1145
    %v1156 = vadd.f32 %v1124, %v1147
    %v1157 = vadd.f32 %v1125, %v1149
    %v1158 = vlaneseq
    %v1159 = vshrl.u32 %v1158, 7
    %v1160 = vsub.s32 5, %v1159
    %v1161 = vrot.slane %v1024, %v1160
    %1163 = vrot.lane.b32.xlu0 %v1161, 24
    %v1164 = vpop.permute.xlu0 %1163
    %v1166 = vmul.f32 %v1106, %v1164
    %v1167 = vmul.f32 %v1107, %v1164
    %v1168 = vmul.f32 %v1108, %v1164
    %v1169 = vmul.f32 %v1109, %v1164
    %1174 = vrot.lane.b32.xlu0 %v1166, 112
    %v1175 = vpop.permute.xlu0 %1174
    %1176 = vrot.lane.b32.xlu0 %v1167, 112
    %v1177 = vpop.permute.xlu0 %1176
    %1178 = vrot.lane.b32.xlu0 %v1168, 112
    %v1179 = vpop.permute.xlu0 %1178
    %1180 = vrot.lane.b32.xlu0 %v1169, 112
    %v1181 = vpop.permute.xlu0 %1180
    %v1186 = vadd.f32 %v1154, %v1175
    %v1187 = vadd.f32 %v1155, %v1177
    %v1188 = vadd.f32 %v1156, %v1179
    %v1189 = vadd.f32 %v1157, %v1181
    %v1190 = vld [vmem:[#allocation3 + $0x6] sm:$0xff]
    %v1191 = vld [vmem:[#allocation3 + $0xe] sm:$0xff]
    %v1192 = vld [vmem:[#allocation3 + $0x1e] sm:$0xff]
    %v1193 = vld [vmem:[#allocation3 + $0x26] sm:$0xff]
    %v1194 = vlaneseq
    %v1195 = vshrl.u32 %v1194, 7
    %v1196 = vsub.s32 6, %v1195
    %v1197 = vrot.slane %v1024, %v1196
    %1199 = vrot.lane.b32.xlu0 %v1197, 8
    %v1200 = vpop.permute.xlu0 %1199
    %v1202 = vmul.f32 %v1190, %v1200
    %v1203 = vmul.f32 %v1191, %v1200
    %v1204 = vmul.f32 %v1192, %v1200
    %v1205 = vmul.f32 %v1193, %v1200
    %v1206 = vadd.f32 %v1186, %v1202
    %v1207 = vadd.f32 %v1187, %v1203
    %v1208 = vadd.f32 %v1188, %v1204
    %v1209 = vadd.f32 %v1189, %v1205
    %v1210 = vlaneseq
    %v1211 = vshrl.u32 %v1210, 7
    %v1212 = vsub.s32 7, %v1211
    %v1213 = vrot.slane %v1024, %v1212
    %1215 = vrot.lane.b32.xlu0 %v1213, 16
    %v1216 = vpop.permute.xlu0 %1215
    %v1218 = vmul.f32 %v1190, %v1216
    %v1219 = vmul.f32 %v1191, %v1216
    %v1220 = vmul.f32 %v1192, %v1216
    %v1221 = vmul.f32 %v1193, %v1216
    %1226 = vrot.lane.b32.xlu0 %v1218, 120
    %v1227 = vpop.permute.xlu0 %1226
    %1228 = vrot.lane.b32.xlu0 %v1219, 120
    %v1229 = vpop.permute.xlu0 %1228
    %1230 = vrot.lane.b32.xlu0 %v1220, 120
    %v1231 = vpop.permute.xlu0 %1230
    %1232 = vrot.lane.b32.xlu0 %v1221, 120
    %v1233 = vpop.permute.xlu0 %1232
    %v1238 = vadd.f32 %v1206, %v1227
    %v1239 = vadd.f32 %v1207, %v1229
    %v1240 = vadd.f32 %v1208, %v1231
    %v1241 = vadd.f32 %v1209, %v1233
    %v1242 = vlaneseq
    %v1243 = vshrl.u32 %v1242, 7
    %v1244 = vsub.s32 0, %v1243
    %v1245 = vrot.slane %v1025, %v1244
    %1247 = vrot.lane.b32.xlu0 %v1245, 24
    %v1248 = vpop.permute.xlu0 %1247
    %v1250 = vmul.f32 %v1190, %v1248
    %v1251 = vmul.f32 %v1191, %v1248
    %v1252 = vmul.f32 %v1192, %v1248
    %v1253 = vmul.f32 %v1193, %v1248
    %1258 = vrot.lane.b32.xlu0 %v1250, 112
    %v1259 = vpop.permute.xlu0 %1258
    %1260 = vrot.lane.b32.xlu0 %v1251, 112
    %v1261 = vpop.permute.xlu0 %1260
    %1262 = vrot.lane.b32.xlu0 %v1252, 112
    %v1263 = vpop.permute.xlu0 %1262
    %1264 = vrot.lane.b32.xlu0 %v1253, 112
    %v1265 = vpop.permute.xlu0 %1264
    %v1270 = vadd.f32 %v1238, %v1259
    %v1271 = vadd.f32 %v1239, %v1261
    %v1272 = vadd.f32 %v1240, %v1263
    %v1273 = vadd.f32 %v1241, %v1265
    %v1274 = vld [vmem:[#allocation24] sm:$0xff]
    %v1275 = vld [vmem:[#allocation24 + $0x8] sm:$0xff]
    %v1276 = vld [vmem:[#allocation24 + $0x10] sm:$0xff]
    %v1277 = vld [vmem:[#allocation24 + $0x18] sm:$0xff]
    %v1278 = vld [vmem:[#allocation24 + $0x20] sm:$0xff]
    %v1279 = vld [vmem:[#allocation24 + $0x28] sm:$0xff]
    %v1280 = vld [vmem:[#allocation24 + $0x30] sm:$0xff]
    %v1281 = vld [vmem:[#allocation24 + $0x38] sm:$0xff]
    %1286 = vrot.lane.b32.xlu0 %v1270, 120
    %v1287 = vpop.permute.xlu0 %1286
    %1288 = vrot.lane.b32.xlu0 %v1271, 120
    %v1289 = vpop.permute.xlu0 %1288
    %1290 = vrot.lane.b32.xlu0 %v1272, 120
    %v1291 = vpop.permute.xlu0 %1290
    %1292 = vrot.lane.b32.xlu0 %v1273, 120
    %v1293 = vpop.permute.xlu0 %1292
    %v1294 = vsel %vm421, %v1287, 0
    %v1296 = vsel %vm421, %v1289, 0
    %v1298 = vsel %vm421, %v1291, 0
    %v1300 = vsel %vm421, %v1293, 0
    %1302 = vmatprep.subr.mxu0 0.0
    %1303 = vmatpush1.msra.mxu0 %v1274
    %1304 = vmatprep.subr.mxu0 0.0
    %1305 = vmatpush1.msra.mxu0 %v1275
    %1306 = vmatprep.subr.mxu0 0.0
    %1307 = vmatpush1.msra.mxu0 %v1276
    %1308 = vmatprep.subr.mxu0 0.0
    %1309 = vmatpush1.msra.mxu0 %v1277
    %1310 = vmatprep.subr.mxu0 0.0
    %1311 = vmatpush1.msra.mxu0 %v1278
    %1312 = vmatprep.subr.mxu0 0.0
    %1313 = vmatpush1.msra.mxu0 %v1279
    %1314 = vmatprep.subr.mxu0 0.0
    %1315 = vmatpush1.msra.mxu0 %v1280
    %1316 = vmatprep.subr.mxu0 0.0
    %1317 = vmatpush1.msra.mxu0 %v1281
    %1318 = vmatprep.subr.mxu0 0.0
    %1319 = vmatpush1.msra.mxu0 0.0
    %1320 = vmatprep.subr.mxu0 0.0
    %1321 = vmatpush1.msra.mxu0 0.0
    %1322 = vmatprep.subr.mxu0 0.0
    %1323 = vmatpush1.msra.mxu0 0.0
    %1324 = vmatprep.subr.mxu0 0.0
    %1325 = vmatpush1.msra.mxu0 0.0
    %1326 = vmatprep.subr.mxu0 0.0
    %1327 = vmatpush1.msra.mxu0 0.0
    %1328 = vmatprep.subr.mxu0 0.0
    %1329 = vmatpush1.msra.mxu0 0.0
    %1330 = vmatprep.subr.mxu0 0.0
    %1331 = vmatpush1.msra.mxu0 0.0
    %1332 = vmatprep.subr.mxu0 0.0
    %1333 = vmatpush1.msra.mxu0 0.0
    %1334 = vmatprep.subr.mxu0 0.0
    %1335 = vmatpush1.msra.mxu0 0.0
    %1336 = vmatprep.subr.mxu0 0.0
    %1337 = vmatpush1.msra.mxu0 0.0
    %1338 = vmatprep.subr.mxu0 0.0
    %1339 = vmatpush1.msra.mxu0 0.0
    %1340 = vmatprep.subr.mxu0 0.0
    %1341 = vmatpush1.msra.mxu0 0.0
    %1342 = vmatprep.subr.mxu0 0.0
    %1343 = vmatpush1.msra.mxu0 0.0
    %1344 = vmatprep.subr.mxu0 0.0
    %1345 = vmatpush1.msra.mxu0 0.0
    %1346 = vmatprep.subr.mxu0 0.0
    %1347 = vmatpush1.msra.mxu0 0.0
    %1348 = vmatprep.subr.mxu0 0.0
    %1349 = vmatpush1.msra.mxu0 0.0
    %1350 = vmatprep.subr.mxu0 0.0
    %1351 = vmatpush1.msra.mxu0 0.0
    %1352 = vmatprep.subr.mxu0 0.0
    %1353 = vmatpush1.msra.mxu0 0.0
    %1354 = vmatprep.subr.mxu0 0.0
    %1355 = vmatpush1.msra.mxu0 0.0
    %1356 = vmatprep.subr.mxu0 0.0
    %1357 = vmatpush1.msra.mxu0 0.0
    %1358 = vmatprep.subr.mxu0 0.0
    %1359 = vmatpush1.msra.mxu0 0.0
    %1360 = vmatprep.subr.mxu0 0.0
    %1361 = vmatpush1.msra.mxu0 0.0
    %1362 = vmatprep.subr.mxu0 0.0
    %1363 = vmatpush1.msra.mxu0 0.0
    %1364 = vmatprep.subr.mxu0 0.0
    %1365 = vmatpush1.msra.mxu0 0.0
    %1366 = vmatprep.mubr.f32.mxu0 0.0
    %1367 = vmatmul.mubr.f32.gmra.mrb[0].mxu0 %v1294
    %v1368 = vpop.f32.mrb[0].mxu0
    %v1369 = vadd.f32 0.0, %v1368
    %v1370 = vpop.f32.mrb[0].mxu0
    %1371 = vmatprep.mubr.f32.mxu0 0.0
    %1372 = vmatmul.mubr.f32.gmra.mrb[0].mxu0 %v1296
    %v1373 = vpop.f32.mrb[0].mxu0
    %v1374 = vadd.f32 0.0, %v1373
    %v1375 = vpop.f32.mrb[0].mxu0
    %1376 = vmatprep.mubr.f32.mxu0 0.0
    %1377 = vmatmul.mubr.f32.gmra.mrb[0].mxu0 %v1298
    %v1378 = vpop.f32.mrb[0].mxu0
    %v1379 = vadd.f32 0.0, %v1378
    %v1380 = vpop.f32.mrb[0].mxu0
    %1381 = vmatprep.mubr.f32.mxu0 0.0
    %1382 = vmatmul.mubr.f32.gmra.mrb[0].mxu0 %v1300
    %v1383 = vpop.f32.mrb[0].mxu0
    %v1384 = vadd.f32 0.0, %v1383
    %v1385 = vpop.f32.mrb[0].mxu0
    %1386 = vdwg.mxu0
    %v1387 = vsel %vm421, %v1369, 0.0
    %v1388 = vsel %vm421, %v1374, 0.0
    %v1389 = vadd.f32 %v1387, %v1388
    %v1390 = vsel %vm421, %v1379, 0.0
    %v1391 = vadd.f32 %v1389, %v1390
    %v1392 = vsel %vm421, %v1384, 0.0
    %v1393 = vadd.f32 %v1391, %v1392
    %v1395 = vsel %vm421, %v1393, 0
    %1397 = vmatprep.subr.mxu0 0.0
    %1398 = vmatpush1.msra.mxu0 %v261
    %1399 = vmatprep.subr.mxu0 0.0
    %1400 = vmatpush1.msra.mxu0 %v262
    %1401 = vmatprep.subr.mxu0 0.0
    %1402 = vmatpush1.msra.mxu0 %v263
    %1403 = vmatprep.subr.mxu0 0.0
    %1404 = vmatpush1.msra.mxu0 %v264
    %1405 = vmatprep.subr.mxu0 0.0
    %1406 = vmatpush1.msra.mxu0 %v265
    %1407 = vmatprep.subr.mxu0 0.0
    %1408 = vmatpush1.msra.mxu0 %v266
    %1409 = vmatprep.subr.mxu0 0.0
    %1410 = vmatpush1.msra.mxu0 %v267
    %1411 = vmatprep.subr.mxu0 0.0
    %1412 = vmatpush1.msra.mxu0 %v268
    %1413 = vmatprep.subr.mxu0 0.0
    %1414 = vmatpush1.msra.mxu0 0.0
    %1415 = vmatprep.subr.mxu0 0.0
    %1416 = vmatpush1.msra.mxu0 0.0
    %1417 = vmatprep.subr.mxu0 0.0
    %1418 = vmatpush1.msra.mxu0 0.0
    %1419 = vmatprep.subr.mxu0 0.0
    %1420 = vmatpush1.msra.mxu0 0.0
    %1421 = vmatprep.subr.mxu0 0.0
    %1422 = vmatpush1.msra.mxu0 0.0
    %1423 = vmatprep.subr.mxu0 0.0
    %1424 = vmatpush1.msra.mxu0 0.0
    %1425 = vmatprep.subr.mxu0 0.0
    %1426 = vmatpush1.msra.mxu0 0.0
    %1427 = vmatprep.subr.mxu0 0.0
    %1428 = vmatpush1.msra.mxu0 0.0
    %1429 = vmatprep.subr.mxu0 0.0
    %1430 = vmatpush1.msra.mxu0 0.0
    %1431 = vmatprep.subr.mxu0 0.0
    %1432 = vmatpush1.msra.mxu0 0.0
    %1433 = vmatprep.subr.mxu0 0.0
    %1434 = vmatpush1.msra.mxu0 0.0
    %1435 = vmatprep.subr.mxu0 0.0
    %1436 = vmatpush1.msra.mxu0 0.0
    %1437 = vmatprep.subr.mxu0 0.0
    %1438 = vmatpush1.msra.mxu0 0.0
    %1439 = vmatprep.subr.mxu0 0.0
    %1440 = vmatpush1.msra.mxu0 0.0
    %1441 = vmatprep.subr.mxu0 0.0
    %1442 = vmatpush1.msra.mxu0 0.0
    %1443 = vmatprep.subr.mxu0 0.0
    %1444 = vmatpush1.msra.mxu0 0.0
    %1445 = vmatprep.subr.mxu0 0.0
    %1446 = vmatpush1.msra.mxu0 0.0
    %1447 = vmatprep.subr.mxu0 0.0
    %1448 = vmatpush1.msra.mxu0 0.0
    %1449 = vmatprep.subr.mxu0 0.0
    %1450 = vmatpush1.msra.mxu0 0.0
    %1451 = vmatprep.subr.mxu0 0.0
    %1452 = vmatpush1.msra.mxu0 0.0
    %1453 = vmatprep.subr.mxu0 0.0
    %1454 = vmatpush1.msra.mxu0 0.0
    %1455 = vmatprep.subr.mxu0 0.0
    %1456 = vmatpush1.msra.mxu0 0.0
    %1457 = vmatprep.subr.mxu0 0.0
    %1458 = vmatpush1.msra.mxu0 0.0
    %1459 = vmatprep.subr.mxu0 0.0
    %1460 = vmatpush1.msra.mxu0 0.0
    %1461 = vmatprep.mubr.f32.mxu0 0.0
    %1462 = vmatmul.mubr.f32.gmra.mrb[0].mxu0 %v1395
    %v1463 = vpop.f32.mrb[0].mxu0
    %v1464 = vadd.f32 0.0, %v1463
    %v1465 = vpop.f32.mrb[0].mxu0
    %1466 = vdwg.mxu0
    %v1467 = vsel %vm421, %v1464, 0.0
    %v1468 = vrot.slane %v1467, 4
    %v1469 = vadd.f32 %v1467, %v1468
    %v1470 = vrot.slane %v1469, 2
    %v1471 = vadd.f32 %v1469, %v1470
    %v1472 = vrot.slane %v1471, 1
    %v1473 = vadd.f32 %v1471, %v1472
    %v1474 = vsub.f32 %v1369, %v1473
    %v1475 = vsub.f32 %v1374, %v1473
    %v1476 = vsub.f32 %v1379, %v1473
    %v1477 = vsub.f32 %v1384, %v1473
    %v1478 = vmul.f32 %v1474, %v1474
    %v1479 = vmul.f32 %v1475, %v1475
    %v1480 = vmul.f32 %v1476, %v1476
    %v1481 = vmul.f32 %v1477, %v1477
    %v1482 = vsel %vm421, %v1478, 0.0
    %v1483 = vsel %vm421, %v1479, 0.0
    %v1484 = vadd.f32 %v1482, %v1483
    %v1485 = vsel %vm421, %v1480, 0.0
    %v1486 = vadd.f32 %v1484, %v1485
    %v1487 = vsel %vm421, %v1481, 0.0
    %v1488 = vadd.f32 %v1486, %v1487
    %v1490 = vsel %vm421, %v1488, 0
    %1492 = vmatprep.subr.mxu0 0.0
    %1493 = vmatpush1.msra.mxu0 %v261
    %1494 = vmatprep.subr.mxu0 0.0
    %1495 = vmatpush1.msra.mxu0 %v262
    %1496 = vmatprep.subr.mxu0 0.0
    %1497 = vmatpush1.msra.mxu0 %v263
    %1498 = vmatprep.subr.mxu0 0.0
    %1499 = vmatpush1.msra.mxu0 %v264
    %1500 = vmatprep.subr.mxu0 0.0
    %1501 = vmatpush1.msra.mxu0 %v265
    %1502 = vmatprep.subr.mxu0 0.0
    %1503 = vmatpush1.msra.mxu0 %v266
    %1504 = vmatprep.subr.mxu0 0.0
    %1505 = vmatpush1.msra.mxu0 %v267
    %1506 = vmatprep.subr.mxu0 0.0
    %1507 = vmatpush1.msra.mxu0 %v268
    %1508 = vmatprep.subr.mxu0 0.0
    %1509 = vmatpush1.msra.mxu0 0.0
    %1510 = vmatprep.subr.mxu0 0.0
    %1511 = vmatpush1.msra.mxu0 0.0
    %1512 = vmatprep.subr.mxu0 0.0
    %1513 = vmatpush1.msra.mxu0 0.0
    %1514 = vmatprep.subr.mxu0 0.0
    %1515 = vmatpush1.msra.mxu0 0.0
    %1516 = vmatprep.subr.mxu0 0.0
    %1517 = vmatpush1.msra.mxu0 0.0
    %1518 = vmatprep.subr.mxu0 0.0
    %1519 = vmatpush1.msra.mxu0 0.0
    %1520 = vmatprep.subr.mxu0 0.0
    %1521 = vmatpush1.msra.mxu0 0.0
    %1522 = vmatprep.subr.mxu0 0.0
    %1523 = vmatpush1.msra.mxu0 0.0
    %1524 = vmatprep.subr.mxu0 0.0
    %1525 = vmatpush1.msra.mxu0 0.0
    %1526 = vmatprep.subr.mxu0 0.0
    %1527 = vmatpush1.msra.mxu0 0.0
    %1528 = vmatprep.subr.mxu0 0.0
    %1529 = vmatpush1.msra.mxu0 0.0
    %1530 = vmatprep.subr.mxu0 0.0
    %1531 = vmatpush1.msra.mxu0 0.0
    %1532 = vmatprep.subr.mxu0 0.0
    %1533 = vmatpush1.msra.mxu0 0.0
    %1534 = vmatprep.subr.mxu0 0.0
    %1535 = vmatpush1.msra.mxu0 0.0
    %1536 = vmatprep.subr.mxu0 0.0
    %1537 = vmatpush1.msra.mxu0 0.0
    %1538 = vmatprep.subr.mxu0 0.0
    %1539 = vmatpush1.msra.mxu0 0.0
    %1540 = vmatprep.subr.mxu0 0.0
    %1541 = vmatpush1.msra.mxu0 0.0
    %1542 = vmatprep.subr.mxu0 0.0
    %1543 = vmatpush1.msra.mxu0 0.0
    %1544 = vmatprep.subr.mxu0 0.0
    %1545 = vmatpush1.msra.mxu0 0.0
    %1546 = vmatprep.subr.mxu0 0.0
    %1547 = vmatpush1.msra.mxu0 0.0
    %1548 = vmatprep.subr.mxu0 0.0
    %1549 = vmatpush1.msra.mxu0 0.0
    %1550 = vmatprep.subr.mxu0 0.0
    %1551 = vmatpush1.msra.mxu0 0.0
    %1552 = vmatprep.subr.mxu0 0.0
    %1553 = vmatpush1.msra.mxu0 0.0
    %1554 = vmatprep.subr.mxu0 0.0
    %1555 = vmatpush1.msra.mxu0 0.0
    %1556 = vmatprep.mubr.f32.mxu0 0.0
    %1557 = vmatmul.mubr.f32.gmra.mrb[0].mxu0 %v1490
    %v1558 = vpop.f32.mrb[0].mxu0
    %v1559 = vadd.f32 0.0, %v1558
    %v1560 = vpop.f32.mrb[0].mxu0
    %1561 = vdwg.mxu0
    %v1562 = vsel %vm421, %v1559, 0.0
    %v1563 = vrot.slane %v1562, 4
    %v1564 = vadd.f32 %v1562, %v1563
    %v1565 = vrot.slane %v1564, 2
    %v1566 = vadd.f32 %v1564, %v1565
    %v1567 = vrot.slane %v1566, 1
    %v1568 = vadd.f32 %v1566, %v1567
    %v1569 = vadd.f32 %v1568, 1e-05
    %v1570 = vrsqrt.pop %v1569
    %v1571 = vmul.f32 %v1474, %v1570
    %v1572 = vmul.f32 %v1475, %v1570
    %v1573 = vmul.f32 %v1476, %v1570
    %v1574 = vmul.f32 %v1477, %v1570
    %s1575 = sld [smem:[#allocation8 + $0x6]]
    %v1576 = vstv %s1575
    %v1577 = vmul.f32 %v1576, %v1571
    %v1578 = vmul.f32 %v1576, %v1572
    %v1579 = vmul.f32 %v1576, %v1573
    %v1580 = vmul.f32 %v1576, %v1574
    %1585 = vrot.lane.b32.xlu0 %v1577, 4
    %v1586 = vpop.permute.xlu0 %1585
    %1587 = vrot.lane.b32.xlu0 %v1578, 4
    %v1588 = vpop.permute.xlu0 %1587
    %1589 = vrot.lane.b32.xlu0 %v1579, 4
    %v1590 = vpop.permute.xlu0 %1589
    %1591 = vrot.lane.b32.xlu0 %v1580, 4
    %v1592 = vpop.permute.xlu0 %1591
    %v1597 = vadd.f32 %v980, %v1586
    %v1598 = vadd.f32 %v981, %v1588
    %v1599 = vadd.f32 %v982, %v1590
    %v1600 = vadd.f32 %v983, %v1592
    %v1601 = vld [vmem:[#allocation26] sm:$0xff]
    %v1602 = vld [vmem:[#allocation26 + $0x8] sm:$0xff]
    %v1603 = vld [vmem:[#allocation26 + $0x10] sm:$0xff]
    %v1604 = vld [vmem:[#allocation26 + $0x18] sm:$0x1]
    %v1605 = vld [vmem:[#allocation3] sm:$0xff]
    %v1606 = vld [vmem:[#allocation3 + $0x8] sm:$0xff]
    %v1607 = vld [vmem:[#allocation3 + $0x18] sm:$0xff]
    %v1608 = vld [vmem:[#allocation3 + $0x20] sm:$0xff]
    %v1609 = vlaneseq
    %v1610 = vshrl.u32 %v1609, 7
    %v1611 = vsub.s32 0, %v1610
    %v1612 = vrot.slane %v1601, %v1611
    %v1613 = vmul.f32 %v1605, %v1612
    %v1614 = vmul.f32 %v1606, %v1612
    %v1615 = vmul.f32 %v1607, %v1612
    %v1616 = vmul.f32 %v1608, %v1612
    %v1617 = vlaneseq
    %v1618 = vshrl.u32 %v1617, 7
    %v1619 = vsub.s32 1, %v1618
    %v1620 = vrot.slane %v1601, %v1619
    %1622 = vrot.lane.b32.xlu0 %v1620, 8
    %v1623 = vpop.permute.xlu0 %1622
    %v1625 = vmul.f32 %v1605, %v1623
    %v1626 = vmul.f32 %v1606, %v1623
    %v1627 = vmul.f32 %v1607, %v1623
    %v1628 = vmul.f32 %v1608, %v1623
    %1633 = vrot.lane.b32.xlu0 %v1625, 120
    %v1634 = vpop.permute.xlu0 %1633
    %1635 = vrot.lane.b32.xlu0 %v1626, 120
    %v1636 = vpop.permute.xlu0 %1635
    %1637 = vrot.lane.b32.xlu0 %v1627, 120
    %v1638 = vpop.permute.xlu0 %1637
    %1639 = vrot.lane.b32.xlu0 %v1628, 120
    %v1640 = vpop.permute.xlu0 %1639
    %v1645 = vadd.f32 %v1613, %v1634
    %v1646 = vadd.f32 %v1614, %v1636
    %v1647 = vadd.f32 %v1615, %v1638
    %v1648 = vadd.f32 %v1616, %v1640
    %v1649 = vlaneseq
    %v1650 = vshrl.u32 %v1649, 7
    %v1651 = vsub.s32 2, %v1650
    %v1652 = vrot.slane %v1601, %v1651
    %1654 = vrot.lane.b32.xlu0 %v1652, 16
    %v1655 = vpop.permute.xlu0 %1654
    %v1657 = vmul.f32 %v1605, %v1655
    %v1658 = vmul.f32 %v1606, %v1655
    %v1659 = vmul.f32 %v1607, %v1655
    %v1660 = vmul.f32 %v1608, %v1655
    %1665 = vrot.lane.b32.xlu0 %v1657, 112
    %v1666 = vpop.permute.xlu0 %1665
    %1667 = vrot.lane.b32.xlu0 %v1658, 112
    %v1668 = vpop.permute.xlu0 %1667
    %1669 = vrot.lane.b32.xlu0 %v1659, 112
    %v1670 = vpop.permute.xlu0 %1669
    %1671 = vrot.lane.b32.xlu0 %v1660, 112
    %v1672 = vpop.permute.xlu0 %1671
    %v1677 = vadd.f32 %v1645, %v1666
    %v1678 = vadd.f32 %v1646, %v1668
    %v1679 = vadd.f32 %v1647, %v1670
    %v1680 = vadd.f32 %v1648, %v1672
    %v1681 = vlaneseq
    %v1682 = vshrl.u32 %v1681, 7
    %v1683 = vsub.s32 3, %v1682
    %v1684 = vrot.slane %v1601, %v1683
    %1686 = vrot.lane.b32.xlu0 %v1684, 24
    %v1687 = vpop.permute.xlu0 %1686
    %v1689 = vmul.f32 %v1605, %v1687
    %v1690 = vmul.f32 %v1606, %v1687
    %v1691 = vmul.f32 %v1607, %v1687
    %v1692 = vmul.f32 %v1608, %v1687
    %1697 = vrot.lane.b32.xlu0 %v1689, 104
    %v1698 = vpop.permute.xlu0 %1697
    %1699 = vrot.lane.b32.xlu0 %v1690, 104
    %v1700 = vpop.permute.xlu0 %1699
    %1701 = vrot.lane.b32.xlu0 %v1691, 104
    %v1702 = vpop.permute.xlu0 %1701
    %1703 = vrot.lane.b32.xlu0 %v1692, 104
    %v1704 = vpop.permute.xlu0 %1703
    %v1709 = vadd.f32 %v1677, %v1698
    %v1710 = vadd.f32 %v1678, %v1700
    %v1711 = vadd.f32 %v1679, %v1702
    %v1712 = vadd.f32 %v1680, %v1704
    %v1713 = vlaneseq
    %v1714 = vshrl.u32 %v1713, 7
    %v1715 = vsub.s32 4, %v1714
    %v1716 = vrot.slane %v1601, %v1715
    %1718 = vrot.lane.b32.xlu0 %v1716, 32
    %v1719 = vpop.permute.xlu0 %1718
    %v1721 = vmul.f32 %v1605, %v1719
    %v1722 = vmul.f32 %v1606, %v1719
    %v1723 = vmul.f32 %v1607, %v1719
    %v1724 = vmul.f32 %v1608, %v1719
    %1729 = vrot.lane.b32.xlu0 %v1721, 96
    %v1730 = vpop.permute.xlu0 %1729
    %1731 = vrot.lane.b32.xlu0 %v1722, 96
    %v1732 = vpop.permute.xlu0 %1731
    %1733 = vrot.lane.b32.xlu0 %v1723, 96
    %v1734 = vpop.permute.xlu0 %1733
    %1735 = vrot.lane.b32.xlu0 %v1724, 96
    %v1736 = vpop.permute.xlu0 %1735
    %v1741 = vadd.f32 %v1709, %v1730
    %v1742 = vadd.f32 %v1710, %v1732
    %v1743 = vadd.f32 %v1711, %v1734
    %v1744 = vadd.f32 %v1712, %v1736
    %v1745 = vlaneseq
    %v1746 = vshrl.u32 %v1745, 7
    %v1747 = vsub.s32 5, %v1746
    %v1748 = vrot.slane %v1601, %v1747
    %v1749 = vmul.f32 %v1026, %v1748
    %v1750 = vmul.f32 %v1027, %v1748
    %v1751 = vmul.f32 %v1028, %v1748
    %v1752 = vmul.f32 %v1029, %v1748
    %v1753 = vadd.f32 %v1741, %v1749
    %v1754 = vadd.f32 %v1742, %v1750
    %v1755 = vadd.f32 %v1743, %v1751
    %v1756 = vadd.f32 %v1744, %v1752
    %v1757 = vlaneseq
    %v1758 = vshrl.u32 %v1757, 7
    %v1759 = vsub.s32 6, %v1758
    %v1760 = vrot.slane %v1601, %v1759
    %1762 = vrot.lane.b32.xlu0 %v1760, 8
    %v1763 = vpop.permute.xlu0 %1762
    %v1765 = vmul.f32 %v1026, %v1763
    %v1766 = vmul.f32 %v1027, %v1763
    %v1767 = vmul.f32 %v1028, %v1763
    %v1768 = vmul.f32 %v1029, %v1763
    %1773 = vrot.lane.b32.xlu0 %v1765, 120
    %v1774 = vpop.permute.xlu0 %1773
    %1775 = vrot.lane.b32.xlu0 %v1766, 120
    %v1776 = vpop.permute.xlu0 %1775
    %1777 = vrot.lane.b32.xlu0 %v1767, 120
    %v1778 = vpop.permute.xlu0 %1777
    %1779 = vrot.lane.b32.xlu0 %v1768, 120
    %v1780 = vpop.permute.xlu0 %1779
    %v1785 = vadd.f32 %v1753, %v1774
    %v1786 = vadd.f32 %v1754, %v1776
    %v1787 = vadd.f32 %v1755, %v1778
    %v1788 = vadd.f32 %v1756, %v1780
    %v1789 = vlaneseq
    %v1790 = vshrl.u32 %v1789, 7
    %v1791 = vsub.s32 7, %v1790
    %v1792 = vrot.slane %v1601, %v1791
    %1794 = vrot.lane.b32.xlu0 %v1792, 16
    %v1795 = vpop.permute.xlu0 %1794
    %v1797 = vmul.f32 %v1026, %v1795
    %v1798 = vmul.f32 %v1027, %v1795
    %v1799 = vmul.f32 %v1028, %v1795
    %v1800 = vmul.f32 %v1029, %v1795
    %1805 = vrot.lane.b32.xlu0 %v1797, 112
    %v1806 = vpop.permute.xlu0 %1805
    %1807 = vrot.lane.b32.xlu0 %v1798, 112
    %v1808 = vpop.permute.xlu0 %1807
    %1809 = vrot.lane.b32.xlu0 %v1799, 112
    %v1810 = vpop.permute.xlu0 %1809
    %1811 = vrot.lane.b32.xlu0 %v1800, 112
    %v1812 = vpop.permute.xlu0 %1811
    %v1817 = vadd.f32 %v1785, %v1806
    %v1818 = vadd.f32 %v1786, %v1808
    %v1819 = vadd.f32 %v1787, %v1810
    %v1820 = vadd.f32 %v1788, %v1812
    %v1821 = vlaneseq
    %v1822 = vshrl.u32 %v1821, 7
    %v1823 = vsub.s32 0, %v1822
    %v1824 = vrot.slane %v1602, %v1823
    %1826 = vrot.lane.b32.xlu0 %v1824, 24
    %v1827 = vpop.permute.xlu0 %1826
    %v1829 = vmul.f32 %v1026, %v1827
    %v1830 = vmul.f32 %v1027, %v1827
    %v1831 = vmul.f32 %v1028, %v1827
    %v1832 = vmul.f32 %v1029, %v1827
    %1837 = vrot.lane.b32.xlu0 %v1829, 104
    %v1838 = vpop.permute.xlu0 %1837
    %1839 = vrot.lane.b32.xlu0 %v1830, 104
    %v1840 = vpop.permute.xlu0 %1839
    %1841 = vrot.lane.b32.xlu0 %v1831, 104
    %v1842 = vpop.permute.xlu0 %1841
    %1843 = vrot.lane.b32.xlu0 %v1832, 104
    %v1844 = vpop.permute.xlu0 %1843
    %v1849 = vadd.f32 %v1817, %v1838
    %v1850 = vadd.f32 %v1818, %v1840
    %v1851 = vadd.f32 %v1819, %v1842
    %v1852 = vadd.f32 %v1820, %v1844
    %v1853 = vlaneseq
    %v1854 = vshrl.u32 %v1853, 7
    %v1855 = vsub.s32 1, %v1854
    %v1856 = vrot.slane %v1602, %v1855
    %1858 = vrot.lane.b32.xlu0 %v1856, 32
    %v1859 = vpop.permute.xlu0 %1858
    %v1861 = vmul.f32 %v1026, %v1859
    %v1862 = vmul.f32 %v1027, %v1859
    %v1863 = vmul.f32 %v1028, %v1859
    %v1864 = vmul.f32 %v1029, %v1859
    %1869 = vrot.lane.b32.xlu0 %v1861, 96
    %v1870 = vpop.permute.xlu0 %1869
    %1871 = vrot.lane.b32.xlu0 %v1862, 96
    %v1872 = vpop.permute.xlu0 %1871
    %1873 = vrot.lane.b32.xlu0 %v1863, 96
    %v1874 = vpop.permute.xlu0 %1873
    %1875 = vrot.lane.b32.xlu0 %v1864, 96
    %v1876 = vpop.permute.xlu0 %1875
    %v1881 = vadd.f32 %v1849, %v1870
    %v1882 = vadd.f32 %v1850, %v1872
    %v1883 = vadd.f32 %v1851, %v1874
    %v1884 = vadd.f32 %v1852, %v1876
    %v1885 = vlaneseq
    %v1886 = vshrl.u32 %v1885, 7
    %v1887 = vsub.s32 2, %v1886
    %v1888 = vrot.slane %v1602, %v1887
    %v1889 = vmul.f32 %v1106, %v1888
    %v1890 = vmul.f32 %v1107, %v1888
    %v1891 = vmul.f32 %v1108, %v1888
    %v1892 = vmul.f32 %v1109, %v1888
    %v1893 = vadd.f32 %v1881, %v1889
    %v1894 = vadd.f32 %v1882, %v1890
    %v1895 = vadd.f32 %v1883, %v1891
    %v1896 = vadd.f32 %v1884, %v1892
    %v1897 = vlaneseq
    %v1898 = vshrl.u32 %v1897, 7
    %v1899 = vsub.s32 3, %v1898
    %v1900 = vrot.slane %v1602, %v1899
    %1902 = vrot.lane.b32.xlu0 %v1900, 8
    %v1903 = vpop.permute.xlu0 %1902
    %v1905 = vmul.f32 %v1106, %v1903
    %v1906 = vmul.f32 %v1107, %v1903
    %v1907 = vmul.f32 %v1108, %v1903
    %v1908 = vmul.f32 %v1109, %v1903
    %1913 = vrot.lane.b32.xlu0 %v1905, 120
    %v1914 = vpop.permute.xlu0 %1913
    %1915 = vrot.lane.b32.xlu0 %v1906, 120
    %v1916 = vpop.permute.xlu0 %1915
    %1917 = vrot.lane.b32.xlu0 %v1907, 120
    %v1918 = vpop.permute.xlu0 %1917
    %1919 = vrot.lane.b32.xlu0 %v1908, 120
    %v1920 = vpop.permute.xlu0 %1919
    %v1925 = vadd.f32 %v1893, %v1914
    %v1926 = vadd.f32 %v1894, %v1916
    %v1927 = vadd.f32 %v1895, %v1918
    %v1928 = vadd.f32 %v1896, %v1920
    %v1929 = vlaneseq
    %v1930 = vshrl.u32 %v1929, 7
    %v1931 = vsub.s32 4, %v1930
    %v1932 = vrot.slane %v1602, %v1931
    %1934 = vrot.lane.b32.xlu0 %v1932, 16
    %v1935 = vpop.permute.xlu0 %1934
    %v1937 = vmul.f32 %v1106, %v1935
    %v1938 = vmul.f32 %v1107, %v1935
    %v1939 = vmul.f32 %v1108, %v1935
    %v1940 = vmul.f32 %v1109, %v1935
    %1945 = vrot.lane.b32.xlu0 %v1937, 112
    %v1946 = vpop.permute.xlu0 %1945
    %1947 = vrot.lane.b32.xlu0 %v1938, 112
    %v1948 = vpop.permute.xlu0 %1947
    %1949 = vrot.lane.b32.xlu0 %v1939, 112
    %v1950 = vpop.permute.xlu0 %1949
    %1951 = vrot.lane.b32.xlu0 %v1940, 112
    %v1952 = vpop.permute.xlu0 %1951
    %v1957 = vadd.f32 %v1925, %v1946
    %v1958 = vadd.f32 %v1926, %v1948
    %v1959 = vadd.f32 %v1927, %v1950
    %v1960 = vadd.f32 %v1928, %v1952
    %v1961 = vlaneseq
    %v1962 = vshrl.u32 %v1961, 7
    %v1963 = vsub.s32 5, %v1962
    %v1964 = vrot.slane %v1602, %v1963
    %1966 = vrot.lane.b32.xlu0 %v1964, 24
    %v1967 = vpop.permute.xlu0 %1966
    %v1969 = vmul.f32 %v1106, %v1967
    %v1970 = vmul.f32 %v1107, %v1967
    %v1971 = vmul.f32 %v1108, %v1967
    %v1972 = vmul.f32 %v1109, %v1967
    %1977 = vrot.lane.b32.xlu0 %v1969, 104
    %v1978 = vpop.permute.xlu0 %1977
    %1979 = vrot.lane.b32.xlu0 %v1970, 104
    %v1980 = vpop.permute.xlu0 %1979
    %1981 = vrot.lane.b32.xlu0 %v1971, 104
    %v1982 = vpop.permute.xlu0 %1981
    %1983 = vrot.lane.b32.xlu0 %v1972, 104
    %v1984 = vpop.permute.xlu0 %1983
    %v1989 = vadd.f32 %v1957, %v1978
    %v1990 = vadd.f32 %v1958, %v1980
    %v1991 = vadd.f32 %v1959, %v1982
    %v1992 = vadd.f32 %v1960, %v1984
    %v1993 = vlaneseq
    %v1994 = vshrl.u32 %v1993, 7
    %v1995 = vsub.s32 6, %v1994
    %v1996 = vrot.slane %v1602, %v1995
    %1998 = vrot.lane.b32.xlu0 %v1996, 32
    %v1999 = vpop.permute.xlu0 %1998
    %v2001 = vmul.f32 %v1106, %v1999
    %v2002 = vmul.f32 %v1107, %v1999
    %v2003 = vmul.f32 %v1108, %v1999
    %v2004 = vmul.f32 %v1109, %v1999
    %2009 = vrot.lane.b32.xlu0 %v2001, 96
    %v2010 = vpop.permute.xlu0 %2009
    %2011 = vrot.lane.b32.xlu0 %v2002, 96
    %v2012 = vpop.permute.xlu0 %2011
    %2013 = vrot.lane.b32.xlu0 %v2003, 96
    %v2014 = vpop.permute.xlu0 %2013
    %2015 = vrot.lane.b32.xlu0 %v2004, 96
    %v2016 = vpop.permute.xlu0 %2015
    %v2021 = vadd.f32 %v1989, %v2010
    %v2022 = vadd.f32 %v1990, %v2012
    %v2023 = vadd.f32 %v1991, %v2014
    %v2024 = vadd.f32 %v1992, %v2016
    %v2025 = vlaneseq
    %v2026 = vshrl.u32 %v2025, 7
    %v2027 = vsub.s32 7, %v2026
    %v2028 = vrot.slane %v1602, %v2027
    %v2029 = vmul.f32 %v1190, %v2028
    %v2030 = vmul.f32 %v1191, %v2028
    %v2031 = vmul.f32 %v1192, %v2028
    %v2032 = vmul.f32 %v1193, %v2028
    %v2033 = vadd.f32 %v2021, %v2029
    %v2034 = vadd.f32 %v2022, %v2030
    %v2035 = vadd.f32 %v2023, %v2031
    %v2036 = vadd.f32 %v2024, %v2032
    %v2037 = vlaneseq
    %v2038 = vshrl.u32 %v2037, 7
    %v2039 = vsub.s32 0, %v2038
    %v2040 = vrot.slane %v1603, %v2039
    %2042 = vrot.lane.b32.xlu0 %v2040, 8
    %v2043 = vpop.permute.xlu0 %2042
    %v2045 = vmul.f32 %v1190, %v2043
    %v2046 = vmul.f32 %v1191, %v2043
    %v2047 = vmul.f32 %v1192, %v2043
    %v2048 = vmul.f32 %v1193, %v2043
    %2053 = vrot.lane.b32.xlu0 %v2045, 120
    %v2054 = vpop.permute.xlu0 %2053
    %2055 = vrot.lane.b32.xlu0 %v2046, 120
    %v2056 = vpop.permute.xlu0 %2055
    %2057 = vrot.lane.b32.xlu0 %v2047, 120
    %v2058 = vpop.permute.xlu0 %2057
    %2059 = vrot.lane.b32.xlu0 %v2048, 120
    %v2060 = vpop.permute.xlu0 %2059
    %v2065 = vadd.f32 %v2033, %v2054
    %v2066 = vadd.f32 %v2034, %v2056
    %v2067 = vadd.f32 %v2035, %v2058
    %v2068 = vadd.f32 %v2036, %v2060
    %v2069 = vlaneseq
    %v2070 = vshrl.u32 %v2069, 7
    %v2071 = vsub.s32 1, %v2070
    %v2072 = vrot.slane %v1603, %v2071
    %2074 = vrot.lane.b32.xlu0 %v2072, 16
    %v2075 = vpop.permute.xlu0 %2074
    %v2077 = vmul.f32 %v1190, %v2075
    %v2078 = vmul.f32 %v1191, %v2075
    %v2079 = vmul.f32 %v1192, %v2075
    %v2080 = vmul.f32 %v1193, %v2075
    %2085 = vrot.lane.b32.xlu0 %v2077, 112
    %v2086 = vpop.permute.xlu0 %2085
    %2087 = vrot.lane.b32.xlu0 %v2078, 112
    %v2088 = vpop.permute.xlu0 %2087
    %2089 = vrot.lane.b32.xlu0 %v2079, 112
    %v2090 = vpop.permute.xlu0 %2089
    %2091 = vrot.lane.b32.xlu0 %v2080, 112
    %v2092 = vpop.permute.xlu0 %2091
    %v2097 = vadd.f32 %v2065, %v2086
    %v2098 = vadd.f32 %v2066, %v2088
    %v2099 = vadd.f32 %v2067, %v2090
    %v2100 = vadd.f32 %v2068, %v2092
    %v2101 = vlaneseq
    %v2102 = vshrl.u32 %v2101, 7
    %v2103 = vsub.s32 2, %v2102
    %v2104 = vrot.slane %v1603, %v2103
    %2106 = vrot.lane.b32.xlu0 %v2104, 24
    %v2107 = vpop.permute.xlu0 %2106
    %v2109 = vmul.f32 %v1190, %v2107
    %v2110 = vmul.f32 %v1191, %v2107
    %v2111 = vmul.f32 %v1192, %v2107
    %v2112 = vmul.f32 %v1193, %v2107
    %2117 = vrot.lane.b32.xlu0 %v2109, 104
    %v2118 = vpop.permute.xlu0 %2117
    %2119 = vrot.lane.b32.xlu0 %v2110, 104
    %v2120 = vpop.permute.xlu0 %2119
    %2121 = vrot.lane.b32.xlu0 %v2111, 104
    %v2122 = vpop.permute.xlu0 %2121
    %2123 = vrot.lane.b32.xlu0 %v2112, 104
    %v2124 = vpop.permute.xlu0 %2123
    %v2129 = vadd.f32 %v2097, %v2118
    %v2130 = vadd.f32 %v2098, %v2120
    %v2131 = vadd.f32 %v2099, %v2122
    %v2132 = vadd.f32 %v2100, %v2124
    %v2133 = vlaneseq
    %v2134 = vshrl.u32 %v2133, 7
    %v2135 = vsub.s32 3, %v2134
    %v2136 = vrot.slane %v1603, %v2135
    %2138 = vrot.lane.b32.xlu0 %v2136, 32
    %v2139 = vpop.permute.xlu0 %2138
    %v2141 = vmul.f32 %v1190, %v2139
    %v2142 = vmul.f32 %v1191, %v2139
    %v2143 = vmul.f32 %v1192, %v2139
    %v2144 = vmul.f32 %v1193, %v2139
    %2149 = vrot.lane.b32.xlu0 %v2141, 96
    %v2150 = vpop.permute.xlu0 %2149
    %2151 = vrot.lane.b32.xlu0 %v2142, 96
    %v2152 = vpop.permute.xlu0 %2151
    %2153 = vrot.lane.b32.xlu0 %v2143, 96
    %v2154 = vpop.permute.xlu0 %2153
    %2155 = vrot.lane.b32.xlu0 %v2144, 96
    %v2156 = vpop.permute.xlu0 %2155
    %v2161 = vadd.f32 %v2129, %v2150
    %v2162 = vadd.f32 %v2130, %v2152
    %v2163 = vadd.f32 %v2131, %v2154
    %v2164 = vadd.f32 %v2132, %v2156
    %v2165 = vld [vmem:[#allocation3 + $0x10] sm:$0xff]
    %v2166 = vld [vmem:[#allocation3 + $0x28] sm:$0xff]
    %v2167 = vlaneseq
    %v2168 = vshrl.u32 %v2167, 7
    %v2169 = vsub.s32 4, %v2168
    %v2170 = vrot.slane %v1603, %v2169
    %v2171 = vmul.f32 %v1606, %v2170
    %v2172 = vmul.f32 %v2165, %v2170
    %v2173 = vmul.f32 %v1608, %v2170
    %v2174 = vmul.f32 %v2166, %v2170
    %v2175 = vadd.f32 %v2161, %v2171
    %v2176 = vadd.f32 %v2162, %v2172
    %v2177 = vadd.f32 %v2163, %v2173
    %v2178 = vadd.f32 %v2164, %v2174
    %v2179 = vlaneseq
    %v2180 = vshrl.u32 %v2179, 7
    %v2181 = vsub.s32 5, %v2180
    %v2182 = vrot.slane %v1603, %v2181
    %2184 = vrot.lane.b32.xlu0 %v2182, 8
    %v2185 = vpop.permute.xlu0 %2184
    %v2187 = vmul.f32 %v1606, %v2185
    %v2188 = vmul.f32 %v2165, %v2185
    %v2189 = vmul.f32 %v1608, %v2185
    %v2190 = vmul.f32 %v2166, %v2185
    %2195 = vrot.lane.b32.xlu0 %v2187, 120
    %v2196 = vpop.permute.xlu0 %2195
    %2197 = vrot.lane.b32.xlu0 %v2188, 120
    %v2198 = vpop.permute.xlu0 %2197
    %2199 = vrot.lane.b32.xlu0 %v2189, 120
    %v2200 = vpop.permute.xlu0 %2199
    %2201 = vrot.lane.b32.xlu0 %v2190, 120
    %v2202 = vpop.permute.xlu0 %2201
    %v2207 = vadd.f32 %v2175, %v2196
    %v2208 = vadd.f32 %v2176, %v2198
    %v2209 = vadd.f32 %v2177, %v2200
    %v2210 = vadd.f32 %v2178, %v2202
    %v2211 = vlaneseq
    %v2212 = vshrl.u32 %v2211, 7
    %v2213 = vsub.s32 6, %v2212
    %v2214 = vrot.slane %v1603, %v2213
    %2216 = vrot.lane.b32.xlu0 %v2214, 16
    %v2217 = vpop.permute.xlu0 %2216
    %v2219 = vmul.f32 %v1606, %v2217
    %v2220 = vmul.f32 %v2165, %v2217
    %v2221 = vmul.f32 %v1608, %v2217
    %v2222 = vmul.f32 %v2166, %v2217
    %2227 = vrot.lane.b32.xlu0 %v2219, 112
    %v2228 = vpop.permute.xlu0 %2227
    %2229 = vrot.lane.b32.xlu0 %v2220, 112
    %v2230 = vpop.permute.xlu0 %2229
    %2231 = vrot.lane.b32.xlu0 %v2221, 112
    %v2232 = vpop.permute.xlu0 %2231
    %2233 = vrot.lane.b32.xlu0 %v2222, 112
    %v2234 = vpop.permute.xlu0 %2233
    %v2239 = vadd.f32 %v2207, %v2228
    %v2240 = vadd.f32 %v2208, %v2230
    %v2241 = vadd.f32 %v2209, %v2232
    %v2242 = vadd.f32 %v2210, %v2234
    %v2243 = vlaneseq
    %v2244 = vshrl.u32 %v2243, 7
    %v2245 = vsub.s32 7, %v2244
    %v2246 = vrot.slane %v1603, %v2245
    %2248 = vrot.lane.b32.xlu0 %v2246, 24
    %v2249 = vpop.permute.xlu0 %2248
    %v2251 = vmul.f32 %v1606, %v2249
    %v2252 = vmul.f32 %v2165, %v2249
    %v2253 = vmul.f32 %v1608, %v2249
    %v2254 = vmul.f32 %v2166, %v2249
    %2259 = vrot.lane.b32.xlu0 %v2251, 104
    %v2260 = vpop.permute.xlu0 %2259
    %2261 = vrot.lane.b32.xlu0 %v2252, 104
    %v2262 = vpop.permute.xlu0 %2261
    %2263 = vrot.lane.b32.xlu0 %v2253, 104
    %v2264 = vpop.permute.xlu0 %2263
    %2265 = vrot.lane.b32.xlu0 %v2254, 104
    %v2266 = vpop.permute.xlu0 %2265
    %v2271 = vadd.f32 %v2239, %v2260
    %v2272 = vadd.f32 %v2240, %v2262
    %v2273 = vadd.f32 %v2241, %v2264
    %v2274 = vadd.f32 %v2242, %v2266
    %v2275 = vlaneseq
    %v2276 = vshrl.u32 %v2275, 7
    %v2277 = vsub.s32 0, %v2276
    %v2278 = vrot.slane %v1604, %v2277
    %2280 = vrot.lane.b32.xlu0 %v2278, 32
    %v2281 = vpop.permute.xlu0 %2280
    %v2283 = vmul.f32 %v1606, %v2281
    %v2284 = vmul.f32 %v2165, %v2281
    %v2285 = vmul.f32 %v1608, %v2281
    %v2286 = vmul.f32 %v2166, %v2281
    %2291 = vrot.lane.b32.xlu0 %v2283, 96
    %v2292 = vpop.permute.xlu0 %2291
    %2293 = vrot.lane.b32.xlu0 %v2284, 96
    %v2294 = vpop.permute.xlu0 %2293
    %2295 = vrot.lane.b32.xlu0 %v2285, 96
    %v2296 = vpop.permute.xlu0 %2295
    %2297 = vrot.lane.b32.xlu0 %v2286, 96
    %v2298 = vpop.permute.xlu0 %2297
    %v2303 = vadd.f32 %v2271, %v2292
    %v2304 = vadd.f32 %v2272, %v2294
    %v2305 = vadd.f32 %v2273, %v2296
    %v2306 = vadd.f32 %v2274, %v2298
    %v2307 = vld [vmem:[#allocation27] sm:$0xff]
    %v2308 = vld [vmem:[#allocation27 + $0x8] sm:$0xff]
    %v2309 = vld [vmem:[#allocation27 + $0x10] sm:$0xff]
    %v2310 = vld [vmem:[#allocation27 + $0x18] sm:$0xff]
    %v2311 = vld [vmem:[#allocation27 + $0x20] sm:$0xff]
    %v2312 = vld [vmem:[#allocation27 + $0x28] sm:$0xff]
    %v2313 = vld [vmem:[#allocation27 + $0x30] sm:$0xff]
    %v2314 = vld [vmem:[#allocation27 + $0x38] sm:$0xff]
    %v2316 = vsel %vm421, %v2303, 0
    %v2319 = vsel %vm421, %v2304, 0
    %v2322 = vsel %vm421, %v2305, 0
    %v2325 = vsel %vm421, %v2306, 0
    %2327 = vmatprep.subr.mxu0 0.0
    %2328 = vmatpush1.msra.mxu0 %v2307
    %2329 = vmatprep.subr.mxu0 0.0
    %2330 = vmatpush1.msra.mxu0 %v2308
    %2331 = vmatprep.subr.mxu0 0.0
    %2332 = vmatpush1.msra.mxu0 %v2309
    %2333 = vmatprep.subr.mxu0 0.0
    %2334 = vmatpush1.msra.mxu0 %v2310
    %2335 = vmatprep.subr.mxu0 0.0
    %2336 = vmatpush1.msra.mxu0 %v2311
    %2337 = vmatprep.subr.mxu0 0.0
    %2338 = vmatpush1.msra.mxu0 %v2312
    %2339 = vmatprep.subr.mxu0 0.0
    %2340 = vmatpush1.msra.mxu0 %v2313
    %2341 = vmatprep.subr.mxu0 0.0
    %2342 = vmatpush1.msra.mxu0 %v2314
    %2343 = vmatprep.subr.mxu0 0.0
    %2344 = vmatpush1.msra.mxu0 0.0
    %2345 = vmatprep.subr.mxu0 0.0
    %2346 = vmatpush1.msra.mxu0 0.0
    %2347 = vmatprep.subr.mxu0 0.0
    %2348 = vmatpush1.msra.mxu0 0.0
    %2349 = vmatprep.subr.mxu0 0.0
    %2350 = vmatpush1.msra.mxu0 0.0
    %2351 = vmatprep.subr.mxu0 0.0
    %2352 = vmatpush1.msra.mxu0 0.0
    %2353 = vmatprep.subr.mxu0 0.0
    %2354 = vmatpush1.msra.mxu0 0.0
    %2355 = vmatprep.subr.mxu0 0.0
    %2356 = vmatpush1.msra.mxu0 0.0
    %2357 = vmatprep.subr.mxu0 0.0
    %2358 = vmatpush1.msra.mxu0 0.0
    %2359 = vmatprep.subr.mxu0 0.0
    %2360 = vmatpush1.msra.mxu0 0.0
    %2361 = vmatprep.subr.mxu0 0.0
    %2362 = vmatpush1.msra.mxu0 0.0
    %2363 = vmatprep.subr.mxu0 0.0
    %2364 = vmatpush1.msra.mxu0 0.0
    %2365 = vmatprep.subr.mxu0 0.0
    %2366 = vmatpush1.msra.mxu0 0.0
    %2367 = vmatprep.subr.mxu0 0.0
    %2368 = vmatpush1.msra.mxu0 0.0
    %2369 = vmatprep.subr.mxu0 0.0
    %2370 = vmatpush1.msra.mxu0 0.0
    %2371 = vmatprep.subr.mxu0 0.0
    %2372 = vmatpush1.msra.mxu0 0.0
    %2373 = vmatprep.subr.mxu0 0.0
    %2374 = vmatpush1.msra.mxu0 0.0
    %2375 = vmatprep.subr.mxu0 0.0
    %2376 = vmatpush1.msra.mxu0 0.0
    %2377 = vmatprep.subr.mxu0 0.0
    %2378 = vmatpush1.msra.mxu0 0.0
    %2379 = vmatprep.subr.mxu0 0.0
    %2380 = vmatpush1.msra.mxu0 0.0
    %2381 = vmatprep.subr.mxu0 0.0
    %2382 = vmatpush1.msra.mxu0 0.0
    %2383 = vmatprep.subr.mxu0 0.0
    %2384 = vmatpush1.msra.mxu0 0.0
    %2385 = vmatprep.subr.mxu0 0.0
    %2386 = vmatpush1.msra.mxu0 0.0
    %2387 = vmatprep.subr.mxu0 0.0
    %2388 = vmatpush1.msra.mxu0 0.0
    %2389 = vmatprep.subr.mxu0 0.0
    %2390 = vmatpush1.msra.mxu0 0.0
    %2391 = vmatprep.mubr.f32.mxu0 0.0
    %2392 = vmatmul.mubr.f32.gmra.mrb[0].mxu0 %v2316
    %v2393 = vpop.f32.mrb[0].mxu0
    %v2394 = vadd.f32 0.0, %v2393
    %v2395 = vpop.f32.mrb[0].mxu0
    %2396 = vmatprep.mubr.f32.mxu0 0.0
    %2397 = vmatmul.mubr.f32.gmra.mrb[0].mxu0 %v2319
    %v2398 = vpop.f32.mrb[0].mxu0
    %v2399 = vadd.f32 0.0, %v2398
    %v2400 = vpop.f32.mrb[0].mxu0
    %2401 = vmatprep.mubr.f32.mxu0 0.0
    %2402 = vmatmul.mubr.f32.gmra.mrb[0].mxu0 %v2322
    %v2403 = vpop.f32.mrb[0].mxu0
    %v2404 = vadd.f32 0.0, %v2403
    %v2405 = vpop.f32.mrb[0].mxu0
    %2406 = vmatprep.mubr.f32.mxu0 0.0
    %2407 = vmatmul.mubr.f32.gmra.mrb[0].mxu0 %v2325
    %v2408 = vpop.f32.mrb[0].mxu0
    %v2409 = vadd.f32 0.0, %v2408
    %v2410 = vpop.f32.mrb[0].mxu0
    %2411 = vdwg.mxu0
    %v2412 = vsel %vm421, %v2394, 0.0
    %v2413 = vsel %vm421, %v2399, 0.0
    %v2414 = vadd.f32 %v2412, %v2413
    %v2415 = vsel %vm421, %v2404, 0.0
    %v2416 = vadd.f32 %v2414, %v2415
    %v2417 = vsel %vm421, %v2409, 0.0
    %v2418 = vadd.f32 %v2416, %v2417
    %v2420 = vsel %vm421, %v2418, 0
    %2422 = vmatprep.subr.mxu0 0.0
    %2423 = vmatpush1.msra.mxu0 %v261
    %2424 = vmatprep.subr.mxu0 0.0
    %2425 = vmatpush1.msra.mxu0 %v262
    %2426 = vmatprep.subr.mxu0 0.0
    %2427 = vmatpush1.msra.mxu0 %v263
    %2428 = vmatprep.subr.mxu0 0.0
    %2429 = vmatpush1.msra.mxu0 %v264
    %2430 = vmatprep.subr.mxu0 0.0
    %2431 = vmatpush1.msra.mxu0 %v265
    %2432 = vmatprep.subr.mxu0 0.0
    %2433 = vmatpush1.msra.mxu0 %v266
    %2434 = vmatprep.subr.mxu0 0.0
    %2435 = vmatpush1.msra.mxu0 %v267
    %2436 = vmatprep.subr.mxu0 0.0
    %2437 = vmatpush1.msra.mxu0 %v268
    %2438 = vmatprep.subr.mxu0 0.0
    %2439 = vmatpush1.msra.mxu0 0.0
    %2440 = vmatprep.subr.mxu0 0.0
    %2441 = vmatpush1.msra.mxu0 0.0
    %2442 = vmatprep.subr.mxu0 0.0
    %2443 = vmatpush1.msra.mxu0 0.0
    %2444 = vmatprep.subr.mxu0 0.0
    %2445 = vmatpush1.msra.mxu0 0.0
    %2446 = vmatprep.subr.mxu0 0.0
    %2447 = vmatpush1.msra.mxu0 0.0
    %2448 = vmatprep.subr.mxu0 0.0
    %2449 = vmatpush1.msra.mxu0 0.0
    %2450 = vmatprep.subr.mxu0 0.0
    %2451 = vmatpush1.msra.mxu0 0.0
    %2452 = vmatprep.subr.mxu0 0.0
    %2453 = vmatpush1.msra.mxu0 0.0
    %2454 = vmatprep.subr.mxu0 0.0
    %2455 = vmatpush1.msra.mxu0 0.0
    %2456 = vmatprep.subr.mxu0 0.0
    %2457 = vmatpush1.msra.mxu0 0.0
    %2458 = vmatprep.subr.mxu0 0.0
    %2459 = vmatpush1.msra.mxu0 0.0
    %2460 = vmatprep.subr.mxu0 0.0
    %2461 = vmatpush1.msra.mxu0 0.0
    %2462 = vmatprep.subr.mxu0 0.0
    %2463 = vmatpush1.msra.mxu0 0.0
    %2464 = vmatprep.subr.mxu0 0.0
    %2465 = vmatpush1.msra.mxu0 0.0
    %2466 = vmatprep.subr.mxu0 0.0
    %2467 = vmatpush1.msra.mxu0 0.0
    %2468 = vmatprep.subr.mxu0 0.0
    %2469 = vmatpush1.msra.mxu0 0.0
    %2470 = vmatprep.subr.mxu0 0.0
    %2471 = vmatpush1.msra.mxu0 0.0
    %2472 = vmatprep.subr.mxu0 0.0
    %2473 = vmatpush1.msra.mxu0 0.0
    %2474 = vmatprep.subr.mxu0 0.0
    %2475 = vmatpush1.msra.mxu0 0.0
    %2476 = vmatprep.subr.mxu0 0.0
    %2477 = vmatpush1.msra.mxu0 0.0
    %2478 = vmatprep.subr.mxu0 0.0
    %2479 = vmatpush1.msra.mxu0 0.0
    %2480 = vmatprep.subr.mxu0 0.0
    %2481 = vmatpush1.msra.mxu0 0.0
    %2482 = vmatprep.subr.mxu0 0.0
    %2483 = vmatpush1.msra.mxu0 0.0
    %2484 = vmatprep.subr.mxu0 0.0
    %2485 = vmatpush1.msra.mxu0 0.0
    %2486 = vmatprep.mubr.f32.mxu0 0.0
    %2487 = vmatmul.mubr.f32.gmra.mrb[0].mxu0 %v2420
    %v2488 = vpop.f32.mrb[0].mxu0
    %v2489 = vadd.f32 0.0, %v2488
    %v2490 = vpop.f32.mrb[0].mxu0
    %2491 = vdwg.mxu0
    %v2492 = vsel %vm421, %v2489, 0.0
    %v2493 = vrot.slane %v2492, 4
    %v2494 = vadd.f32 %v2492, %v2493
    %v2495 = vrot.slane %v2494, 2
    %v2496 = vadd.f32 %v2494, %v2495
    %v2497 = vrot.slane %v2496, 1
    %v2498 = vadd.f32 %v2496, %v2497
    %v2499 = vsub.f32 %v2394, %v2498
    %v2500 = vsub.f32 %v2399, %v2498
    %v2501 = vsub.f32 %v2404, %v2498
    %v2502 = vsub.f32 %v2409, %v2498
    %v2503 = vmul.f32 %v2499, %v2499
    %v2504 = vmul.f32 %v2500, %v2500
    %v2505 = vmul.f32 %v2501, %v2501
    %v2506 = vmul.f32 %v2502, %v2502
    %v2507 = vsel %vm421, %v2503, 0.0
    %v2508 = vsel %vm421, %v2504, 0.0
    %v2509 = vadd.f32 %v2507, %v2508
    %v2510 = vsel %vm421, %v2505, 0.0
    %v2511 = vadd.f32 %v2509, %v2510
    %v2512 = vsel %vm421, %v2506, 0.0
    %v2513 = vadd.f32 %v2511, %v2512
    %v2515 = vsel %vm421, %v2513, 0
    %2517 = vmatprep.subr.mxu0 0.0
    %2518 = vmatpush1.msra.mxu0 %v261
    %2519 = vmatprep.subr.mxu0 0.0
    %2520 = vmatpush1.msra.mxu0 %v262
    %2521 = vmatprep.subr.mxu0 0.0
    %2522 = vmatpush1.msra.mxu0 %v263
    %2523 = vmatprep.subr.mxu0 0.0
    %2524 = vmatpush1.msra.mxu0 %v264
    %2525 = vmatprep.subr.mxu0 0.0
    %2526 = vmatpush1.msra.mxu0 %v265
    %2527 = vmatprep.subr.mxu0 0.0
    %2528 = vmatpush1.msra.mxu0 %v266
    %2529 = vmatprep.subr.mxu0 0.0
    %2530 = vmatpush1.msra.mxu0 %v267
    %2531 = vmatprep.subr.mxu0 0.0
    %2532 = vmatpush1.msra.mxu0 %v268
    %2533 = vmatprep.subr.mxu0 0.0
    %2534 = vmatpush1.msra.mxu0 0.0
    %2535 = vmatprep.subr.mxu0 0.0
    %2536 = vmatpush1.msra.mxu0 0.0
    %2537 = vmatprep.subr.mxu0 0.0
    %2538 = vmatpush1.msra.mxu0 0.0
    %2539 = vmatprep.subr.mxu0 0.0
    %2540 = vmatpush1.msra.mxu0 0.0
    %2541 = vmatprep.subr.mxu0 0.0
    %2542 = vmatpush1.msra.mxu0 0.0
    %2543 = vmatprep.subr.mxu0 0.0
    %2544 = vmatpush1.msra.mxu0 0.0
    %2545 = vmatprep.subr.mxu0 0.0
    %2546 = vmatpush1.msra.mxu0 0.0
    %2547 = vmatprep.subr.mxu0 0.0
    %2548 = vmatpush1.msra.mxu0 0.0
    %2549 = vmatprep.subr.mxu0 0.0
    %2550 = vmatpush1.msra.mxu0 0.0
    %2551 = vmatprep.subr.mxu0 0.0
    %2552 = vmatpush1.msra.mxu0 0.0
    %2553 = vmatprep.subr.mxu0 0.0
    %2554 = vmatpush1.msra.mxu0 0.0
    %2555 = vmatprep.subr.mxu0 0.0
    %2556 = vmatpush1.msra.mxu0 0.0
    %2557 = vmatprep.subr.mxu0 0.0
    %2558 = vmatpush1.msra.mxu0 0.0
    %2559 = vmatprep.subr.mxu0 0.0
    %2560 = vmatpush1.msra.mxu0 0.0
    %2561 = vmatprep.subr.mxu0 0.0
    %2562 = vmatpush1.msra.mxu0 0.0
    %2563 = vmatprep.subr.mxu0 0.0
    %2564 = vmatpush1.msra.mxu0 0.0
    %2565 = vmatprep.subr.mxu0 0.0
    %2566 = vmatpush1.msra.mxu0 0.0
    %2567 = vmatprep.subr.mxu0 0.0
    %2568 = vmatpush1.msra.mxu0 0.0
    %2569 = vmatprep.subr.mxu0 0.0
    %2570 = vmatpush1.msra.mxu0 0.0
    %2571 = vmatprep.subr.mxu0 0.0
    %2572 = vmatpush1.msra.mxu0 0.0
    %2573 = vmatprep.subr.mxu0 0.0
    %2574 = vmatpush1.msra.mxu0 0.0
    %2575 = vmatprep.subr.mxu0 0.0
    %2576 = vmatpush1.msra.mxu0 0.0
    %2577 = vmatprep.subr.mxu0 0.0
    %2578 = vmatpush1.msra.mxu0 0.0
    %2579 = vmatprep.subr.mxu0 0.0
    %2580 = vmatpush1.msra.mxu0 0.0
    %2581 = vmatprep.mubr.f32.mxu0 0.0
    %2582 = vmatmul.mubr.f32.gmra.mrb[0].mxu0 %v2515
    %v2583 = vpop.f32.mrb[0].mxu0
    %v2584 = vadd.f32 0.0, %v2583
    %v2585 = vpop.f32.mrb[0].mxu0
    %2586 = vdwg.mxu0
    %v2587 = vsel %vm421, %v2584, 0.0
    %v2588 = vrot.slane %v2587, 4
    %v2589 = vadd.f32 %v2587, %v2588
    %v2590 = vrot.slane %v2589, 2
    %v2591 = vadd.f32 %v2589, %v2590
    %v2592 = vrot.slane %v2591, 1
    %v2593 = vadd.f32 %v2591, %v2592
    %v2594 = vadd.f32 %v2593, 1e-05
    %v2595 = vrsqrt.pop %v2594
    %v2596 = vmul.f32 %v2499, %v2595
    %v2597 = vmul.f32 %v2500, %v2595
    %v2598 = vmul.f32 %v2501, %v2595
    %v2599 = vmul.f32 %v2502, %v2595
    %s2600 = sld [smem:[#allocation8 + $0x7]]
    %v2601 = vstv %s2600
    %v2602 = vmul.f32 %v2601, %v2596
    %v2603 = vmul.f32 %v2601, %v2597
    %v2604 = vmul.f32 %v2601, %v2598
    %v2605 = vmul.f32 %v2601, %v2599
    %2610 = vrot.lane.b32.xlu0 %v2602, 4
    %v2611 = vpop.permute.xlu0 %2610
    %2612 = vrot.lane.b32.xlu0 %v2603, 4
    %v2613 = vpop.permute.xlu0 %2612
    %2614 = vrot.lane.b32.xlu0 %v2604, 4
    %v2615 = vpop.permute.xlu0 %2614
    %2616 = vrot.lane.b32.xlu0 %v2605, 4
    %v2617 = vpop.permute.xlu0 %2616
    %v2622 = vadd.f32 %v1597, %v2611
    %v2623 = vadd.f32 %v1598, %v2613
    %v2624 = vadd.f32 %v1599, %v2615
    %v2625 = vadd.f32 %v1600, %v2617
    %v2626 = vld [vmem:[#allocation12] sm:$0xff]
    %v2627 = vld [vmem:[#allocation12 + $0x8] sm:$0x1]
    %v2628 = vld [vmem:[#allocation3 + $0x3] sm:$0xff]
    %v2629 = vld [vmem:[#allocation3 + $0xb] sm:$0xff]
    %v2630 = vld [vmem:[#allocation3 + $0x1b] sm:$0xff]
    %v2631 = vld [vmem:[#allocation3 + $0x23] sm:$0xff]
    %v2632 = vlaneseq
    %v2633 = vshrl.u32 %v2632, 7
    %v2634 = vsub.s32 0, %v2633
    %v2635 = vrot.slane %v2626, %v2634
    %2637 = vrot.lane.b32.xlu0 %v2635, 12
    %v2638 = vpop.permute.xlu0 %2637
    %v2640 = vmul.f32 %v2628, %v2638
    %v2641 = vmul.f32 %v2629, %v2638
    %v2642 = vmul.f32 %v2630, %v2638
    %v2643 = vmul.f32 %v2631, %v2638
    %v2644 = vlaneseq
    %v2645 = vshrl.u32 %v2644, 7
    %v2646 = vsub.s32 1, %v2645
    %v2647 = vrot.slane %v2626, %v2646
    %2649 = vrot.lane.b32.xlu0 %v2647, 16
    %v2650 = vpop.permute.xlu0 %2649
    %v2652 = vmul.f32 %v2628, %v2650
    %v2653 = vmul.f32 %v2629, %v2650
    %v2654 = vmul.f32 %v2630, %v2650
    %v2655 = vmul.f32 %v2631, %v2650
    %2660 = vrot.lane.b32.xlu0 %v2652, 124
    %v2661 = vpop.permute.xlu0 %2660
    %2662 = vrot.lane.b32.xlu0 %v2653, 124
    %v2663 = vpop.permute.xlu0 %2662
    %2664 = vrot.lane.b32.xlu0 %v2654, 124
    %v2665 = vpop.permute.xlu0 %2664
    %2666 = vrot.lane.b32.xlu0 %v2655, 124
    %v2667 = vpop.permute.xlu0 %2666
    %v2672 = vadd.f32 %v2640, %v2661
    %v2673 = vadd.f32 %v2641, %v2663
    %v2674 = vadd.f32 %v2642, %v2665
    %v2675 = vadd.f32 %v2643, %v2667
    %v2676 = vlaneseq
    %v2677 = vshrl.u32 %v2676, 7
    %v2678 = vsub.s32 2, %v2677
    %v2679 = vrot.slane %v2626, %v2678
    %2681 = vrot.lane.b32.xlu0 %v2679, 20
    %v2682 = vpop.permute.xlu0 %2681
    %v2684 = vmul.f32 %v2628, %v2682
    %v2685 = vmul.f32 %v2629, %v2682
    %v2686 = vmul.f32 %v2630, %v2682
    %v2687 = vmul.f32 %v2631, %v2682
    %2692 = vrot.lane.b32.xlu0 %v2684, 120
    %v2693 = vpop.permute.xlu0 %2692
    %2694 = vrot.lane.b32.xlu0 %v2685, 120
    %v2695 = vpop.permute.xlu0 %2694
    %2696 = vrot.lane.b32.xlu0 %v2686, 120
    %v2697 = vpop.permute.xlu0 %2696
    %2698 = vrot.lane.b32.xlu0 %v2687, 120
    %v2699 = vpop.permute.xlu0 %2698
    %v2704 = vadd.f32 %v2672, %v2693
    %v2705 = vadd.f32 %v2673, %v2695
    %v2706 = vadd.f32 %v2674, %v2697
    %v2707 = vadd.f32 %v2675, %v2699
    %v2708 = vlaneseq
    %v2709 = vshrl.u32 %v2708, 7
    %v2710 = vsub.s32 3, %v2709
    %v2711 = vrot.slane %v2626, %v2710
    %2713 = vrot.lane.b32.xlu0 %v2711, 12
    %v2714 = vpop.permute.xlu0 %2713
    %v2716 = vmul.f32 %v1106, %v2714
    %v2717 = vmul.f32 %v1107, %v2714
    %v2718 = vmul.f32 %v1108, %v2714
    %v2719 = vmul.f32 %v1109, %v2714
    %v2720 = vadd.f32 %v2704, %v2716
    %v2721 = vadd.f32 %v2705, %v2717
    %v2722 = vadd.f32 %v2706, %v2718
    %v2723 = vadd.f32 %v2707, %v2719
    %v2724 = vlaneseq
    %v2725 = vshrl.u32 %v2724, 7
    %v2726 = vsub.s32 4, %v2725
    %v2727 = vrot.slane %v2626, %v2726
    %2729 = vrot.lane.b32.xlu0 %v2727, 16
    %v2730 = vpop.permute.xlu0 %2729
    %v2732 = vmul.f32 %v1106, %v2730
    %v2733 = vmul.f32 %v1107, %v2730
    %v2734 = vmul.f32 %v1108, %v2730
    %v2735 = vmul.f32 %v1109, %v2730
    %2740 = vrot.lane.b32.xlu0 %v2732, 124
    %v2741 = vpop.permute.xlu0 %2740
    %2742 = vrot.lane.b32.xlu0 %v2733, 124
    %v2743 = vpop.permute.xlu0 %2742
    %2744 = vrot.lane.b32.xlu0 %v2734, 124
    %v2745 = vpop.permute.xlu0 %2744
    %2746 = vrot.lane.b32.xlu0 %v2735, 124
    %v2747 = vpop.permute.xlu0 %2746
    %v2752 = vadd.f32 %v2720, %v2741
    %v2753 = vadd.f32 %v2721, %v2743
    %v2754 = vadd.f32 %v2722, %v2745
    %v2755 = vadd.f32 %v2723, %v2747
    %v2756 = vlaneseq
    %v2757 = vshrl.u32 %v2756, 7
    %v2758 = vsub.s32 5, %v2757
    %v2759 = vrot.slane %v2626, %v2758
    %2761 = vrot.lane.b32.xlu0 %v2759, 20
    %v2762 = vpop.permute.xlu0 %2761
    %v2764 = vmul.f32 %v1106, %v2762
    %v2765 = vmul.f32 %v1107, %v2762
    %v2766 = vmul.f32 %v1108, %v2762
    %v2767 = vmul.f32 %v1109, %v2762
    %2772 = vrot.lane.b32.xlu0 %v2764, 120
    %v2773 = vpop.permute.xlu0 %2772
    %2774 = vrot.lane.b32.xlu0 %v2765, 120
    %v2775 = vpop.permute.xlu0 %2774
    %2776 = vrot.lane.b32.xlu0 %v2766, 120
    %v2777 = vpop.permute.xlu0 %2776
    %2778 = vrot.lane.b32.xlu0 %v2767, 120
    %v2779 = vpop.permute.xlu0 %2778
    %v2784 = vadd.f32 %v2752, %v2773
    %v2785 = vadd.f32 %v2753, %v2775
    %v2786 = vadd.f32 %v2754, %v2777
    %v2787 = vadd.f32 %v2755, %v2779
    %v2788 = vld [vmem:[#allocation3 + $0x5] sm:$0xff]
    %v2789 = vld [vmem:[#allocation3 + $0xd] sm:$0xff]
    %v2790 = vld [vmem:[#allocation3 + $0x1d] sm:$0xff]
    %v2791 = vld [vmem:[#allocation3 + $0x25] sm:$0xff]
    %v2792 = vlaneseq
    %v2793 = vshrl.u32 %v2792, 7
    %v2794 = vsub.s32 6, %v2793
    %v2795 = vrot.slane %v2626, %v2794
    %2797 = vrot.lane.b32.xlu0 %v2795, 12
    %v2798 = vpop.permute.xlu0 %2797
    %v2800 = vmul.f32 %v2788, %v2798
    %v2801 = vmul.f32 %v2789, %v2798
    %v2802 = vmul.f32 %v2790, %v2798
    %v2803 = vmul.f32 %v2791, %v2798
    %v2804 = vadd.f32 %v2784, %v2800
    %v2805 = vadd.f32 %v2785, %v2801
    %v2806 = vadd.f32 %v2786, %v2802
    %v2807 = vadd.f32 %v2787, %v2803
    %v2808 = vlaneseq
    %v2809 = vshrl.u32 %v2808, 7
    %v2810 = vsub.s32 7, %v2809
    %v2811 = vrot.slane %v2626, %v2810
    %2813 = vrot.lane.b32.xlu0 %v2811, 16
    %v2814 = vpop.permute.xlu0 %2813
    %v2816 = vmul.f32 %v2788, %v2814
    %v2817 = vmul.f32 %v2789, %v2814
    %v2818 = vmul.f32 %v2790, %v2814
    %v2819 = vmul.f32 %v2791, %v2814
    %2824 = vrot.lane.b32.xlu0 %v2816, 124
    %v2825 = vpop.permute.xlu0 %2824
    %2826 = vrot.lane.b32.xlu0 %v2817, 124
    %v2827 = vpop.permute.xlu0 %2826
    %2828 = vrot.lane.b32.xlu0 %v2818, 124
    %v2829 = vpop.permute.xlu0 %2828
    %2830 = vrot.lane.b32.xlu0 %v2819, 124
    %v2831 = vpop.permute.xlu0 %2830
    %v2836 = vadd.f32 %v2804, %v2825
    %v2837 = vadd.f32 %v2805, %v2827
    %v2838 = vadd.f32 %v2806, %v2829
    %v2839 = vadd.f32 %v2807, %v2831
    %v2840 = vlaneseq
    %v2841 = vshrl.u32 %v2840, 7
    %v2842 = vsub.s32 0, %v2841
    %v2843 = vrot.slane %v2627, %v2842
    %2845 = vrot.lane.b32.xlu0 %v2843, 20
    %v2846 = vpop.permute.xlu0 %2845
    %v2848 = vmul.f32 %v2788, %v2846
    %v2849 = vmul.f32 %v2789, %v2846
    %v2850 = vmul.f32 %v2790, %v2846
    %v2851 = vmul.f32 %v2791, %v2846
    %2856 = vrot.lane.b32.xlu0 %v2848, 120
    %v2857 = vpop.permute.xlu0 %2856
    %2858 = vrot.lane.b32.xlu0 %v2849, 120
    %v2859 = vpop.permute.xlu0 %2858
    %2860 = vrot.lane.b32.xlu0 %v2850, 120
    %v2861 = vpop.permute.xlu0 %2860
    %2862 = vrot.lane.b32.xlu0 %v2851, 120
    %v2863 = vpop.permute.xlu0 %2862
    %v2868 = vadd.f32 %v2836, %v2857
    %v2869 = vadd.f32 %v2837, %v2859
    %v2870 = vadd.f32 %v2838, %v2861
    %v2871 = vadd.f32 %v2839, %v2863
    %v2872 = vld [vmem:[#allocation14] sm:$0xff]
    %v2873 = vld [vmem:[#allocation14 + $0x8] sm:$0xff]
    %v2874 = vld [vmem:[#allocation14 + $0x10] sm:$0xff]
    %v2875 = vld [vmem:[#allocation14 + $0x18] sm:$0xff]
    %v2876 = vld [vmem:[#allocation14 + $0x20] sm:$0xff]
    %v2877 = vld [vmem:[#allocation14 + $0x28] sm:$0xff]
    %v2878 = vld [vmem:[#allocation14 + $0x30] sm:$0xff]
    %v2879 = vld [vmem:[#allocation14 + $0x38] sm:$0xff]
    %2884 = vrot.lane.b32.xlu0 %v2868, 116
    %v2885 = vpop.permute.xlu0 %2884
    %2886 = vrot.lane.b32.xlu0 %v2869, 116
    %v2887 = vpop.permute.xlu0 %2886
    %2888 = vrot.lane.b32.xlu0 %v2870, 116
    %v2889 = vpop.permute.xlu0 %2888
    %2890 = vrot.lane.b32.xlu0 %v2871, 116
    %v2891 = vpop.permute.xlu0 %2890
    %v2892 = vsel %vm421, %v2885, 0
    %v2894 = vsel %vm421, %v2887, 0
    %v2896 = vsel %vm421, %v2889, 0
    %v2898 = vsel %vm421, %v2891, 0
    %2900 = vmatprep.subr.mxu0 0.0
    %2901 = vmatpush1.msra.mxu0 %v2872
    %2902 = vmatprep.subr.mxu0 0.0
    %2903 = vmatpush1.msra.mxu0 %v2873
    %2904 = vmatprep.subr.mxu0 0.0
    %2905 = vmatpush1.msra.mxu0 %v2874
    %2906 = vmatprep.subr.mxu0 0.0
    %2907 = vmatpush1.msra.mxu0 %v2875
    %2908 = vmatprep.subr.mxu0 0.0
    %2909 = vmatpush1.msra.mxu0 %v2876
    %2910 = vmatprep.subr.mxu0 0.0
    %2911 = vmatpush1.msra.mxu0 %v2877
    %2912 = vmatprep.subr.mxu0 0.0
    %2913 = vmatpush1.msra.mxu0 %v2878
    %2914 = vmatprep.subr.mxu0 0.0
    %2915 = vmatpush1.msra.mxu0 %v2879
    %2916 = vmatprep.subr.mxu0 0.0
    %2917 = vmatpush1.msra.mxu0 0.0
    %2918 = vmatprep.subr.mxu0 0.0
    %2919 = vmatpush1.msra.mxu0 0.0
    %2920 = vmatprep.subr.mxu0 0.0
    %2921 = vmatpush1.msra.mxu0 0.0
    %2922 = vmatprep.subr.mxu0 0.0
    %2923 = vmatpush1.msra.mxu0 0.0
    %2924 = vmatprep.subr.mxu0 0.0
    %2925 = vmatpush1.msra.mxu0 0.0
    %2926 = vmatprep.subr.mxu0 0.0
    %2927 = vmatpush1.msra.mxu0 0.0
    %2928 = vmatprep.subr.mxu0 0.0
    %2929 = vmatpush1.msra.mxu0 0.0
    %2930 = vmatprep.subr.mxu0 0.0
    %2931 = vmatpush1.msra.mxu0 0.0
    %2932 = vmatprep.subr.mxu0 0.0
    %2933 = vmatpush1.msra.mxu0 0.0
    %2934 = vmatprep.subr.mxu0 0.0
    %2935 = vmatpush1.msra.mxu0 0.0
    %2936 = vmatprep.subr.mxu0 0.0
    %2937 = vmatpush1.msra.mxu0 0.0
    %2938 = vmatprep.subr.mxu0 0.0
    %2939 = vmatpush1.msra.mxu0 0.0
    %2940 = vmatprep.subr.mxu0 0.0
    %2941 = vmatpush1.msra.mxu0 0.0
    %2942 = vmatprep.subr.mxu0 0.0
    %2943 = vmatpush1.msra.mxu0 0.0
    %2944 = vmatprep.subr.mxu0 0.0
    %2945 = vmatpush1.msra.mxu0 0.0
    %2946 = vmatprep.subr.mxu0 0.0
    %2947 = vmatpush1.msra.mxu0 0.0
    %2948 = vmatprep.subr.mxu0 0.0
    %2949 = vmatpush1.msra.mxu0 0.0
    %2950 = vmatprep.subr.mxu0 0.0
    %2951 = vmatpush1.msra.mxu0 0.0
    %2952 = vmatprep.subr.mxu0 0.0
    %2953 = vmatpush1.msra.mxu0 0.0
    %2954 = vmatprep.subr.mxu0 0.0
    %2955 = vmatpush1.msra.mxu0 0.0
    %2956 = vmatprep.subr.mxu0 0.0
    %2957 = vmatpush1.msra.mxu0 0.0
    %2958 = vmatprep.subr.mxu0 0.0
    %2959 = vmatpush1.msra.mxu0 0.0
    %2960 = vmatprep.subr.mxu0 0.0
    %2961 = vmatpush1.msra.mxu0 0.0
    %2962 = vmatprep.subr.mxu0 0.0
    %2963 = vmatpush1.msra.mxu0 0.0
    %2964 = vmatprep.mubr.f32.mxu0 0.0
    %2965 = vmatmul.mubr.f32.gmra.mrb[0].mxu0 %v2892
    %v2966 = vpop.f32.mrb[0].mxu0
    %v2967 = vadd.f32 0.0, %v2966
    %v2968 = vpop.f32.mrb[0].mxu0
    %2969 = vmatprep.mubr.f32.mxu0 0.0
    %2970 = vmatmul.mubr.f32.gmra.mrb[0].mxu0 %v2894
    %v2971 = vpop.f32.mrb[0].mxu0
    %v2972 = vadd.f32 0.0, %v2971
    %v2973 = vpop.f32.mrb[0].mxu0
    %2974 = vmatprep.mubr.f32.mxu0 0.0
    %2975 = vmatmul.mubr.f32.gmra.mrb[0].mxu0 %v2896
    %v2976 = vpop.f32.mrb[0].mxu0
    %v2977 = vadd.f32 0.0, %v2976
    %v2978 = vpop.f32.mrb[0].mxu0
    %2979 = vmatprep.mubr.f32.mxu0 0.0
    %2980 = vmatmul.mubr.f32.gmra.mrb[0].mxu0 %v2898
    %v2981 = vpop.f32.mrb[0].mxu0
    %v2982 = vadd.f32 0.0, %v2981
    %v2983 = vpop.f32.mrb[0].mxu0
    %2984 = vdwg.mxu0
    %v2985 = vsel %vm421, %v2967, 0.0
    %v2986 = vsel %vm421, %v2972, 0.0
    %v2987 = vadd.f32 %v2985, %v2986
    %v2988 = vsel %vm421, %v2977, 0.0
    %v2989 = vadd.f32 %v2987, %v2988
    %v2990 = vsel %vm421, %v2982, 0.0
    %v2991 = vadd.f32 %v2989, %v2990
    %v2993 = vsel %vm421, %v2991, 0
    %2995 = vmatprep.subr.mxu0 0.0
    %2996 = vmatpush1.msra.mxu0 %v261
    %2997 = vmatprep.subr.mxu0 0.0
    %2998 = vmatpush1.msra.mxu0 %v262
    %2999 = vmatprep.subr.mxu0 0.0
    %3000 = vmatpush1.msra.mxu0 %v263
    %3001 = vmatprep.subr.mxu0 0.0
    %3002 = vmatpush1.msra.mxu0 %v264
    %3003 = vmatprep.subr.mxu0 0.0
    %3004 = vmatpush1.msra.mxu0 %v265
    %3005 = vmatprep.subr.mxu0 0.0
    %3006 = vmatpush1.msra.mxu0 %v266
    %3007 = vmatprep.subr.mxu0 0.0
    %3008 = vmatpush1.msra.mxu0 %v267
    %3009 = vmatprep.subr.mxu0 0.0
    %3010 = vmatpush1.msra.mxu0 %v268
    %3011 = vmatprep.subr.mxu0 0.0
    %3012 = vmatpush1.msra.mxu0 0.0
    %3013 = vmatprep.subr.mxu0 0.0
    %3014 = vmatpush1.msra.mxu0 0.0
    %3015 = vmatprep.subr.mxu0 0.0
    %3016 = vmatpush1.msra.mxu0 0.0
    %3017 = vmatprep.subr.mxu0 0.0
    %3018 = vmatpush1.msra.mxu0 0.0
    %3019 = vmatprep.subr.mxu0 0.0
    %3020 = vmatpush1.msra.mxu0 0.0
    %3021 = vmatprep.subr.mxu0 0.0
    %3022 = vmatpush1.msra.mxu0 0.0
    %3023 = vmatprep.subr.mxu0 0.0
    %3024 = vmatpush1.msra.mxu0 0.0
    %3025 = vmatprep.subr.mxu0 0.0
    %3026 = vmatpush1.msra.mxu0 0.0
    %3027 = vmatprep.subr.mxu0 0.0
    %3028 = vmatpush1.msra.mxu0 0.0
    %3029 = vmatprep.subr.mxu0 0.0
    %3030 = vmatpush1.msra.mxu0 0.0
    %3031 = vmatprep.subr.mxu0 0.0
    %3032 = vmatpush1.msra.mxu0 0.0
    %3033 = vmatprep.subr.mxu0 0.0
    %3034 = vmatpush1.msra.mxu0 0.0
    %3035 = vmatprep.subr.mxu0 0.0
    %3036 = vmatpush1.msra.mxu0 0.0
    %3037 = vmatprep.subr.mxu0 0.0
    %3038 = vmatpush1.msra.mxu0 0.0
    %3039 = vmatprep.subr.mxu0 0.0
    %3040 = vmatpush1.msra.mxu0 0.0
    %3041 = vmatprep.subr.mxu0 0.0
    %3042 = vmatpush1.msra.mxu0 0.0
    %3043 = vmatprep.subr.mxu0 0.0
    %3044 = vmatpush1.msra.mxu0 0.0
    %3045 = vmatprep.subr.mxu0 0.0
    %3046 = vmatpush1.msra.mxu0 0.0
    %3047 = vmatprep.subr.mxu0 0.0
    %3048 = vmatpush1.msra.mxu0 0.0
    %3049 = vmatprep.subr.mxu0 0.0
    %3050 = vmatpush1.msra.mxu0 0.0
    %3051 = vmatprep.subr.mxu0 0.0
    %3052 = vmatpush1.msra.mxu0 0.0
    %3053 = vmatprep.subr.mxu0 0.0
    %3054 = vmatpush1.msra.mxu0 0.0
    %3055 = vmatprep.subr.mxu0 0.0
    %3056 = vmatpush1.msra.mxu0 0.0
    %3057 = vmatprep.subr.mxu0 0.0
    %3058 = vmatpush1.msra.mxu0 0.0
    %3059 = vmatprep.mubr.f32.mxu0 0.0
    %3060 = vmatmul.mubr.f32.gmra.mrb[0].mxu0 %v2993
    %v3061 = vpop.f32.mrb[0].mxu0
    %v3062 = vadd.f32 0.0, %v3061
    %v3063 = vpop.f32.mrb[0].mxu0
    %3064 = vdwg.mxu0
    %v3065 = vsel %vm421, %v3062, 0.0
    %v3066 = vrot.slane %v3065, 4
    %v3067 = vadd.f32 %v3065, %v3066
    %v3068 = vrot.slane %v3067, 2
    %v3069 = vadd.f32 %v3067, %v3068
    %v3070 = vrot.slane %v3069, 1
    %v3071 = vadd.f32 %v3069, %v3070
    %v3072 = vsub.f32 %v2967, %v3071
    %v3073 = vsub.f32 %v2972, %v3071
    %v3074 = vsub.f32 %v2977, %v3071
    %v3075 = vsub.f32 %v2982, %v3071
    %v3076 = vmul.f32 %v3072, %v3072
    %v3077 = vmul.f32 %v3073, %v3073
    %v3078 = vmul.f32 %v3074, %v3074
    %v3079 = vmul.f32 %v3075, %v3075
    %v3080 = vsel %vm421, %v3076, 0.0
    %v3081 = vsel %vm421, %v3077, 0.0
    %v3082 = vadd.f32 %v3080, %v3081
    %v3083 = vsel %vm421, %v3078, 0.0
    %v3084 = vadd.f32 %v3082, %v3083
    %v3085 = vsel %vm421, %v3079, 0.0
    %v3086 = vadd.f32 %v3084, %v3085
    %v3088 = vsel %vm421, %v3086, 0
    %3090 = vmatprep.subr.mxu0 0.0
    %3091 = vmatpush1.msra.mxu0 %v261
    %3092 = vmatprep.subr.mxu0 0.0
    %3093 = vmatpush1.msra.mxu0 %v262
    %3094 = vmatprep.subr.mxu0 0.0
    %3095 = vmatpush1.msra.mxu0 %v263
    %3096 = vmatprep.subr.mxu0 0.0
    %3097 = vmatpush1.msra.mxu0 %v264
    %3098 = vmatprep.subr.mxu0 0.0
    %3099 = vmatpush1.msra.mxu0 %v265
    %3100 = vmatprep.subr.mxu0 0.0
    %3101 = vmatpush1.msra.mxu0 %v266
    %3102 = vmatprep.subr.mxu0 0.0
    %3103 = vmatpush1.msra.mxu0 %v267
    %3104 = vmatprep.subr.mxu0 0.0
    %3105 = vmatpush1.msra.mxu0 %v268
    %3106 = vmatprep.subr.mxu0 0.0
    %3107 = vmatpush1.msra.mxu0 0.0
    %3108 = vmatprep.subr.mxu0 0.0
    %3109 = vmatpush1.msra.mxu0 0.0
    %3110 = vmatprep.subr.mxu0 0.0
    %3111 = vmatpush1.msra.mxu0 0.0
    %3112 = vmatprep.subr.mxu0 0.0
    %3113 = vmatpush1.msra.mxu0 0.0
    %3114 = vmatprep.subr.mxu0 0.0
    %3115 = vmatpush1.msra.mxu0 0.0
    %3116 = vmatprep.subr.mxu0 0.0
    %3117 = vmatpush1.msra.mxu0 0.0
    %3118 = vmatprep.subr.mxu0 0.0
    %3119 = vmatpush1.msra.mxu0 0.0
    %3120 = vmatprep.subr.mxu0 0.0
    %3121 = vmatpush1.msra.mxu0 0.0
    %3122 = vmatprep.subr.mxu0 0.0
    %3123 = vmatpush1.msra.mxu0 0.0
    %3124 = vmatprep.subr.mxu0 0.0
    %3125 = vmatpush1.msra.mxu0 0.0
    %3126 = vmatprep.subr.mxu0 0.0
    %3127 = vmatpush1.msra.mxu0 0.0
    %3128 = vmatprep.subr.mxu0 0.0
    %3129 = vmatpush1.msra.mxu0 0.0
    %3130 = vmatprep.subr.mxu0 0.0
    %3131 = vmatpush1.msra.mxu0 0.0
    %3132 = vmatprep.subr.mxu0 0.0
    %3133 = vmatpush1.msra.mxu0 0.0
    %3134 = vmatprep.subr.mxu0 0.0
    %3135 = vmatpush1.msra.mxu0 0.0
    %3136 = vmatprep.subr.mxu0 0.0
    %3137 = vmatpush1.msra.mxu0 0.0
    %3138 = vmatprep.subr.mxu0 0.0
    %3139 = vmatpush1.msra.mxu0 0.0
    %3140 = vmatprep.subr.mxu0 0.0
    %3141 = vmatpush1.msra.mxu0 0.0
    %3142 = vmatprep.subr.mxu0 0.0
    %3143 = vmatpush1.msra.mxu0 0.0
    %3144 = vmatprep.subr.mxu0 0.0
    %3145 = vmatpush1.msra.mxu0 0.0
    %3146 = vmatprep.subr.mxu0 0.0
    %3147 = vmatpush1.msra.mxu0 0.0
    %3148 = vmatprep.subr.mxu0 0.0
    %3149 = vmatpush1.msra.mxu0 0.0
    %3150 = vmatprep.subr.mxu0 0.0
    %3151 = vmatpush1.msra.mxu0 0.0
    %3152 = vmatprep.subr.mxu0 0.0
    %3153 = vmatpush1.msra.mxu0 0.0
    %3154 = vmatprep.mubr.f32.mxu0 0.0
    %3155 = vmatmul.mubr.f32.gmra.mrb[0].mxu0 %v3088
    %v3156 = vpop.f32.mrb[0].mxu0
    %v3157 = vadd.f32 0.0, %v3156
    %v3158 = vpop.f32.mrb[0].mxu0
    %3159 = vdwg.mxu0
    %v3160 = vsel %vm421, %v3157, 0.0
    %v3161 = vrot.slane %v3160, 4
    %v3162 = vadd.f32 %v3160, %v3161
    %v3163 = vrot.slane %v3162, 2
    %v3164 = vadd.f32 %v3162, %v3163
    %v3165 = vrot.slane %v3164, 1
    %v3166 = vadd.f32 %v3164, %v3165
    %v3167 = vadd.f32 %v3166, 1e-05
    %v3168 = vrsqrt.pop %v3167
    %v3169 = vmul.f32 %v3072, %v3168
    %v3170 = vmul.f32 %v3073, %v3168
    %v3171 = vmul.f32 %v3074, %v3168
    %v3172 = vmul.f32 %v3075, %v3168
    %v3173 = vmax.f32 %v3169, 0.0
    %v3174 = vmax.f32 %v3170, 0.0
    %v3175 = vmax.f32 %v3171, 0.0
    %v3176 = vmax.f32 %v3172, 0.0
    %3181 = vrot.lane.b32.xlu0 %v3173, 8
    %v3182 = vpop.permute.xlu0 %3181
    %3183 = vrot.lane.b32.xlu0 %v3174, 8
    %v3184 = vpop.permute.xlu0 %3183
    %3185 = vrot.lane.b32.xlu0 %v3175, 8
    %v3186 = vpop.permute.xlu0 %3185
    %3187 = vrot.lane.b32.xlu0 %v3176, 8
    %v3188 = vpop.permute.xlu0 %3187
    %3193 = vst.msk [vmem:[#allocation2 + $0x2] sm:$0xff] %vm285, %v3182
    %3194 = vst.msk [vmem:[#allocation2 + $0xa] sm:$0xff] %vm285, %v3184
    %3195 = vst.msk [vmem:[#allocation2 + $0x1a] sm:$0xff] %vm285, %v3186
    %3196 = vst.msk [vmem:[#allocation2 + $0x22] sm:$0xff] %vm285, %v3188
    %v3197 = vld [vmem:[#allocation15] sm:$0xff]
    %v3198 = vld [vmem:[#allocation15 + $0x8] sm:$0x1]
    %v3199 = vld [vmem:[#allocation2 + $0x1] sm:$0xff]
    %v3200 = vld [vmem:[#allocation2 + $0x9] sm:$0xff]
    %v3201 = vld [vmem:[#allocation2 + $0x19] sm:$0xff]
    %v3202 = vld [vmem:[#allocation2 + $0x21] sm:$0xff]
    %v3203 = vlaneseq
    %v3204 = vshrl.u32 %v3203, 7
    %v3205 = vsub.s32 0, %v3204
    %v3206 = vrot.slane %v3197, %v3205
    %3208 = vrot.lane.b32.xlu0 %v3206, 4
    %v3209 = vpop.permute.xlu0 %3208
    %v3211 = vmul.f32 %v3199, %v3209
    %v3212 = vmul.f32 %v3200, %v3209
    %v3213 = vmul.f32 %v3201, %v3209
    %v3214 = vmul.f32 %v3202, %v3209
    %v3215 = vlaneseq
    %v3216 = vshrl.u32 %v3215, 7
    %v3217 = vsub.s32 1, %v3216
    %v3218 = vrot.slane %v3197, %v3217
    %3220 = vrot.lane.b32.xlu0 %v3218, 8
    %v3221 = vpop.permute.xlu0 %3220
    %v3223 = vmul.f32 %v3199, %v3221
    %v3224 = vmul.f32 %v3200, %v3221
    %v3225 = vmul.f32 %v3201, %v3221
    %v3226 = vmul.f32 %v3202, %v3221
    %3231 = vrot.lane.b32.xlu0 %v3223, 124
    %v3232 = vpop.permute.xlu0 %3231
    %3233 = vrot.lane.b32.xlu0 %v3224, 124
    %v3234 = vpop.permute.xlu0 %3233
    %3235 = vrot.lane.b32.xlu0 %v3225, 124
    %v3236 = vpop.permute.xlu0 %3235
    %3237 = vrot.lane.b32.xlu0 %v3226, 124
    %v3238 = vpop.permute.xlu0 %3237
    %v3243 = vadd.f32 %v3211, %v3232
    %v3244 = vadd.f32 %v3212, %v3234
    %v3245 = vadd.f32 %v3213, %v3236
    %v3246 = vadd.f32 %v3214, %v3238
    %v3247 = vlaneseq
    %v3248 = vshrl.u32 %v3247, 7
    %v3249 = vsub.s32 2, %v3248
    %v3250 = vrot.slane %v3197, %v3249
    %3252 = vrot.lane.b32.xlu0 %v3250, 12
    %v3253 = vpop.permute.xlu0 %3252
    %v3255 = vmul.f32 %v3199, %v3253
    %v3256 = vmul.f32 %v3200, %v3253
    %v3257 = vmul.f32 %v3201, %v3253
    %v3258 = vmul.f32 %v3202, %v3253
    %3263 = vrot.lane.b32.xlu0 %v3255, 120
    %v3264 = vpop.permute.xlu0 %3263
    %3265 = vrot.lane.b32.xlu0 %v3256, 120
    %v3266 = vpop.permute.xlu0 %3265
    %3267 = vrot.lane.b32.xlu0 %v3257, 120
    %v3268 = vpop.permute.xlu0 %3267
    %3269 = vrot.lane.b32.xlu0 %v3258, 120
    %v3270 = vpop.permute.xlu0 %3269
    %v3275 = vadd.f32 %v3243, %v3264
    %v3276 = vadd.f32 %v3244, %v3266
    %v3277 = vadd.f32 %v3245, %v3268
    %v3278 = vadd.f32 %v3246, %v3270
    %v3279 = vld [vmem:[#allocation2 + $0x2] sm:$0xff]
    %v3280 = vld [vmem:[#allocation2 + $0xa] sm:$0xff]
    %v3281 = vld [vmem:[#allocation2 + $0x1a] sm:$0xff]
    %v3282 = vld [vmem:[#allocation2 + $0x22] sm:$0xff]
    %v3283 = vlaneseq
    %v3284 = vshrl.u32 %v3283, 7
    %v3285 = vsub.s32 3, %v3284
    %v3286 = vrot.slane %v3197, %v3285
    %3288 = vrot.lane.b32.xlu0 %v3286, 4
    %v3289 = vpop.permute.xlu0 %3288
    %v3291 = vmul.f32 %v3279, %v3289
    %v3292 = vmul.f32 %v3280, %v3289
    %v3293 = vmul.f32 %v3281, %v3289
    %v3294 = vmul.f32 %v3282, %v3289
    %v3295 = vadd.f32 %v3275, %v3291
    %v3296 = vadd.f32 %v3276, %v3292
    %v3297 = vadd.f32 %v3277, %v3293
    %v3298 = vadd.f32 %v3278, %v3294
    %v3299 = vlaneseq
    %v3300 = vshrl.u32 %v3299, 7
    %v3301 = vsub.s32 4, %v3300
    %v3302 = vrot.slane %v3197, %v3301
    %3304 = vrot.lane.b32.xlu0 %v3302, 8
    %v3305 = vpop.permute.xlu0 %3304
    %v3307 = vmul.f32 %v3279, %v3305
    %v3308 = vmul.f32 %v3280, %v3305
    %v3309 = vmul.f32 %v3281, %v3305
    %v3310 = vmul.f32 %v3282, %v3305
    %3315 = vrot.lane.b32.xlu0 %v3307, 124
    %v3316 = vpop.permute.xlu0 %3315
    %3317 = vrot.lane.b32.xlu0 %v3308, 124
    %v3318 = vpop.permute.xlu0 %3317
    %3319 = vrot.lane.b32.xlu0 %v3309, 124
    %v3320 = vpop.permute.xlu0 %3319
    %3321 = vrot.lane.b32.xlu0 %v3310, 124
    %v3322 = vpop.permute.xlu0 %3321
    %v3327 = vadd.f32 %v3295, %v3316
    %v3328 = vadd.f32 %v3296, %v3318
    %v3329 = vadd.f32 %v3297, %v3320
    %v3330 = vadd.f32 %v3298, %v3322
    %v3331 = vlaneseq
    %v3332 = vshrl.u32 %v3331, 7
    %v3333 = vsub.s32 5, %v3332
    %v3334 = vrot.slane %v3197, %v3333
    %3336 = vrot.lane.b32.xlu0 %v3334, 12
    %v3337 = vpop.permute.xlu0 %3336
    %v3339 = vmul.f32 %v3279, %v3337
    %v3340 = vmul.f32 %v3280, %v3337
    %v3341 = vmul.f32 %v3281, %v3337
    %v3342 = vmul.f32 %v3282, %v3337
    %3347 = vrot.lane.b32.xlu0 %v3339, 120
    %v3348 = vpop.permute.xlu0 %3347
    %3349 = vrot.lane.b32.xlu0 %v3340, 120
    %v3350 = vpop.permute.xlu0 %3349
    %3351 = vrot.lane.b32.xlu0 %v3341, 120
    %v3352 = vpop.permute.xlu0 %3351
    %3353 = vrot.lane.b32.xlu0 %v3342, 120
    %v3354 = vpop.permute.xlu0 %3353
    %v3359 = vadd.f32 %v3327, %v3348
    %v3360 = vadd.f32 %v3328, %v3350
    %v3361 = vadd.f32 %v3329, %v3352
    %v3362 = vadd.f32 %v3330, %v3354
    %v3363 = vld [vmem:[#allocation2 + $0x3] sm:$0xff]
    %v3364 = vld [vmem:[#allocation2 + $0xb] sm:$0xff]
    %v3365 = vld [vmem:[#allocation2 + $0x1b] sm:$0xff]
    %v3366 = vld [vmem:[#allocation2 + $0x23] sm:$0xff]
    %v3367 = vlaneseq
    %v3368 = vshrl.u32 %v3367, 7
    %v3369 = vsub.s32 6, %v3368
    %v3370 = vrot.slane %v3197, %v3369
    %3372 = vrot.lane.b32.xlu0 %v3370, 4
    %v3373 = vpop.permute.xlu0 %3372
    %v3375 = vmul.f32 %v3363, %v3373
    %v3376 = vmul.f32 %v3364, %v3373
    %v3377 = vmul.f32 %v3365, %v3373
    %v3378 = vmul.f32 %v3366, %v3373
    %v3379 = vadd.f32 %v3359, %v3375
    %v3380 = vadd.f32 %v3360, %v3376
    %v3381 = vadd.f32 %v3361, %v3377
    %v3382 = vadd.f32 %v3362, %v3378
    %v3383 = vlaneseq
    %v3384 = vshrl.u32 %v3383, 7
    %v3385 = vsub.s32 7, %v3384
    %v3386 = vrot.slane %v3197, %v3385
    %3388 = vrot.lane.b32.xlu0 %v3386, 8
    %v3389 = vpop.permute.xlu0 %3388
    %v3391 = vmul.f32 %v3363, %v3389
    %v3392 = vmul.f32 %v3364, %v3389
    %v3393 = vmul.f32 %v3365, %v3389
    %v3394 = vmul.f32 %v3366, %v3389
    %3399 = vrot.lane.b32.xlu0 %v3391, 124
    %v3400 = vpop.permute.xlu0 %3399
    %3401 = vrot.lane.b32.xlu0 %v3392, 124
    %v3402 = vpop.permute.xlu0 %3401
    %3403 = vrot.lane.b32.xlu0 %v3393, 124
    %v3404 = vpop.permute.xlu0 %3403
    %3405 = vrot.lane.b32.xlu0 %v3394, 124
    %v3406 = vpop.permute.xlu0 %3405
    %v3411 = vadd.f32 %v3379, %v3400
    %v3412 = vadd.f32 %v3380, %v3402
    %v3413 = vadd.f32 %v3381, %v3404
    %v3414 = vadd.f32 %v3382, %v3406
    %v3415 = vlaneseq
    %v3416 = vshrl.u32 %v3415, 7
    %v3417 = vsub.s32 0, %v3416
    %v3418 = vrot.slane %v3198, %v3417
    %3420 = vrot.lane.b32.xlu0 %v3418, 12
    %v3421 = vpop.permute.xlu0 %3420
    %v3423 = vmul.f32 %v3363, %v3421
    %v3424 = vmul.f32 %v3364, %v3421
    %v3425 = vmul.f32 %v3365, %v3421
    %v3426 = vmul.f32 %v3366, %v3421
    %3431 = vrot.lane.b32.xlu0 %v3423, 120
    %v3432 = vpop.permute.xlu0 %3431
    %3433 = vrot.lane.b32.xlu0 %v3424, 120
    %v3434 = vpop.permute.xlu0 %3433
    %3435 = vrot.lane.b32.xlu0 %v3425, 120
    %v3436 = vpop.permute.xlu0 %3435
    %3437 = vrot.lane.b32.xlu0 %v3426, 120
    %v3438 = vpop.permute.xlu0 %3437
    %v3443 = vadd.f32 %v3411, %v3432
    %v3444 = vadd.f32 %v3412, %v3434
    %v3445 = vadd.f32 %v3413, %v3436
    %v3446 = vadd.f32 %v3414, %v3438
    %v3447 = vld [vmem:[#allocation17] sm:$0xff]
    %v3448 = vld [vmem:[#allocation17 + $0x8] sm:$0xff]
    %v3449 = vld [vmem:[#allocation17 + $0x10] sm:$0xff]
    %v3450 = vld [vmem:[#allocation17 + $0x18] sm:$0xff]
    %v3451 = vld [vmem:[#allocation17 + $0x20] sm:$0xff]
    %v3452 = vld [vmem:[#allocation17 + $0x28] sm:$0xff]
    %v3453 = vld [vmem:[#allocation17 + $0x30] sm:$0xff]
    %v3454 = vld [vmem:[#allocation17 + $0x38] sm:$0xff]
    %3459 = vrot.lane.b32.xlu0 %v3443, 124
    %v3460 = vpop.permute.xlu0 %3459
    %3461 = vrot.lane.b32.xlu0 %v3444, 124
    %v3462 = vpop.permute.xlu0 %3461
    %3463 = vrot.lane.b32.xlu0 %v3445, 124
    %v3464 = vpop.permute.xlu0 %3463
    %3465 = vrot.lane.b32.xlu0 %v3446, 124
    %v3466 = vpop.permute.xlu0 %3465
    %v3467 = vsel %vm421, %v3460, 0
    %v3469 = vsel %vm421, %v3462, 0
    %v3471 = vsel %vm421, %v3464, 0
    %v3473 = vsel %vm421, %v3466, 0
    %3475 = vmatprep.subr.mxu0 0.0
    %3476 = vmatpush1.msra.mxu0 %v3447
    %3477 = vmatprep.subr.mxu0 0.0
    %3478 = vmatpush1.msra.mxu0 %v3448
    %3479 = vmatprep.subr.mxu0 0.0
    %3480 = vmatpush1.msra.mxu0 %v3449
    %3481 = vmatprep.subr.mxu0 0.0
    %3482 = vmatpush1.msra.mxu0 %v3450
    %3483 = vmatprep.subr.mxu0 0.0
    %3484 = vmatpush1.msra.mxu0 %v3451
    %3485 = vmatprep.subr.mxu0 0.0
    %3486 = vmatpush1.msra.mxu0 %v3452
    %3487 = vmatprep.subr.mxu0 0.0
    %3488 = vmatpush1.msra.mxu0 %v3453
    %3489 = vmatprep.subr.mxu0 0.0
    %3490 = vmatpush1.msra.mxu0 %v3454
    %3491 = vmatprep.subr.mxu0 0.0
    %3492 = vmatpush1.msra.mxu0 0.0
    %3493 = vmatprep.subr.mxu0 0.0
    %3494 = vmatpush1.msra.mxu0 0.0
    %3495 = vmatprep.subr.mxu0 0.0
    %3496 = vmatpush1.msra.mxu0 0.0
    %3497 = vmatprep.subr.mxu0 0.0
    %3498 = vmatpush1.msra.mxu0 0.0
    %3499 = vmatprep.subr.mxu0 0.0
    %3500 = vmatpush1.msra.mxu0 0.0
    %3501 = vmatprep.subr.mxu0 0.0
    %3502 = vmatpush1.msra.mxu0 0.0
    %3503 = vmatprep.subr.mxu0 0.0
    %3504 = vmatpush1.msra.mxu0 0.0
    %3505 = vmatprep.subr.mxu0 0.0
    %3506 = vmatpush1.msra.mxu0 0.0
    %3507 = vmatprep.subr.mxu0 0.0
    %3508 = vmatpush1.msra.mxu0 0.0
    %3509 = vmatprep.subr.mxu0 0.0
    %3510 = vmatpush1.msra.mxu0 0.0
    %3511 = vmatprep.subr.mxu0 0.0
    %3512 = vmatpush1.msra.mxu0 0.0
    %3513 = vmatprep.subr.mxu0 0.0
    %3514 = vmatpush1.msra.mxu0 0.0
    %3515 = vmatprep.subr.mxu0 0.0
    %3516 = vmatpush1.msra.mxu0 0.0
    %3517 = vmatprep.subr.mxu0 0.0
    %3518 = vmatpush1.msra.mxu0 0.0
    %3519 = vmatprep.subr.mxu0 0.0
    %3520 = vmatpush1.msra.mxu0 0.0
    %3521 = vmatprep.subr.mxu0 0.0
    %3522 = vmatpush1.msra.mxu0 0.0
    %3523 = vmatprep.subr.mxu0 0.0
    %3524 = vmatpush1.msra.mxu0 0.0
    %3525 = vmatprep.subr.mxu0 0.0
    %3526 = vmatpush1.msra.mxu0 0.0
    %3527 = vmatprep.subr.mxu0 0.0
    %3528 = vmatpush1.msra.mxu0 0.0
    %3529 = vmatprep.subr.mxu0 0.0
    %3530 = vmatpush1.msra.mxu0 0.0
    %3531 = vmatprep.subr.mxu0 0.0
    %3532 = vmatpush1.msra.mxu0 0.0
    %3533 = vmatprep.subr.mxu0 0.0
    %3534 = vmatpush1.msra.mxu0 0.0
    %3535 = vmatprep.subr.mxu0 0.0
    %3536 = vmatpush1.msra.mxu0 0.0
    %3537 = vmatprep.subr.mxu0 0.0
    %3538 = vmatpush1.msra.mxu0 0.0
    %3539 = vmatprep.mubr.f32.mxu0 0.0
    %3540 = vmatmul.mubr.f32.gmra.mrb[0].mxu0 %v3467
    %v3541 = vpop.f32.mrb[0].mxu0
    %v3542 = vadd.f32 0.0, %v3541
    %v3543 = vpop.f32.mrb[0].mxu0
    %3544 = vmatprep.mubr.f32.mxu0 0.0
    %3545 = vmatmul.mubr.f32.gmra.mrb[0].mxu0 %v3469
    %v3546 = vpop.f32.mrb[0].mxu0
    %v3547 = vadd.f32 0.0, %v3546
    %v3548 = vpop.f32.mrb[0].mxu0
    %3549 = vmatprep.mubr.f32.mxu0 0.0
    %3550 = vmatmul.mubr.f32.gmra.mrb[0].mxu0 %v3471
    %v3551 = vpop.f32.mrb[0].mxu0
    %v3552 = vadd.f32 0.0, %v3551
    %v3553 = vpop.f32.mrb[0].mxu0
    %3554 = vmatprep.mubr.f32.mxu0 0.0
    %3555 = vmatmul.mubr.f32.gmra.mrb[0].mxu0 %v3473
    %v3556 = vpop.f32.mrb[0].mxu0
    %v3557 = vadd.f32 0.0, %v3556
    %v3558 = vpop.f32.mrb[0].mxu0
    %3559 = vdwg.mxu0
    %v3560 = vsel %vm421, %v3542, 0.0
    %v3561 = vsel %vm421, %v3547, 0.0
    %v3562 = vadd.f32 %v3560, %v3561
    %v3563 = vsel %vm421, %v3552, 0.0
    %v3564 = vadd.f32 %v3562, %v3563
    %v3565 = vsel %vm421, %v3557, 0.0
    %v3566 = vadd.f32 %v3564, %v3565
    %v3568 = vsel %vm421, %v3566, 0
    %3570 = vmatprep.subr.mxu0 0.0
    %3571 = vmatpush1.msra.mxu0 %v261
    %3572 = vmatprep.subr.mxu0 0.0
    %3573 = vmatpush1.msra.mxu0 %v262
    %3574 = vmatprep.subr.mxu0 0.0
    %3575 = vmatpush1.msra.mxu0 %v263
    %3576 = vmatprep.subr.mxu0 0.0
    %3577 = vmatpush1.msra.mxu0 %v264
    %3578 = vmatprep.subr.mxu0 0.0
    %3579 = vmatpush1.msra.mxu0 %v265
    %3580 = vmatprep.subr.mxu0 0.0
    %3581 = vmatpush1.msra.mxu0 %v266
    %3582 = vmatprep.subr.mxu0 0.0
    %3583 = vmatpush1.msra.mxu0 %v267
    %3584 = vmatprep.subr.mxu0 0.0
    %3585 = vmatpush1.msra.mxu0 %v268
    %3586 = vmatprep.subr.mxu0 0.0
    %3587 = vmatpush1.msra.mxu0 0.0
    %3588 = vmatprep.subr.mxu0 0.0
    %3589 = vmatpush1.msra.mxu0 0.0
    %3590 = vmatprep.subr.mxu0 0.0
    %3591 = vmatpush1.msra.mxu0 0.0
    %3592 = vmatprep.subr.mxu0 0.0
    %3593 = vmatpush1.msra.mxu0 0.0
    %3594 = vmatprep.subr.mxu0 0.0
    %3595 = vmatpush1.msra.mxu0 0.0
    %3596 = vmatprep.subr.mxu0 0.0
    %3597 = vmatpush1.msra.mxu0 0.0
    %3598 = vmatprep.subr.mxu0 0.0
    %3599 = vmatpush1.msra.mxu0 0.0
    %3600 = vmatprep.subr.mxu0 0.0
    %3601 = vmatpush1.msra.mxu0 0.0
    %3602 = vmatprep.subr.mxu0 0.0
    %3603 = vmatpush1.msra.mxu0 0.0
    %3604 = vmatprep.subr.mxu0 0.0
    %3605 = vmatpush1.msra.mxu0 0.0
    %3606 = vmatprep.subr.mxu0 0.0
    %3607 = vmatpush1.msra.mxu0 0.0
    %3608 = vmatprep.subr.mxu0 0.0
    %3609 = vmatpush1.msra.mxu0 0.0
    %3610 = vmatprep.subr.mxu0 0.0
    %3611 = vmatpush1.msra.mxu0 0.0
    %3612 = vmatprep.subr.mxu0 0.0
    %3613 = vmatpush1.msra.mxu0 0.0
    %3614 = vmatprep.subr.mxu0 0.0
    %3615 = vmatpush1.msra.mxu0 0.0
    %3616 = vmatprep.subr.mxu0 0.0
    %3617 = vmatpush1.msra.mxu0 0.0
    %3618 = vmatprep.subr.mxu0 0.0
    %3619 = vmatpush1.msra.mxu0 0.0
    %3620 = vmatprep.subr.mxu0 0.0
    %3621 = vmatpush1.msra.mxu0 0.0
    %3622 = vmatprep.subr.mxu0 0.0
    %3623 = vmatpush1.msra.mxu0 0.0
    %3624 = vmatprep.subr.mxu0 0.0
    %3625 = vmatpush1.msra.mxu0 0.0
    %3626 = vmatprep.subr.mxu0 0.0
    %3627 = vmatpush1.msra.mxu0 0.0
    %3628 = vmatprep.subr.mxu0 0.0
    %3629 = vmatpush1.msra.mxu0 0.0
    %3630 = vmatprep.subr.mxu0 0.0
    %3631 = vmatpush1.msra.mxu0 0.0
    %3632 = vmatprep.subr.mxu0 0.0
    %3633 = vmatpush1.msra.mxu0 0.0
    %3634 = vmatprep.mubr.f32.mxu0 0.0
    %3635 = vmatmul.mubr.f32.gmra.mrb[0].mxu0 %v3568
    %v3636 = vpop.f32.mrb[0].mxu0
    %v3637 = vadd.f32 0.0, %v3636
    %v3638 = vpop.f32.mrb[0].mxu0
    %3639 = vdwg.mxu0
    %v3640 = vsel %vm421, %v3637, 0.0
    %v3641 = vrot.slane %v3640, 4
    %v3642 = vadd.f32 %v3640, %v3641
    %v3643 = vrot.slane %v3642, 2
    %v3644 = vadd.f32 %v3642, %v3643
    %v3645 = vrot.slane %v3644, 1
    %v3646 = vadd.f32 %v3644, %v3645
    %v3647 = vsub.f32 %v3542, %v3646
    %v3648 = vsub.f32 %v3547, %v3646
    %v3649 = vsub.f32 %v3552, %v3646
    %v3650 = vsub.f32 %v3557, %v3646
    %v3651 = vmul.f32 %v3647, %v3647
    %v3652 = vmul.f32 %v3648, %v3648
    %v3653 = vmul.f32 %v3649, %v3649
    %v3654 = vmul.f32 %v3650, %v3650
    %v3655 = vsel %vm421, %v3651, 0.0
    %v3656 = vsel %vm421, %v3652, 0.0
    %v3657 = vadd.f32 %v3655, %v3656
    %v3658 = vsel %vm421, %v3653, 0.0
    %v3659 = vadd.f32 %v3657, %v3658
    %v3660 = vsel %vm421, %v3654, 0.0
    %v3661 = vadd.f32 %v3659, %v3660
    %v3663 = vsel %vm421, %v3661, 0
    %3665 = vmatprep.subr.mxu0 0.0
    %3666 = vmatpush1.msra.mxu0 %v261
    %3667 = vmatprep.subr.mxu0 0.0
    %3668 = vmatpush1.msra.mxu0 %v262
    %3669 = vmatprep.subr.mxu0 0.0
    %3670 = vmatpush1.msra.mxu0 %v263
    %3671 = vmatprep.subr.mxu0 0.0
    %3672 = vmatpush1.msra.mxu0 %v264
    %3673 = vmatprep.subr.mxu0 0.0
    %3674 = vmatpush1.msra.mxu0 %v265
    %3675 = vmatprep.subr.mxu0 0.0
    %3676 = vmatpush1.msra.mxu0 %v266
    %3677 = vmatprep.subr.mxu0 0.0
    %3678 = vmatpush1.msra.mxu0 %v267
    %3679 = vmatprep.subr.mxu0 0.0
    %3680 = vmatpush1.msra.mxu0 %v268
    %3681 = vmatprep.subr.mxu0 0.0
    %3682 = vmatpush1.msra.mxu0 0.0
    %3683 = vmatprep.subr.mxu0 0.0
    %3684 = vmatpush1.msra.mxu0 0.0
    %3685 = vmatprep.subr.mxu0 0.0
    %3686 = vmatpush1.msra.mxu0 0.0
    %3687 = vmatprep.subr.mxu0 0.0
    %3688 = vmatpush1.msra.mxu0 0.0
    %3689 = vmatprep.subr.mxu0 0.0
    %3690 = vmatpush1.msra.mxu0 0.0
    %3691 = vmatprep.subr.mxu0 0.0
    %3692 = vmatpush1.msra.mxu0 0.0
    %3693 = vmatprep.subr.mxu0 0.0
    %3694 = vmatpush1.msra.mxu0 0.0
    %3695 = vmatprep.subr.mxu0 0.0
    %3696 = vmatpush1.msra.mxu0 0.0
    %3697 = vmatprep.subr.mxu0 0.0
    %3698 = vmatpush1.msra.mxu0 0.0
    %3699 = vmatprep.subr.mxu0 0.0
    %3700 = vmatpush1.msra.mxu0 0.0
    %3701 = vmatprep.subr.mxu0 0.0
    %3702 = vmatpush1.msra.mxu0 0.0
    %3703 = vmatprep.subr.mxu0 0.0
    %3704 = vmatpush1.msra.mxu0 0.0
    %3705 = vmatprep.subr.mxu0 0.0
    %3706 = vmatpush1.msra.mxu0 0.0
    %3707 = vmatprep.subr.mxu0 0.0
    %3708 = vmatpush1.msra.mxu0 0.0
    %3709 = vmatprep.subr.mxu0 0.0
    %3710 = vmatpush1.msra.mxu0 0.0
    %3711 = vmatprep.subr.mxu0 0.0
    %3712 = vmatpush1.msra.mxu0 0.0
    %3713 = vmatprep.subr.mxu0 0.0
    %3714 = vmatpush1.msra.mxu0 0.0
    %3715 = vmatprep.subr.mxu0 0.0
    %3716 = vmatpush1.msra.mxu0 0.0
    %3717 = vmatprep.subr.mxu0 0.0
    %3718 = vmatpush1.msra.mxu0 0.0
    %3719 = vmatprep.subr.mxu0 0.0
    %3720 = vmatpush1.msra.mxu0 0.0
    %3721 = vmatprep.subr.mxu0 0.0
    %3722 = vmatpush1.msra.mxu0 0.0
    %3723 = vmatprep.subr.mxu0 0.0
    %3724 = vmatpush1.msra.mxu0 0.0
    %3725 = vmatprep.subr.mxu0 0.0
    %3726 = vmatpush1.msra.mxu0 0.0
    %3727 = vmatprep.subr.mxu0 0.0
    %3728 = vmatpush1.msra.mxu0 0.0
    %3729 = vmatprep.mubr.f32.mxu0 0.0
    %3730 = vmatmul.mubr.f32.gmra.mrb[0].mxu0 %v3663
    %v3731 = vpop.f32.mrb[0].mxu0
    %v3732 = vadd.f32 0.0, %v3731
    %v3733 = vpop.f32.mrb[0].mxu0
    %3734 = vdwg.mxu0
    %v3735 = vsel %vm421, %v3732, 0.0
    %v3736 = vrot.slane %v3735, 4
    %v3737 = vadd.f32 %v3735, %v3736
    %v3738 = vrot.slane %v3737, 2
    %v3739 = vadd.f32 %v3737, %v3738
    %v3740 = vrot.slane %v3739, 1
    %v3741 = vadd.f32 %v3739, %v3740
    %v3742 = vadd.f32 %v3741, 1e-05
    %v3743 = vrsqrt.pop %v3742
    %v3744 = vmul.f32 %v3647, %v3743
    %v3745 = vmul.f32 %v3648, %v3743
    %v3746 = vmul.f32 %v3649, %v3743
    %v3747 = vmul.f32 %v3650, %v3743
    %s3748 = sld [smem:[#allocation8 + $0x4]]
    %v3749 = vstv %s3748
    %v3750 = vmul.f32 %v3749, %v3744
    %v3751 = vmul.f32 %v3749, %v3745
    %v3752 = vmul.f32 %v3749, %v3746
    %v3753 = vmul.f32 %v3749, %v3747
    %3758 = vrot.lane.b32.xlu0 %v3750, 4
    %v3759 = vpop.permute.xlu0 %3758
    %3760 = vrot.lane.b32.xlu0 %v3751, 4
    %v3761 = vpop.permute.xlu0 %3760
    %3762 = vrot.lane.b32.xlu0 %v3752, 4
    %v3763 = vpop.permute.xlu0 %3762
    %3764 = vrot.lane.b32.xlu0 %v3753, 4
    %v3765 = vpop.permute.xlu0 %3764
    %v3770 = vadd.f32 %v2622, %v3759
    %v3771 = vadd.f32 %v2623, %v3761
    %v3772 = vadd.f32 %v2624, %v3763
    %v3773 = vadd.f32 %v2625, %v3765
    %v3774 = vld [vmem:[#allocation18] sm:$0xff]
    %v3775 = vld [vmem:[#allocation18 + $0x8] sm:$0xff]
    %v3776 = vld [vmem:[#allocation18 + $0x10] sm:$0xff]
    %v3777 = vld [vmem:[#allocation18 + $0x18] sm:$0x1]
    %v3778 = vld [vmem:[#allocation3 + $0x2] sm:$0xff]
    %v3779 = vld [vmem:[#allocation3 + $0xa] sm:$0xff]
    %v3780 = vld [vmem:[#allocation3 + $0x1a] sm:$0xff]
    %v3781 = vld [vmem:[#allocation3 + $0x22] sm:$0xff]
    %v3782 = vlaneseq
    %v3783 = vshrl.u32 %v3782, 7
    %v3784 = vsub.s32 0, %v3783
    %v3785 = vrot.slane %v3774, %v3784
    %3787 = vrot.lane.b32.xlu0 %v3785, 8
    %v3788 = vpop.permute.xlu0 %3787
    %v3790 = vmul.f32 %v3778, %v3788
    %v3791 = vmul.f32 %v3779, %v3788
    %v3792 = vmul.f32 %v3780, %v3788
    %v3793 = vmul.f32 %v3781, %v3788
    %v3794 = vlaneseq
    %v3795 = vshrl.u32 %v3794, 7
    %v3796 = vsub.s32 1, %v3795
    %v3797 = vrot.slane %v3774, %v3796
    %3799 = vrot.lane.b32.xlu0 %v3797, 12
    %v3800 = vpop.permute.xlu0 %3799
    %v3802 = vmul.f32 %v3778, %v3800
    %v3803 = vmul.f32 %v3779, %v3800
    %v3804 = vmul.f32 %v3780, %v3800
    %v3805 = vmul.f32 %v3781, %v3800
    %3810 = vrot.lane.b32.xlu0 %v3802, 124
    %v3811 = vpop.permute.xlu0 %3810
    %3812 = vrot.lane.b32.xlu0 %v3803, 124
    %v3813 = vpop.permute.xlu0 %3812
    %3814 = vrot.lane.b32.xlu0 %v3804, 124
    %v3815 = vpop.permute.xlu0 %3814
    %3816 = vrot.lane.b32.xlu0 %v3805, 124
    %v3817 = vpop.permute.xlu0 %3816
    %v3822 = vadd.f32 %v3790, %v3811
    %v3823 = vadd.f32 %v3791, %v3813
    %v3824 = vadd.f32 %v3792, %v3815
    %v3825 = vadd.f32 %v3793, %v3817
    %v3826 = vlaneseq
    %v3827 = vshrl.u32 %v3826, 7
    %v3828 = vsub.s32 2, %v3827
    %v3829 = vrot.slane %v3774, %v3828
    %3831 = vrot.lane.b32.xlu0 %v3829, 16
    %v3832 = vpop.permute.xlu0 %3831
    %v3834 = vmul.f32 %v3778, %v3832
    %v3835 = vmul.f32 %v3779, %v3832
    %v3836 = vmul.f32 %v3780, %v3832
    %v3837 = vmul.f32 %v3781, %v3832
    %3842 = vrot.lane.b32.xlu0 %v3834, 120
    %v3843 = vpop.permute.xlu0 %3842
    %3844 = vrot.lane.b32.xlu0 %v3835, 120
    %v3845 = vpop.permute.xlu0 %3844
    %3846 = vrot.lane.b32.xlu0 %v3836, 120
    %v3847 = vpop.permute.xlu0 %3846
    %3848 = vrot.lane.b32.xlu0 %v3837, 120
    %v3849 = vpop.permute.xlu0 %3848
    %v3854 = vadd.f32 %v3822, %v3843
    %v3855 = vadd.f32 %v3823, %v3845
    %v3856 = vadd.f32 %v3824, %v3847
    %v3857 = vadd.f32 %v3825, %v3849
    %v3858 = vlaneseq
    %v3859 = vshrl.u32 %v3858, 7
    %v3860 = vsub.s32 3, %v3859
    %v3861 = vrot.slane %v3774, %v3860
    %3863 = vrot.lane.b32.xlu0 %v3861, 20
    %v3864 = vpop.permute.xlu0 %3863
    %v3866 = vmul.f32 %v3778, %v3864
    %v3867 = vmul.f32 %v3779, %v3864
    %v3868 = vmul.f32 %v3780, %v3864
    %v3869 = vmul.f32 %v3781, %v3864
    %3874 = vrot.lane.b32.xlu0 %v3866, 116
    %v3875 = vpop.permute.xlu0 %3874
    %3876 = vrot.lane.b32.xlu0 %v3867, 116
    %v3877 = vpop.permute.xlu0 %3876
    %3878 = vrot.lane.b32.xlu0 %v3868, 116
    %v3879 = vpop.permute.xlu0 %3878
    %3880 = vrot.lane.b32.xlu0 %v3869, 116
    %v3881 = vpop.permute.xlu0 %3880
    %v3886 = vadd.f32 %v3854, %v3875
    %v3887 = vadd.f32 %v3855, %v3877
    %v3888 = vadd.f32 %v3856, %v3879
    %v3889 = vadd.f32 %v3857, %v3881
    %v3890 = vlaneseq
    %v3891 = vshrl.u32 %v3890, 7
    %v3892 = vsub.s32 4, %v3891
    %v3893 = vrot.slane %v3774, %v3892
    %3895 = vrot.lane.b32.xlu0 %v3893, 24
    %v3896 = vpop.permute.xlu0 %3895
    %v3898 = vmul.f32 %v3778, %v3896
    %v3899 = vmul.f32 %v3779, %v3896
    %v3900 = vmul.f32 %v3780, %v3896
    %v3901 = vmul.f32 %v3781, %v3896
    %3906 = vrot.lane.b32.xlu0 %v3898, 112
    %v3907 = vpop.permute.xlu0 %3906
    %3908 = vrot.lane.b32.xlu0 %v3899, 112
    %v3909 = vpop.permute.xlu0 %3908
    %3910 = vrot.lane.b32.xlu0 %v3900, 112
    %v3911 = vpop.permute.xlu0 %3910
    %3912 = vrot.lane.b32.xlu0 %v3901, 112
    %v3913 = vpop.permute.xlu0 %3912
    %v3918 = vadd.f32 %v3886, %v3907
    %v3919 = vadd.f32 %v3887, %v3909
    %v3920 = vadd.f32 %v3888, %v3911
    %v3921 = vadd.f32 %v3889, %v3913
    %v3922 = vld [vmem:[#allocation3 + $0x3] sm:$0xff]
    %v3923 = vld [vmem:[#allocation3 + $0xb] sm:$0xff]
    %v3924 = vld [vmem:[#allocation3 + $0x1b] sm:$0xff]
    %v3925 = vld [vmem:[#allocation3 + $0x23] sm:$0xff]
    %v3926 = vlaneseq
    %v3927 = vshrl.u32 %v3926, 7
    %v3928 = vsub.s32 5, %v3927
    %v3929 = vrot.slane %v3774, %v3928
    %3931 = vrot.lane.b32.xlu0 %v3929, 8
    %v3932 = vpop.permute.xlu0 %3931
    %v3934 = vmul.f32 %v3922, %v3932
    %v3935 = vmul.f32 %v3923, %v3932
    %v3936 = vmul.f32 %v3924, %v3932
    %v3937 = vmul.f32 %v3925, %v3932
    %v3938 = vadd.f32 %v3918, %v3934
    %v3939 = vadd.f32 %v3919, %v3935
    %v3940 = vadd.f32 %v3920, %v3936
    %v3941 = vadd.f32 %v3921, %v3937
    %v3942 = vlaneseq
    %v3943 = vshrl.u32 %v3942, 7
    %v3944 = vsub.s32 6, %v3943
    %v3945 = vrot.slane %v3774, %v3944
    %3947 = vrot.lane.b32.xlu0 %v3945, 12
    %v3948 = vpop.permute.xlu0 %3947
    %v3950 = vmul.f32 %v3922, %v3948
    %v3951 = vmul.f32 %v3923, %v3948
    %v3952 = vmul.f32 %v3924, %v3948
    %v3953 = vmul.f32 %v3925, %v3948
    %3958 = vrot.lane.b32.xlu0 %v3950, 124
    %v3959 = vpop.permute.xlu0 %3958
    %3960 = vrot.lane.b32.xlu0 %v3951, 124
    %v3961 = vpop.permute.xlu0 %3960
    %3962 = vrot.lane.b32.xlu0 %v3952, 124
    %v3963 = vpop.permute.xlu0 %3962
    %3964 = vrot.lane.b32.xlu0 %v3953, 124
    %v3965 = vpop.permute.xlu0 %3964
    %v3970 = vadd.f32 %v3938, %v3959
    %v3971 = vadd.f32 %v3939, %v3961
    %v3972 = vadd.f32 %v3940, %v3963
    %v3973 = vadd.f32 %v3941, %v3965
    %v3974 = vlaneseq
    %v3975 = vshrl.u32 %v3974, 7
    %v3976 = vsub.s32 7, %v3975
    %v3977 = vrot.slane %v3774, %v3976
    %3979 = vrot.lane.b32.xlu0 %v3977, 16
    %v3980 = vpop.permute.xlu0 %3979
    %v3982 = vmul.f32 %v3922, %v3980
    %v3983 = vmul.f32 %v3923, %v3980
    %v3984 = vmul.f32 %v3924, %v3980
    %v3985 = vmul.f32 %v3925, %v3980
    %3990 = vrot.lane.b32.xlu0 %v3982, 120
    %v3991 = vpop.permute.xlu0 %3990
    %3992 = vrot.lane.b32.xlu0 %v3983, 120
    %v3993 = vpop.permute.xlu0 %3992
    %3994 = vrot.lane.b32.xlu0 %v3984, 120
    %v3995 = vpop.permute.xlu0 %3994
    %3996 = vrot.lane.b32.xlu0 %v3985, 120
    %v3997 = vpop.permute.xlu0 %3996
    %v4002 = vadd.f32 %v3970, %v3991
    %v4003 = vadd.f32 %v3971, %v3993
    %v4004 = vadd.f32 %v3972, %v3995
    %v4005 = vadd.f32 %v3973, %v3997
    %v4006 = vlaneseq
    %v4007 = vshrl.u32 %v4006, 7
    %v4008 = vsub.s32 0, %v4007
    %v4009 = vrot.slane %v3775, %v4008
    %4011 = vrot.lane.b32.xlu0 %v4009, 20
    %v4012 = vpop.permute.xlu0 %4011
    %v4014 = vmul.f32 %v3922, %v4012
    %v4015 = vmul.f32 %v3923, %v4012
    %v4016 = vmul.f32 %v3924, %v4012
    %v4017 = vmul.f32 %v3925, %v4012
    %4022 = vrot.lane.b32.xlu0 %v4014, 116
    %v4023 = vpop.permute.xlu0 %4022
    %4024 = vrot.lane.b32.xlu0 %v4015, 116
    %v4025 = vpop.permute.xlu0 %4024
    %4026 = vrot.lane.b32.xlu0 %v4016, 116
    %v4027 = vpop.permute.xlu0 %4026
    %4028 = vrot.lane.b32.xlu0 %v4017, 116
    %v4029 = vpop.permute.xlu0 %4028
    %v4034 = vadd.f32 %v4002, %v4023
    %v4035 = vadd.f32 %v4003, %v4025
    %v4036 = vadd.f32 %v4004, %v4027
    %v4037 = vadd.f32 %v4005, %v4029
    %v4038 = vlaneseq
    %v4039 = vshrl.u32 %v4038, 7
    %v4040 = vsub.s32 1, %v4039
    %v4041 = vrot.slane %v3775, %v4040
    %4043 = vrot.lane.b32.xlu0 %v4041, 24
    %v4044 = vpop.permute.xlu0 %4043
    %v4046 = vmul.f32 %v3922, %v4044
    %v4047 = vmul.f32 %v3923, %v4044
    %v4048 = vmul.f32 %v3924, %v4044
    %v4049 = vmul.f32 %v3925, %v4044
    %4054 = vrot.lane.b32.xlu0 %v4046, 112
    %v4055 = vpop.permute.xlu0 %4054
    %4056 = vrot.lane.b32.xlu0 %v4047, 112
    %v4057 = vpop.permute.xlu0 %4056
    %4058 = vrot.lane.b32.xlu0 %v4048, 112
    %v4059 = vpop.permute.xlu0 %4058
    %4060 = vrot.lane.b32.xlu0 %v4049, 112
    %v4061 = vpop.permute.xlu0 %4060
    %v4066 = vadd.f32 %v4034, %v4055
    %v4067 = vadd.f32 %v4035, %v4057
    %v4068 = vadd.f32 %v4036, %v4059
    %v4069 = vadd.f32 %v4037, %v4061
    %v4070 = vld [vmem:[#allocation3 + $0x4] sm:$0xff]
    %v4071 = vld [vmem:[#allocation3 + $0xc] sm:$0xff]
    %v4072 = vld [vmem:[#allocation3 + $0x1c] sm:$0xff]
    %v4073 = vld [vmem:[#allocation3 + $0x24] sm:$0xff]
    %v4074 = vlaneseq
    %v4075 = vshrl.u32 %v4074, 7
    %v4076 = vsub.s32 2, %v4075
    %v4077 = vrot.slane %v3775, %v4076
    %4079 = vrot.lane.b32.xlu0 %v4077, 8
    %v4080 = vpop.permute.xlu0 %4079
    %v4082 = vmul.f32 %v4070, %v4080
    %v4083 = vmul.f32 %v4071, %v4080
    %v4084 = vmul.f32 %v4072, %v4080
    %v4085 = vmul.f32 %v4073, %v4080
    %v4086 = vadd.f32 %v4066, %v4082
    %v4087 = vadd.f32 %v4067, %v4083
    %v4088 = vadd.f32 %v4068, %v4084
    %v4089 = vadd.f32 %v4069, %v4085
    %v4090 = vlaneseq
    %v4091 = vshrl.u32 %v4090, 7
    %v4092 = vsub.s32 3, %v4091
    %v4093 = vrot.slane %v3775, %v4092
    %4095 = vrot.lane.b32.xlu0 %v4093, 12
    %v4096 = vpop.permute.xlu0 %4095
    %v4098 = vmul.f32 %v4070, %v4096
    %v4099 = vmul.f32 %v4071, %v4096
    %v4100 = vmul.f32 %v4072, %v4096
    %v4101 = vmul.f32 %v4073, %v4096
    %4106 = vrot.lane.b32.xlu0 %v4098, 124
    %v4107 = vpop.permute.xlu0 %4106
    %4108 = vrot.lane.b32.xlu0 %v4099, 124
    %v4109 = vpop.permute.xlu0 %4108
    %4110 = vrot.lane.b32.xlu0 %v4100, 124
    %v4111 = vpop.permute.xlu0 %4110
    %4112 = vrot.lane.b32.xlu0 %v4101, 124
    %v4113 = vpop.permute.xlu0 %4112
    %v4118 = vadd.f32 %v4086, %v4107
    %v4119 = vadd.f32 %v4087, %v4109
    %v4120 = vadd.f32 %v4088, %v4111
    %v4121 = vadd.f32 %v4089, %v4113
    %v4122 = vlaneseq
    %v4123 = vshrl.u32 %v4122, 7
    %v4124 = vsub.s32 4, %v4123
    %v4125 = vrot.slane %v3775, %v4124
    %4127 = vrot.lane.b32.xlu0 %v4125, 16
    %v4128 = vpop.permute.xlu0 %4127
    %v4130 = vmul.f32 %v4070, %v4128
    %v4131 = vmul.f32 %v4071, %v4128
    %v4132 = vmul.f32 %v4072, %v4128
    %v4133 = vmul.f32 %v4073, %v4128
    %4138 = vrot.lane.b32.xlu0 %v4130, 120
    %v4139 = vpop.permute.xlu0 %4138
    %4140 = vrot.lane.b32.xlu0 %v4131, 120
    %v4141 = vpop.permute.xlu0 %4140
    %4142 = vrot.lane.b32.xlu0 %v4132, 120
    %v4143 = vpop.permute.xlu0 %4142
    %4144 = vrot.lane.b32.xlu0 %v4133, 120
    %v4145 = vpop.permute.xlu0 %4144
    %v4150 = vadd.f32 %v4118, %v4139
    %v4151 = vadd.f32 %v4119, %v4141
    %v4152 = vadd.f32 %v4120, %v4143
    %v4153 = vadd.f32 %v4121, %v4145
    %v4154 = vlaneseq
    %v4155 = vshrl.u32 %v4154, 7
    %v4156 = vsub.s32 5, %v4155
    %v4157 = vrot.slane %v3775, %v4156
    %4159 = vrot.lane.b32.xlu0 %v4157, 20
    %v4160 = vpop.permute.xlu0 %4159
    %v4162 = vmul.f32 %v4070, %v4160
    %v4163 = vmul.f32 %v4071, %v4160
    %v4164 = vmul.f32 %v4072, %v4160
    %v4165 = vmul.f32 %v4073, %v4160
    %4170 = vrot.lane.b32.xlu0 %v4162, 116
    %v4171 = vpop.permute.xlu0 %4170
    %4172 = vrot.lane.b32.xlu0 %v4163, 116
    %v4173 = vpop.permute.xlu0 %4172
    %4174 = vrot.lane.b32.xlu0 %v4164, 116
    %v4175 = vpop.permute.xlu0 %4174
    %4176 = vrot.lane.b32.xlu0 %v4165, 116
    %v4177 = vpop.permute.xlu0 %4176
    %v4182 = vadd.f32 %v4150, %v4171
    %v4183 = vadd.f32 %v4151, %v4173
    %v4184 = vadd.f32 %v4152, %v4175
    %v4185 = vadd.f32 %v4153, %v4177
    %v4186 = vlaneseq
    %v4187 = vshrl.u32 %v4186, 7
    %v4188 = vsub.s32 6, %v4187
    %v4189 = vrot.slane %v3775, %v4188
    %4191 = vrot.lane.b32.xlu0 %v4189, 24
    %v4192 = vpop.permute.xlu0 %4191
    %v4194 = vmul.f32 %v4070, %v4192
    %v4195 = vmul.f32 %v4071, %v4192
    %v4196 = vmul.f32 %v4072, %v4192
    %v4197 = vmul.f32 %v4073, %v4192
    %4202 = vrot.lane.b32.xlu0 %v4194, 112
    %v4203 = vpop.permute.xlu0 %4202
    %4204 = vrot.lane.b32.xlu0 %v4195, 112
    %v4205 = vpop.permute.xlu0 %4204
    %4206 = vrot.lane.b32.xlu0 %v4196, 112
    %v4207 = vpop.permute.xlu0 %4206
    %4208 = vrot.lane.b32.xlu0 %v4197, 112
    %v4209 = vpop.permute.xlu0 %4208
    %v4214 = vadd.f32 %v4182, %v4203
    %v4215 = vadd.f32 %v4183, %v4205
    %v4216 = vadd.f32 %v4184, %v4207
    %v4217 = vadd.f32 %v4185, %v4209
    %v4218 = vld [vmem:[#allocation3 + $0x5] sm:$0xff]
    %v4219 = vld [vmem:[#allocation3 + $0xd] sm:$0xff]
    %v4220 = vld [vmem:[#allocation3 + $0x1d] sm:$0xff]
    %v4221 = vld [vmem:[#allocation3 + $0x25] sm:$0xff]
    %v4222 = vlaneseq
    %v4223 = vshrl.u32 %v4222, 7
    %v4224 = vsub.s32 7, %v4223
    %v4225 = vrot.slane %v3775, %v4224
    %4227 = vrot.lane.b32.xlu0 %v4225, 8
    %v4228 = vpop.permute.xlu0 %4227
    %v4230 = vmul.f32 %v4218, %v4228
    %v4231 = vmul.f32 %v4219, %v4228
    %v4232 = vmul.f32 %v4220, %v4228
    %v4233 = vmul.f32 %v4221, %v4228
    %v4234 = vadd.f32 %v4214, %v4230
    %v4235 = vadd.f32 %v4215, %v4231
    %v4236 = vadd.f32 %v4216, %v4232
    %v4237 = vadd.f32 %v4217, %v4233
    %v4238 = vlaneseq
    %v4239 = vshrl.u32 %v4238, 7
    %v4240 = vsub.s32 0, %v4239
    %v4241 = vrot.slane %v3776, %v4240
    %4243 = vrot.lane.b32.xlu0 %v4241, 12
    %v4244 = vpop.permute.xlu0 %4243
    %v4246 = vmul.f32 %v4218, %v4244
    %v4247 = vmul.f32 %v4219, %v4244
    %v4248 = vmul.f32 %v4220, %v4244
    %v4249 = vmul.f32 %v4221, %v4244
    %4254 = vrot.lane.b32.xlu0 %v4246, 124
    %v4255 = vpop.permute.xlu0 %4254
    %4256 = vrot.lane.b32.xlu0 %v4247, 124
    %v4257 = vpop.permute.xlu0 %4256
    %4258 = vrot.lane.b32.xlu0 %v4248, 124
    %v4259 = vpop.permute.xlu0 %4258
    %4260 = vrot.lane.b32.xlu0 %v4249, 124
    %v4261 = vpop.permute.xlu0 %4260
    %v4266 = vadd.f32 %v4234, %v4255
    %v4267 = vadd.f32 %v4235, %v4257
    %v4268 = vadd.f32 %v4236, %v4259
    %v4269 = vadd.f32 %v4237, %v4261
    %v4270 = vlaneseq
    %v4271 = vshrl.u32 %v4270, 7
    %v4272 = vsub.s32 1, %v4271
    %v4273 = vrot.slane %v3776, %v4272
    %4275 = vrot.lane.b32.xlu0 %v4273, 16
    %v4276 = vpop.permute.xlu0 %4275
    %v4278 = vmul.f32 %v4218, %v4276
    %v4279 = vmul.f32 %v4219, %v4276
    %v4280 = vmul.f32 %v4220, %v4276
    %v4281 = vmul.f32 %v4221, %v4276
    %4286 = vrot.lane.b32.xlu0 %v4278, 120
    %v4287 = vpop.permute.xlu0 %4286
    %4288 = vrot.lane.b32.xlu0 %v4279, 120
    %v4289 = vpop.permute.xlu0 %4288
    %4290 = vrot.lane.b32.xlu0 %v4280, 120
    %v4291 = vpop.permute.xlu0 %4290
    %4292 = vrot.lane.b32.xlu0 %v4281, 120
    %v4293 = vpop.permute.xlu0 %4292
    %v4298 = vadd.f32 %v4266, %v4287
    %v4299 = vadd.f32 %v4267, %v4289
    %v4300 = vadd.f32 %v4268, %v4291
    %v4301 = vadd.f32 %v4269, %v4293
    %v4302 = vlaneseq
    %v4303 = vshrl.u32 %v4302, 7
    %v4304 = vsub.s32 2, %v4303
    %v4305 = vrot.slane %v3776, %v4304
    %4307 = vrot.lane.b32.xlu0 %v4305, 20
    %v4308 = vpop.permute.xlu0 %4307
    %v4310 = vmul.f32 %v4218, %v4308
    %v4311 = vmul.f32 %v4219, %v4308
    %v4312 = vmul.f32 %v4220, %v4308
    %v4313 = vmul.f32 %v4221, %v4308
    %4318 = vrot.lane.b32.xlu0 %v4310, 116
    %v4319 = vpop.permute.xlu0 %4318
    %4320 = vrot.lane.b32.xlu0 %v4311, 116
    %v4321 = vpop.permute.xlu0 %4320
    %4322 = vrot.lane.b32.xlu0 %v4312, 116
    %v4323 = vpop.permute.xlu0 %4322
    %4324 = vrot.lane.b32.xlu0 %v4313, 116
    %v4325 = vpop.permute.xlu0 %4324
    %v4330 = vadd.f32 %v4298, %v4319
    %v4331 = vadd.f32 %v4299, %v4321
    %v4332 = vadd.f32 %v4300, %v4323
    %v4333 = vadd.f32 %v4301, %v4325
    %v4334 = vlaneseq
    %v4335 = vshrl.u32 %v4334, 7
    %v4336 = vsub.s32 3, %v4335
    %v4337 = vrot.slane %v3776, %v4336
    %4339 = vrot.lane.b32.xlu0 %v4337, 24
    %v4340 = vpop.permute.xlu0 %4339
    %v4342 = vmul.f32 %v4218, %v4340
    %v4343 = vmul.f32 %v4219, %v4340
    %v4344 = vmul.f32 %v4220, %v4340
    %v4345 = vmul.f32 %v4221, %v4340
    %4350 = vrot.lane.b32.xlu0 %v4342, 112
    %v4351 = vpop.permute.xlu0 %4350
    %4352 = vrot.lane.b32.xlu0 %v4343, 112
    %v4353 = vpop.permute.xlu0 %4352
    %4354 = vrot.lane.b32.xlu0 %v4344, 112
    %v4355 = vpop.permute.xlu0 %4354
    %4356 = vrot.lane.b32.xlu0 %v4345, 112
    %v4357 = vpop.permute.xlu0 %4356
    %v4362 = vadd.f32 %v4330, %v4351
    %v4363 = vadd.f32 %v4331, %v4353
    %v4364 = vadd.f32 %v4332, %v4355
    %v4365 = vadd.f32 %v4333, %v4357
    %v4366 = vld [vmem:[#allocation3 + $0x6] sm:$0xff]
    %v4367 = vld [vmem:[#allocation3 + $0xe] sm:$0xff]
    %v4368 = vld [vmem:[#allocation3 + $0x1e] sm:$0xff]
    %v4369 = vld [vmem:[#allocation3 + $0x26] sm:$0xff]
    %v4370 = vlaneseq
    %v4371 = vshrl.u32 %v4370, 7
    %v4372 = vsub.s32 4, %v4371
    %v4373 = vrot.slane %v3776, %v4372
    %4375 = vrot.lane.b32.xlu0 %v4373, 8
    %v4376 = vpop.permute.xlu0 %4375
    %v4378 = vmul.f32 %v4366, %v4376
    %v4379 = vmul.f32 %v4367, %v4376
    %v4380 = vmul.f32 %v4368, %v4376
    %v4381 = vmul.f32 %v4369, %v4376
    %v4382 = vadd.f32 %v4362, %v4378
    %v4383 = vadd.f32 %v4363, %v4379
    %v4384 = vadd.f32 %v4364, %v4380
    %v4385 = vadd.f32 %v4365, %v4381
    %v4386 = vlaneseq
    %v4387 = vshrl.u32 %v4386, 7
    %v4388 = vsub.s32 5, %v4387
    %v4389 = vrot.slane %v3776, %v4388
    %4391 = vrot.lane.b32.xlu0 %v4389, 12
    %v4392 = vpop.permute.xlu0 %4391
    %v4394 = vmul.f32 %v4366, %v4392
    %v4395 = vmul.f32 %v4367, %v4392
    %v4396 = vmul.f32 %v4368, %v4392
    %v4397 = vmul.f32 %v4369, %v4392
    %4402 = vrot.lane.b32.xlu0 %v4394, 124
    %v4403 = vpop.permute.xlu0 %4402
    %4404 = vrot.lane.b32.xlu0 %v4395, 124
    %v4405 = vpop.permute.xlu0 %4404
    %4406 = vrot.lane.b32.xlu0 %v4396, 124
    %v4407 = vpop.permute.xlu0 %4406
    %4408 = vrot.lane.b32.xlu0 %v4397, 124
    %v4409 = vpop.permute.xlu0 %4408
    %v4414 = vadd.f32 %v4382, %v4403
    %v4415 = vadd.f32 %v4383, %v4405
    %v4416 = vadd.f32 %v4384, %v4407
    %v4417 = vadd.f32 %v4385, %v4409
    %v4418 = vlaneseq
    %v4419 = vshrl.u32 %v4418, 7
    %v4420 = vsub.s32 6, %v4419
    %v4421 = vrot.slane %v3776, %v4420
    %4423 = vrot.lane.b32.xlu0 %v4421, 16
    %v4424 = vpop.permute.xlu0 %4423
    %v4426 = vmul.f32 %v4366, %v4424
    %v4427 = vmul.f32 %v4367, %v4424
    %v4428 = vmul.f32 %v4368, %v4424
    %v4429 = vmul.f32 %v4369, %v4424
    %4434 = vrot.lane.b32.xlu0 %v4426, 120
    %v4435 = vpop.permute.xlu0 %4434
    %4436 = vrot.lane.b32.xlu0 %v4427, 120
    %v4437 = vpop.permute.xlu0 %4436
    %4438 = vrot.lane.b32.xlu0 %v4428, 120
    %v4439 = vpop.permute.xlu0 %4438
    %4440 = vrot.lane.b32.xlu0 %v4429, 120
    %v4441 = vpop.permute.xlu0 %4440
    %v4446 = vadd.f32 %v4414, %v4435
    %v4447 = vadd.f32 %v4415, %v4437
    %v4448 = vadd.f32 %v4416, %v4439
    %v4449 = vadd.f32 %v4417, %v4441
    %v4450 = vlaneseq
    %v4451 = vshrl.u32 %v4450, 7
    %v4452 = vsub.s32 7, %v4451
    %v4453 = vrot.slane %v3776, %v4452
    %4455 = vrot.lane.b32.xlu0 %v4453, 20
    %v4456 = vpop.permute.xlu0 %4455
    %v4458 = vmul.f32 %v4366, %v4456
    %v4459 = vmul.f32 %v4367, %v4456
    %v4460 = vmul.f32 %v4368, %v4456
    %v4461 = vmul.f32 %v4369, %v4456
    %4466 = vrot.lane.b32.xlu0 %v4458, 116
    %v4467 = vpop.permute.xlu0 %4466
    %4468 = vrot.lane.b32.xlu0 %v4459, 116
    %v4469 = vpop.permute.xlu0 %4468
    %4470 = vrot.lane.b32.xlu0 %v4460, 116
    %v4471 = vpop.permute.xlu0 %4470
    %4472 = vrot.lane.b32.xlu0 %v4461, 116
    %v4473 = vpop.permute.xlu0 %4472
    %v4478 = vadd.f32 %v4446, %v4467
    %v4479 = vadd.f32 %v4447, %v4469
    %v4480 = vadd.f32 %v4448, %v4471
    %v4481 = vadd.f32 %v4449, %v4473
    %v4482 = vlaneseq
    %v4483 = vshrl.u32 %v4482, 7
    %v4484 = vsub.s32 0, %v4483
    %v4485 = vrot.slane %v3777, %v4484
    %4487 = vrot.lane.b32.xlu0 %v4485, 24
    %v4488 = vpop.permute.xlu0 %4487
    %v4490 = vmul.f32 %v4366, %v4488
    %v4491 = vmul.f32 %v4367, %v4488
    %v4492 = vmul.f32 %v4368, %v4488
    %v4493 = vmul.f32 %v4369, %v4488
    %4498 = vrot.lane.b32.xlu0 %v4490, 112
    %v4499 = vpop.permute.xlu0 %4498
    %4500 = vrot.lane.b32.xlu0 %v4491, 112
    %v4501 = vpop.permute.xlu0 %4500
    %4502 = vrot.lane.b32.xlu0 %v4492, 112
    %v4503 = vpop.permute.xlu0 %4502
    %4504 = vrot.lane.b32.xlu0 %v4493, 112
    %v4505 = vpop.permute.xlu0 %4504
    %v4510 = vadd.f32 %v4478, %v4499
    %v4511 = vadd.f32 %v4479, %v4501
    %v4512 = vadd.f32 %v4480, %v4503
    %v4513 = vadd.f32 %v4481, %v4505
    %v4514 = vld [vmem:[#allocation20] sm:$0xff]
    %v4515 = vld [vmem:[#allocation20 + $0x8] sm:$0xff]
    %v4516 = vld [vmem:[#allocation20 + $0x10] sm:$0xff]
    %v4517 = vld [vmem:[#allocation20 + $0x18] sm:$0xff]
    %v4518 = vld [vmem:[#allocation20 + $0x20] sm:$0xff]
    %v4519 = vld [vmem:[#allocation20 + $0x28] sm:$0xff]
    %v4520 = vld [vmem:[#allocation20 + $0x30] sm:$0xff]
    %v4521 = vld [vmem:[#allocation20 + $0x38] sm:$0xff]
    %4526 = vrot.lane.b32.xlu0 %v4510, 120
    %v4527 = vpop.permute.xlu0 %4526
    %4528 = vrot.lane.b32.xlu0 %v4511, 120
    %v4529 = vpop.permute.xlu0 %4528
    %4530 = vrot.lane.b32.xlu0 %v4512, 120
    %v4531 = vpop.permute.xlu0 %4530
    %4532 = vrot.lane.b32.xlu0 %v4513, 120
    %v4533 = vpop.permute.xlu0 %4532
    %v4534 = vsel %vm421, %v4527, 0
    %v4536 = vsel %vm421, %v4529, 0
    %v4538 = vsel %vm421, %v4531, 0
    %v4540 = vsel %vm421, %v4533, 0
    %4542 = vmatprep.subr.mxu0 0.0
    %4543 = vmatpush1.msra.mxu0 %v4514
    %4544 = vmatprep.subr.mxu0 0.0
    %4545 = vmatpush1.msra.mxu0 %v4515
    %4546 = vmatprep.subr.mxu0 0.0
    %4547 = vmatpush1.msra.mxu0 %v4516
    %4548 = vmatprep.subr.mxu0 0.0
    %4549 = vmatpush1.msra.mxu0 %v4517
    %4550 = vmatprep.subr.mxu0 0.0
    %4551 = vmatpush1.msra.mxu0 %v4518
    %4552 = vmatprep.subr.mxu0 0.0
    %4553 = vmatpush1.msra.mxu0 %v4519
    %4554 = vmatprep.subr.mxu0 0.0
    %4555 = vmatpush1.msra.mxu0 %v4520
    %4556 = vmatprep.subr.mxu0 0.0
    %4557 = vmatpush1.msra.mxu0 %v4521
    %4558 = vmatprep.subr.mxu0 0.0
    %4559 = vmatpush1.msra.mxu0 0.0
    %4560 = vmatprep.subr.mxu0 0.0
    %4561 = vmatpush1.msra.mxu0 0.0
    %4562 = vmatprep.subr.mxu0 0.0
    %4563 = vmatpush1.msra.mxu0 0.0
    %4564 = vmatprep.subr.mxu0 0.0
    %4565 = vmatpush1.msra.mxu0 0.0
    %4566 = vmatprep.subr.mxu0 0.0
    %4567 = vmatpush1.msra.mxu0 0.0
    %4568 = vmatprep.subr.mxu0 0.0
    %4569 = vmatpush1.msra.mxu0 0.0
    %4570 = vmatprep.subr.mxu0 0.0
    %4571 = vmatpush1.msra.mxu0 0.0
    %4572 = vmatprep.subr.mxu0 0.0
    %4573 = vmatpush1.msra.mxu0 0.0
    %4574 = vmatprep.subr.mxu0 0.0
    %4575 = vmatpush1.msra.mxu0 0.0
    %4576 = vmatprep.subr.mxu0 0.0
    %4577 = vmatpush1.msra.mxu0 0.0
    %4578 = vmatprep.subr.mxu0 0.0
    %4579 = vmatpush1.msra.mxu0 0.0
    %4580 = vmatprep.subr.mxu0 0.0
    %4581 = vmatpush1.msra.mxu0 0.0
    %4582 = vmatprep.subr.mxu0 0.0
    %4583 = vmatpush1.msra.mxu0 0.0
    %4584 = vmatprep.subr.mxu0 0.0
    %4585 = vmatpush1.msra.mxu0 0.0
    %4586 = vmatprep.subr.mxu0 0.0
    %4587 = vmatpush1.msra.mxu0 0.0
    %4588 = vmatprep.subr.mxu0 0.0
    %4589 = vmatpush1.msra.mxu0 0.0
    %4590 = vmatprep.subr.mxu0 0.0
    %4591 = vmatpush1.msra.mxu0 0.0
    %4592 = vmatprep.subr.mxu0 0.0
    %4593 = vmatpush1.msra.mxu0 0.0
    %4594 = vmatprep.subr.mxu0 0.0
    %4595 = vmatpush1.msra.mxu0 0.0
    %4596 = vmatprep.subr.mxu0 0.0
    %4597 = vmatpush1.msra.mxu0 0.0
    %4598 = vmatprep.subr.mxu0 0.0
    %4599 = vmatpush1.msra.mxu0 0.0
    %4600 = vmatprep.subr.mxu0 0.0
    %4601 = vmatpush1.msra.mxu0 0.0
    %4602 = vmatprep.subr.mxu0 0.0
    %4603 = vmatpush1.msra.mxu0 0.0
    %4604 = vmatprep.subr.mxu0 0.0
    %4605 = vmatpush1.msra.mxu0 0.0
    %4606 = vmatprep.mubr.f32.mxu0 0.0
    %4607 = vmatmul.mubr.f32.gmra.mrb[0].mxu0 %v4534
    %v4608 = vpop.f32.mrb[0].mxu0
    %v4609 = vadd.f32 0.0, %v4608
    %v4610 = vpop.f32.mrb[0].mxu0
    %4611 = vmatprep.mubr.f32.mxu0 0.0
    %4612 = vmatmul.mubr.f32.gmra.mrb[0].mxu0 %v4536
    %v4613 = vpop.f32.mrb[0].mxu0
    %v4614 = vadd.f32 0.0, %v4613
    %v4615 = vpop.f32.mrb[0].mxu0
    %4616 = vmatprep.mubr.f32.mxu0 0.0
    %4617 = vmatmul.mubr.f32.gmra.mrb[0].mxu0 %v4538
    %v4618 = vpop.f32.mrb[0].mxu0
    %v4619 = vadd.f32 0.0, %v4618
    %v4620 = vpop.f32.mrb[0].mxu0
    %4621 = vmatprep.mubr.f32.mxu0 0.0
    %4622 = vmatmul.mubr.f32.gmra.mrb[0].mxu0 %v4540
    %v4623 = vpop.f32.mrb[0].mxu0
    %v4624 = vadd.f32 0.0, %v4623
    %v4625 = vpop.f32.mrb[0].mxu0
    %4626 = vdwg.mxu0
    %v4627 = vsel %vm421, %v4609, 0.0
    %v4628 = vsel %vm421, %v4614, 0.0
    %v4629 = vadd.f32 %v4627, %v4628
    %v4630 = vsel %vm421, %v4619, 0.0
    %v4631 = vadd.f32 %v4629, %v4630
    %v4632 = vsel %vm421, %v4624, 0.0
    %v4633 = vadd.f32 %v4631, %v4632
    %v4635 = vsel %vm421, %v4633, 0
    %4637 = vmatprep.subr.mxu0 0.0
    %4638 = vmatpush1.msra.mxu0 %v261
    %4639 = vmatprep.subr.mxu0 0.0
    %4640 = vmatpush1.msra.mxu0 %v262
    %4641 = vmatprep.subr.mxu0 0.0
    %4642 = vmatpush1.msra.mxu0 %v263
    %4643 = vmatprep.subr.mxu0 0.0
    %4644 = vmatpush1.msra.mxu0 %v264
    %4645 = vmatprep.subr.mxu0 0.0
    %4646 = vmatpush1.msra.mxu0 %v265
    %4647 = vmatprep.subr.mxu0 0.0
    %4648 = vmatpush1.msra.mxu0 %v266
    %4649 = vmatprep.subr.mxu0 0.0
    %4650 = vmatpush1.msra.mxu0 %v267
    %4651 = vmatprep.subr.mxu0 0.0
    %4652 = vmatpush1.msra.mxu0 %v268
    %4653 = vmatprep.subr.mxu0 0.0
    %4654 = vmatpush1.msra.mxu0 0.0
    %4655 = vmatprep.subr.mxu0 0.0
    %4656 = vmatpush1.msra.mxu0 0.0
    %4657 = vmatprep.subr.mxu0 0.0
    %4658 = vmatpush1.msra.mxu0 0.0
    %4659 = vmatprep.subr.mxu0 0.0
    %4660 = vmatpush1.msra.mxu0 0.0
    %4661 = vmatprep.subr.mxu0 0.0
    %4662 = vmatpush1.msra.mxu0 0.0
    %4663 = vmatprep.subr.mxu0 0.0
    %4664 = vmatpush1.msra.mxu0 0.0
    %4665 = vmatprep.subr.mxu0 0.0
    %4666 = vmatpush1.msra.mxu0 0.0
    %4667 = vmatprep.subr.mxu0 0.0
    %4668 = vmatpush1.msra.mxu0 0.0
    %4669 = vmatprep.subr.mxu0 0.0
    %4670 = vmatpush1.msra.mxu0 0.0
    %4671 = vmatprep.subr.mxu0 0.0
    %4672 = vmatpush1.msra.mxu0 0.0
    %4673 = vmatprep.subr.mxu0 0.0
    %4674 = vmatpush1.msra.mxu0 0.0
    %4675 = vmatprep.subr.mxu0 0.0
    %4676 = vmatpush1.msra.mxu0 0.0
    %4677 = vmatprep.subr.mxu0 0.0
    %4678 = vmatpush1.msra.mxu0 0.0
    %4679 = vmatprep.subr.mxu0 0.0
    %4680 = vmatpush1.msra.mxu0 0.0
    %4681 = vmatprep.subr.mxu0 0.0
    %4682 = vmatpush1.msra.mxu0 0.0
    %4683 = vmatprep.subr.mxu0 0.0
    %4684 = vmatpush1.msra.mxu0 0.0
    %4685 = vmatprep.subr.mxu0 0.0
    %4686 = vmatpush1.msra.mxu0 0.0
    %4687 = vmatprep.subr.mxu0 0.0
    %4688 = vmatpush1.msra.mxu0 0.0
    %4689 = vmatprep.subr.mxu0 0.0
    %4690 = vmatpush1.msra.mxu0 0.0
    %4691 = vmatprep.subr.mxu0 0.0
    %4692 = vmatpush1.msra.mxu0 0.0
    %4693 = vmatprep.subr.mxu0 0.0
    %4694 = vmatpush1.msra.mxu0 0.0
    %4695 = vmatprep.subr.mxu0 0.0
    %4696 = vmatpush1.msra.mxu0 0.0
    %4697 = vmatprep.subr.mxu0 0.0
    %4698 = vmatpush1.msra.mxu0 0.0
    %4699 = vmatprep.subr.mxu0 0.0
    %4700 = vmatpush1.msra.mxu0 0.0
    %4701 = vmatprep.mubr.f32.mxu0 0.0
    %4702 = vmatmul.mubr.f32.gmra.mrb[0].mxu0 %v4635
    %v4703 = vpop.f32.mrb[0].mxu0
    %v4704 = vadd.f32 0.0, %v4703
    %v4705 = vpop.f32.mrb[0].mxu0
    %4706 = vdwg.mxu0
    %v4707 = vsel %vm421, %v4704, 0.0
    %v4708 = vrot.slane %v4707, 4
    %v4709 = vadd.f32 %v4707, %v4708
    %v4710 = vrot.slane %v4709, 2
    %v4711 = vadd.f32 %v4709, %v4710
    %v4712 = vrot.slane %v4711, 1
    %v4713 = vadd.f32 %v4711, %v4712
    %v4714 = vsub.f32 %v4609, %v4713
    %v4715 = vsub.f32 %v4614, %v4713
    %v4716 = vsub.f32 %v4619, %v4713
    %v4717 = vsub.f32 %v4624, %v4713
    %v4718 = vmul.f32 %v4714, %v4714
    %v4719 = vmul.f32 %v4715, %v4715
    %v4720 = vmul.f32 %v4716, %v4716
    %v4721 = vmul.f32 %v4717, %v4717
    %v4722 = vsel %vm421, %v4718, 0.0
    %v4723 = vsel %vm421, %v4719, 0.0
    %v4724 = vadd.f32 %v4722, %v4723
    %v4725 = vsel %vm421, %v4720, 0.0
    %v4726 = vadd.f32 %v4724, %v4725
    %v4727 = vsel %vm421, %v4721, 0.0
    %v4728 = vadd.f32 %v4726, %v4727
    %v4730 = vsel %vm421, %v4728, 0
    %4732 = vmatprep.subr.mxu0 0.0
    %4733 = vmatpush1.msra.mxu0 %v261
    %4734 = vmatprep.subr.mxu0 0.0
    %4735 = vmatpush1.msra.mxu0 %v262
    %4736 = vmatprep.subr.mxu0 0.0
    %4737 = vmatpush1.msra.mxu0 %v263
    %4738 = vmatprep.subr.mxu0 0.0
    %4739 = vmatpush1.msra.mxu0 %v264
    %4740 = vmatprep.subr.mxu0 0.0
    %4741 = vmatpush1.msra.mxu0 %v265
    %4742 = vmatprep.subr.mxu0 0.0
    %4743 = vmatpush1.msra.mxu0 %v266
    %4744 = vmatprep.subr.mxu0 0.0
    %4745 = vmatpush1.msra.mxu0 %v267
    %4746 = vmatprep.subr.mxu0 0.0
    %4747 = vmatpush1.msra.mxu0 %v268
    %4748 = vmatprep.subr.mxu0 0.0
    %4749 = vmatpush1.msra.mxu0 0.0
    %4750 = vmatprep.subr.mxu0 0.0
    %4751 = vmatpush1.msra.mxu0 0.0
    %4752 = vmatprep.subr.mxu0 0.0
    %4753 = vmatpush1.msra.mxu0 0.0
    %4754 = vmatprep.subr.mxu0 0.0
    %4755 = vmatpush1.msra.mxu0 0.0
    %4756 = vmatprep.subr.mxu0 0.0
    %4757 = vmatpush1.msra.mxu0 0.0
    %4758 = vmatprep.subr.mxu0 0.0
    %4759 = vmatpush1.msra.mxu0 0.0
    %4760 = vmatprep.subr.mxu0 0.0
    %4761 = vmatpush1.msra.mxu0 0.0
    %4762 = vmatprep.subr.mxu0 0.0
    %4763 = vmatpush1.msra.mxu0 0.0
    %4764 = vmatprep.subr.mxu0 0.0
    %4765 = vmatpush1.msra.mxu0 0.0
    %4766 = vmatprep.subr.mxu0 0.0
    %4767 = vmatpush1.msra.mxu0 0.0
    %4768 = vmatprep.subr.mxu0 0.0
    %4769 = vmatpush1.msra.mxu0 0.0
    %4770 = vmatprep.subr.mxu0 0.0
    %4771 = vmatpush1.msra.mxu0 0.0
    %4772 = vmatprep.subr.mxu0 0.0
    %4773 = vmatpush1.msra.mxu0 0.0
    %4774 = vmatprep.subr.mxu0 0.0
    %4775 = vmatpush1.msra.mxu0 0.0
    %4776 = vmatprep.subr.mxu0 0.0
    %4777 = vmatpush1.msra.mxu0 0.0
    %4778 = vmatprep.subr.mxu0 0.0
    %4779 = vmatpush1.msra.mxu0 0.0
    %4780 = vmatprep.subr.mxu0 0.0
    %4781 = vmatpush1.msra.mxu0 0.0
    %4782 = vmatprep.subr.mxu0 0.0
    %4783 = vmatpush1.msra.mxu0 0.0
    %4784 = vmatprep.subr.mxu0 0.0
    %4785 = vmatpush1.msra.mxu0 0.0
    %4786 = vmatprep.subr.mxu0 0.0
    %4787 = vmatpush1.msra.mxu0 0.0
    %4788 = vmatprep.subr.mxu0 0.0
    %4789 = vmatpush1.msra.mxu0 0.0
    %4790 = vmatprep.subr.mxu0 0.0
    %4791 = vmatpush1.msra.mxu0 0.0
    %4792 = vmatprep.subr.mxu0 0.0
    %4793 = vmatpush1.msra.mxu0 0.0
    %4794 = vmatprep.subr.mxu0 0.0
    %4795 = vmatpush1.msra.mxu0 0.0
    %4796 = vmatprep.mubr.f32.mxu0 0.0
    %4797 = vmatmul.mubr.f32.gmra.mrb[0].mxu0 %v4730
    %v4798 = vpop.f32.mrb[0].mxu0
    %v4799 = vadd.f32 0.0, %v4798
    %v4800 = vpop.f32.mrb[0].mxu0
    %4801 = vdwg.mxu0
    %v4802 = vsel %vm421, %v4799, 0.0
    %v4803 = vrot.slane %v4802, 4
    %v4804 = vadd.f32 %v4802, %v4803
    %v4805 = vrot.slane %v4804, 2
    %v4806 = vadd.f32 %v4804, %v4805
    %v4807 = vrot.slane %v4806, 1
    %v4808 = vadd.f32 %v4806, %v4807
    %v4809 = vadd.f32 %v4808, 1e-05
    %v4810 = vrsqrt.pop %v4809
    %v4811 = vmul.f32 %v4714, %v4810
    %v4812 = vmul.f32 %v4715, %v4810
    %v4813 = vmul.f32 %v4716, %v4810
    %v4814 = vmul.f32 %v4717, %v4810
    %v4815 = vmax.f32 %v4811, 0.0
    %v4816 = vmax.f32 %v4812, 0.0
    %v4817 = vmax.f32 %v4813, 0.0
    %v4818 = vmax.f32 %v4814, 0.0
    %4823 = vrot.lane.b32.xlu0 %v4815, 8
    %v4824 = vpop.permute.xlu0 %4823
    %4825 = vrot.lane.b32.xlu0 %v4816, 8
    %v4826 = vpop.permute.xlu0 %4825
    %4827 = vrot.lane.b32.xlu0 %v4817, 8
    %v4828 = vpop.permute.xlu0 %4827
    %4829 = vrot.lane.b32.xlu0 %v4818, 8
    %v4830 = vpop.permute.xlu0 %4829
    %4835 = vst.msk [vmem:[#allocation2 + $0x2] sm:$0xff] %vm285, %v4824
    %4836 = vst.msk [vmem:[#allocation2 + $0xa] sm:$0xff] %vm285, %v4826
    %4837 = vst.msk [vmem:[#allocation2 + $0x1a] sm:$0xff] %vm285, %v4828
    %4838 = vst.msk [vmem:[#allocation2 + $0x22] sm:$0xff] %vm285, %v4830
    %v4839 = vld [vmem:[%s10] sm:$0xff]
    %v4840 = vld [vmem:[%s10 + $0x8] sm:$0xff]
    %v4841 = vld [vmem:[%s10 + $0x10] sm:$0xff]
    %v4842 = vld [vmem:[%s10 + $0x18] sm:$0x1]
    %v4843 = vld [vmem:[#allocation2] sm:$0xff]
    %v4844 = vld [vmem:[#allocation2 + $0x8] sm:$0xff]
    %v4845 = vld [vmem:[#allocation2 + $0x18] sm:$0xff]
    %v4846 = vld [vmem:[#allocation2 + $0x20] sm:$0xff]
    %v4847 = vlaneseq
    %v4848 = vshrl.u32 %v4847, 7
    %v4849 = vsub.s32 0, %v4848
    %v4850 = vrot.slane %v4839, %v4849
    %v4851 = vmul.f32 %v4843, %v4850
    %v4852 = vmul.f32 %v4844, %v4850
    %v4853 = vmul.f32 %v4845, %v4850
    %v4854 = vmul.f32 %v4846, %v4850
    %v4855 = vlaneseq
    %v4856 = vshrl.u32 %v4855, 7
    %v4857 = vsub.s32 1, %v4856
    %v4858 = vrot.slane %v4839, %v4857
    %4860 = vrot.lane.b32.xlu0 %v4858, 4
    %v4861 = vpop.permute.xlu0 %4860
    %v4863 = vmul.f32 %v4843, %v4861
    %v4864 = vmul.f32 %v4844, %v4861
    %v4865 = vmul.f32 %v4845, %v4861
    %v4866 = vmul.f32 %v4846, %v4861
    %4871 = vrot.lane.b32.xlu0 %v4863, 124
    %v4872 = vpop.permute.xlu0 %4871
    %4873 = vrot.lane.b32.xlu0 %v4864, 124
    %v4874 = vpop.permute.xlu0 %4873
    %4875 = vrot.lane.b32.xlu0 %v4865, 124
    %v4876 = vpop.permute.xlu0 %4875
    %4877 = vrot.lane.b32.xlu0 %v4866, 124
    %v4878 = vpop.permute.xlu0 %4877
    %v4883 = vadd.f32 %v4851, %v4872
    %v4884 = vadd.f32 %v4852, %v4874
    %v4885 = vadd.f32 %v4853, %v4876
    %v4886 = vadd.f32 %v4854, %v4878
    %v4887 = vlaneseq
    %v4888 = vshrl.u32 %v4887, 7
    %v4889 = vsub.s32 2, %v4888
    %v4890 = vrot.slane %v4839, %v4889
    %4892 = vrot.lane.b32.xlu0 %v4890, 8
    %v4893 = vpop.permute.xlu0 %4892
    %v4895 = vmul.f32 %v4843, %v4893
    %v4896 = vmul.f32 %v4844, %v4893
    %v4897 = vmul.f32 %v4845, %v4893
    %v4898 = vmul.f32 %v4846, %v4893
    %4903 = vrot.lane.b32.xlu0 %v4895, 120
    %v4904 = vpop.permute.xlu0 %4903
    %4905 = vrot.lane.b32.xlu0 %v4896, 120
    %v4906 = vpop.permute.xlu0 %4905
    %4907 = vrot.lane.b32.xlu0 %v4897, 120
    %v4908 = vpop.permute.xlu0 %4907
    %4909 = vrot.lane.b32.xlu0 %v4898, 120
    %v4910 = vpop.permute.xlu0 %4909
    %v4915 = vadd.f32 %v4883, %v4904
    %v4916 = vadd.f32 %v4884, %v4906
    %v4917 = vadd.f32 %v4885, %v4908
    %v4918 = vadd.f32 %v4886, %v4910
    %v4919 = vlaneseq
    %v4920 = vshrl.u32 %v4919, 7
    %v4921 = vsub.s32 3, %v4920
    %v4922 = vrot.slane %v4839, %v4921
    %4924 = vrot.lane.b32.xlu0 %v4922, 12
    %v4925 = vpop.permute.xlu0 %4924
    %v4927 = vmul.f32 %v4843, %v4925
    %v4928 = vmul.f32 %v4844, %v4925
    %v4929 = vmul.f32 %v4845, %v4925
    %v4930 = vmul.f32 %v4846, %v4925
    %4935 = vrot.lane.b32.xlu0 %v4927, 116
    %v4936 = vpop.permute.xlu0 %4935
    %4937 = vrot.lane.b32.xlu0 %v4928, 116
    %v4938 = vpop.permute.xlu0 %4937
    %4939 = vrot.lane.b32.xlu0 %v4929, 116
    %v4940 = vpop.permute.xlu0 %4939
    %4941 = vrot.lane.b32.xlu0 %v4930, 116
    %v4942 = vpop.permute.xlu0 %4941
    %v4947 = vadd.f32 %v4915, %v4936
    %v4948 = vadd.f32 %v4916, %v4938
    %v4949 = vadd.f32 %v4917, %v4940
    %v4950 = vadd.f32 %v4918, %v4942
    %v4951 = vlaneseq
    %v4952 = vshrl.u32 %v4951, 7
    %v4953 = vsub.s32 4, %v4952
    %v4954 = vrot.slane %v4839, %v4953
    %4956 = vrot.lane.b32.xlu0 %v4954, 16
    %v4957 = vpop.permute.xlu0 %4956
    %v4959 = vmul.f32 %v4843, %v4957
    %v4960 = vmul.f32 %v4844, %v4957
    %v4961 = vmul.f32 %v4845, %v4957
    %v4962 = vmul.f32 %v4846, %v4957
    %4967 = vrot.lane.b32.xlu0 %v4959, 112
    %v4968 = vpop.permute.xlu0 %4967
    %4969 = vrot.lane.b32.xlu0 %v4960, 112
    %v4970 = vpop.permute.xlu0 %4969
    %4971 = vrot.lane.b32.xlu0 %v4961, 112
    %v4972 = vpop.permute.xlu0 %4971
    %4973 = vrot.lane.b32.xlu0 %v4962, 112
    %v4974 = vpop.permute.xlu0 %4973
    %v4979 = vadd.f32 %v4947, %v4968
    %v4980 = vadd.f32 %v4948, %v4970
    %v4981 = vadd.f32 %v4949, %v4972
    %v4982 = vadd.f32 %v4950, %v4974
    %v4983 = vld [vmem:[#allocation2 + $0x1] sm:$0xff]
    %v4984 = vld [vmem:[#allocation2 + $0x9] sm:$0xff]
    %v4985 = vld [vmem:[#allocation2 + $0x19] sm:$0xff]
    %v4986 = vld [vmem:[#allocation2 + $0x21] sm:$0xff]
    %v4987 = vlaneseq
    %v4988 = vshrl.u32 %v4987, 7
    %v4989 = vsub.s32 5, %v4988
    %v4990 = vrot.slane %v4839, %v4989
    %v4991 = vmul.f32 %v4983, %v4990
    %v4992 = vmul.f32 %v4984, %v4990
    %v4993 = vmul.f32 %v4985, %v4990
    %v4994 = vmul.f32 %v4986, %v4990
    %v4995 = vadd.f32 %v4979, %v4991
    %v4996 = vadd.f32 %v4980, %v4992
    %v4997 = vadd.f32 %v4981, %v4993
    %v4998 = vadd.f32 %v4982, %v4994
    %v4999 = vlaneseq
    %v5000 = vshrl.u32 %v4999, 7
    %v5001 = vsub.s32 6, %v5000
    %v5002 = vrot.slane %v4839, %v5001
    %5004 = vrot.lane.b32.xlu0 %v5002, 4
    %v5005 = vpop.permute.xlu0 %5004
    %v5007 = vmul.f32 %v4983, %v5005
    %v5008 = vmul.f32 %v4984, %v5005
    %v5009 = vmul.f32 %v4985, %v5005
    %v5010 = vmul.f32 %v4986, %v5005
    %5015 = vrot.lane.b32.xlu0 %v5007, 124
    %v5016 = vpop.permute.xlu0 %5015
    %5017 = vrot.lane.b32.xlu0 %v5008, 124
    %v5018 = vpop.permute.xlu0 %5017
    %5019 = vrot.lane.b32.xlu0 %v5009, 124
    %v5020 = vpop.permute.xlu0 %5019
    %5021 = vrot.lane.b32.xlu0 %v5010, 124
    %v5022 = vpop.permute.xlu0 %5021
    %v5027 = vadd.f32 %v4995, %v5016
    %v5028 = vadd.f32 %v4996, %v5018
    %v5029 = vadd.f32 %v4997, %v5020
    %v5030 = vadd.f32 %v4998, %v5022
    %v5031 = vlaneseq
    %v5032 = vshrl.u32 %v5031, 7
    %v5033 = vsub.s32 7, %v5032
    %v5034 = vrot.slane %v4839, %v5033
    %5036 = vrot.lane.b32.xlu0 %v5034, 8
    %v5037 = vpop.permute.xlu0 %5036
    %v5039 = vmul.f32 %v4983, %v5037
    %v5040 = vmul.f32 %v4984, %v5037
    %v5041 = vmul.f32 %v4985, %v5037
    %v5042 = vmul.f32 %v4986, %v5037
    %5047 = vrot.lane.b32.xlu0 %v5039, 120
    %v5048 = vpop.permute.xlu0 %5047
    %5049 = vrot.lane.b32.xlu0 %v5040, 120
    %v5050 = vpop.permute.xlu0 %5049
    %5051 = vrot.lane.b32.xlu0 %v5041, 120
    %v5052 = vpop.permute.xlu0 %5051
    %5053 = vrot.lane.b32.xlu0 %v5042, 120
    %v5054 = vpop.permute.xlu0 %5053
    %v5059 = vadd.f32 %v5027, %v5048
    %v5060 = vadd.f32 %v5028, %v5050
    %v5061 = vadd.f32 %v5029, %v5052
    %v5062 = vadd.f32 %v5030, %v5054
    %v5063 = vlaneseq
    %v5064 = vshrl.u32 %v5063, 7
    %v5065 = vsub.s32 0, %v5064
    %v5066 = vrot.slane %v4840, %v5065
    %5068 = vrot.lane.b32.xlu0 %v5066, 12
    %v5069 = vpop.permute.xlu0 %5068
    %v5071 = vmul.f32 %v4983, %v5069
    %v5072 = vmul.f32 %v4984, %v5069
    %v5073 = vmul.f32 %v4985, %v5069
    %v5074 = vmul.f32 %v4986, %v5069
    %5079 = vrot.lane.b32.xlu0 %v5071, 116
    %v5080 = vpop.permute.xlu0 %5079
    %5081 = vrot.lane.b32.xlu0 %v5072, 116
    %v5082 = vpop.permute.xlu0 %5081
    %5083 = vrot.lane.b32.xlu0 %v5073, 116
    %v5084 = vpop.permute.xlu0 %5083
    %5085 = vrot.lane.b32.xlu0 %v5074, 116
    %v5086 = vpop.permute.xlu0 %5085
    %v5091 = vadd.f32 %v5059, %v5080
    %v5092 = vadd.f32 %v5060, %v5082
    %v5093 = vadd.f32 %v5061, %v5084
    %v5094 = vadd.f32 %v5062, %v5086
    %v5095 = vlaneseq
    %v5096 = vshrl.u32 %v5095, 7
    %v5097 = vsub.s32 1, %v5096
    %v5098 = vrot.slane %v4840, %v5097
    %5100 = vrot.lane.b32.xlu0 %v5098, 16
    %v5101 = vpop.permute.xlu0 %5100
    %v5103 = vmul.f32 %v4983, %v5101
    %v5104 = vmul.f32 %v4984, %v5101
    %v5105 = vmul.f32 %v4985, %v5101
    %v5106 = vmul.f32 %v4986, %v5101
    %5111 = vrot.lane.b32.xlu0 %v5103, 112
    %v5112 = vpop.permute.xlu0 %5111
    %5113 = vrot.lane.b32.xlu0 %v5104, 112
    %v5114 = vpop.permute.xlu0 %5113
    %5115 = vrot.lane.b32.xlu0 %v5105, 112
    %v5116 = vpop.permute.xlu0 %5115
    %5117 = vrot.lane.b32.xlu0 %v5106, 112
    %v5118 = vpop.permute.xlu0 %5117
    %v5123 = vadd.f32 %v5091, %v5112
    %v5124 = vadd.f32 %v5092, %v5114
    %v5125 = vadd.f32 %v5093, %v5116
    %v5126 = vadd.f32 %v5094, %v5118
    %v5127 = vld [vmem:[#allocation2 + $0x2] sm:$0xff]
    %v5128 = vld [vmem:[#allocation2 + $0xa] sm:$0xff]
    %v5129 = vld [vmem:[#allocation2 + $0x1a] sm:$0xff]
    %v5130 = vld [vmem:[#allocation2 + $0x22] sm:$0xff]
    %v5131 = vlaneseq
    %v5132 = vshrl.u32 %v5131, 7
    %v5133 = vsub.s32 2, %v5132
    %v5134 = vrot.slane %v4840, %v5133
    %v5135 = vmul.f32 %v5127, %v5134
    %v5136 = vmul.f32 %v5128, %v5134
    %v5137 = vmul.f32 %v5129, %v5134
    %v5138 = vmul.f32 %v5130, %v5134
    %v5139 = vadd.f32 %v5123, %v5135
    %v5140 = vadd.f32 %v5124, %v5136
    %v5141 = vadd.f32 %v5125, %v5137
    %v5142 = vadd.f32 %v5126, %v5138
    %v5143 = vlaneseq
    %v5144 = vshrl.u32 %v5143, 7
    %v5145 = vsub.s32 3, %v5144
    %v5146 = vrot.slane %v4840, %v5145
    %5148 = vrot.lane.b32.xlu0 %v5146, 4
    %v5149 = vpop.permute.xlu0 %5148
    %v5151 = vmul.f32 %v5127, %v5149
    %v5152 = vmul.f32 %v5128, %v5149
    %v5153 = vmul.f32 %v5129, %v5149
    %v5154 = vmul.f32 %v5130, %v5149
    %5159 = vrot.lane.b32.xlu0 %v5151, 124
    %v5160 = vpop.permute.xlu0 %5159
    %5161 = vrot.lane.b32.xlu0 %v5152, 124
    %v5162 = vpop.permute.xlu0 %5161
    %5163 = vrot.lane.b32.xlu0 %v5153, 124
    %v5164 = vpop.permute.xlu0 %5163
    %5165 = vrot.lane.b32.xlu0 %v5154, 124
    %v5166 = vpop.permute.xlu0 %5165
    %v5171 = vadd.f32 %v5139, %v5160
    %v5172 = vadd.f32 %v5140, %v5162
    %v5173 = vadd.f32 %v5141, %v5164
    %v5174 = vadd.f32 %v5142, %v5166
    %v5175 = vlaneseq
    %v5176 = vshrl.u32 %v5175, 7
    %v5177 = vsub.s32 4, %v5176
    %v5178 = vrot.slane %v4840, %v5177
    %5180 = vrot.lane.b32.xlu0 %v5178, 8
    %v5181 = vpop.permute.xlu0 %5180
    %v5183 = vmul.f32 %v5127, %v5181
    %v5184 = vmul.f32 %v5128, %v5181
    %v5185 = vmul.f32 %v5129, %v5181
    %v5186 = vmul.f32 %v5130, %v5181
    %5191 = vrot.lane.b32.xlu0 %v5183, 120
    %v5192 = vpop.permute.xlu0 %5191
    %5193 = vrot.lane.b32.xlu0 %v5184, 120
    %v5194 = vpop.permute.xlu0 %5193
    %5195 = vrot.lane.b32.xlu0 %v5185, 120
    %v5196 = vpop.permute.xlu0 %5195
    %5197 = vrot.lane.b32.xlu0 %v5186, 120
    %v5198 = vpop.permute.xlu0 %5197
    %v5203 = vadd.f32 %v5171, %v5192
    %v5204 = vadd.f32 %v5172, %v5194
    %v5205 = vadd.f32 %v5173, %v5196
    %v5206 = vadd.f32 %v5174, %v5198
    %v5207 = vlaneseq
    %v5208 = vshrl.u32 %v5207, 7
    %v5209 = vsub.s32 5, %v5208
    %v5210 = vrot.slane %v4840, %v5209
    %5212 = vrot.lane.b32.xlu0 %v5210, 12
    %v5213 = vpop.permute.xlu0 %5212
    %v5215 = vmul.f32 %v5127, %v5213
    %v5216 = vmul.f32 %v5128, %v5213
    %v5217 = vmul.f32 %v5129, %v5213
    %v5218 = vmul.f32 %v5130, %v5213
    %5223 = vrot.lane.b32.xlu0 %v5215, 116
    %v5224 = vpop.permute.xlu0 %5223
    %5225 = vrot.lane.b32.xlu0 %v5216, 116
    %v5226 = vpop.permute.xlu0 %5225
    %5227 = vrot.lane.b32.xlu0 %v5217, 116
    %v5228 = vpop.permute.xlu0 %5227
    %5229 = vrot.lane.b32.xlu0 %v5218, 116
    %v5230 = vpop.permute.xlu0 %5229
    %v5235 = vadd.f32 %v5203, %v5224
    %v5236 = vadd.f32 %v5204, %v5226
    %v5237 = vadd.f32 %v5205, %v5228
    %v5238 = vadd.f32 %v5206, %v5230
    %v5239 = vlaneseq
    %v5240 = vshrl.u32 %v5239, 7
    %v5241 = vsub.s32 6, %v5240
    %v5242 = vrot.slane %v4840, %v5241
    %5244 = vrot.lane.b32.xlu0 %v5242, 16
    %v5245 = vpop.permute.xlu0 %5244
    %v5247 = vmul.f32 %v5127, %v5245
    %v5248 = vmul.f32 %v5128, %v5245
    %v5249 = vmul.f32 %v5129, %v5245
    %v5250 = vmul.f32 %v5130, %v5245
    %5255 = vrot.lane.b32.xlu0 %v5247, 112
    %v5256 = vpop.permute.xlu0 %5255
    %5257 = vrot.lane.b32.xlu0 %v5248, 112
    %v5258 = vpop.permute.xlu0 %5257
    %5259 = vrot.lane.b32.xlu0 %v5249, 112
    %v5260 = vpop.permute.xlu0 %5259
    %5261 = vrot.lane.b32.xlu0 %v5250, 112
    %v5262 = vpop.permute.xlu0 %5261
    %v5267 = vadd.f32 %v5235, %v5256
    %v5268 = vadd.f32 %v5236, %v5258
    %v5269 = vadd.f32 %v5237, %v5260
    %v5270 = vadd.f32 %v5238, %v5262
    %v5271 = vld [vmem:[#allocation2 + $0x3] sm:$0xff]
    %v5272 = vld [vmem:[#allocation2 + $0xb] sm:$0xff]
    %v5273 = vld [vmem:[#allocation2 + $0x1b] sm:$0xff]
    %v5274 = vld [vmem:[#allocation2 + $0x23] sm:$0xff]
    %v5275 = vlaneseq
    %v5276 = vshrl.u32 %v5275, 7
    %v5277 = vsub.s32 7, %v5276
    %v5278 = vrot.slane %v4840, %v5277
    %v5279 = vmul.f32 %v5271, %v5278
    %v5280 = vmul.f32 %v5272, %v5278
    %v5281 = vmul.f32 %v5273, %v5278
    %v5282 = vmul.f32 %v5274, %v5278
    %v5283 = vadd.f32 %v5267, %v5279
    %v5284 = vadd.f32 %v5268, %v5280
    %v5285 = vadd.f32 %v5269, %v5281
    %v5286 = vadd.f32 %v5270, %v5282
    %v5287 = vlaneseq
    %v5288 = vshrl.u32 %v5287, 7
    %v5289 = vsub.s32 0, %v5288
    %v5290 = vrot.slane %v4841, %v5289
    %5292 = vrot.lane.b32.xlu0 %v5290, 4
    %v5293 = vpop.permute.xlu0 %5292
    %v5295 = vmul.f32 %v5271, %v5293
    %v5296 = vmul.f32 %v5272, %v5293
    %v5297 = vmul.f32 %v5273, %v5293
    %v5298 = vmul.f32 %v5274, %v5293
    %5303 = vrot.lane.b32.xlu0 %v5295, 124
    %v5304 = vpop.permute.xlu0 %5303
    %5305 = vrot.lane.b32.xlu0 %v5296, 124
    %v5306 = vpop.permute.xlu0 %5305
    %5307 = vrot.lane.b32.xlu0 %v5297, 124
    %v5308 = vpop.permute.xlu0 %5307
    %5309 = vrot.lane.b32.xlu0 %v5298, 124
    %v5310 = vpop.permute.xlu0 %5309
    %v5315 = vadd.f32 %v5283, %v5304
    %v5316 = vadd.f32 %v5284, %v5306
    %v5317 = vadd.f32 %v5285, %v5308
    %v5318 = vadd.f32 %v5286, %v5310
    %v5319 = vlaneseq
    %v5320 = vshrl.u32 %v5319, 7
    %v5321 = vsub.s32 1, %v5320
    %v5322 = vrot.slane %v4841, %v5321
    %5324 = vrot.lane.b32.xlu0 %v5322, 8
    %v5325 = vpop.permute.xlu0 %5324
    %v5327 = vmul.f32 %v5271, %v5325
    %v5328 = vmul.f32 %v5272, %v5325
    %v5329 = vmul.f32 %v5273, %v5325
    %v5330 = vmul.f32 %v5274, %v5325
    %5335 = vrot.lane.b32.xlu0 %v5327, 120
    %v5336 = vpop.permute.xlu0 %5335
    %5337 = vrot.lane.b32.xlu0 %v5328, 120
    %v5338 = vpop.permute.xlu0 %5337
    %5339 = vrot.lane.b32.xlu0 %v5329, 120
    %v5340 = vpop.permute.xlu0 %5339
    %5341 = vrot.lane.b32.xlu0 %v5330, 120
    %v5342 = vpop.permute.xlu0 %5341
    %v5347 = vadd.f32 %v5315, %v5336
    %v5348 = vadd.f32 %v5316, %v5338
    %v5349 = vadd.f32 %v5317, %v5340
    %v5350 = vadd.f32 %v5318, %v5342
    %v5351 = vlaneseq
    %v5352 = vshrl.u32 %v5351, 7
    %v5353 = vsub.s32 2, %v5352
    %v5354 = vrot.slane %v4841, %v5353
    %5356 = vrot.lane.b32.xlu0 %v5354, 12
    %v5357 = vpop.permute.xlu0 %5356
    %v5359 = vmul.f32 %v5271, %v5357
    %v5360 = vmul.f32 %v5272, %v5357
    %v5361 = vmul.f32 %v5273, %v5357
    %v5362 = vmul.f32 %v5274, %v5357
    %5367 = vrot.lane.b32.xlu0 %v5359, 116
    %v5368 = vpop.permute.xlu0 %5367
    %5369 = vrot.lane.b32.xlu0 %v5360, 116
    %v5370 = vpop.permute.xlu0 %5369
    %5371 = vrot.lane.b32.xlu0 %v5361, 116
    %v5372 = vpop.permute.xlu0 %5371
    %5373 = vrot.lane.b32.xlu0 %v5362, 116
    %v5374 = vpop.permute.xlu0 %5373
    %v5379 = vadd.f32 %v5347, %v5368
    %v5380 = vadd.f32 %v5348, %v5370
    %v5381 = vadd.f32 %v5349, %v5372
    %v5382 = vadd.f32 %v5350, %v5374
    %v5383 = vlaneseq
    %v5384 = vshrl.u32 %v5383, 7
    %v5385 = vsub.s32 3, %v5384
    %v5386 = vrot.slane %v4841, %v5385
    %5388 = vrot.lane.b32.xlu0 %v5386, 16
    %v5389 = vpop.permute.xlu0 %5388
    %v5391 = vmul.f32 %v5271, %v5389
    %v5392 = vmul.f32 %v5272, %v5389
    %v5393 = vmul.f32 %v5273, %v5389
    %v5394 = vmul.f32 %v5274, %v5389
    %5399 = vrot.lane.b32.xlu0 %v5391, 112
    %v5400 = vpop.permute.xlu0 %5399
    %5401 = vrot.lane.b32.xlu0 %v5392, 112
    %v5402 = vpop.permute.xlu0 %5401
    %5403 = vrot.lane.b32.xlu0 %v5393, 112
    %v5404 = vpop.permute.xlu0 %5403
    %5405 = vrot.lane.b32.xlu0 %v5394, 112
    %v5406 = vpop.permute.xlu0 %5405
    %v5411 = vadd.f32 %v5379, %v5400
    %v5412 = vadd.f32 %v5380, %v5402
    %v5413 = vadd.f32 %v5381, %v5404
    %v5414 = vadd.f32 %v5382, %v5406
    %v5415 = vld [vmem:[#allocation2 + $0x4] sm:$0xff]
    %v5416 = vld [vmem:[#allocation2 + $0xc] sm:$0xff]
    %v5417 = vld [vmem:[#allocation2 + $0x1c] sm:$0xff]
    %v5418 = vld [vmem:[#allocation2 + $0x24] sm:$0xff]
    %v5419 = vlaneseq
    %v5420 = vshrl.u32 %v5419, 7
    %v5421 = vsub.s32 4, %v5420
    %v5422 = vrot.slane %v4841, %v5421
    %v5423 = vmul.f32 %v5415, %v5422
    %v5424 = vmul.f32 %v5416, %v5422
    %v5425 = vmul.f32 %v5417, %v5422
    %v5426 = vmul.f32 %v5418, %v5422
    %v5427 = vadd.f32 %v5411, %v5423
    %v5428 = vadd.f32 %v5412, %v5424
    %v5429 = vadd.f32 %v5413, %v5425
    %v5430 = vadd.f32 %v5414, %v5426
    %v5431 = vlaneseq
    %v5432 = vshrl.u32 %v5431, 7
    %v5433 = vsub.s32 5, %v5432
    %v5434 = vrot.slane %v4841, %v5433
    %5436 = vrot.lane.b32.xlu0 %v5434, 4
    %v5437 = vpop.permute.xlu0 %5436
    %v5439 = vmul.f32 %v5415, %v5437
    %v5440 = vmul.f32 %v5416, %v5437
    %v5441 = vmul.f32 %v5417, %v5437
    %v5442 = vmul.f32 %v5418, %v5437
    %5447 = vrot.lane.b32.xlu0 %v5439, 124
    %v5448 = vpop.permute.xlu0 %5447
    %5449 = vrot.lane.b32.xlu0 %v5440, 124
    %v5450 = vpop.permute.xlu0 %5449
    %5451 = vrot.lane.b32.xlu0 %v5441, 124
    %v5452 = vpop.permute.xlu0 %5451
    %5453 = vrot.lane.b32.xlu0 %v5442, 124
    %v5454 = vpop.permute.xlu0 %5453
    %v5459 = vadd.f32 %v5427, %v5448
    %v5460 = vadd.f32 %v5428, %v5450
    %v5461 = vadd.f32 %v5429, %v5452
    %v5462 = vadd.f32 %v5430, %v5454
    %v5463 = vlaneseq
    %v5464 = vshrl.u32 %v5463, 7
    %v5465 = vsub.s32 6, %v5464
    %v5466 = vrot.slane %v4841, %v5465
    %5468 = vrot.lane.b32.xlu0 %v5466, 8
    %v5469 = vpop.permute.xlu0 %5468
    %v5471 = vmul.f32 %v5415, %v5469
    %v5472 = vmul.f32 %v5416, %v5469
    %v5473 = vmul.f32 %v5417, %v5469
    %v5474 = vmul.f32 %v5418, %v5469
    %5479 = vrot.lane.b32.xlu0 %v5471, 120
    %v5480 = vpop.permute.xlu0 %5479
    %5481 = vrot.lane.b32.xlu0 %v5472, 120
    %v5482 = vpop.permute.xlu0 %5481
    %5483 = vrot.lane.b32.xlu0 %v5473, 120
    %v5484 = vpop.permute.xlu0 %5483
    %5485 = vrot.lane.b32.xlu0 %v5474, 120
    %v5486 = vpop.permute.xlu0 %5485
    %v5491 = vadd.f32 %v5459, %v5480
    %v5492 = vadd.f32 %v5460, %v5482
    %v5493 = vadd.f32 %v5461, %v5484
    %v5494 = vadd.f32 %v5462, %v5486
    %v5495 = vlaneseq
    %v5496 = vshrl.u32 %v5495, 7
    %v5497 = vsub.s32 7, %v5496
    %v5498 = vrot.slane %v4841, %v5497
    %5500 = vrot.lane.b32.xlu0 %v5498, 12
    %v5501 = vpop.permute.xlu0 %5500
    %v5503 = vmul.f32 %v5415, %v5501
    %v5504 = vmul.f32 %v5416, %v5501
    %v5505 = vmul.f32 %v5417, %v5501
    %v5506 = vmul.f32 %v5418, %v5501
    %5511 = vrot.lane.b32.xlu0 %v5503, 116
    %v5512 = vpop.permute.xlu0 %5511
    %5513 = vrot.lane.b32.xlu0 %v5504, 116
    %v5514 = vpop.permute.xlu0 %5513
    %5515 = vrot.lane.b32.xlu0 %v5505, 116
    %v5516 = vpop.permute.xlu0 %5515
    %5517 = vrot.lane.b32.xlu0 %v5506, 116
    %v5518 = vpop.permute.xlu0 %5517
    %v5523 = vadd.f32 %v5491, %v5512
    %v5524 = vadd.f32 %v5492, %v5514
    %v5525 = vadd.f32 %v5493, %v5516
    %v5526 = vadd.f32 %v5494, %v5518
    %v5527 = vlaneseq
    %v5528 = vshrl.u32 %v5527, 7
    %v5529 = vsub.s32 0, %v5528
    %v5530 = vrot.slane %v4842, %v5529
    %5532 = vrot.lane.b32.xlu0 %v5530, 16
    %v5533 = vpop.permute.xlu0 %5532
    %v5535 = vmul.f32 %v5415, %v5533
    %v5536 = vmul.f32 %v5416, %v5533
    %v5537 = vmul.f32 %v5417, %v5533
    %v5538 = vmul.f32 %v5418, %v5533
    %5543 = vrot.lane.b32.xlu0 %v5535, 112
    %v5544 = vpop.permute.xlu0 %5543
    %5545 = vrot.lane.b32.xlu0 %v5536, 112
    %v5546 = vpop.permute.xlu0 %5545
    %5547 = vrot.lane.b32.xlu0 %v5537, 112
    %v5548 = vpop.permute.xlu0 %5547
    %5549 = vrot.lane.b32.xlu0 %v5538, 112
    %v5550 = vpop.permute.xlu0 %5549
    %v5555 = vadd.f32 %v5523, %v5544
    %v5556 = vadd.f32 %v5524, %v5546
    %v5557 = vadd.f32 %v5525, %v5548
    %v5558 = vadd.f32 %v5526, %v5550
    %v5559 = vld [vmem:[#allocation21] sm:$0xff]
    %v5560 = vld [vmem:[#allocation21 + $0x8] sm:$0xff]
    %v5561 = vld [vmem:[#allocation21 + $0x10] sm:$0xff]
    %v5562 = vld [vmem:[#allocation21 + $0x18] sm:$0xff]
    %v5563 = vld [vmem:[#allocation21 + $0x20] sm:$0xff]
    %v5564 = vld [vmem:[#allocation21 + $0x28] sm:$0xff]
    %v5565 = vld [vmem:[#allocation21 + $0x30] sm:$0xff]
    %v5566 = vld [vmem:[#allocation21 + $0x38] sm:$0xff]
    %v5568 = vsel %vm421, %v5555, 0
    %v5571 = vsel %vm421, %v5556, 0
    %v5574 = vsel %vm421, %v5557, 0
    %v5577 = vsel %vm421, %v5558, 0
    %5579 = vmatprep.subr.mxu0 0.0
    %5580 = vmatpush1.msra.mxu0 %v5559
    %5581 = vmatprep.subr.mxu0 0.0
    %5582 = vmatpush1.msra.mxu0 %v5560
    %5583 = vmatprep.subr.mxu0 0.0
    %5584 = vmatpush1.msra.mxu0 %v5561
    %5585 = vmatprep.subr.mxu0 0.0
    %5586 = vmatpush1.msra.mxu0 %v5562
    %5587 = vmatprep.subr.mxu0 0.0
    %5588 = vmatpush1.msra.mxu0 %v5563
    %5589 = vmatprep.subr.mxu0 0.0
    %5590 = vmatpush1.msra.mxu0 %v5564
    %5591 = vmatprep.subr.mxu0 0.0
    %5592 = vmatpush1.msra.mxu0 %v5565
    %5593 = vmatprep.subr.mxu0 0.0
    %5594 = vmatpush1.msra.mxu0 %v5566
    %5595 = vmatprep.subr.mxu0 0.0
    %5596 = vmatpush1.msra.mxu0 0.0
    %5597 = vmatprep.subr.mxu0 0.0
    %5598 = vmatpush1.msra.mxu0 0.0
    %5599 = vmatprep.subr.mxu0 0.0
    %5600 = vmatpush1.msra.mxu0 0.0
    %5601 = vmatprep.subr.mxu0 0.0
    %5602 = vmatpush1.msra.mxu0 0.0
    %5603 = vmatprep.subr.mxu0 0.0
    %5604 = vmatpush1.msra.mxu0 0.0
    %5605 = vmatprep.subr.mxu0 0.0
    %5606 = vmatpush1.msra.mxu0 0.0
    %5607 = vmatprep.subr.mxu0 0.0
    %5608 = vmatpush1.msra.mxu0 0.0
    %5609 = vmatprep.subr.mxu0 0.0
    %5610 = vmatpush1.msra.mxu0 0.0
    %5611 = vmatprep.subr.mxu0 0.0
    %5612 = vmatpush1.msra.mxu0 0.0
    %5613 = vmatprep.subr.mxu0 0.0
    %5614 = vmatpush1.msra.mxu0 0.0
    %5615 = vmatprep.subr.mxu0 0.0
    %5616 = vmatpush1.msra.mxu0 0.0
    %5617 = vmatprep.subr.mxu0 0.0
    %5618 = vmatpush1.msra.mxu0 0.0
    %5619 = vmatprep.subr.mxu0 0.0
    %5620 = vmatpush1.msra.mxu0 0.0
    %5621 = vmatprep.subr.mxu0 0.0
    %5622 = vmatpush1.msra.mxu0 0.0
    %5623 = vmatprep.subr.mxu0 0.0
    %5624 = vmatpush1.msra.mxu0 0.0
    %5625 = vmatprep.subr.mxu0 0.0
    %5626 = vmatpush1.msra.mxu0 0.0
    %5627 = vmatprep.subr.mxu0 0.0
    %5628 = vmatpush1.msra.mxu0 0.0
    %5629 = vmatprep.subr.mxu0 0.0
    %5630 = vmatpush1.msra.mxu0 0.0
    %5631 = vmatprep.subr.mxu0 0.0
    %5632 = vmatpush1.msra.mxu0 0.0
    %5633 = vmatprep.subr.mxu0 0.0
    %5634 = vmatpush1.msra.mxu0 0.0
    %5635 = vmatprep.subr.mxu0 0.0
    %5636 = vmatpush1.msra.mxu0 0.0
    %5637 = vmatprep.subr.mxu0 0.0
    %5638 = vmatpush1.msra.mxu0 0.0
    %5639 = vmatprep.subr.mxu0 0.0
    %5640 = vmatpush1.msra.mxu0 0.0
    %5641 = vmatprep.subr.mxu0 0.0
    %5642 = vmatpush1.msra.mxu0 0.0
    %5643 = vmatprep.mubr.f32.mxu0 0.0
    %5644 = vmatmul.mubr.f32.gmra.mrb[0].mxu0 %v5568
    %v5645 = vpop.f32.mrb[0].mxu0
    %v5646 = vadd.f32 0.0, %v5645
    %v5647 = vpop.f32.mrb[0].mxu0
    %5648 = vmatprep.mubr.f32.mxu0 0.0
    %5649 = vmatmul.mubr.f32.gmra.mrb[0].mxu0 %v5571
    %v5650 = vpop.f32.mrb[0].mxu0
    %v5651 = vadd.f32 0.0, %v5650
    %v5652 = vpop.f32.mrb[0].mxu0
    %5653 = vmatprep.mubr.f32.mxu0 0.0
    %5654 = vmatmul.mubr.f32.gmra.mrb[0].mxu0 %v5574
    %v5655 = vpop.f32.mrb[0].mxu0
    %v5656 = vadd.f32 0.0, %v5655
    %v5657 = vpop.f32.mrb[0].mxu0
    %5658 = vmatprep.mubr.f32.mxu0 0.0
    %5659 = vmatmul.mubr.f32.gmra.mrb[0].mxu0 %v5577
    %v5660 = vpop.f32.mrb[0].mxu0
    %v5661 = vadd.f32 0.0, %v5660
    %v5662 = vpop.f32.mrb[0].mxu0
    %5663 = vdwg.mxu0
    %v5664 = vsel %vm421, %v5646, 0.0
    %v5665 = vsel %vm421, %v5651, 0.0
    %v5666 = vadd.f32 %v5664, %v5665
    %v5667 = vsel %vm421, %v5656, 0.0
    %v5668 = vadd.f32 %v5666, %v5667
    %v5669 = vsel %vm421, %v5661, 0.0
    %v5670 = vadd.f32 %v5668, %v5669
    %v5672 = vsel %vm421, %v5670, 0
    %5674 = vmatprep.subr.mxu0 0.0
    %5675 = vmatpush1.msra.mxu0 %v261
    %5676 = vmatprep.subr.mxu0 0.0
    %5677 = vmatpush1.msra.mxu0 %v262
    %5678 = vmatprep.subr.mxu0 0.0
    %5679 = vmatpush1.msra.mxu0 %v263
    %5680 = vmatprep.subr.mxu0 0.0
    %5681 = vmatpush1.msra.mxu0 %v264
    %5682 = vmatprep.subr.mxu0 0.0
    %5683 = vmatpush1.msra.mxu0 %v265
    %5684 = vmatprep.subr.mxu0 0.0
    %5685 = vmatpush1.msra.mxu0 %v266
    %5686 = vmatprep.subr.mxu0 0.0
    %5687 = vmatpush1.msra.mxu0 %v267
    %5688 = vmatprep.subr.mxu0 0.0
    %5689 = vmatpush1.msra.mxu0 %v268
    %5690 = vmatprep.subr.mxu0 0.0
    %5691 = vmatpush1.msra.mxu0 0.0
    %5692 = vmatprep.subr.mxu0 0.0
    %5693 = vmatpush1.msra.mxu0 0.0
    %5694 = vmatprep.subr.mxu0 0.0
    %5695 = vmatpush1.msra.mxu0 0.0
    %5696 = vmatprep.subr.mxu0 0.0
    %5697 = vmatpush1.msra.mxu0 0.0
    %5698 = vmatprep.subr.mxu0 0.0
    %5699 = vmatpush1.msra.mxu0 0.0
    %5700 = vmatprep.subr.mxu0 0.0
    %5701 = vmatpush1.msra.mxu0 0.0
    %5702 = vmatprep.subr.mxu0 0.0
    %5703 = vmatpush1.msra.mxu0 0.0
    %5704 = vmatprep.subr.mxu0 0.0
    %5705 = vmatpush1.msra.mxu0 0.0
    %5706 = vmatprep.subr.mxu0 0.0
    %5707 = vmatpush1.msra.mxu0 0.0
    %5708 = vmatprep.subr.mxu0 0.0
    %5709 = vmatpush1.msra.mxu0 0.0
    %5710 = vmatprep.subr.mxu0 0.0
    %5711 = vmatpush1.msra.mxu0 0.0
    %5712 = vmatprep.subr.mxu0 0.0
    %5713 = vmatpush1.msra.mxu0 0.0
    %5714 = vmatprep.subr.mxu0 0.0
    %5715 = vmatpush1.msra.mxu0 0.0
    %5716 = vmatprep.subr.mxu0 0.0
    %5717 = vmatpush1.msra.mxu0 0.0
    %5718 = vmatprep.subr.mxu0 0.0
    %5719 = vmatpush1.msra.mxu0 0.0
    %5720 = vmatprep.subr.mxu0 0.0
    %5721 = vmatpush1.msra.mxu0 0.0
    %5722 = vmatprep.subr.mxu0 0.0
    %5723 = vmatpush1.msra.mxu0 0.0
    %5724 = vmatprep.subr.mxu0 0.0
    %5725 = vmatpush1.msra.mxu0 0.0
    %5726 = vmatprep.subr.mxu0 0.0
    %5727 = vmatpush1.msra.mxu0 0.0
    %5728 = vmatprep.subr.mxu0 0.0
    %5729 = vmatpush1.msra.mxu0 0.0
    %5730 = vmatprep.subr.mxu0 0.0
    %5731 = vmatpush1.msra.mxu0 0.0
    %5732 = vmatprep.subr.mxu0 0.0
    %5733 = vmatpush1.msra.mxu0 0.0
    %5734 = vmatprep.subr.mxu0 0.0
    %5735 = vmatpush1.msra.mxu0 0.0
    %5736 = vmatprep.subr.mxu0 0.0
    %5737 = vmatpush1.msra.mxu0 0.0
    %5738 = vmatprep.mubr.f32.mxu0 0.0
    %5739 = vmatmul.mubr.f32.gmra.mrb[0].mxu0 %v5672
    %v5740 = vpop.f32.mrb[0].mxu0
    %v5741 = vadd.f32 0.0, %v5740
    %v5742 = vpop.f32.mrb[0].mxu0
    %5743 = vdwg.mxu0
    %v5744 = vsel %vm421, %v5741, 0.0
    %v5745 = vrot.slane %v5744, 4
    %v5746 = vadd.f32 %v5744, %v5745
    %v5747 = vrot.slane %v5746, 2
    %v5748 = vadd.f32 %v5746, %v5747
    %v5749 = vrot.slane %v5748, 1
    %v5750 = vadd.f32 %v5748, %v5749
    %v5751 = vsub.f32 %v5646, %v5750
    %v5752 = vsub.f32 %v5651, %v5750
    %v5753 = vsub.f32 %v5656, %v5750
    %v5754 = vsub.f32 %v5661, %v5750
    %v5755 = vmul.f32 %v5751, %v5751
    %v5756 = vmul.f32 %v5752, %v5752
    %v5757 = vmul.f32 %v5753, %v5753
    %v5758 = vmul.f32 %v5754, %v5754
    %v5759 = vsel %vm421, %v5755, 0.0
    %v5760 = vsel %vm421, %v5756, 0.0
    %v5761 = vadd.f32 %v5759, %v5760
    %v5762 = vsel %vm421, %v5757, 0.0
    %v5763 = vadd.f32 %v5761, %v5762
    %v5764 = vsel %vm421, %v5758, 0.0
    %v5765 = vadd.f32 %v5763, %v5764
    %v5767 = vsel %vm421, %v5765, 0
    %5769 = vmatprep.subr.mxu0 0.0
    %5770 = vmatpush1.msra.mxu0 %v261
    %5771 = vmatprep.subr.mxu0 0.0
    %5772 = vmatpush1.msra.mxu0 %v262
    %5773 = vmatprep.subr.mxu0 0.0
    %5774 = vmatpush1.msra.mxu0 %v263
    %5775 = vmatprep.subr.mxu0 0.0
    %5776 = vmatpush1.msra.mxu0 %v264
    %5777 = vmatprep.subr.mxu0 0.0
    %5778 = vmatpush1.msra.mxu0 %v265
    %5779 = vmatprep.subr.mxu0 0.0
    %5780 = vmatpush1.msra.mxu0 %v266
    %5781 = vmatprep.subr.mxu0 0.0
    %5782 = vmatpush1.msra.mxu0 %v267
    %5783 = vmatprep.subr.mxu0 0.0
    %5784 = vmatpush1.msra.mxu0 %v268
    %5785 = vmatprep.subr.mxu0 0.0
    %5786 = vmatpush1.msra.mxu0 0.0
    %5787 = vmatprep.subr.mxu0 0.0
    %5788 = vmatpush1.msra.mxu0 0.0
    %5789 = vmatprep.subr.mxu0 0.0
    %5790 = vmatpush1.msra.mxu0 0.0
    %5791 = vmatprep.subr.mxu0 0.0
    %5792 = vmatpush1.msra.mxu0 0.0
    %5793 = vmatprep.subr.mxu0 0.0
    %5794 = vmatpush1.msra.mxu0 0.0
    %5795 = vmatprep.subr.mxu0 0.0
    %5796 = vmatpush1.msra.mxu0 0.0
    %5797 = vmatprep.subr.mxu0 0.0
    %5798 = vmatpush1.msra.mxu0 0.0
    %5799 = vmatprep.subr.mxu0 0.0
    %5800 = vmatpush1.msra.mxu0 0.0
    %5801 = vmatprep.subr.mxu0 0.0
    %5802 = vmatpush1.msra.mxu0 0.0
    %5803 = vmatprep.subr.mxu0 0.0
    %5804 = vmatpush1.msra.mxu0 0.0
    %5805 = vmatprep.subr.mxu0 0.0
    %5806 = vmatpush1.msra.mxu0 0.0
    %5807 = vmatprep.subr.mxu0 0.0
    %5808 = vmatpush1.msra.mxu0 0.0
    %5809 = vmatprep.subr.mxu0 0.0
    %5810 = vmatpush1.msra.mxu0 0.0
    %5811 = vmatprep.subr.mxu0 0.0
    %5812 = vmatpush1.msra.mxu0 0.0
    %5813 = vmatprep.subr.mxu0 0.0
    %5814 = vmatpush1.msra.mxu0 0.0
    %5815 = vmatprep.subr.mxu0 0.0
    %5816 = vmatpush1.msra.mxu0 0.0
    %5817 = vmatprep.subr.mxu0 0.0
    %5818 = vmatpush1.msra.mxu0 0.0
    %5819 = vmatprep.subr.mxu0 0.0
    %5820 = vmatpush1.msra.mxu0 0.0
    %5821 = vmatprep.subr.mxu0 0.0
    %5822 = vmatpush1.msra.mxu0 0.0
    %5823 = vmatprep.subr.mxu0 0.0
    %5824 = vmatpush1.msra.mxu0 0.0
    %5825 = vmatprep.subr.mxu0 0.0
    %5826 = vmatpush1.msra.mxu0 0.0
    %5827 = vmatprep.subr.mxu0 0.0
    %5828 = vmatpush1.msra.mxu0 0.0
    %5829 = vmatprep.subr.mxu0 0.0
    %5830 = vmatpush1.msra.mxu0 0.0
    %5831 = vmatprep.subr.mxu0 0.0
    %5832 = vmatpush1.msra.mxu0 0.0
    %5833 = vmatprep.mubr.f32.mxu0 0.0
    %5834 = vmatmul.mubr.f32.gmra.mrb[0].mxu0 %v5767
    %v5835 = vpop.f32.mrb[0].mxu0
    %v5836 = vadd.f32 0.0, %v5835
    %v5837 = vpop.f32.mrb[0].mxu0
    %5838 = vdwg.mxu0
    %v5839 = vsel %vm421, %v5836, 0.0
    %v5840 = vrot.slane %v5839, 4
    %v5841 = vadd.f32 %v5839, %v5840
    %v5842 = vrot.slane %v5841, 2
    %v5843 = vadd.f32 %v5841, %v5842
    %v5844 = vrot.slane %v5843, 1
    %v5845 = vadd.f32 %v5843, %v5844
    %v5846 = vadd.f32 %v5845, 1e-05
    %v5847 = vrsqrt.pop %v5846
    %v5848 = vmul.f32 %v5751, %v5847
    %v5849 = vmul.f32 %v5752, %v5847
    %v5850 = vmul.f32 %v5753, %v5847
    %v5851 = vmul.f32 %v5754, %v5847
    %s5852 = sld [smem:[#allocation8 + $0x5]]
    %v5853 = vstv %s5852
    %v5854 = vmul.f32 %v5853, %v5848
    %v5855 = vmul.f32 %v5853, %v5849
    %v5856 = vmul.f32 %v5853, %v5850
    %v5857 = vmul.f32 %v5853, %v5851
    %5862 = vrot.lane.b32.xlu0 %v5854, 4
    %v5863 = vpop.permute.xlu0 %5862
    %5864 = vrot.lane.b32.xlu0 %v5855, 4
    %v5865 = vpop.permute.xlu0 %5864
    %5866 = vrot.lane.b32.xlu0 %v5856, 4
    %v5867 = vpop.permute.xlu0 %5866
    %5868 = vrot.lane.b32.xlu0 %v5857, 4
    %v5869 = vpop.permute.xlu0 %5868
    %v5874 = vadd.f32 %v3770, %v5863
    %v5875 = vadd.f32 %v3771, %v5865
    %v5876 = vadd.f32 %v3772, %v5867
    %v5877 = vadd.f32 %v3773, %v5869
    %5882 = vrot.lane.b32.xlu0 %v5874, 124
    %v5883 = vpop.permute.xlu0 %5882
    %5884 = vrot.lane.b32.xlu0 %v5875, 124
    %v5885 = vpop.permute.xlu0 %5884
    %5886 = vrot.lane.b32.xlu0 %v5876, 124
    %v5887 = vpop.permute.xlu0 %5886
    %5888 = vrot.lane.b32.xlu0 %v5877, 124
    %v5889 = vpop.permute.xlu0 %5888
    %5894 = vst.msk [vmem:[#allocation29] sm:$0xff] %vm421, %v5883
    %5895 = vst.msk [vmem:[#allocation29 + $0x8] sm:$0xff] %vm421, %v5885
    %5896 = vst.msk [vmem:[#allocation29 + $0x10] sm:$0xff] %vm421, %v5887
    %5897 = vst.msk [vmem:[#allocation29 + $0x18] sm:$0xff] %vm421, %v5889
    // Predicated region
    $region126: #{tpu_custom_call.1} parent=1 // pred_check
      _
    $region127: #{tpu_custom_call.1} parent=1 // pred_check_branch
      %5899 = sbr.rel (0) target = $region129
    $region128: #{tpu_custom_call.1} parent=1 // pred_region
      %s5901 = ssub.s32 512, 512
      %5902 = vsyncadd [#allocation6], %s5901
      %s5903 = sshll.u32 [#allocation29], 4
      %s5904 = int_to_ptr.vmem [resolvable:$true] %s5903
      %5909 = dma.vmem_to_hbm [thread:$0]  %s5904, 512, %s16, [#allocation6], 128, 128, 8
    $region129: #{tpu_custom_call.1} parent=1 // pred_fallthru
      _
    // Predicated region
    $region130: #{tpu_custom_call.1} parent=1 // pred_check
      _
    $region131: #{tpu_custom_call.1} parent=1 // pred_check_branch
      %5911 = sbr.rel (0) target = $region133
    $region132: #{tpu_custom_call.1} parent=1 // pred_region
      %5912 = dma.done [#allocation6], 512
    $region133: #{tpu_custom_call.1} parent=1 // pred_fallthru
      _
    %5913 = vsyncpa [#allocation5], 1
    %5914 = vsyncpa [#allocation10], 1
    %5915 = vsyncpa [#allocation13], 1
    %5916 = vsyncpa [#allocation16], 1
    %5917 = vsyncpa [#allocation19], 1
    %5918 = vsyncpa [#allocation22], 1
    %5919 = vsyncpa [#allocation25], 1
    %5920 = vsyncpa [#allocation28], 1
    %5921 = vsyncpa [#allocation6], 1
    %5922 = vsyncpa [#allocation7], 1

</llo_original>
